<compile_context>
chip_gen: v7x
topology: tpu7x:2x2x1
jax: 0.10.0
libtpu: 0.0.40
codegen_flags: <defaults>
</compile_context>

<pallas_src>
import functools

import numpy as np
import jax
import jax.numpy as jnp
from jax import lax
from jax.experimental import pallas as pl
from jax.experimental.pallas import tpu as pltpu


def _full_spec(shape):
    # Whole-array block resident in VMEM (block == full array dims, so the
    # (8,128) divisibility rule does not apply).
    shape = tuple(shape)
    return pl.BlockSpec(shape, lambda i: (0,) * len(shape))


# ------------------------------ fused kernel -------------------------------- #

def _encoder_kernel(x_ref, w1_ref, b1_ref, w2_ref, b2_ref, w3_ref, b3_ref,
                    mask_ref, wfc_hbm, bfc_ref,
                    zm_ref, zl_ref,
                    s0_ref, s1_ref, s2_ref, a3_ref, xflat_ref, wfc_vmem,
                    dma_sem,
                    *, B, H, W, P, guard, latent_dim, n_chunks, chunk_k):
    BP = B * P
    c3_fat = a3_ref.shape[1]          # = W * 128
    L2 = 2 * latent_dim

    # 0) Kick off the FC-weight HBM->VMEM fetch; it overlaps all of the conv
    #    compute below and is only waited on right before the FC matmuls.
    wfc_copy = pltpu.make_async_copy(wfc_hbm, wfc_vmem, dma_sem)
    wfc_copy.start()

    # 1) Build the zero-padded "fat" input slab from the raw NCHW input.
    #    Slab layout: rows = guard | (b, local row j) | guard, lanes = w*C + c.
    s0_ref[...] = jnp.zeros_like(s0_ref)
    s1_ref[...] = jnp.zeros_like(s1_ref)
    s2_ref[...] = jnp.zeros_like(s2_ref)
    for b in range(B):
        s0_ref[pl.ds(guard + b * P + 1, H), pl.ds(0, W)] = x_ref[b, 0]

    mask = mask_ref[...]      # [BP, 1] f32: 1 on data rows, 0 on pad rows

    def conv_layer(src_ref, w_ref, b_ref):
        # One full-slab matmul per kernel row (dh), accumulated in f32.
        acc = None
        for dh in range(3):
            a = src_ref[pl.ds(guard - 1 + dh, BP), :].astype(jnp.bfloat16)
            t = jnp.dot(a, w_ref[dh], preferred_element_type=jnp.float32)
            acc = t if acc is None else acc + t
        return jnp.maximum(acc + b_ref[...], 0.0)

    # conv1 / conv2 (+bias+ReLU): the mask re-zeroes the height-padding rows
    # (which would otherwise become ReLU(bias)) before they feed the next layer.
    s1_ref[pl.ds(guard, BP), :] = conv_layer(s0_ref, w1_ref, b1_ref) * mask
    s2_ref[pl.ds(guard, BP), :] = conv_layer(s1_ref, w2_ref, b2_ref) * mask
    # conv3: padding rows are never read downstream, no mask needed.
    a3_ref[...] = conv_layer(s2_ref, w3_ref, b3_ref)

    # 2) Relayout for the FC heads: rows (b, h) with (w, c) lanes
    #    -> x_flat[b, h*c3_fat + lane]  (matches torch's x.view(B, -1) after the
    #    FC-weight permutation done in prepare_params).
    for b in range(B):
        base = b * P + 1
        for j in range(H):
            xflat_ref[pl.ds(b, 1), pl.ds(j * c3_fat, c3_fat)] = \
                a3_ref[pl.ds(base + j, 1), :]

    # 3) Fused FC heads: z = x_flat @ Wfc + bfc.  Wfc is stored as a lane-dense
    #    [chunk_k, n_chunks*2L] slab; chunk c of the slab holds columns for the
    #    K-range [c*chunk_k, (c+1)*chunk_k), so we accumulate n_chunks dots and
    #    pick the matching 2L-wide lane block of each result.
    wfc_copy.wait()
    wfc = wfc_vmem[...]
    z = jnp.zeros((B, L2), jnp.float32)
    for c in range(n_chunks):
        xc = xflat_ref[:, pl.ds(c * chunk_k, chunk_k)].astype(jnp.bfloat16)
        yc = jnp.dot(xc, wfc, preferred_element_type=jnp.float32)   # [B, n_chunks*L2]
        z = z + yc[:, c * L2:(c + 1) * L2]
    z = z + bfc_ref[...]
    zm_ref[...] = z[:, :latent_dim]
    zl_ref[...] = z[:, latent_dim:]


# ------------------- one-time weight preparation (outside jit) -------------- #

def prepare_params(params, *, H=50, W=2):
    """Rearrange PyTorch-layout weights into kernel-ready layouts once."""

    def fat_conv_weight(k_oihw, pad_cin_fat_to=None):
        # K[co, ci, kh, kw] -> per-kh "fat" matrix Wf[kh] of shape
        # [W*Cin, W*Cout]: Wf[kh][wi*Cin+ci, wo*Cout+co] = K[co, ci, kh, wi-wo+1]
        # (taps that fall on the width padding are dropped -> zero).
        kt = jnp.transpose(k_oihw, (2, 3, 1, 0))          # [3, 3, Cin, Cout]
        mats = []
        for kh in range(3):
            top = jnp.concatenate([kt[kh, 1], kt[kh, 0]], axis=1)   # wi = 0
            bot = jnp.concatenate([kt[kh, 2], kt[kh, 1]], axis=1)   # wi = 1
            mats.append(jnp.concatenate([top, bot], axis=0))        # [2Cin, 2Cout]
        w = jnp.stack(mats, axis=0)                        # [3, 2Cin, 2Cout]
        if pad_cin_fat_to is not None and w.shape[1] < pad_cin_fat_to:
            w = jnp.pad(w, ((0, 0), (0, pad_cin_fat_to - w.shape[1]), (0, 0)))
        return w.astype(jnp.bfloat16)

    def fat_bias(b):
        return jnp.concatenate([b, b]).reshape(1, -1).astype(jnp.float32)

    c3 = params["w3"].shape[0]
    latent = params["wm"].shape[0]
    L2 = 2 * latent
    K_fc = c3 * H * W

    def fc_weight(w):
        # torch Linear weight [N, C3*H*W] (flatten index c*H*W + h*W + w)
        # -> [H*W*C3, N] with rows ordered (h, w, c) to match the conv kernel's
        #    activation layout (lane = w*C3 + c).
        n = w.shape[0]
        w4 = w.reshape(n, c3, H, W)
        return jnp.transpose(w4, (2, 3, 1, 0)).reshape(K_fc, n)

    wfc = jnp.concatenate([fc_weight(params["wm"]), fc_weight(params["wl"])],
                          axis=1)                          # [K_fc, 2L] f32

    # Pack into a lane-dense slab [K_fc//n_chunks, n_chunks*2L] so the HBM
    # array, the DMA and the VMEM buffer all stay dense (no 32->128 lane pad).
    if L2 <= 128 and 128 % L2 == 0 and K_fc % (128 // L2) == 0:
        n_chunks = 128 // L2
    else:
        n_chunks = 1
    chunk_k = K_fc // n_chunks
    wfc_slab = (wfc.reshape(n_chunks, chunk_k, L2)
                   .transpose(1, 0, 2)
                   .reshape(chunk_k, n_chunks * L2)
                   .astype(jnp.bfloat16))

    bfc = jnp.concatenate([params["bm"], params["bl"]]).reshape(1, -1)

    return {
        "w1": fat_conv_weight(params["w1"], pad_cin_fat_to=8),
        "b1": fat_bias(params["b1"]),
        "w2": fat_conv_weight(params["w2"]),
        "b2": fat_bias(params["b2"]),
        "w3": fat_conv_weight(params["w3"]),
        "b3": fat_bias(params["b3"]),
        "wfc": wfc_slab,
        "bfc": bfc.astype(jnp.float32),
    }


# ------------------------------- forward pass ------------------------------- #

def encoder_forward(pp, x_nchw):
    B, cin, H, W = x_nchw.shape
    assert cin == 1
    P = ((H + 2 + 7) // 8) * 8          # 8-aligned per-batch row stride (56)
    guard = 8
    slab = B * P + 2 * guard

    cin_fat = pp["w1"].shape[1]
    c1_fat = pp["w1"].shape[2]
    c2_fat = pp["w2"].shape[2]
    c3_fat = pp["w3"].shape[2]
    L2 = pp["bfc"].shape[1]
    latent_dim = L2 // 2
    chunk_k, slab_n = pp["wfc"].shape
    n_chunks = slab_n // L2
    assert n_chunks * chunk_k == H * c3_fat

    # Row mask (trace-time constant): 1 on data rows, 0 on height-pad rows.
    mask_np = np.zeros((B * P, 1), np.float32)
    for b in range(B):
        mask_np[b * P + 1: b * P + 1 + H, 0] = 1.0
    mask = jnp.asarray(mask_np)

    kernel = functools.partial(
        _encoder_kernel, B=B, H=H, W=W, P=P, guard=guard,
        latent_dim=latent_dim, n_chunks=n_chunks, chunk_k=chunk_k)

    zm, zl = pl.pallas_call(
        kernel,
        out_shape=(jax.ShapeDtypeStruct((B, latent_dim), jnp.float32),
                   jax.ShapeDtypeStruct((B, latent_dim), jnp.float32)),
        grid=(1,),
        in_specs=[
            _full_spec(x_nchw.shape),
            _full_spec(pp["w1"].shape), _full_spec(pp["b1"].shape),
            _full_spec(pp["w2"].shape), _full_spec(pp["b2"].shape),
            _full_spec(pp["w3"].shape), _full_spec(pp["b3"].shape),
            _full_spec(mask.shape),
            pl.BlockSpec(memory_space=pl.ANY),     # FC weight stays in HBM
            _full_spec(pp["bfc"].shape),
        ],
        out_specs=(_full_spec((B, latent_dim)), _full_spec((B, latent_dim))),
        scratch_shapes=[
            pltpu.VMEM((slab, cin_fat), jnp.float32),     # input slab
            pltpu.VMEM((slab, c1_fat), jnp.float32),      # conv1 activations
            pltpu.VMEM((slab, c2_fat), jnp.float32),      # conv2 activations
            pltpu.VMEM((B * P, c3_fat), jnp.float32),     # conv3 activations
            pltpu.VMEM((B, H * c3_fat), jnp.float32),     # flattened features
            pltpu.VMEM(pp["wfc"].shape, jnp.bfloat16),    # FC weight landing buf
            pltpu.SemaphoreType.DMA,
        ],
        compiler_params=pltpu.CompilerParams(
            dimension_semantics=("arbitrary",)),
    )(x_nchw, pp["w1"], pp["b1"], pp["w2"], pp["b2"], pp["w3"], pp["b3"],
      mask, pp["wfc"], pp["bfc"])
    return zm, zl


# ------------------------- pure-JAX reference (check) ----------------------- #

def reference_forward(params, x):
    def conv(h, w, b):
        y = lax.conv_general_dilated(h, w, (1, 1), ((1, 1), (1, 1)),
                                     dimension_numbers=("NCHW", "OIHW", "NCHW"),
                                     precision=lax.Precision.HIGHEST)
        return jax.nn.relu(y + b[None, :, None, None])

    h = conv(x, params["w1"], params["b1"])
    h = conv(h, params["w2"], params["b2"])
    h = conv(h, params["w3"], params["b3"])
    hf = h.reshape(h.shape[0], -1)
    zm = jnp.matmul(hf, params["wm"].T, precision=lax.Precision.HIGHEST) + params["bm"]
    zl = jnp.matmul(hf, params["wl"].T, precision=lax.Precision.HIGHEST) + params["bl"]
    return zm, zl


# ----------------------------------- main ----------------------------------- #

if __name__ == "__main__":
    latent_dim = 16          # args.latent_dim
    B, H, W = 2, 50, 2       # implied by fc1_mean: 128 * 50 * 2 input features

    key = jax.random.PRNGKey(0)
    ks = jax.random.split(key, 11)
    scale = 0.05
    params = {
        "w1": scale * jax.random.normal(ks[0], (32, 1, 3, 3), jnp.float32),
        "b1": scale * jax.random.normal(ks[1], (32,), jnp.float32),
        "w2": scale * jax.random.normal(ks[2], (64, 32, 3, 3), jnp.float32),
        "b2": scale * jax.random.normal(ks[3], (64,), jnp.float32),
        "w3": scale * jax.random.normal(ks[4], (128, 64, 3, 3), jnp.float32),
        "b3": scale * jax.random.normal(ks[5], (128,), jnp.float32),
        # nn.Linear weights are [out_features, in_features]
        "wm": scale * jax.random.normal(ks[6], (latent_dim, 128 * H * W), jnp.float32),
        "bm": scale * jax.random.normal(ks[7], (latent_dim,), jnp.float32),
        "wl": scale * jax.random.normal(ks[8], (latent_dim, 128 * H * W), jnp.float32),
        "bl": scale * jax.random.normal(ks[9], (latent_dim,), jnp.float32),
    }
    x = jax.random.normal(ks[10], (B, 1, H, W), jnp.float32)   # NCHW input

    pp = prepare_params(params)          # one-time weight rearrangement (outside jit)
    fwd = jax.jit(encoder_forward)
    z_mean, z_logvar = fwd(pp, x)
    jax.block_until_ready((z_mean, z_logvar))

    assert z_mean.shape == (B, latent_dim) and z_logvar.shape == (B, latent_dim)
    assert z_mean.dtype == jnp.float32 and z_logvar.dtype == jnp.float32

    zm_ref, zl_ref = reference_forward(params, x)
    assert bool(jnp.allclose(z_mean, zm_ref, rtol=2e-2, atol=2e-2))
    assert bool(jnp.allclose(z_logvar, zl_ref, rtol=2e-2, atol=2e-2))

    print("KERNEL_OK")
</pallas_src>

<mosaic_0001>
module attributes {stable_mosaic.version = 11 : i64} {
  func.func @_encoder_kernel(%arg0: i32, %arg1: memref<2x1x50x2xf32, #tpu.memory_space<vmem>>, %arg2: memref<3x8x64xbf16, #tpu.memory_space<vmem>>, %arg3: memref<1x64xf32, #tpu.memory_space<vmem>>, %arg4: memref<3x64x128xbf16, #tpu.memory_space<vmem>>, %arg5: memref<1x128xf32, #tpu.memory_space<vmem>>, %arg6: memref<3x128x256xbf16, #tpu.memory_space<vmem>>, %arg7: memref<1x256xf32, #tpu.memory_space<vmem>>, %arg8: memref<112x1xf32, #tpu.memory_space<vmem>>, %arg9: memref<3200x128xbf16, #tpu.memory_space<any>>, %arg10: memref<1x32xf32, #tpu.memory_space<vmem>>, %arg11: memref<2x16xf32, #tpu.memory_space<vmem>>, %arg12: memref<2x16xf32, #tpu.memory_space<vmem>>, %arg13: memref<128x8xf32, #tpu.memory_space<vmem>>, %arg14: memref<128x64xf32, #tpu.memory_space<vmem>>, %arg15: memref<128x128xf32, #tpu.memory_space<vmem>>, %arg16: memref<112x256xf32, #tpu.memory_space<vmem>>, %arg17: memref<2x12800xf32, #tpu.memory_space<vmem>>, %arg18: memref<3200x128xbf16, #tpu.memory_space<vmem>>, %arg19: memref<!tpu.dma_semaphore, #tpu.memory_space<semaphore_mem>>) attributes {dimension_semantics = [#tpu.dimension_semantics<arbitrary>], iteration_bounds = array<i64: 1>, scalar_prefetch = 0 : i64, scratch_operands = 7 : i64, tpu.core_type = #tpu.core_type<tc>, window_params = [{pipeline_mode = #tpu.pipeline_mode<synchronous>, transform_indices = @transform_0, window_bounds = array<i64: 2, 1, 50, 2>}, {pipeline_mode = #tpu.pipeline_mode<synchronous>, transform_indices = @transform_1, window_bounds = array<i64: 3, 8, 64>}, {pipeline_mode = #tpu.pipeline_mode<synchronous>, transform_indices = @transform_2, window_bounds = array<i64: 1, 64>}, {pipeline_mode = #tpu.pipeline_mode<synchronous>, transform_indices = @transform_3, window_bounds = array<i64: 3, 64, 128>}, {pipeline_mode = #tpu.pipeline_mode<synchronous>, transform_indices = @transform_4, window_bounds = array<i64: 1, 128>}, {pipeline_mode = #tpu.pipeline_mode<synchronous>, transform_indices = @transform_5, window_bounds = array<i64: 3, 128, 256>}, {pipeline_mode = #tpu.pipeline_mode<synchronous>, transform_indices = @transform_6, window_bounds = array<i64: 1, 256>}, {pipeline_mode = #tpu.pipeline_mode<synchronous>, transform_indices = @transform_7, window_bounds = array<i64: 112, 1>}, {}, {pipeline_mode = #tpu.pipeline_mode<synchronous>, transform_indices = @transform_9, window_bounds = array<i64: 1, 32>}, {pipeline_mode = #tpu.pipeline_mode<synchronous>, transform_indices = @transform_10, window_bounds = array<i64: 2, 16>}, {pipeline_mode = #tpu.pipeline_mode<synchronous>, transform_indices = @transform_11, window_bounds = array<i64: 2, 16>}]} {
    tpu.enqueue_dma source(%arg9 : memref<3200x128xbf16, #tpu.memory_space<any>>) target(%arg18 : memref<3200x128xbf16, #tpu.memory_space<vmem>>) target_semaphore(%arg19 : memref<!tpu.dma_semaphore, #tpu.memory_space<semaphore_mem>>)
    %cst = arith.constant 0.000000e+00 : f32
    %0 = vector.broadcast %cst : f32 to vector<128x8xf32>
    %c0 = arith.constant 0 : index
    %c0_0 = arith.constant 0 : index
    %1 = vector.load %arg13[%c0, %c0_0] : memref<128x8xf32, #tpu.memory_space<vmem>>, vector<128x8xf32>
    tpu.vector_store %arg13[%c0, %c0_0], %0 {strides = array<i32>} : memref<128x8xf32, #tpu.memory_space<vmem>>, vector<128x8xf32>,
    %cst_1 = arith.constant 0.000000e+00 : f32
    %2 = vector.broadcast %cst_1 : f32 to vector<128x64xf32>
    %c0_2 = arith.constant 0 : index
    %c0_3 = arith.constant 0 : index
    %3 = vector.load %arg14[%c0_2, %c0_3] : memref<128x64xf32, #tpu.memory_space<vmem>>, vector<128x64xf32>
    tpu.vector_store %arg14[%c0_2, %c0_3], %2 {strides = array<i32>} : memref<128x64xf32, #tpu.memory_space<vmem>>, vector<128x64xf32>,
    %cst_4 = arith.constant 0.000000e+00 : f32
    %4 = vector.broadcast %cst_4 : f32 to vector<128x128xf32>
    %c0_5 = arith.constant 0 : index
    %c0_6 = arith.constant 0 : index
    %5 = vector.load %arg15[%c0_5, %c0_6] : memref<128x128xf32, #tpu.memory_space<vmem>>, vector<128x128xf32>
    tpu.vector_store %arg15[%c0_5, %c0_6], %4 {strides = array<i32>} : memref<128x128xf32, #tpu.memory_space<vmem>>, vector<128x128xf32>,
    %c0_7 = arith.constant 0 : index
    %c0_8 = arith.constant 0 : index
    %c0_9 = arith.constant 0 : index
    %c0_10 = arith.constant 0 : index
    %6 = vector.load %arg1[%c0_7, %c0_8, %c0_9, %c0_10] : memref<2x1x50x2xf32, #tpu.memory_space<vmem>>, vector<1x1x50x2xf32>
    %7 = vector.shape_cast %6 : vector<1x1x50x2xf32> to vector<50x2xf32>
    %c9 = arith.constant 9 : index
    %c0_11 = arith.constant 0 : index
    %8 = vector.load %arg13[%c9, %c0_11] : memref<128x8xf32, #tpu.memory_space<vmem>>, vector<50x2xf32>
    tpu.vector_store %arg13[%c9, %c0_11], %7 {strides = array<i32>} : memref<128x8xf32, #tpu.memory_space<vmem>>, vector<50x2xf32>,
    %c1 = arith.constant 1 : index
    %c0_12 = arith.constant 0 : index
    %c0_13 = arith.constant 0 : index
    %c0_14 = arith.constant 0 : index
    %9 = vector.load %arg1[%c1, %c0_12, %c0_13, %c0_14] : memref<2x1x50x2xf32, #tpu.memory_space<vmem>>, vector<1x1x50x2xf32>
    %10 = vector.shape_cast %9 : vector<1x1x50x2xf32> to vector<50x2xf32>
    %c65 = arith.constant 65 : index
    %c0_15 = arith.constant 0 : index
    %11 = vector.load %arg13[%c65, %c0_15] : memref<128x8xf32, #tpu.memory_space<vmem>>, vector<50x2xf32>
    tpu.vector_store %arg13[%c65, %c0_15], %10 {strides = array<i32>} : memref<128x8xf32, #tpu.memory_space<vmem>>, vector<50x2xf32>,
    %c0_16 = arith.constant 0 : index
    %c0_17 = arith.constant 0 : index
    %12 = vector.load %arg8[%c0_16, %c0_17] : memref<112x1xf32, #tpu.memory_space<vmem>>, vector<112x1xf32>
    %c7 = arith.constant 7 : index
    %c0_18 = arith.constant 0 : index
    %13 = vector.load %arg13[%c7, %c0_18] : memref<128x8xf32, #tpu.memory_space<vmem>>, vector<112x8xf32>
    %14 = arith.truncf %13 : vector<112x8xf32> to vector<112x8xbf16>
    %c0_19 = arith.constant 0 : index
    %c0_20 = arith.constant 0 : index
    %c0_21 = arith.constant 0 : index
    %15 = vector.load %arg2[%c0_19, %c0_20, %c0_21] : memref<3x8x64xbf16, #tpu.memory_space<vmem>>, vector<1x8x64xbf16>
    %16 = vector.shape_cast %15 : vector<1x8x64xbf16> to vector<8x64xbf16>
    %cst_22 = arith.constant dense<0.000000e+00> : vector<112x64xf32>
    %17 = tpu.matmul %14, %16, %cst_22 {dimension_numbers = #tpu.dot_dimension_numbers<[1], [0], [0], [1], [0, 0, 1, 1], [], []>} : vector<112x8xbf16>, vector<8x64xbf16>, vector<112x64xf32> -> vector<112x64xf32>
    %c8 = arith.constant 8 : index
    %c0_23 = arith.constant 0 : index
    %18 = vector.load %arg13[%c8, %c0_23] : memref<128x8xf32, #tpu.memory_space<vmem>>, vector<112x8xf32>
    %19 = arith.truncf %18 : vector<112x8xf32> to vector<112x8xbf16>
    %c1_24 = arith.constant 1 : index
    %c0_25 = arith.constant 0 : index
    %c0_26 = arith.constant 0 : index
    %20 = vector.load %arg2[%c1_24, %c0_25, %c0_26] : memref<3x8x64xbf16, #tpu.memory_space<vmem>>, vector<1x8x64xbf16>
    %21 = vector.shape_cast %20 : vector<1x8x64xbf16> to vector<8x64xbf16>
    %cst_27 = arith.constant dense<0.000000e+00> : vector<112x64xf32>
    %22 = tpu.matmul %19, %21, %cst_27 {dimension_numbers = #tpu.dot_dimension_numbers<[1], [0], [0], [1], [0, 0, 1, 1], [], []>} : vector<112x8xbf16>, vector<8x64xbf16>, vector<112x64xf32> -> vector<112x64xf32>
    %23 = arith.addf %17, %22 : vector<112x64xf32>
    %c9_28 = arith.constant 9 : index
    %c0_29 = arith.constant 0 : index
    %24 = vector.load %arg13[%c9_28, %c0_29] : memref<128x8xf32, #tpu.memory_space<vmem>>, vector<112x8xf32>
    %25 = arith.truncf %24 : vector<112x8xf32> to vector<112x8xbf16>
    %c2 = arith.constant 2 : index
    %c0_30 = arith.constant 0 : index
    %c0_31 = arith.constant 0 : index
    %26 = vector.load %arg2[%c2, %c0_30, %c0_31] : memref<3x8x64xbf16, #tpu.memory_space<vmem>>, vector<1x8x64xbf16>
    %27 = vector.shape_cast %26 : vector<1x8x64xbf16> to vector<8x64xbf16>
    %cst_32 = arith.constant dense<0.000000e+00> : vector<112x64xf32>
    %28 = tpu.matmul %25, %27, %cst_32 {dimension_numbers = #tpu.dot_dimension_numbers<[1], [0], [0], [1], [0, 0, 1, 1], [], []>} : vector<112x8xbf16>, vector<8x64xbf16>, vector<112x64xf32> -> vector<112x64xf32>
    %29 = arith.addf %23, %28 : vector<112x64xf32>
    %c0_33 = arith.constant 0 : index
    %c0_34 = arith.constant 0 : index
    %30 = vector.load %arg3[%c0_33, %c0_34] : memref<1x64xf32, #tpu.memory_space<vmem>>, vector<1x64xf32>
    %31 = vector.broadcast %30 : vector<1x64xf32> to vector<112x64xf32>
    %32 = arith.addf %29, %31 : vector<112x64xf32>
    %cst_35 = arith.constant 0.000000e+00 : f32
    %33 = vector.broadcast %cst_35 : f32 to vector<112x64xf32>
    %34 = arith.maximumf %32, %33 : vector<112x64xf32>
    %35 = vector.broadcast %12 : vector<112x1xf32> to vector<112x64xf32>
    %36 = arith.mulf %34, %35 : vector<112x64xf32>
    %c8_36 = arith.constant 8 : index
    %c0_37 = arith.constant 0 : index
    %37 = vector.load %arg14[%c8_36, %c0_37] : memref<128x64xf32, #tpu.memory_space<vmem>>, vector<112x64xf32>
    tpu.vector_store %arg14[%c8_36, %c0_37], %36 {strides = array<i32>} : memref<128x64xf32, #tpu.memory_space<vmem>>, vector<112x64xf32>,
    %c7_38 = arith.constant 7 : index
    %c0_39 = arith.constant 0 : index
    %38 = vector.load %arg14[%c7_38, %c0_39] : memref<128x64xf32, #tpu.memory_space<vmem>>, vector<112x64xf32>
    %39 = arith.truncf %38 : vector<112x64xf32> to vector<112x64xbf16>
    %c0_40 = arith.constant 0 : index
    %c0_41 = arith.constant 0 : index
    %c0_42 = arith.constant 0 : index
    %40 = vector.load %arg4[%c0_40, %c0_41, %c0_42] : memref<3x64x128xbf16, #tpu.memory_space<vmem>>, vector<1x64x128xbf16>
    %41 = vector.shape_cast %40 : vector<1x64x128xbf16> to vector<64x128xbf16>
    %cst_43 = arith.constant dense<0.000000e+00> : vector<112x128xf32>
    %42 = tpu.matmul %39, %41, %cst_43 {dimension_numbers = #tpu.dot_dimension_numbers<[1], [0], [0], [1], [0, 0, 1, 1], [], []>} : vector<112x64xbf16>, vector<64x128xbf16>, vector<112x128xf32> -> vector<112x128xf32>
    %c8_44 = arith.constant 8 : index
    %c0_45 = arith.constant 0 : index
    %43 = vector.load %arg14[%c8_44, %c0_45] : memref<128x64xf32, #tpu.memory_space<vmem>>, vector<112x64xf32>
    %44 = arith.truncf %43 : vector<112x64xf32> to vector<112x64xbf16>
    %c1_46 = arith.constant 1 : index
    %c0_47 = arith.constant 0 : index
    %c0_48 = arith.constant 0 : index
    %45 = vector.load %arg4[%c1_46, %c0_47, %c0_48] : memref<3x64x128xbf16, #tpu.memory_space<vmem>>, vector<1x64x128xbf16>
    %46 = vector.shape_cast %45 : vector<1x64x128xbf16> to vector<64x128xbf16>
    %cst_49 = arith.constant dense<0.000000e+00> : vector<112x128xf32>
    %47 = tpu.matmul %44, %46, %cst_49 {dimension_numbers = #tpu.dot_dimension_numbers<[1], [0], [0], [1], [0, 0, 1, 1], [], []>} : vector<112x64xbf16>, vector<64x128xbf16>, vector<112x128xf32> -> vector<112x128xf32>
    %48 = arith.addf %42, %47 : vector<112x128xf32>
    %c9_50 = arith.constant 9 : index
    %c0_51 = arith.constant 0 : index
    %49 = vector.load %arg14[%c9_50, %c0_51] : memref<128x64xf32, #tpu.memory_space<vmem>>, vector<112x64xf32>
    %50 = arith.truncf %49 : vector<112x64xf32> to vector<112x64xbf16>
    %c2_52 = arith.constant 2 : index
    %c0_53 = arith.constant 0 : index
    %c0_54 = arith.constant 0 : index
    %51 = vector.load %arg4[%c2_52, %c0_53, %c0_54] : memref<3x64x128xbf16, #tpu.memory_space<vmem>>, vector<1x64x128xbf16>
    %52 = vector.shape_cast %51 : vector<1x64x128xbf16> to vector<64x128xbf16>
    %cst_55 = arith.constant dense<0.000000e+00> : vector<112x128xf32>
    %53 = tpu.matmul %50, %52, %cst_55 {dimension_numbers = #tpu.dot_dimension_numbers<[1], [0], [0], [1], [0, 0, 1, 1], [], []>} : vector<112x64xbf16>, vector<64x128xbf16>, vector<112x128xf32> -> vector<112x128xf32>
    %54 = arith.addf %48, %53 : vector<112x128xf32>
    %c0_56 = arith.constant 0 : index
    %c0_57 = arith.constant 0 : index
    %55 = vector.load %arg5[%c0_56, %c0_57] : memref<1x128xf32, #tpu.memory_space<vmem>>, vector<1x128xf32>
    %56 = vector.broadcast %55 : vector<1x128xf32> to vector<112x128xf32>
    %57 = arith.addf %54, %56 : vector<112x128xf32>
    %cst_58 = arith.constant 0.000000e+00 : f32
    %58 = vector.broadcast %cst_58 : f32 to vector<112x128xf32>
    %59 = arith.maximumf %57, %58 : vector<112x128xf32>
    %60 = vector.broadcast %12 : vector<112x1xf32> to vector<112x128xf32>
    %61 = arith.mulf %59, %60 : vector<112x128xf32>
    %c8_59 = arith.constant 8 : index
    %c0_60 = arith.constant 0 : index
    %62 = vector.load %arg15[%c8_59, %c0_60] : memref<128x128xf32, #tpu.memory_space<vmem>>, vector<112x128xf32>
    tpu.vector_store %arg15[%c8_59, %c0_60], %61 {strides = array<i32>} : memref<128x128xf32, #tpu.memory_space<vmem>>, vector<112x128xf32>,
    %c7_61 = arith.constant 7 : index
    %c0_62 = arith.constant 0 : index
    %63 = vector.load %arg15[%c7_61, %c0_62] : memref<128x128xf32, #tpu.memory_space<vmem>>, vector<112x128xf32>
    %64 = arith.truncf %63 : vector<112x128xf32> to vector<112x128xbf16>
    %c0_63 = arith.constant 0 : index
    %c0_64 = arith.constant 0 : index
    %c0_65 = arith.constant 0 : index
    %65 = vector.load %arg6[%c0_63, %c0_64, %c0_65] : memref<3x128x256xbf16, #tpu.memory_space<vmem>>, vector<1x128x256xbf16>
    %66 = vector.shape_cast %65 : vector<1x128x256xbf16> to vector<128x256xbf16>
    %cst_66 = arith.constant dense<0.000000e+00> : vector<112x256xf32>
    %67 = tpu.matmul %64, %66, %cst_66 {dimension_numbers = #tpu.dot_dimension_numbers<[1], [0], [0], [1], [0, 0, 1, 1], [], []>} : vector<112x128xbf16>, vector<128x256xbf16>, vector<112x256xf32> -> vector<112x256xf32>
    %c8_67 = arith.constant 8 : index
    %c0_68 = arith.constant 0 : index
    %68 = vector.load %arg15[%c8_67, %c0_68] : memref<128x128xf32, #tpu.memory_space<vmem>>, vector<112x128xf32>
    %69 = arith.truncf %68 : vector<112x128xf32> to vector<112x128xbf16>
    %c1_69 = arith.constant 1 : index
    %c0_70 = arith.constant 0 : index
    %c0_71 = arith.constant 0 : index
    %70 = vector.load %arg6[%c1_69, %c0_70, %c0_71] : memref<3x128x256xbf16, #tpu.memory_space<vmem>>, vector<1x128x256xbf16>
    %71 = vector.shape_cast %70 : vector<1x128x256xbf16> to vector<128x256xbf16>
    %cst_72 = arith.constant dense<0.000000e+00> : vector<112x256xf32>
    %72 = tpu.matmul %69, %71, %cst_72 {dimension_numbers = #tpu.dot_dimension_numbers<[1], [0], [0], [1], [0, 0, 1, 1], [], []>} : vector<112x128xbf16>, vector<128x256xbf16>, vector<112x256xf32> -> vector<112x256xf32>
    %73 = arith.addf %67, %72 : vector<112x256xf32>
    %c9_73 = arith.constant 9 : index
    %c0_74 = arith.constant 0 : index
    %74 = vector.load %arg15[%c9_73, %c0_74] : memref<128x128xf32, #tpu.memory_space<vmem>>, vector<112x128xf32>
    %75 = arith.truncf %74 : vector<112x128xf32> to vector<112x128xbf16>
    %c2_75 = arith.constant 2 : index
    %c0_76 = arith.constant 0 : index
    %c0_77 = arith.constant 0 : index
    %76 = vector.load %arg6[%c2_75, %c0_76, %c0_77] : memref<3x128x256xbf16, #tpu.memory_space<vmem>>, vector<1x128x256xbf16>
    %77 = vector.shape_cast %76 : vector<1x128x256xbf16> to vector<128x256xbf16>
    %cst_78 = arith.constant dense<0.000000e+00> : vector<112x256xf32>
    %78 = tpu.matmul %75, %77, %cst_78 {dimension_numbers = #tpu.dot_dimension_numbers<[1], [0], [0], [1], [0, 0, 1, 1], [], []>} : vector<112x128xbf16>, vector<128x256xbf16>, vector<112x256xf32> -> vector<112x256xf32>
    %79 = arith.addf %73, %78 : vector<112x256xf32>
    %c0_79 = arith.constant 0 : index
    %c0_80 = arith.constant 0 : index
    %80 = vector.load %arg7[%c0_79, %c0_80] : memref<1x256xf32, #tpu.memory_space<vmem>>, vector<1x256xf32>
    %81 = vector.broadcast %80 : vector<1x256xf32> to vector<112x256xf32>
    %82 = arith.addf %79, %81 : vector<112x256xf32>
    %cst_81 = arith.constant 0.000000e+00 : f32
    %83 = vector.broadcast %cst_81 : f32 to vector<112x256xf32>
    %84 = arith.maximumf %82, %83 : vector<112x256xf32>
    %c0_82 = arith.constant 0 : index
    %c0_83 = arith.constant 0 : index
    %85 = vector.load %arg16[%c0_82, %c0_83] : memref<112x256xf32, #tpu.memory_space<vmem>>, vector<112x256xf32>
    tpu.vector_store %arg16[%c0_82, %c0_83], %84 {strides = array<i32>} : memref<112x256xf32, #tpu.memory_space<vmem>>, vector<112x256xf32>,
    %c1_84 = arith.constant 1 : index
    %c0_85 = arith.constant 0 : index
    %86 = vector.load %arg16[%c1_84, %c0_85] : memref<112x256xf32, #tpu.memory_space<vmem>>, vector<1x256xf32>
    %c0_86 = arith.constant 0 : index
    %c0_87 = arith.constant 0 : index
    %87 = vector.load %arg17[%c0_86, %c0_87] : memref<2x12800xf32, #tpu.memory_space<vmem>>, vector<1x256xf32>
    tpu.vector_store %arg17[%c0_86, %c0_87], %86 {strides = array<i32>} : memref<2x12800xf32, #tpu.memory_space<vmem>>, vector<1x256xf32>,
    %c2_88 = arith.constant 2 : index
    %c0_89 = arith.constant 0 : index
    %88 = vector.load %arg16[%c2_88, %c0_89] : memref<112x256xf32, #tpu.memory_space<vmem>>, vector<1x256xf32>
    %c0_90 = arith.constant 0 : index
    %c256 = arith.constant 256 : index
    %89 = vector.load %arg17[%c0_90, %c256] : memref<2x12800xf32, #tpu.memory_space<vmem>>, vector<1x256xf32>
    tpu.vector_store %arg17[%c0_90, %c256], %88 {strides = array<i32>} : memref<2x12800xf32, #tpu.memory_space<vmem>>, vector<1x256xf32>,
    %c3 = arith.constant 3 : index
    %c0_91 = arith.constant 0 : index
    %90 = vector.load %arg16[%c3, %c0_91] : memref<112x256xf32, #tpu.memory_space<vmem>>, vector<1x256xf32>
    %c0_92 = arith.constant 0 : index
    %c512 = arith.constant 512 : index
    %91 = vector.load %arg17[%c0_92, %c512] : memref<2x12800xf32, #tpu.memory_space<vmem>>, vector<1x256xf32>
    tpu.vector_store %arg17[%c0_92, %c512], %90 {strides = array<i32>} : memref<2x12800xf32, #tpu.memory_space<vmem>>, vector<1x256xf32>,
    %c4 = arith.constant 4 : index
    %c0_93 = arith.constant 0 : index
    %92 = vector.load %arg16[%c4, %c0_93] : memref<112x256xf32, #tpu.memory_space<vmem>>, vector<1x256xf32>
    %c0_94 = arith.constant 0 : index
    %c768 = arith.constant 768 : index
    %93 = vector.load %arg17[%c0_94, %c768] : memref<2x12800xf32, #tpu.memory_space<vmem>>, vector<1x256xf32>
    tpu.vector_store %arg17[%c0_94, %c768], %92 {strides = array<i32>} : memref<2x12800xf32, #tpu.memory_space<vmem>>, vector<1x256xf32>,
    %c5 = arith.constant 5 : index
    %c0_95 = arith.constant 0 : index
    %94 = vector.load %arg16[%c5, %c0_95] : memref<112x256xf32, #tpu.memory_space<vmem>>, vector<1x256xf32>
    %c0_96 = arith.constant 0 : index
    %c1024 = arith.constant 1024 : index
    %95 = vector.load %arg17[%c0_96, %c1024] : memref<2x12800xf32, #tpu.memory_space<vmem>>, vector<1x256xf32>
    tpu.vector_store %arg17[%c0_96, %c1024], %94 {strides = array<i32>} : memref<2x12800xf32, #tpu.memory_space<vmem>>, vector<1x256xf32>,
    %c6 = arith.constant 6 : index
    %c0_97 = arith.constant 0 : index
    %96 = vector.load %arg16[%c6, %c0_97] : memref<112x256xf32, #tpu.memory_space<vmem>>, vector<1x256xf32>
    %c0_98 = arith.constant 0 : index
    %c1280 = arith.constant 1280 : index
    %97 = vector.load %arg17[%c0_98, %c1280] : memref<2x12800xf32, #tpu.memory_space<vmem>>, vector<1x256xf32>
    tpu.vector_store %arg17[%c0_98, %c1280], %96 {strides = array<i32>} : memref<2x12800xf32, #tpu.memory_space<vmem>>, vector<1x256xf32>,
    %c7_99 = arith.constant 7 : index
    %c0_100 = arith.constant 0 : index
    %98 = vector.load %arg16[%c7_99, %c0_100] : memref<112x256xf32, #tpu.memory_space<vmem>>, vector<1x256xf32>
    %c0_101 = arith.constant 0 : index
    %c1536 = arith.constant 1536 : index
    %99 = vector.load %arg17[%c0_101, %c1536] : memref<2x12800xf32, #tpu.memory_space<vmem>>, vector<1x256xf32>
    tpu.vector_store %arg17[%c0_101, %c1536], %98 {strides = array<i32>} : memref<2x12800xf32, #tpu.memory_space<vmem>>, vector<1x256xf32>,
    %c8_102 = arith.constant 8 : index
    %c0_103 = arith.constant 0 : index
    %100 = vector.load %arg16[%c8_102, %c0_103] : memref<112x256xf32, #tpu.memory_space<vmem>>, vector<1x256xf32>
    %c0_104 = arith.constant 0 : index
    %c1792 = arith.constant 1792 : index
    %101 = vector.load %arg17[%c0_104, %c1792] : memref<2x12800xf32, #tpu.memory_space<vmem>>, vector<1x256xf32>
    tpu.vector_store %arg17[%c0_104, %c1792], %100 {strides = array<i32>} : memref<2x12800xf32, #tpu.memory_space<vmem>>, vector<1x256xf32>,
    %c9_105 = arith.constant 9 : index
    %c0_106 = arith.constant 0 : index
    %102 = vector.load %arg16[%c9_105, %c0_106] : memref<112x256xf32, #tpu.memory_space<vmem>>, vector<1x256xf32>
    %c0_107 = arith.constant 0 : index
    %c2048 = arith.constant 2048 : index
    %103 = vector.load %arg17[%c0_107, %c2048] : memref<2x12800xf32, #tpu.memory_space<vmem>>, vector<1x256xf32>
    tpu.vector_store %arg17[%c0_107, %c2048], %102 {strides = array<i32>} : memref<2x12800xf32, #tpu.memory_space<vmem>>, vector<1x256xf32>,
    %c10 = arith.constant 10 : index
    %c0_108 = arith.constant 0 : index
    %104 = vector.load %arg16[%c10, %c0_108] : memref<112x256xf32, #tpu.memory_space<vmem>>, vector<1x256xf32>
    %c0_109 = arith.constant 0 : index
    %c2304 = arith.constant 2304 : index
    %105 = vector.load %arg17[%c0_109, %c2304] : memref<2x12800xf32, #tpu.memory_space<vmem>>, vector<1x256xf32>
    tpu.vector_store %arg17[%c0_109, %c2304], %104 {strides = array<i32>} : memref<2x12800xf32, #tpu.memory_space<vmem>>, vector<1x256xf32>,
    %c11 = arith.constant 11 : index
    %c0_110 = arith.constant 0 : index
    %106 = vector.load %arg16[%c11, %c0_110] : memref<112x256xf32, #tpu.memory_space<vmem>>, vector<1x256xf32>
    %c0_111 = arith.constant 0 : index
    %c2560 = arith.constant 2560 : index
    %107 = vector.load %arg17[%c0_111, %c2560] : memref<2x12800xf32, #tpu.memory_space<vmem>>, vector<1x256xf32>
    tpu.vector_store %arg17[%c0_111, %c2560], %106 {strides = array<i32>} : memref<2x12800xf32, #tpu.memory_space<vmem>>, vector<1x256xf32>,
    %c12 = arith.constant 12 : index
    %c0_112 = arith.constant 0 : index
    %108 = vector.load %arg16[%c12, %c0_112] : memref<112x256xf32, #tpu.memory_space<vmem>>, vector<1x256xf32>
    %c0_113 = arith.constant 0 : index
    %c2816 = arith.constant 2816 : index
    %109 = vector.load %arg17[%c0_113, %c2816] : memref<2x12800xf32, #tpu.memory_space<vmem>>, vector<1x256xf32>
    tpu.vector_store %arg17[%c0_113, %c2816], %108 {strides = array<i32>} : memref<2x12800xf32, #tpu.memory_space<vmem>>, vector<1x256xf32>,
    %c13 = arith.constant 13 : index
    %c0_114 = arith.constant 0 : index
    %110 = vector.load %arg16[%c13, %c0_114] : memref<112x256xf32, #tpu.memory_space<vmem>>, vector<1x256xf32>
    %c0_115 = arith.constant 0 : index
    %c3072 = arith.constant 3072 : index
    %111 = vector.load %arg17[%c0_115, %c3072] : memref<2x12800xf32, #tpu.memory_space<vmem>>, vector<1x256xf32>
    tpu.vector_store %arg17[%c0_115, %c3072], %110 {strides = array<i32>} : memref<2x12800xf32, #tpu.memory_space<vmem>>, vector<1x256xf32>,
    %c14 = arith.constant 14 : index
    %c0_116 = arith.constant 0 : index
    %112 = vector.load %arg16[%c14, %c0_116] : memref<112x256xf32, #tpu.memory_space<vmem>>, vector<1x256xf32>
    %c0_117 = arith.constant 0 : index
    %c3328 = arith.constant 3328 : index
    %113 = vector.load %arg17[%c0_117, %c3328] : memref<2x12800xf32, #tpu.memory_space<vmem>>, vector<1x256xf32>
    tpu.vector_store %arg17[%c0_117, %c3328], %112 {strides = array<i32>} : memref<2x12800xf32, #tpu.memory_space<vmem>>, vector<1x256xf32>,
    %c15 = arith.constant 15 : index
    %c0_118 = arith.constant 0 : index
    %114 = vector.load %arg16[%c15, %c0_118] : memref<112x256xf32, #tpu.memory_space<vmem>>, vector<1x256xf32>
    %c0_119 = arith.constant 0 : index
    %c3584 = arith.constant 3584 : index
    %115 = vector.load %arg17[%c0_119, %c3584] : memref<2x12800xf32, #tpu.memory_space<vmem>>, vector<1x256xf32>
    tpu.vector_store %arg17[%c0_119, %c3584], %114 {strides = array<i32>} : memref<2x12800xf32, #tpu.memory_space<vmem>>, vector<1x256xf32>,
    %c16 = arith.constant 16 : index
    %c0_120 = arith.constant 0 : index
    %116 = vector.load %arg16[%c16, %c0_120] : memref<112x256xf32, #tpu.memory_space<vmem>>, vector<1x256xf32>
    %c0_121 = arith.constant 0 : index
    %c3840 = arith.constant 3840 : index
    %117 = vector.load %arg17[%c0_121, %c3840] : memref<2x12800xf32, #tpu.memory_space<vmem>>, vector<1x256xf32>
    tpu.vector_store %arg17[%c0_121, %c3840], %116 {strides = array<i32>} : memref<2x12800xf32, #tpu.memory_space<vmem>>, vector<1x256xf32>,
    %c17 = arith.constant 17 : index
    %c0_122 = arith.constant 0 : index
    %118 = vector.load %arg16[%c17, %c0_122] : memref<112x256xf32, #tpu.memory_space<vmem>>, vector<1x256xf32>
    %c0_123 = arith.constant 0 : index
    %c4096 = arith.constant 4096 : index
    %119 = vector.load %arg17[%c0_123, %c4096] : memref<2x12800xf32, #tpu.memory_space<vmem>>, vector<1x256xf32>
    tpu.vector_store %arg17[%c0_123, %c4096], %118 {strides = array<i32>} : memref<2x12800xf32, #tpu.memory_space<vmem>>, vector<1x256xf32>,
    %c18 = arith.constant 18 : index
    %c0_124 = arith.constant 0 : index
    %120 = vector.load %arg16[%c18, %c0_124] : memref<112x256xf32, #tpu.memory_space<vmem>>, vector<1x256xf32>
    %c0_125 = arith.constant 0 : index
    %c4352 = arith.constant 4352 : index
    %121 = vector.load %arg17[%c0_125, %c4352] : memref<2x12800xf32, #tpu.memory_space<vmem>>, vector<1x256xf32>
    tpu.vector_store %arg17[%c0_125, %c4352], %120 {strides = array<i32>} : memref<2x12800xf32, #tpu.memory_space<vmem>>, vector<1x256xf32>,
    %c19 = arith.constant 19 : index
    %c0_126 = arith.constant 0 : index
    %122 = vector.load %arg16[%c19, %c0_126] : memref<112x256xf32, #tpu.memory_space<vmem>>, vector<1x256xf32>
    %c0_127 = arith.constant 0 : index
    %c4608 = arith.constant 4608 : index
    %123 = vector.load %arg17[%c0_127, %c4608] : memref<2x12800xf32, #tpu.memory_space<vmem>>, vector<1x256xf32>
    tpu.vector_store %arg17[%c0_127, %c4608], %122 {strides = array<i32>} : memref<2x12800xf32, #tpu.memory_space<vmem>>, vector<1x256xf32>,
    %c20 = arith.constant 20 : index
    %c0_128 = arith.constant 0 : index
    %124 = vector.load %arg16[%c20, %c0_128] : memref<112x256xf32, #tpu.memory_space<vmem>>, vector<1x256xf32>
    %c0_129 = arith.constant 0 : index
    %c4864 = arith.constant 4864 : index
    %125 = vector.load %arg17[%c0_129, %c4864] : memref<2x12800xf32, #tpu.memory_space<vmem>>, vector<1x256xf32>
    tpu.vector_store %arg17[%c0_129, %c4864], %124 {strides = array<i32>} : memref<2x12800xf32, #tpu.memory_space<vmem>>, vector<1x256xf32>,
    %c21 = arith.constant 21 : index
    %c0_130 = arith.constant 0 : index
    %126 = vector.load %arg16[%c21, %c0_130] : memref<112x256xf32, #tpu.memory_space<vmem>>, vector<1x256xf32>
    %c0_131 = arith.constant 0 : index
    %c5120 = arith.constant 5120 : index
    %127 = vector.load %arg17[%c0_131, %c5120] : memref<2x12800xf32, #tpu.memory_space<vmem>>, vector<1x256xf32>
    tpu.vector_store %arg17[%c0_131, %c5120], %126 {strides = array<i32>} : memref<2x12800xf32, #tpu.memory_space<vmem>>, vector<1x256xf32>,
    %c22 = arith.constant 22 : index
    %c0_132 = arith.constant 0 : index
    %128 = vector.load %arg16[%c22, %c0_132] : memref<112x256xf32, #tpu.memory_space<vmem>>, vector<1x256xf32>
    %c0_133 = arith.constant 0 : index
    %c5376 = arith.constant 5376 : index
    %129 = vector.load %arg17[%c0_133, %c5376] : memref<2x12800xf32, #tpu.memory_space<vmem>>, vector<1x256xf32>
    tpu.vector_store %arg17[%c0_133, %c5376], %128 {strides = array<i32>} : memref<2x12800xf32, #tpu.memory_space<vmem>>, vector<1x256xf32>,
    %c23 = arith.constant 23 : index
    %c0_134 = arith.constant 0 : index
    %130 = vector.load %arg16[%c23, %c0_134] : memref<112x256xf32, #tpu.memory_space<vmem>>, vector<1x256xf32>
    %c0_135 = arith.constant 0 : index
    %c5632 = arith.constant 5632 : index
    %131 = vector.load %arg17[%c0_135, %c5632] : memref<2x12800xf32, #tpu.memory_space<vmem>>, vector<1x256xf32>
    tpu.vector_store %arg17[%c0_135, %c5632], %130 {strides = array<i32>} : memref<2x12800xf32, #tpu.memory_space<vmem>>, vector<1x256xf32>,
    %c24 = arith.constant 24 : index
    %c0_136 = arith.constant 0 : index
    %132 = vector.load %arg16[%c24, %c0_136] : memref<112x256xf32, #tpu.memory_space<vmem>>, vector<1x256xf32>
    %c0_137 = arith.constant 0 : index
    %c5888 = arith.constant 5888 : index
    %133 = vector.load %arg17[%c0_137, %c5888] : memref<2x12800xf32, #tpu.memory_space<vmem>>, vector<1x256xf32>
    tpu.vector_store %arg17[%c0_137, %c5888], %132 {strides = array<i32>} : memref<2x12800xf32, #tpu.memory_space<vmem>>, vector<1x256xf32>,
    %c25 = arith.constant 25 : index
    %c0_138 = arith.constant 0 : index
    %134 = vector.load %arg16[%c25, %c0_138] : memref<112x256xf32, #tpu.memory_space<vmem>>, vector<1x256xf32>
    %c0_139 = arith.constant 0 : index
    %c6144 = arith.constant 6144 : index
    %135 = vector.load %arg17[%c0_139, %c6144] : memref<2x12800xf32, #tpu.memory_space<vmem>>, vector<1x256xf32>
    tpu.vector_store %arg17[%c0_139, %c6144], %134 {strides = array<i32>} : memref<2x12800xf32, #tpu.memory_space<vmem>>, vector<1x256xf32>,
    %c26 = arith.constant 26 : index
    %c0_140 = arith.constant 0 : index
    %136 = vector.load %arg16[%c26, %c0_140] : memref<112x256xf32, #tpu.memory_space<vmem>>, vector<1x256xf32>
    %c0_141 = arith.constant 0 : index
    %c6400 = arith.constant 6400 : index
    %137 = vector.load %arg17[%c0_141, %c6400] : memref<2x12800xf32, #tpu.memory_space<vmem>>, vector<1x256xf32>
    tpu.vector_store %arg17[%c0_141, %c6400], %136 {strides = array<i32>} : memref<2x12800xf32, #tpu.memory_space<vmem>>, vector<1x256xf32>,
    %c27 = arith.constant 27 : index
    %c0_142 = arith.constant 0 : index
    %138 = vector.load %arg16[%c27, %c0_142] : memref<112x256xf32, #tpu.memory_space<vmem>>, vector<1x256xf32>
    %c0_143 = arith.constant 0 : index
    %c6656 = arith.constant 6656 : index
    %139 = vector.load %arg17[%c0_143, %c6656] : memref<2x12800xf32, #tpu.memory_space<vmem>>, vector<1x256xf32>
    tpu.vector_store %arg17[%c0_143, %c6656], %138 {strides = array<i32>} : memref<2x12800xf32, #tpu.memory_space<vmem>>, vector<1x256xf32>,
    %c28 = arith.constant 28 : index
    %c0_144 = arith.constant 0 : index
    %140 = vector.load %arg16[%c28, %c0_144] : memref<112x256xf32, #tpu.memory_space<vmem>>, vector<1x256xf32>
    %c0_145 = arith.constant 0 : index
    %c6912 = arith.constant 6912 : index
    %141 = vector.load %arg17[%c0_145, %c6912] : memref<2x12800xf32, #tpu.memory_space<vmem>>, vector<1x256xf32>
    tpu.vector_store %arg17[%c0_145, %c6912], %140 {strides = array<i32>} : memref<2x12800xf32, #tpu.memory_space<vmem>>, vector<1x256xf32>,
    %c29 = arith.constant 29 : index
    %c0_146 = arith.constant 0 : index
    %142 = vector.load %arg16[%c29, %c0_146] : memref<112x256xf32, #tpu.memory_space<vmem>>, vector<1x256xf32>
    %c0_147 = arith.constant 0 : index
    %c7168 = arith.constant 7168 : index
    %143 = vector.load %arg17[%c0_147, %c7168] : memref<2x12800xf32, #tpu.memory_space<vmem>>, vector<1x256xf32>
    tpu.vector_store %arg17[%c0_147, %c7168], %142 {strides = array<i32>} : memref<2x12800xf32, #tpu.memory_space<vmem>>, vector<1x256xf32>,
    %c30 = arith.constant 30 : index
    %c0_148 = arith.constant 0 : index
    %144 = vector.load %arg16[%c30, %c0_148] : memref<112x256xf32, #tpu.memory_space<vmem>>, vector<1x256xf32>
    %c0_149 = arith.constant 0 : index
    %c7424 = arith.constant 7424 : index
    %145 = vector.load %arg17[%c0_149, %c7424] : memref<2x12800xf32, #tpu.memory_space<vmem>>, vector<1x256xf32>
    tpu.vector_store %arg17[%c0_149, %c7424], %144 {strides = array<i32>} : memref<2x12800xf32, #tpu.memory_space<vmem>>, vector<1x256xf32>,
    %c31 = arith.constant 31 : index
    %c0_150 = arith.constant 0 : index
    %146 = vector.load %arg16[%c31, %c0_150] : memref<112x256xf32, #tpu.memory_space<vmem>>, vector<1x256xf32>
    %c0_151 = arith.constant 0 : index
    %c7680 = arith.constant 7680 : index
    %147 = vector.load %arg17[%c0_151, %c7680] : memref<2x12800xf32, #tpu.memory_space<vmem>>, vector<1x256xf32>
    tpu.vector_store %arg17[%c0_151, %c7680], %146 {strides = array<i32>} : memref<2x12800xf32, #tpu.memory_space<vmem>>, vector<1x256xf32>,
    %c32 = arith.constant 32 : index
    %c0_152 = arith.constant 0 : index
    %148 = vector.load %arg16[%c32, %c0_152] : memref<112x256xf32, #tpu.memory_space<vmem>>, vector<1x256xf32>
    %c0_153 = arith.constant 0 : index
    %c7936 = arith.constant 7936 : index
    %149 = vector.load %arg17[%c0_153, %c7936] : memref<2x12800xf32, #tpu.memory_space<vmem>>, vector<1x256xf32>
    tpu.vector_store %arg17[%c0_153, %c7936], %148 {strides = array<i32>} : memref<2x12800xf32, #tpu.memory_space<vmem>>, vector<1x256xf32>,
    %c33 = arith.constant 33 : index
    %c0_154 = arith.constant 0 : index
    %150 = vector.load %arg16[%c33, %c0_154] : memref<112x256xf32, #tpu.memory_space<vmem>>, vector<1x256xf32>
    %c0_155 = arith.constant 0 : index
    %c8192 = arith.constant 8192 : index
    %151 = vector.load %arg17[%c0_155, %c8192] : memref<2x12800xf32, #tpu.memory_space<vmem>>, vector<1x256xf32>
    tpu.vector_store %arg17[%c0_155, %c8192], %150 {strides = array<i32>} : memref<2x12800xf32, #tpu.memory_space<vmem>>, vector<1x256xf32>,
    %c34 = arith.constant 34 : index
    %c0_156 = arith.constant 0 : index
    %152 = vector.load %arg16[%c34, %c0_156] : memref<112x256xf32, #tpu.memory_space<vmem>>, vector<1x256xf32>
    %c0_157 = arith.constant 0 : index
    %c8448 = arith.constant 8448 : index
    %153 = vector.load %arg17[%c0_157, %c8448] : memref<2x12800xf32, #tpu.memory_space<vmem>>, vector<1x256xf32>
    tpu.vector_store %arg17[%c0_157, %c8448], %152 {strides = array<i32>} : memref<2x12800xf32, #tpu.memory_space<vmem>>, vector<1x256xf32>,
    %c35 = arith.constant 35 : index
    %c0_158 = arith.constant 0 : index
    %154 = vector.load %arg16[%c35, %c0_158] : memref<112x256xf32, #tpu.memory_space<vmem>>, vector<1x256xf32>
    %c0_159 = arith.constant 0 : index
    %c8704 = arith.constant 8704 : index
    %155 = vector.load %arg17[%c0_159, %c8704] : memref<2x12800xf32, #tpu.memory_space<vmem>>, vector<1x256xf32>
    tpu.vector_store %arg17[%c0_159, %c8704], %154 {strides = array<i32>} : memref<2x12800xf32, #tpu.memory_space<vmem>>, vector<1x256xf32>,
    %c36 = arith.constant 36 : index
    %c0_160 = arith.constant 0 : index
    %156 = vector.load %arg16[%c36, %c0_160] : memref<112x256xf32, #tpu.memory_space<vmem>>, vector<1x256xf32>
    %c0_161 = arith.constant 0 : index
    %c8960 = arith.constant 8960 : index
    %157 = vector.load %arg17[%c0_161, %c8960] : memref<2x12800xf32, #tpu.memory_space<vmem>>, vector<1x256xf32>
    tpu.vector_store %arg17[%c0_161, %c8960], %156 {strides = array<i32>} : memref<2x12800xf32, #tpu.memory_space<vmem>>, vector<1x256xf32>,
    %c37 = arith.constant 37 : index
    %c0_162 = arith.constant 0 : index
    %158 = vector.load %arg16[%c37, %c0_162] : memref<112x256xf32, #tpu.memory_space<vmem>>, vector<1x256xf32>
    %c0_163 = arith.constant 0 : index
    %c9216 = arith.constant 9216 : index
    %159 = vector.load %arg17[%c0_163, %c9216] : memref<2x12800xf32, #tpu.memory_space<vmem>>, vector<1x256xf32>
    tpu.vector_store %arg17[%c0_163, %c9216], %158 {strides = array<i32>} : memref<2x12800xf32, #tpu.memory_space<vmem>>, vector<1x256xf32>,
    %c38 = arith.constant 38 : index
    %c0_164 = arith.constant 0 : index
    %160 = vector.load %arg16[%c38, %c0_164] : memref<112x256xf32, #tpu.memory_space<vmem>>, vector<1x256xf32>
    %c0_165 = arith.constant 0 : index
    %c9472 = arith.constant 9472 : index
    %161 = vector.load %arg17[%c0_165, %c9472] : memref<2x12800xf32, #tpu.memory_space<vmem>>, vector<1x256xf32>
    tpu.vector_store %arg17[%c0_165, %c9472], %160 {strides = array<i32>} : memref<2x12800xf32, #tpu.memory_space<vmem>>, vector<1x256xf32>,
    %c39 = arith.constant 39 : index
    %c0_166 = arith.constant 0 : index
    %162 = vector.load %arg16[%c39, %c0_166] : memref<112x256xf32, #tpu.memory_space<vmem>>, vector<1x256xf32>
    %c0_167 = arith.constant 0 : index
    %c9728 = arith.constant 9728 : index
    %163 = vector.load %arg17[%c0_167, %c9728] : memref<2x12800xf32, #tpu.memory_space<vmem>>, vector<1x256xf32>
    tpu.vector_store %arg17[%c0_167, %c9728], %162 {strides = array<i32>} : memref<2x12800xf32, #tpu.memory_space<vmem>>, vector<1x256xf32>,
    %c40 = arith.constant 40 : index
    %c0_168 = arith.constant 0 : index
    %164 = vector.load %arg16[%c40, %c0_168] : memref<112x256xf32, #tpu.memory_space<vmem>>, vector<1x256xf32>
    %c0_169 = arith.constant 0 : index
    %c9984 = arith.constant 9984 : index
    %165 = vector.load %arg17[%c0_169, %c9984] : memref<2x12800xf32, #tpu.memory_space<vmem>>, vector<1x256xf32>
    tpu.vector_store %arg17[%c0_169, %c9984], %164 {strides = array<i32>} : memref<2x12800xf32, #tpu.memory_space<vmem>>, vector<1x256xf32>,
    %c41 = arith.constant 41 : index
    %c0_170 = arith.constant 0 : index
    %166 = vector.load %arg16[%c41, %c0_170] : memref<112x256xf32, #tpu.memory_space<vmem>>, vector<1x256xf32>
    %c0_171 = arith.constant 0 : index
    %c10240 = arith.constant 10240 : index
    %167 = vector.load %arg17[%c0_171, %c10240] : memref<2x12800xf32, #tpu.memory_space<vmem>>, vector<1x256xf32>
    tpu.vector_store %arg17[%c0_171, %c10240], %166 {strides = array<i32>} : memref<2x12800xf32, #tpu.memory_space<vmem>>, vector<1x256xf32>,
    %c42 = arith.constant 42 : index
    %c0_172 = arith.constant 0 : index
    %168 = vector.load %arg16[%c42, %c0_172] : memref<112x256xf32, #tpu.memory_space<vmem>>, vector<1x256xf32>
    %c0_173 = arith.constant 0 : index
    %c10496 = arith.constant 10496 : index
    %169 = vector.load %arg17[%c0_173, %c10496] : memref<2x12800xf32, #tpu.memory_space<vmem>>, vector<1x256xf32>
    tpu.vector_store %arg17[%c0_173, %c10496], %168 {strides = array<i32>} : memref<2x12800xf32, #tpu.memory_space<vmem>>, vector<1x256xf32>,
    %c43 = arith.constant 43 : index
    %c0_174 = arith.constant 0 : index
    %170 = vector.load %arg16[%c43, %c0_174] : memref<112x256xf32, #tpu.memory_space<vmem>>, vector<1x256xf32>
    %c0_175 = arith.constant 0 : index
    %c10752 = arith.constant 10752 : index
    %171 = vector.load %arg17[%c0_175, %c10752] : memref<2x12800xf32, #tpu.memory_space<vmem>>, vector<1x256xf32>
    tpu.vector_store %arg17[%c0_175, %c10752], %170 {strides = array<i32>} : memref<2x12800xf32, #tpu.memory_space<vmem>>, vector<1x256xf32>,
    %c44 = arith.constant 44 : index
    %c0_176 = arith.constant 0 : index
    %172 = vector.load %arg16[%c44, %c0_176] : memref<112x256xf32, #tpu.memory_space<vmem>>, vector<1x256xf32>
    %c0_177 = arith.constant 0 : index
    %c11008 = arith.constant 11008 : index
    %173 = vector.load %arg17[%c0_177, %c11008] : memref<2x12800xf32, #tpu.memory_space<vmem>>, vector<1x256xf32>
    tpu.vector_store %arg17[%c0_177, %c11008], %172 {strides = array<i32>} : memref<2x12800xf32, #tpu.memory_space<vmem>>, vector<1x256xf32>,
    %c45 = arith.constant 45 : index
    %c0_178 = arith.constant 0 : index
    %174 = vector.load %arg16[%c45, %c0_178] : memref<112x256xf32, #tpu.memory_space<vmem>>, vector<1x256xf32>
    %c0_179 = arith.constant 0 : index
    %c11264 = arith.constant 11264 : index
    %175 = vector.load %arg17[%c0_179, %c11264] : memref<2x12800xf32, #tpu.memory_space<vmem>>, vector<1x256xf32>
    tpu.vector_store %arg17[%c0_179, %c11264], %174 {strides = array<i32>} : memref<2x12800xf32, #tpu.memory_space<vmem>>, vector<1x256xf32>,
    %c46 = arith.constant 46 : index
    %c0_180 = arith.constant 0 : index
    %176 = vector.load %arg16[%c46, %c0_180] : memref<112x256xf32, #tpu.memory_space<vmem>>, vector<1x256xf32>
    %c0_181 = arith.constant 0 : index
    %c11520 = arith.constant 11520 : index
    %177 = vector.load %arg17[%c0_181, %c11520] : memref<2x12800xf32, #tpu.memory_space<vmem>>, vector<1x256xf32>
    tpu.vector_store %arg17[%c0_181, %c11520], %176 {strides = array<i32>} : memref<2x12800xf32, #tpu.memory_space<vmem>>, vector<1x256xf32>,
    %c47 = arith.constant 47 : index
    %c0_182 = arith.constant 0 : index
    %178 = vector.load %arg16[%c47, %c0_182] : memref<112x256xf32, #tpu.memory_space<vmem>>, vector<1x256xf32>
    %c0_183 = arith.constant 0 : index
    %c11776 = arith.constant 11776 : index
    %179 = vector.load %arg17[%c0_183, %c11776] : memref<2x12800xf32, #tpu.memory_space<vmem>>, vector<1x256xf32>
    tpu.vector_store %arg17[%c0_183, %c11776], %178 {strides = array<i32>} : memref<2x12800xf32, #tpu.memory_space<vmem>>, vector<1x256xf32>,
    %c48 = arith.constant 48 : index
    %c0_184 = arith.constant 0 : index
    %180 = vector.load %arg16[%c48, %c0_184] : memref<112x256xf32, #tpu.memory_space<vmem>>, vector<1x256xf32>
    %c0_185 = arith.constant 0 : index
    %c12032 = arith.constant 12032 : index
    %181 = vector.load %arg17[%c0_185, %c12032] : memref<2x12800xf32, #tpu.memory_space<vmem>>, vector<1x256xf32>
    tpu.vector_store %arg17[%c0_185, %c12032], %180 {strides = array<i32>} : memref<2x12800xf32, #tpu.memory_space<vmem>>, vector<1x256xf32>,
    %c49 = arith.constant 49 : index
    %c0_186 = arith.constant 0 : index
    %182 = vector.load %arg16[%c49, %c0_186] : memref<112x256xf32, #tpu.memory_space<vmem>>, vector<1x256xf32>
    %c0_187 = arith.constant 0 : index
    %c12288 = arith.constant 12288 : index
    %183 = vector.load %arg17[%c0_187, %c12288] : memref<2x12800xf32, #tpu.memory_space<vmem>>, vector<1x256xf32>
    tpu.vector_store %arg17[%c0_187, %c12288], %182 {strides = array<i32>} : memref<2x12800xf32, #tpu.memory_space<vmem>>, vector<1x256xf32>,
    %c50 = arith.constant 50 : index
    %c0_188 = arith.constant 0 : index
    %184 = vector.load %arg16[%c50, %c0_188] : memref<112x256xf32, #tpu.memory_space<vmem>>, vector<1x256xf32>
    %c0_189 = arith.constant 0 : index
    %c12544 = arith.constant 12544 : index
    %185 = vector.load %arg17[%c0_189, %c12544] : memref<2x12800xf32, #tpu.memory_space<vmem>>, vector<1x256xf32>
    tpu.vector_store %arg17[%c0_189, %c12544], %184 {strides = array<i32>} : memref<2x12800xf32, #tpu.memory_space<vmem>>, vector<1x256xf32>,
    %c57 = arith.constant 57 : index
    %c0_190 = arith.constant 0 : index
    %186 = vector.load %arg16[%c57, %c0_190] : memref<112x256xf32, #tpu.memory_space<vmem>>, vector<1x256xf32>
    %c1_191 = arith.constant 1 : index
    %c0_192 = arith.constant 0 : index
    %187 = vector.load %arg17[%c1_191, %c0_192] : memref<2x12800xf32, #tpu.memory_space<vmem>>, vector<1x256xf32>
    tpu.vector_store %arg17[%c1_191, %c0_192], %186 {strides = array<i32>} : memref<2x12800xf32, #tpu.memory_space<vmem>>, vector<1x256xf32>,
    %c58 = arith.constant 58 : index
    %c0_193 = arith.constant 0 : index
    %188 = vector.load %arg16[%c58, %c0_193] : memref<112x256xf32, #tpu.memory_space<vmem>>, vector<1x256xf32>
    %c1_194 = arith.constant 1 : index
    %c256_195 = arith.constant 256 : index
    %189 = vector.load %arg17[%c1_194, %c256_195] : memref<2x12800xf32, #tpu.memory_space<vmem>>, vector<1x256xf32>
    tpu.vector_store %arg17[%c1_194, %c256_195], %188 {strides = array<i32>} : memref<2x12800xf32, #tpu.memory_space<vmem>>, vector<1x256xf32>,
    %c59 = arith.constant 59 : index
    %c0_196 = arith.constant 0 : index
    %190 = vector.load %arg16[%c59, %c0_196] : memref<112x256xf32, #tpu.memory_space<vmem>>, vector<1x256xf32>
    %c1_197 = arith.constant 1 : index
    %c512_198 = arith.constant 512 : index
    %191 = vector.load %arg17[%c1_197, %c512_198] : memref<2x12800xf32, #tpu.memory_space<vmem>>, vector<1x256xf32>
    tpu.vector_store %arg17[%c1_197, %c512_198], %190 {strides = array<i32>} : memref<2x12800xf32, #tpu.memory_space<vmem>>, vector<1x256xf32>,
    %c60 = arith.constant 60 : index
    %c0_199 = arith.constant 0 : index
    %192 = vector.load %arg16[%c60, %c0_199] : memref<112x256xf32, #tpu.memory_space<vmem>>, vector<1x256xf32>
    %c1_200 = arith.constant 1 : index
    %c768_201 = arith.constant 768 : index
    %193 = vector.load %arg17[%c1_200, %c768_201] : memref<2x12800xf32, #tpu.memory_space<vmem>>, vector<1x256xf32>
    tpu.vector_store %arg17[%c1_200, %c768_201], %192 {strides = array<i32>} : memref<2x12800xf32, #tpu.memory_space<vmem>>, vector<1x256xf32>,
    %c61 = arith.constant 61 : index
    %c0_202 = arith.constant 0 : index
    %194 = vector.load %arg16[%c61, %c0_202] : memref<112x256xf32, #tpu.memory_space<vmem>>, vector<1x256xf32>
    %c1_203 = arith.constant 1 : index
    %c1024_204 = arith.constant 1024 : index
    %195 = vector.load %arg17[%c1_203, %c1024_204] : memref<2x12800xf32, #tpu.memory_space<vmem>>, vector<1x256xf32>
    tpu.vector_store %arg17[%c1_203, %c1024_204], %194 {strides = array<i32>} : memref<2x12800xf32, #tpu.memory_space<vmem>>, vector<1x256xf32>,
    %c62 = arith.constant 62 : index
    %c0_205 = arith.constant 0 : index
    %196 = vector.load %arg16[%c62, %c0_205] : memref<112x256xf32, #tpu.memory_space<vmem>>, vector<1x256xf32>
    %c1_206 = arith.constant 1 : index
    %c1280_207 = arith.constant 1280 : index
    %197 = vector.load %arg17[%c1_206, %c1280_207] : memref<2x12800xf32, #tpu.memory_space<vmem>>, vector<1x256xf32>
    tpu.vector_store %arg17[%c1_206, %c1280_207], %196 {strides = array<i32>} : memref<2x12800xf32, #tpu.memory_space<vmem>>, vector<1x256xf32>,
    %c63 = arith.constant 63 : index
    %c0_208 = arith.constant 0 : index
    %198 = vector.load %arg16[%c63, %c0_208] : memref<112x256xf32, #tpu.memory_space<vmem>>, vector<1x256xf32>
    %c1_209 = arith.constant 1 : index
    %c1536_210 = arith.constant 1536 : index
    %199 = vector.load %arg17[%c1_209, %c1536_210] : memref<2x12800xf32, #tpu.memory_space<vmem>>, vector<1x256xf32>
    tpu.vector_store %arg17[%c1_209, %c1536_210], %198 {strides = array<i32>} : memref<2x12800xf32, #tpu.memory_space<vmem>>, vector<1x256xf32>,
    %c64 = arith.constant 64 : index
    %c0_211 = arith.constant 0 : index
    %200 = vector.load %arg16[%c64, %c0_211] : memref<112x256xf32, #tpu.memory_space<vmem>>, vector<1x256xf32>
    %c1_212 = arith.constant 1 : index
    %c1792_213 = arith.constant 1792 : index
    %201 = vector.load %arg17[%c1_212, %c1792_213] : memref<2x12800xf32, #tpu.memory_space<vmem>>, vector<1x256xf32>
    tpu.vector_store %arg17[%c1_212, %c1792_213], %200 {strides = array<i32>} : memref<2x12800xf32, #tpu.memory_space<vmem>>, vector<1x256xf32>,
    %c65_214 = arith.constant 65 : index
    %c0_215 = arith.constant 0 : index
    %202 = vector.load %arg16[%c65_214, %c0_215] : memref<112x256xf32, #tpu.memory_space<vmem>>, vector<1x256xf32>
    %c1_216 = arith.constant 1 : index
    %c2048_217 = arith.constant 2048 : index
    %203 = vector.load %arg17[%c1_216, %c2048_217] : memref<2x12800xf32, #tpu.memory_space<vmem>>, vector<1x256xf32>
    tpu.vector_store %arg17[%c1_216, %c2048_217], %202 {strides = array<i32>} : memref<2x12800xf32, #tpu.memory_space<vmem>>, vector<1x256xf32>,
    %c66 = arith.constant 66 : index
    %c0_218 = arith.constant 0 : index
    %204 = vector.load %arg16[%c66, %c0_218] : memref<112x256xf32, #tpu.memory_space<vmem>>, vector<1x256xf32>
    %c1_219 = arith.constant 1 : index
    %c2304_220 = arith.constant 2304 : index
    %205 = vector.load %arg17[%c1_219, %c2304_220] : memref<2x12800xf32, #tpu.memory_space<vmem>>, vector<1x256xf32>
    tpu.vector_store %arg17[%c1_219, %c2304_220], %204 {strides = array<i32>} : memref<2x12800xf32, #tpu.memory_space<vmem>>, vector<1x256xf32>,
    %c67 = arith.constant 67 : index
    %c0_221 = arith.constant 0 : index
    %206 = vector.load %arg16[%c67, %c0_221] : memref<112x256xf32, #tpu.memory_space<vmem>>, vector<1x256xf32>
    %c1_222 = arith.constant 1 : index
    %c2560_223 = arith.constant 2560 : index
    %207 = vector.load %arg17[%c1_222, %c2560_223] : memref<2x12800xf32, #tpu.memory_space<vmem>>, vector<1x256xf32>
    tpu.vector_store %arg17[%c1_222, %c2560_223], %206 {strides = array<i32>} : memref<2x12800xf32, #tpu.memory_space<vmem>>, vector<1x256xf32>,
    %c68 = arith.constant 68 : index
    %c0_224 = arith.constant 0 : index
    %208 = vector.load %arg16[%c68, %c0_224] : memref<112x256xf32, #tpu.memory_space<vmem>>, vector<1x256xf32>
    %c1_225 = arith.constant 1 : index
    %c2816_226 = arith.constant 2816 : index
    %209 = vector.load %arg17[%c1_225, %c2816_226] : memref<2x12800xf32, #tpu.memory_space<vmem>>, vector<1x256xf32>
    tpu.vector_store %arg17[%c1_225, %c2816_226], %208 {strides = array<i32>} : memref<2x12800xf32, #tpu.memory_space<vmem>>, vector<1x256xf32>,
    %c69 = arith.constant 69 : index
    %c0_227 = arith.constant 0 : index
    %210 = vector.load %arg16[%c69, %c0_227] : memref<112x256xf32, #tpu.memory_space<vmem>>, vector<1x256xf32>
    %c1_228 = arith.constant 1 : index
    %c3072_229 = arith.constant 3072 : index
    %211 = vector.load %arg17[%c1_228, %c3072_229] : memref<2x12800xf32, #tpu.memory_space<vmem>>, vector<1x256xf32>
    tpu.vector_store %arg17[%c1_228, %c3072_229], %210 {strides = array<i32>} : memref<2x12800xf32, #tpu.memory_space<vmem>>, vector<1x256xf32>,
    %c70 = arith.constant 70 : index
    %c0_230 = arith.constant 0 : index
    %212 = vector.load %arg16[%c70, %c0_230] : memref<112x256xf32, #tpu.memory_space<vmem>>, vector<1x256xf32>
    %c1_231 = arith.constant 1 : index
    %c3328_232 = arith.constant 3328 : index
    %213 = vector.load %arg17[%c1_231, %c3328_232] : memref<2x12800xf32, #tpu.memory_space<vmem>>, vector<1x256xf32>
    tpu.vector_store %arg17[%c1_231, %c3328_232], %212 {strides = array<i32>} : memref<2x12800xf32, #tpu.memory_space<vmem>>, vector<1x256xf32>,
    %c71 = arith.constant 71 : index
    %c0_233 = arith.constant 0 : index
    %214 = vector.load %arg16[%c71, %c0_233] : memref<112x256xf32, #tpu.memory_space<vmem>>, vector<1x256xf32>
    %c1_234 = arith.constant 1 : index
    %c3584_235 = arith.constant 3584 : index
    %215 = vector.load %arg17[%c1_234, %c3584_235] : memref<2x12800xf32, #tpu.memory_space<vmem>>, vector<1x256xf32>
    tpu.vector_store %arg17[%c1_234, %c3584_235], %214 {strides = array<i32>} : memref<2x12800xf32, #tpu.memory_space<vmem>>, vector<1x256xf32>,
    %c72 = arith.constant 72 : index
    %c0_236 = arith.constant 0 : index
    %216 = vector.load %arg16[%c72, %c0_236] : memref<112x256xf32, #tpu.memory_space<vmem>>, vector<1x256xf32>
    %c1_237 = arith.constant 1 : index
    %c3840_238 = arith.constant 3840 : index
    %217 = vector.load %arg17[%c1_237, %c3840_238] : memref<2x12800xf32, #tpu.memory_space<vmem>>, vector<1x256xf32>
    tpu.vector_store %arg17[%c1_237, %c3840_238], %216 {strides = array<i32>} : memref<2x12800xf32, #tpu.memory_space<vmem>>, vector<1x256xf32>,
    %c73 = arith.constant 73 : index
    %c0_239 = arith.constant 0 : index
    %218 = vector.load %arg16[%c73, %c0_239] : memref<112x256xf32, #tpu.memory_space<vmem>>, vector<1x256xf32>
    %c1_240 = arith.constant 1 : index
    %c4096_241 = arith.constant 4096 : index
    %219 = vector.load %arg17[%c1_240, %c4096_241] : memref<2x12800xf32, #tpu.memory_space<vmem>>, vector<1x256xf32>
    tpu.vector_store %arg17[%c1_240, %c4096_241], %218 {strides = array<i32>} : memref<2x12800xf32, #tpu.memory_space<vmem>>, vector<1x256xf32>,
    %c74 = arith.constant 74 : index
    %c0_242 = arith.constant 0 : index
    %220 = vector.load %arg16[%c74, %c0_242] : memref<112x256xf32, #tpu.memory_space<vmem>>, vector<1x256xf32>
    %c1_243 = arith.constant 1 : index
    %c4352_244 = arith.constant 4352 : index
    %221 = vector.load %arg17[%c1_243, %c4352_244] : memref<2x12800xf32, #tpu.memory_space<vmem>>, vector<1x256xf32>
    tpu.vector_store %arg17[%c1_243, %c4352_244], %220 {strides = array<i32>} : memref<2x12800xf32, #tpu.memory_space<vmem>>, vector<1x256xf32>,
    %c75 = arith.constant 75 : index
    %c0_245 = arith.constant 0 : index
    %222 = vector.load %arg16[%c75, %c0_245] : memref<112x256xf32, #tpu.memory_space<vmem>>, vector<1x256xf32>
    %c1_246 = arith.constant 1 : index
    %c4608_247 = arith.constant 4608 : index
    %223 = vector.load %arg17[%c1_246, %c4608_247] : memref<2x12800xf32, #tpu.memory_space<vmem>>, vector<1x256xf32>
    tpu.vector_store %arg17[%c1_246, %c4608_247], %222 {strides = array<i32>} : memref<2x12800xf32, #tpu.memory_space<vmem>>, vector<1x256xf32>,
    %c76 = arith.constant 76 : index
    %c0_248 = arith.constant 0 : index
    %224 = vector.load %arg16[%c76, %c0_248] : memref<112x256xf32, #tpu.memory_space<vmem>>, vector<1x256xf32>
    %c1_249 = arith.constant 1 : index
    %c4864_250 = arith.constant 4864 : index
    %225 = vector.load %arg17[%c1_249, %c4864_250] : memref<2x12800xf32, #tpu.memory_space<vmem>>, vector<1x256xf32>
    tpu.vector_store %arg17[%c1_249, %c4864_250], %224 {strides = array<i32>} : memref<2x12800xf32, #tpu.memory_space<vmem>>, vector<1x256xf32>,
    %c77 = arith.constant 77 : index
    %c0_251 = arith.constant 0 : index
    %226 = vector.load %arg16[%c77, %c0_251] : memref<112x256xf32, #tpu.memory_space<vmem>>, vector<1x256xf32>
    %c1_252 = arith.constant 1 : index
    %c5120_253 = arith.constant 5120 : index
    %227 = vector.load %arg17[%c1_252, %c5120_253] : memref<2x12800xf32, #tpu.memory_space<vmem>>, vector<1x256xf32>
    tpu.vector_store %arg17[%c1_252, %c5120_253], %226 {strides = array<i32>} : memref<2x12800xf32, #tpu.memory_space<vmem>>, vector<1x256xf32>,
    %c78 = arith.constant 78 : index
    %c0_254 = arith.constant 0 : index
    %228 = vector.load %arg16[%c78, %c0_254] : memref<112x256xf32, #tpu.memory_space<vmem>>, vector<1x256xf32>
    %c1_255 = arith.constant 1 : index
    %c5376_256 = arith.constant 5376 : index
    %229 = vector.load %arg17[%c1_255, %c5376_256] : memref<2x12800xf32, #tpu.memory_space<vmem>>, vector<1x256xf32>
    tpu.vector_store %arg17[%c1_255, %c5376_256], %228 {strides = array<i32>} : memref<2x12800xf32, #tpu.memory_space<vmem>>, vector<1x256xf32>,
    %c79 = arith.constant 79 : index
    %c0_257 = arith.constant 0 : index
    %230 = vector.load %arg16[%c79, %c0_257] : memref<112x256xf32, #tpu.memory_space<vmem>>, vector<1x256xf32>
    %c1_258 = arith.constant 1 : index
    %c5632_259 = arith.constant 5632 : index
    %231 = vector.load %arg17[%c1_258, %c5632_259] : memref<2x12800xf32, #tpu.memory_space<vmem>>, vector<1x256xf32>
    tpu.vector_store %arg17[%c1_258, %c5632_259], %230 {strides = array<i32>} : memref<2x12800xf32, #tpu.memory_space<vmem>>, vector<1x256xf32>,
    %c80 = arith.constant 80 : index
    %c0_260 = arith.constant 0 : index
    %232 = vector.load %arg16[%c80, %c0_260] : memref<112x256xf32, #tpu.memory_space<vmem>>, vector<1x256xf32>
    %c1_261 = arith.constant 1 : index
    %c5888_262 = arith.constant 5888 : index
    %233 = vector.load %arg17[%c1_261, %c5888_262] : memref<2x12800xf32, #tpu.memory_space<vmem>>, vector<1x256xf32>
    tpu.vector_store %arg17[%c1_261, %c5888_262], %232 {strides = array<i32>} : memref<2x12800xf32, #tpu.memory_space<vmem>>, vector<1x256xf32>,
    %c81 = arith.constant 81 : index
    %c0_263 = arith.constant 0 : index
    %234 = vector.load %arg16[%c81, %c0_263] : memref<112x256xf32, #tpu.memory_space<vmem>>, vector<1x256xf32>
    %c1_264 = arith.constant 1 : index
    %c6144_265 = arith.constant 6144 : index
    %235 = vector.load %arg17[%c1_264, %c6144_265] : memref<2x12800xf32, #tpu.memory_space<vmem>>, vector<1x256xf32>
    tpu.vector_store %arg17[%c1_264, %c6144_265], %234 {strides = array<i32>} : memref<2x12800xf32, #tpu.memory_space<vmem>>, vector<1x256xf32>,
    %c82 = arith.constant 82 : index
    %c0_266 = arith.constant 0 : index
    %236 = vector.load %arg16[%c82, %c0_266] : memref<112x256xf32, #tpu.memory_space<vmem>>, vector<1x256xf32>
    %c1_267 = arith.constant 1 : index
    %c6400_268 = arith.constant 6400 : index
    %237 = vector.load %arg17[%c1_267, %c6400_268] : memref<2x12800xf32, #tpu.memory_space<vmem>>, vector<1x256xf32>
    tpu.vector_store %arg17[%c1_267, %c6400_268], %236 {strides = array<i32>} : memref<2x12800xf32, #tpu.memory_space<vmem>>, vector<1x256xf32>,
    %c83 = arith.constant 83 : index
    %c0_269 = arith.constant 0 : index
    %238 = vector.load %arg16[%c83, %c0_269] : memref<112x256xf32, #tpu.memory_space<vmem>>, vector<1x256xf32>
    %c1_270 = arith.constant 1 : index
    %c6656_271 = arith.constant 6656 : index
    %239 = vector.load %arg17[%c1_270, %c6656_271] : memref<2x12800xf32, #tpu.memory_space<vmem>>, vector<1x256xf32>
    tpu.vector_store %arg17[%c1_270, %c6656_271], %238 {strides = array<i32>} : memref<2x12800xf32, #tpu.memory_space<vmem>>, vector<1x256xf32>,
    %c84 = arith.constant 84 : index
    %c0_272 = arith.constant 0 : index
    %240 = vector.load %arg16[%c84, %c0_272] : memref<112x256xf32, #tpu.memory_space<vmem>>, vector<1x256xf32>
    %c1_273 = arith.constant 1 : index
    %c6912_274 = arith.constant 6912 : index
    %241 = vector.load %arg17[%c1_273, %c6912_274] : memref<2x12800xf32, #tpu.memory_space<vmem>>, vector<1x256xf32>
    tpu.vector_store %arg17[%c1_273, %c6912_274], %240 {strides = array<i32>} : memref<2x12800xf32, #tpu.memory_space<vmem>>, vector<1x256xf32>,
    %c85 = arith.constant 85 : index
    %c0_275 = arith.constant 0 : index
    %242 = vector.load %arg16[%c85, %c0_275] : memref<112x256xf32, #tpu.memory_space<vmem>>, vector<1x256xf32>
    %c1_276 = arith.constant 1 : index
    %c7168_277 = arith.constant 7168 : index
    %243 = vector.load %arg17[%c1_276, %c7168_277] : memref<2x12800xf32, #tpu.memory_space<vmem>>, vector<1x256xf32>
    tpu.vector_store %arg17[%c1_276, %c7168_277], %242 {strides = array<i32>} : memref<2x12800xf32, #tpu.memory_space<vmem>>, vector<1x256xf32>,
    %c86 = arith.constant 86 : index
    %c0_278 = arith.constant 0 : index
    %244 = vector.load %arg16[%c86, %c0_278] : memref<112x256xf32, #tpu.memory_space<vmem>>, vector<1x256xf32>
    %c1_279 = arith.constant 1 : index
    %c7424_280 = arith.constant 7424 : index
    %245 = vector.load %arg17[%c1_279, %c7424_280] : memref<2x12800xf32, #tpu.memory_space<vmem>>, vector<1x256xf32>
    tpu.vector_store %arg17[%c1_279, %c7424_280], %244 {strides = array<i32>} : memref<2x12800xf32, #tpu.memory_space<vmem>>, vector<1x256xf32>,
    %c87 = arith.constant 87 : index
    %c0_281 = arith.constant 0 : index
    %246 = vector.load %arg16[%c87, %c0_281] : memref<112x256xf32, #tpu.memory_space<vmem>>, vector<1x256xf32>
    %c1_282 = arith.constant 1 : index
    %c7680_283 = arith.constant 7680 : index
    %247 = vector.load %arg17[%c1_282, %c7680_283] : memref<2x12800xf32, #tpu.memory_space<vmem>>, vector<1x256xf32>
    tpu.vector_store %arg17[%c1_282, %c7680_283], %246 {strides = array<i32>} : memref<2x12800xf32, #tpu.memory_space<vmem>>, vector<1x256xf32>,
    %c88 = arith.constant 88 : index
    %c0_284 = arith.constant 0 : index
    %248 = vector.load %arg16[%c88, %c0_284] : memref<112x256xf32, #tpu.memory_space<vmem>>, vector<1x256xf32>
    %c1_285 = arith.constant 1 : index
    %c7936_286 = arith.constant 7936 : index
    %249 = vector.load %arg17[%c1_285, %c7936_286] : memref<2x12800xf32, #tpu.memory_space<vmem>>, vector<1x256xf32>
    tpu.vector_store %arg17[%c1_285, %c7936_286], %248 {strides = array<i32>} : memref<2x12800xf32, #tpu.memory_space<vmem>>, vector<1x256xf32>,
    %c89 = arith.constant 89 : index
    %c0_287 = arith.constant 0 : index
    %250 = vector.load %arg16[%c89, %c0_287] : memref<112x256xf32, #tpu.memory_space<vmem>>, vector<1x256xf32>
    %c1_288 = arith.constant 1 : index
    %c8192_289 = arith.constant 8192 : index
    %251 = vector.load %arg17[%c1_288, %c8192_289] : memref<2x12800xf32, #tpu.memory_space<vmem>>, vector<1x256xf32>
    tpu.vector_store %arg17[%c1_288, %c8192_289], %250 {strides = array<i32>} : memref<2x12800xf32, #tpu.memory_space<vmem>>, vector<1x256xf32>,
    %c90 = arith.constant 90 : index
    %c0_290 = arith.constant 0 : index
    %252 = vector.load %arg16[%c90, %c0_290] : memref<112x256xf32, #tpu.memory_space<vmem>>, vector<1x256xf32>
    %c1_291 = arith.constant 1 : index
    %c8448_292 = arith.constant 8448 : index
    %253 = vector.load %arg17[%c1_291, %c8448_292] : memref<2x12800xf32, #tpu.memory_space<vmem>>, vector<1x256xf32>
    tpu.vector_store %arg17[%c1_291, %c8448_292], %252 {strides = array<i32>} : memref<2x12800xf32, #tpu.memory_space<vmem>>, vector<1x256xf32>,
    %c91 = arith.constant 91 : index
    %c0_293 = arith.constant 0 : index
    %254 = vector.load %arg16[%c91, %c0_293] : memref<112x256xf32, #tpu.memory_space<vmem>>, vector<1x256xf32>
    %c1_294 = arith.constant 1 : index
    %c8704_295 = arith.constant 8704 : index
    %255 = vector.load %arg17[%c1_294, %c8704_295] : memref<2x12800xf32, #tpu.memory_space<vmem>>, vector<1x256xf32>
    tpu.vector_store %arg17[%c1_294, %c8704_295], %254 {strides = array<i32>} : memref<2x12800xf32, #tpu.memory_space<vmem>>, vector<1x256xf32>,
    %c92 = arith.constant 92 : index
    %c0_296 = arith.constant 0 : index
    %256 = vector.load %arg16[%c92, %c0_296] : memref<112x256xf32, #tpu.memory_space<vmem>>, vector<1x256xf32>
    %c1_297 = arith.constant 1 : index
    %c8960_298 = arith.constant 8960 : index
    %257 = vector.load %arg17[%c1_297, %c8960_298] : memref<2x12800xf32, #tpu.memory_space<vmem>>, vector<1x256xf32>
    tpu.vector_store %arg17[%c1_297, %c8960_298], %256 {strides = array<i32>} : memref<2x12800xf32, #tpu.memory_space<vmem>>, vector<1x256xf32>,
    %c93 = arith.constant 93 : index
    %c0_299 = arith.constant 0 : index
    %258 = vector.load %arg16[%c93, %c0_299] : memref<112x256xf32, #tpu.memory_space<vmem>>, vector<1x256xf32>
    %c1_300 = arith.constant 1 : index
    %c9216_301 = arith.constant 9216 : index
    %259 = vector.load %arg17[%c1_300, %c9216_301] : memref<2x12800xf32, #tpu.memory_space<vmem>>, vector<1x256xf32>
    tpu.vector_store %arg17[%c1_300, %c9216_301], %258 {strides = array<i32>} : memref<2x12800xf32, #tpu.memory_space<vmem>>, vector<1x256xf32>,
    %c94 = arith.constant 94 : index
    %c0_302 = arith.constant 0 : index
    %260 = vector.load %arg16[%c94, %c0_302] : memref<112x256xf32, #tpu.memory_space<vmem>>, vector<1x256xf32>
    %c1_303 = arith.constant 1 : index
    %c9472_304 = arith.constant 9472 : index
    %261 = vector.load %arg17[%c1_303, %c9472_304] : memref<2x12800xf32, #tpu.memory_space<vmem>>, vector<1x256xf32>
    tpu.vector_store %arg17[%c1_303, %c9472_304], %260 {strides = array<i32>} : memref<2x12800xf32, #tpu.memory_space<vmem>>, vector<1x256xf32>,
    %c95 = arith.constant 95 : index
    %c0_305 = arith.constant 0 : index
    %262 = vector.load %arg16[%c95, %c0_305] : memref<112x256xf32, #tpu.memory_space<vmem>>, vector<1x256xf32>
    %c1_306 = arith.constant 1 : index
    %c9728_307 = arith.constant 9728 : index
    %263 = vector.load %arg17[%c1_306, %c9728_307] : memref<2x12800xf32, #tpu.memory_space<vmem>>, vector<1x256xf32>
    tpu.vector_store %arg17[%c1_306, %c9728_307], %262 {strides = array<i32>} : memref<2x12800xf32, #tpu.memory_space<vmem>>, vector<1x256xf32>,
    %c96 = arith.constant 96 : index
    %c0_308 = arith.constant 0 : index
    %264 = vector.load %arg16[%c96, %c0_308] : memref<112x256xf32, #tpu.memory_space<vmem>>, vector<1x256xf32>
    %c1_309 = arith.constant 1 : index
    %c9984_310 = arith.constant 9984 : index
    %265 = vector.load %arg17[%c1_309, %c9984_310] : memref<2x12800xf32, #tpu.memory_space<vmem>>, vector<1x256xf32>
    tpu.vector_store %arg17[%c1_309, %c9984_310], %264 {strides = array<i32>} : memref<2x12800xf32, #tpu.memory_space<vmem>>, vector<1x256xf32>,
    %c97 = arith.constant 97 : index
    %c0_311 = arith.constant 0 : index
    %266 = vector.load %arg16[%c97, %c0_311] : memref<112x256xf32, #tpu.memory_space<vmem>>, vector<1x256xf32>
    %c1_312 = arith.constant 1 : index
    %c10240_313 = arith.constant 10240 : index
    %267 = vector.load %arg17[%c1_312, %c10240_313] : memref<2x12800xf32, #tpu.memory_space<vmem>>, vector<1x256xf32>
    tpu.vector_store %arg17[%c1_312, %c10240_313], %266 {strides = array<i32>} : memref<2x12800xf32, #tpu.memory_space<vmem>>, vector<1x256xf32>,
    %c98 = arith.constant 98 : index
    %c0_314 = arith.constant 0 : index
    %268 = vector.load %arg16[%c98, %c0_314] : memref<112x256xf32, #tpu.memory_space<vmem>>, vector<1x256xf32>
    %c1_315 = arith.constant 1 : index
    %c10496_316 = arith.constant 10496 : index
    %269 = vector.load %arg17[%c1_315, %c10496_316] : memref<2x12800xf32, #tpu.memory_space<vmem>>, vector<1x256xf32>
    tpu.vector_store %arg17[%c1_315, %c10496_316], %268 {strides = array<i32>} : memref<2x12800xf32, #tpu.memory_space<vmem>>, vector<1x256xf32>,
    %c99 = arith.constant 99 : index
    %c0_317 = arith.constant 0 : index
    %270 = vector.load %arg16[%c99, %c0_317] : memref<112x256xf32, #tpu.memory_space<vmem>>, vector<1x256xf32>
    %c1_318 = arith.constant 1 : index
    %c10752_319 = arith.constant 10752 : index
    %271 = vector.load %arg17[%c1_318, %c10752_319] : memref<2x12800xf32, #tpu.memory_space<vmem>>, vector<1x256xf32>
    tpu.vector_store %arg17[%c1_318, %c10752_319], %270 {strides = array<i32>} : memref<2x12800xf32, #tpu.memory_space<vmem>>, vector<1x256xf32>,
    %c100 = arith.constant 100 : index
    %c0_320 = arith.constant 0 : index
    %272 = vector.load %arg16[%c100, %c0_320] : memref<112x256xf32, #tpu.memory_space<vmem>>, vector<1x256xf32>
    %c1_321 = arith.constant 1 : index
    %c11008_322 = arith.constant 11008 : index
    %273 = vector.load %arg17[%c1_321, %c11008_322] : memref<2x12800xf32, #tpu.memory_space<vmem>>, vector<1x256xf32>
    tpu.vector_store %arg17[%c1_321, %c11008_322], %272 {strides = array<i32>} : memref<2x12800xf32, #tpu.memory_space<vmem>>, vector<1x256xf32>,
    %c101 = arith.constant 101 : index
    %c0_323 = arith.constant 0 : index
    %274 = vector.load %arg16[%c101, %c0_323] : memref<112x256xf32, #tpu.memory_space<vmem>>, vector<1x256xf32>
    %c1_324 = arith.constant 1 : index
    %c11264_325 = arith.constant 11264 : index
    %275 = vector.load %arg17[%c1_324, %c11264_325] : memref<2x12800xf32, #tpu.memory_space<vmem>>, vector<1x256xf32>
    tpu.vector_store %arg17[%c1_324, %c11264_325], %274 {strides = array<i32>} : memref<2x12800xf32, #tpu.memory_space<vmem>>, vector<1x256xf32>,
    %c102 = arith.constant 102 : index
    %c0_326 = arith.constant 0 : index
    %276 = vector.load %arg16[%c102, %c0_326] : memref<112x256xf32, #tpu.memory_space<vmem>>, vector<1x256xf32>
    %c1_327 = arith.constant 1 : index
    %c11520_328 = arith.constant 11520 : index
    %277 = vector.load %arg17[%c1_327, %c11520_328] : memref<2x12800xf32, #tpu.memory_space<vmem>>, vector<1x256xf32>
    tpu.vector_store %arg17[%c1_327, %c11520_328], %276 {strides = array<i32>} : memref<2x12800xf32, #tpu.memory_space<vmem>>, vector<1x256xf32>,
    %c103 = arith.constant 103 : index
    %c0_329 = arith.constant 0 : index
    %278 = vector.load %arg16[%c103, %c0_329] : memref<112x256xf32, #tpu.memory_space<vmem>>, vector<1x256xf32>
    %c1_330 = arith.constant 1 : index
    %c11776_331 = arith.constant 11776 : index
    %279 = vector.load %arg17[%c1_330, %c11776_331] : memref<2x12800xf32, #tpu.memory_space<vmem>>, vector<1x256xf32>
    tpu.vector_store %arg17[%c1_330, %c11776_331], %278 {strides = array<i32>} : memref<2x12800xf32, #tpu.memory_space<vmem>>, vector<1x256xf32>,
    %c104 = arith.constant 104 : index
    %c0_332 = arith.constant 0 : index
    %280 = vector.load %arg16[%c104, %c0_332] : memref<112x256xf32, #tpu.memory_space<vmem>>, vector<1x256xf32>
    %c1_333 = arith.constant 1 : index
    %c12032_334 = arith.constant 12032 : index
    %281 = vector.load %arg17[%c1_333, %c12032_334] : memref<2x12800xf32, #tpu.memory_space<vmem>>, vector<1x256xf32>
    tpu.vector_store %arg17[%c1_333, %c12032_334], %280 {strides = array<i32>} : memref<2x12800xf32, #tpu.memory_space<vmem>>, vector<1x256xf32>,
    %c105 = arith.constant 105 : index
    %c0_335 = arith.constant 0 : index
    %282 = vector.load %arg16[%c105, %c0_335] : memref<112x256xf32, #tpu.memory_space<vmem>>, vector<1x256xf32>
    %c1_336 = arith.constant 1 : index
    %c12288_337 = arith.constant 12288 : index
    %283 = vector.load %arg17[%c1_336, %c12288_337] : memref<2x12800xf32, #tpu.memory_space<vmem>>, vector<1x256xf32>
    tpu.vector_store %arg17[%c1_336, %c12288_337], %282 {strides = array<i32>} : memref<2x12800xf32, #tpu.memory_space<vmem>>, vector<1x256xf32>,
    %c106 = arith.constant 106 : index
    %c0_338 = arith.constant 0 : index
    %284 = vector.load %arg16[%c106, %c0_338] : memref<112x256xf32, #tpu.memory_space<vmem>>, vector<1x256xf32>
    %c1_339 = arith.constant 1 : index
    %c12544_340 = arith.constant 12544 : index
    %285 = vector.load %arg17[%c1_339, %c12544_340] : memref<2x12800xf32, #tpu.memory_space<vmem>>, vector<1x256xf32>
    tpu.vector_store %arg17[%c1_339, %c12544_340], %284 {strides = array<i32>} : memref<2x12800xf32, #tpu.memory_space<vmem>>, vector<1x256xf32>,
    tpu.wait_dma2 semaphore(%arg19 : memref<!tpu.dma_semaphore, #tpu.memory_space<semaphore_mem>>) src(%arg9 : memref<3200x128xbf16, #tpu.memory_space<any>>) dst(%arg18 : memref<3200x128xbf16, #tpu.memory_space<vmem>>)
    %c0_341 = arith.constant 0 : index
    %c0_342 = arith.constant 0 : index
    %286 = vector.load %arg18[%c0_341, %c0_342] : memref<3200x128xbf16, #tpu.memory_space<vmem>>, vector<3200x128xbf16>
    %cst_343 = arith.constant 0.000000e+00 : f32
    %287 = vector.broadcast %cst_343 : f32 to vector<2x32xf32>
    %c0_344 = arith.constant 0 : index
    %c0_345 = arith.constant 0 : index
    %288 = vector.load %arg17[%c0_344, %c0_345] : memref<2x12800xf32, #tpu.memory_space<vmem>>, vector<2x3200xf32>
    %289 = arith.truncf %288 : vector<2x3200xf32> to vector<2x3200xbf16>
    %cst_346 = arith.constant dense<0.000000e+00> : vector<2x128xf32>
    %290 = tpu.matmul %289, %286, %cst_346 {dimension_numbers = #tpu.dot_dimension_numbers<[1], [0], [0], [1], [0, 0, 1, 1], [], []>} : vector<2x3200xbf16>, vector<3200x128xbf16>, vector<2x128xf32> -> vector<2x128xf32>
    %291 = vector.extract_strided_slice %290 {offsets = [0, 0], sizes = [2, 32], strides = [1, 1]} : vector<2x128xf32> to vector<2x32xf32>
    %292 = arith.addf %287, %291 : vector<2x32xf32>
    %c0_347 = arith.constant 0 : index
    %c3200 = arith.constant 3200 : index
    %293 = vector.load %arg17[%c0_347, %c3200] : memref<2x12800xf32, #tpu.memory_space<vmem>>, vector<2x3200xf32>
    %294 = arith.truncf %293 : vector<2x3200xf32> to vector<2x3200xbf16>
    %cst_348 = arith.constant dense<0.000000e+00> : vector<2x128xf32>
    %295 = tpu.matmul %294, %286, %cst_348 {dimension_numbers = #tpu.dot_dimension_numbers<[1], [0], [0], [1], [0, 0, 1, 1], [], []>} : vector<2x3200xbf16>, vector<3200x128xbf16>, vector<2x128xf32> -> vector<2x128xf32>
    %296 = vector.extract_strided_slice %295 {offsets = [0, 32], sizes = [2, 32], strides = [1, 1]} : vector<2x128xf32> to vector<2x32xf32>
    %297 = arith.addf %292, %296 : vector<2x32xf32>
    %c0_349 = arith.constant 0 : index
    %c6400_350 = arith.constant 6400 : index
    %298 = vector.load %arg17[%c0_349, %c6400_350] : memref<2x12800xf32, #tpu.memory_space<vmem>>, vector<2x3200xf32>
    %299 = arith.truncf %298 : vector<2x3200xf32> to vector<2x3200xbf16>
    %cst_351 = arith.constant dense<0.000000e+00> : vector<2x128xf32>
    %300 = tpu.matmul %299, %286, %cst_351 {dimension_numbers = #tpu.dot_dimension_numbers<[1], [0], [0], [1], [0, 0, 1, 1], [], []>} : vector<2x3200xbf16>, vector<3200x128xbf16>, vector<2x128xf32> -> vector<2x128xf32>
    %301 = vector.extract_strided_slice %300 {offsets = [0, 64], sizes = [2, 32], strides = [1, 1]} : vector<2x128xf32> to vector<2x32xf32>
    %302 = arith.addf %297, %301 : vector<2x32xf32>
    %c0_352 = arith.constant 0 : index
    %c9600 = arith.constant 9600 : index
    %303 = vector.load %arg17[%c0_352, %c9600] : memref<2x12800xf32, #tpu.memory_space<vmem>>, vector<2x3200xf32>
    %304 = arith.truncf %303 : vector<2x3200xf32> to vector<2x3200xbf16>
    %cst_353 = arith.constant dense<0.000000e+00> : vector<2x128xf32>
    %305 = tpu.matmul %304, %286, %cst_353 {dimension_numbers = #tpu.dot_dimension_numbers<[1], [0], [0], [1], [0, 0, 1, 1], [], []>} : vector<2x3200xbf16>, vector<3200x128xbf16>, vector<2x128xf32> -> vector<2x128xf32>
    %306 = vector.extract_strided_slice %305 {offsets = [0, 96], sizes = [2, 32], strides = [1, 1]} : vector<2x128xf32> to vector<2x32xf32>
    %307 = arith.addf %302, %306 : vector<2x32xf32>
    %c0_354 = arith.constant 0 : index
    %c0_355 = arith.constant 0 : index
    %308 = vector.load %arg10[%c0_354, %c0_355] : memref<1x32xf32, #tpu.memory_space<vmem>>, vector<1x32xf32>
    %309 = vector.broadcast %308 : vector<1x32xf32> to vector<2x32xf32>
    %310 = arith.addf %307, %309 : vector<2x32xf32>
    %311 = vector.extract_strided_slice %310 {offsets = [0, 0], sizes = [2, 16], strides = [1, 1]} : vector<2x32xf32> to vector<2x16xf32>
    %c0_356 = arith.constant 0 : index
    %c0_357 = arith.constant 0 : index
    %312 = vector.load %arg11[%c0_356, %c0_357] : memref<2x16xf32, #tpu.memory_space<vmem>>, vector<2x16xf32>
    tpu.vector_store %arg11[%c0_356, %c0_357], %311 {strides = array<i32>} : memref<2x16xf32, #tpu.memory_space<vmem>>, vector<2x16xf32>,
    %313 = vector.extract_strided_slice %310 {offsets = [0, 16], sizes = [2, 16], strides = [1, 1]} : vector<2x32xf32> to vector<2x16xf32>
    %c0_358 = arith.constant 0 : index
    %c0_359 = arith.constant 0 : index
    %314 = vector.load %arg12[%c0_358, %c0_359] : memref<2x16xf32, #tpu.memory_space<vmem>>, vector<2x16xf32>
    tpu.vector_store %arg12[%c0_358, %c0_359], %313 {strides = array<i32>} : memref<2x16xf32, #tpu.memory_space<vmem>>, vector<2x16xf32>,
    return
  }
  func.func @transform_0(%arg0: i32) -> (i32, i32, i32, i32) {
    %c0_i32 = arith.constant 0 : i32
    %c0_i32_0 = arith.constant 0 : i32
    %c0_i32_1 = arith.constant 0 : i32
    %c0_i32_2 = arith.constant 0 : i32
    %c0_i32_3 = arith.constant 0 : i32
    return %c0_i32, %c0_i32_0, %c0_i32_1, %c0_i32_2 : i32, i32, i32, i32
  }
  func.func @transform_1(%arg0: i32) -> (i32, i32, i32) {
    %c0_i32 = arith.constant 0 : i32
    %c0_i32_0 = arith.constant 0 : i32
    %c0_i32_1 = arith.constant 0 : i32
    %c0_i32_2 = arith.constant 0 : i32
    return %c0_i32, %c0_i32_0, %c0_i32_1 : i32, i32, i32
  }
  func.func @transform_2(%arg0: i32) -> (i32, i32) {
    %c0_i32 = arith.constant 0 : i32
    %c0_i32_0 = arith.constant 0 : i32
    %c0_i32_1 = arith.constant 0 : i32
    return %c0_i32, %c0_i32_0 : i32, i32
  }
  func.func @transform_3(%arg0: i32) -> (i32, i32, i32) {
    %c0_i32 = arith.constant 0 : i32
    %c0_i32_0 = arith.constant 0 : i32
    %c0_i32_1 = arith.constant 0 : i32
    %c0_i32_2 = arith.constant 0 : i32
    return %c0_i32, %c0_i32_0, %c0_i32_1 : i32, i32, i32
  }
  func.func @transform_4(%arg0: i32) -> (i32, i32) {
    %c0_i32 = arith.constant 0 : i32
    %c0_i32_0 = arith.constant 0 : i32
    %c0_i32_1 = arith.constant 0 : i32
    return %c0_i32, %c0_i32_0 : i32, i32
  }
  func.func @transform_5(%arg0: i32) -> (i32, i32, i32) {
    %c0_i32 = arith.constant 0 : i32
    %c0_i32_0 = arith.constant 0 : i32
    %c0_i32_1 = arith.constant 0 : i32
    %c0_i32_2 = arith.constant 0 : i32
    return %c0_i32, %c0_i32_0, %c0_i32_1 : i32, i32, i32
  }
  func.func @transform_6(%arg0: i32) -> (i32, i32) {
    %c0_i32 = arith.constant 0 : i32
    %c0_i32_0 = arith.constant 0 : i32
    %c0_i32_1 = arith.constant 0 : i32
    return %c0_i32, %c0_i32_0 : i32, i32
  }
  func.func @transform_7(%arg0: i32) -> (i32, i32) {
    %c0_i32 = arith.constant 0 : i32
    %c0_i32_0 = arith.constant 0 : i32
    %c0_i32_1 = arith.constant 0 : i32
    return %c0_i32, %c0_i32_0 : i32, i32
  }
  func.func @transform_9(%arg0: i32) -> (i32, i32) {
    %c0_i32 = arith.constant 0 : i32
    %c0_i32_0 = arith.constant 0 : i32
    %c0_i32_1 = arith.constant 0 : i32
    return %c0_i32, %c0_i32_0 : i32, i32
  }
  func.func @transform_10(%arg0: i32) -> (i32, i32) {
    %c0_i32 = arith.constant 0 : i32
    %c0_i32_0 = arith.constant 0 : i32
    %c0_i32_1 = arith.constant 0 : i32
    return %c0_i32, %c0_i32_0 : i32, i32
  }
  func.func @transform_11(%arg0: i32) -> (i32, i32) {
    %c0_i32 = arith.constant 0 : i32
    %c0_i32_0 = arith.constant 0 : i32
    %c0_i32_1 = arith.constant 0 : i32
    return %c0_i32, %c0_i32_0 : i32, i32
  }
}

</mosaic_0001>

<llo_original>
// kernel: encoder_forward.1
$region0: #{encoder_forward.1}
  #allocation0 [shape = 'u32[]', space=smem, size = 0x4, offset = 0x4, fixed_abs, tag = 'smem constant byte address 0x4 - core index']
  #allocation1 [shape = 'u32[144,128]{1,0:T(1,128)}', space=vmem, size = 0x12000, scoped, tag = 'internal scratch']
  #allocation2 [shape = 'f32[128,8]{1,0:T(8,128)}', space=vmem, size = 0x10000, scoped, tag = 'scratch operand']
  #allocation3 [shape = 'f32[128,64]{1,0:T(8,128)}', space=vmem, size = 0x10000, scoped, tag = 'scratch operand']
  #allocation4 [shape = 'f32[128,128]{1,0:T(8,128)}', space=vmem, size = 0x10000, scoped, tag = 'scratch operand']
  #allocation5 [shape = 'f32[112,256]{1,0:T(8,128)}', space=vmem, size = 0x1c000, scoped, tag = 'scratch operand']
  #allocation6 [shape = 'f32[2,12800]{1,0:T(2,128)}', space=vmem, size = 0x19000, scoped, tag = 'scratch operand']
  #allocation7 [shape = 'bf16[3200,128]{1,0:T(16,128)(2,1)}', space=vmem, size = 0xc8000, scoped, tag = 'scratch operand']
  #allocation8 [shape = 's32[1]{0}', space=sflag, size = 0x4, scoped, tag = 'scratch operand']
  #allocation17 [shape = 's32[]', space=sflag, size = 0x4, offset = 0, fixed_abs, tag = 'sflag constant byte address 0x0 - dummy sync flag']
  #allocation18 [shape = 's32[]', space=sflag, size = 0x4, offset = 0, fixed_abs, tag = 'sflag constant byte address 0x0 - dummy sync flag']
  #allocation19 [shape = 'u32[]', space=smem, size = 0x4, offset = 0x44, fixed_abs, tag = 'smem constant byte address 0x44 - assertion arg 0']
  #allocation20 [shape = 'u32[]', space=smem, size = 0x4, offset = 0x48, fixed_abs, tag = 'smem constant byte address 0x48 - assertion arg 1']
  %s0 = inlined_call_operand.vmem [shape: f32[2,1,50,2], index: 0, kind: input, shape index: {}]
  %s1 = inlined_call_operand.vmem [shape: bf16[3,8,64], index: 1, kind: input, shape index: {}]
  %s2 = inlined_call_operand.vmem [shape: f32[1,64], index: 2, kind: input, shape index: {}]
  %s3 = inlined_call_operand.hbm [shape: bf16[3,64,128], index: 3, kind: input, shape index: {}]
  %s4 = inlined_call_operand.vmem [shape: f32[1,128], index: 4, kind: input, shape index: {}]
  %s5 = inlined_call_operand.hbm [shape: bf16[3,128,256], index: 5, kind: input, shape index: {}]
  %s6 = inlined_call_operand.vmem [shape: f32[1,256], index: 6, kind: input, shape index: {}]
  %s7 = inlined_call_operand.vmem [shape: f32[112,1], index: 7, kind: input, shape index: {}]
  %s8 = inlined_call_operand.hbm [shape: bf16[3200,128], index: 8, kind: input, shape index: {}]
  %s9 = inlined_call_operand.vmem [shape: f32[1,32], index: 9, kind: input, shape index: {}]
  %s10 = inlined_call_operand.hbm [shape: f32[2,16], index: 10, kind: output, shape index: {0}]
  %s11 = inlined_call_operand.hbm [shape: f32[2,16], index: 11, kind: output, shape index: {1}]
  %12 = xla_tuple %s10, %s11
  %s13 = sld [smem:[#allocation0]]
  $region66: #{encoder_forward.1} parent=0
    _
  %s15 = ssub.s32 1, %s13
  %s16 = scalar_select 0, %s15, %s13
  $region1: #{encoder_forward.1} parent=0
    #allocation9 [shape = 'u8[49152]{0}', space=vmem, size = 0xc000, scoped, tag = 'input window, operand 3, single buffered']
    #allocation10 [shape = 's32[1]{0}', space=sflag, size = 0x4, scoped, tag = 'scoped memory for encoder_forward.1']
    #allocation11 [shape = 's32[1]{0}', space=sflag, size = 0x4, scoped, tag = 'scoped memory for encoder_forward.1']
    #allocation12 [shape = 'u8[196608]{0}', space=vmem, size = 0x30000, scoped, tag = 'input window, operand 5, single buffered']
    #allocation13 [shape = 's32[1]{0}', space=sflag, size = 0x4, scoped, tag = 'scoped memory for encoder_forward.1']
    #allocation14 [shape = 'u8[1024]{0}', space=vmem, size = 0x400, scoped, tag = 'output window, operand 0, single buffered']
    #allocation15 [shape = 'u8[1024]{0}', space=vmem, size = 0x400, scoped, tag = 'output window, operand 1, single buffered']
    #allocation16 [shape = 's32[1]{0}', space=sflag, size = 0x4, scoped, tag = 'scoped memory for encoder_forward.1']
    %17 = vsyncpa [#allocation10], 0
    %18 = vsyncpa [#allocation13], 0
    %19 = vsyncpa [#allocation11], 0
    %20 = vsyncpa [#allocation16], 0
    // Predicated region
    $region2: #{encoder_forward.1} parent=1 // pred_check
      _
    $region3: #{encoder_forward.1} parent=1 // pred_check_branch
      %22 = sbr.rel (0) target = $region5
    $region4: #{encoder_forward.1} parent=1 // pred_region
      _
    $region5: #{encoder_forward.1} parent=1 // pred_fallthru
      _
    // Predicated region
    $region6: #{encoder_forward.1} parent=1 // pred_check
      _
    $region7: #{encoder_forward.1} parent=1 // pred_check_branch
      %24 = sbr.rel (0) target = $region9
    $region8: #{encoder_forward.1} parent=1 // pred_region
      _
    $region9: #{encoder_forward.1} parent=1 // pred_fallthru
      _
    // Predicated region
    $region10: #{encoder_forward.1} parent=1 // pred_check
      _
    $region11: #{encoder_forward.1} parent=1 // pred_check_branch
      %26 = sbr.rel (0) target = $region13
    $region12: #{encoder_forward.1} parent=1 // pred_region
      _
    $region13: #{encoder_forward.1} parent=1 // pred_fallthru
      _
    // Predicated region
    $region14: #{encoder_forward.1} parent=1 // pred_check
      _
    $region15: #{encoder_forward.1} parent=1 // pred_check_branch
      %28 = sbr.rel (0) target = $region17
    $region16: #{encoder_forward.1} parent=1 // pred_region
      %s30 = ssub.s32 1536, 1536
      %31 = vsyncadd [#allocation10], %s30
      %s32 = sshll.u32 [#allocation9], 4
      %s33 = int_to_ptr.vmem [resolvable:$true] %s32
      %38 = dma.hbm_to_vmem [thread:$0]  %s3, 1536, %s33, [#allocation10], 64, 64, 4
    $region17: #{encoder_forward.1} parent=1 // pred_fallthru
      _
    // Predicated region
    $region18: #{encoder_forward.1} parent=1 // pred_check
      _
    $region19: #{encoder_forward.1} parent=1 // pred_check_branch
      %40 = sbr.rel (0) target = $region21
    $region20: #{encoder_forward.1} parent=1 // pred_region
      _
    $region21: #{encoder_forward.1} parent=1 // pred_fallthru
      _
    // Predicated region
    $region22: #{encoder_forward.1} parent=1 // pred_check
      _
    $region23: #{encoder_forward.1} parent=1 // pred_check_branch
      %42 = sbr.rel (0) target = $region25
    $region24: #{encoder_forward.1} parent=1 // pred_region
      %s44 = ssub.s32 6144, 6144
      %45 = vsyncadd [#allocation13], %s44
      %s46 = sshll.u32 [#allocation12], 4
      %s47 = int_to_ptr.vmem [resolvable:$true] %s46
      %52 = dma.hbm_to_vmem [thread:$0]  %s5, 6144, %s47, [#allocation13], 128, 128, 8
    $region25: #{encoder_forward.1} parent=1 // pred_fallthru
      _
    // Predicated region
    $region26: #{encoder_forward.1} parent=1 // pred_check
      _
    $region27: #{encoder_forward.1} parent=1 // pred_check_branch
      %54 = sbr.rel (0) target = $region29
    $region28: #{encoder_forward.1} parent=1 // pred_region
      _
    $region29: #{encoder_forward.1} parent=1 // pred_fallthru
      _
    // Predicated region
    $region30: #{encoder_forward.1} parent=1 // pred_check
      _
    $region31: #{encoder_forward.1} parent=1 // pred_check_branch
      %56 = sbr.rel (0) target = $region33
    $region32: #{encoder_forward.1} parent=1 // pred_region
      _
    $region33: #{encoder_forward.1} parent=1 // pred_fallthru
      _
    // Predicated region
    $region34: #{encoder_forward.1} parent=1 // pred_check
      _
    $region35: #{encoder_forward.1} parent=1 // pred_check_branch
      %58 = sbr.rel (0) target = $region37
    $region36: #{encoder_forward.1} parent=1 // pred_region
      _
    $region37: #{encoder_forward.1} parent=1 // pred_fallthru
      _
    // Predicated region
    $region38: #{encoder_forward.1} parent=1 // pred_check
      _
    $region39: #{encoder_forward.1} parent=1 // pred_check_branch
      %60 = sbr.rel (0) target = $region41
    $region40: #{encoder_forward.1} parent=1 // pred_region
      %61 = dma.done [#allocation10], 1536
    $region41: #{encoder_forward.1} parent=1 // pred_fallthru
      _
    // Predicated region
    $region42: #{encoder_forward.1} parent=1 // pred_check
      _
    $region43: #{encoder_forward.1} parent=1 // pred_check_branch
      %63 = sbr.rel (0) target = $region45
    $region44: #{encoder_forward.1} parent=1 // pred_region
      %64 = dma.done [#allocation13], 6144
    $region45: #{encoder_forward.1} parent=1 // pred_fallthru
      _
    // Predicated region
    $region46: #{encoder_forward.1} parent=1 // pred_check
      _
    $region47: #{encoder_forward.1} parent=1 // pred_check_branch
      %67 = sbr.rel target = $region49
    $region48: #{encoder_forward.1} parent=1 // pred_region
      %68 = sst [smem:[#allocation19]] [#allocation18]
      %69 = sst [smem:[#allocation20]] [#allocation17]
    $region49: #{encoder_forward.1} parent=1 // pred_fallthru
      _
    %71 = shalt.err (0)
    %s73 = sshll.u32 [#allocation7], 4
    %s74 = int_to_ptr.vmem [resolvable:$true] %s73
    %76 = dma.hbm_to_vmem [thread:$0]  %s8, 25600, %s74, [#allocation8]
    %vm77 = vcmask 64512
    %78 = vst.msk [vmem:[#allocation2] sm:$0xff] %vm77, 0.0
    %79 = vst.msk [vmem:[#allocation2 + $0x8] sm:$0xff] %vm77, 0.0
    %80 = vst.msk [vmem:[#allocation2 + $0x10] sm:$0xff] %vm77, 0.0
    %81 = vst.msk [vmem:[#allocation2 + $0x18] sm:$0xff] %vm77, 0.0
    %82 = vst.msk [vmem:[#allocation2 + $0x20] sm:$0xff] %vm77, 0.0
    %83 = vst.msk [vmem:[#allocation2 + $0x28] sm:$0xff] %vm77, 0.0
    %84 = vst.msk [vmem:[#allocation2 + $0x30] sm:$0xff] %vm77, 0.0
    %85 = vst.msk [vmem:[#allocation2 + $0x38] sm:$0xff] %vm77, 0.0
    %86 = vst.msk [vmem:[#allocation2 + $0x40] sm:$0xff] %vm77, 0.0
    %87 = vst.msk [vmem:[#allocation2 + $0x48] sm:$0xff] %vm77, 0.0
    %88 = vst.msk [vmem:[#allocation2 + $0x50] sm:$0xff] %vm77, 0.0
    %89 = vst.msk [vmem:[#allocation2 + $0x58] sm:$0xff] %vm77, 0.0
    %90 = vst.msk [vmem:[#allocation2 + $0x60] sm:$0xff] %vm77, 0.0
    %91 = vst.msk [vmem:[#allocation2 + $0x68] sm:$0xff] %vm77, 0.0
    %92 = vst.msk [vmem:[#allocation2 + $0x70] sm:$0xff] %vm77, 0.0
    %93 = vst.msk [vmem:[#allocation2 + $0x78] sm:$0xff] %vm77, 0.0
    %vm94 = vcmask 523264
    %95 = vst.msk [vmem:[#allocation3] sm:$0xff] %vm94, 0.0
    %96 = vst.msk [vmem:[#allocation3 + $0x8] sm:$0xff] %vm94, 0.0
    %97 = vst.msk [vmem:[#allocation3 + $0x10] sm:$0xff] %vm94, 0.0
    %98 = vst.msk [vmem:[#allocation3 + $0x18] sm:$0xff] %vm94, 0.0
    %99 = vst.msk [vmem:[#allocation3 + $0x20] sm:$0xff] %vm94, 0.0
    %100 = vst.msk [vmem:[#allocation3 + $0x28] sm:$0xff] %vm94, 0.0
    %101 = vst.msk [vmem:[#allocation3 + $0x30] sm:$0xff] %vm94, 0.0
    %102 = vst.msk [vmem:[#allocation3 + $0x38] sm:$0xff] %vm94, 0.0
    %103 = vst.msk [vmem:[#allocation3 + $0x40] sm:$0xff] %vm94, 0.0
    %104 = vst.msk [vmem:[#allocation3 + $0x48] sm:$0xff] %vm94, 0.0
    %105 = vst.msk [vmem:[#allocation3 + $0x50] sm:$0xff] %vm94, 0.0
    %106 = vst.msk [vmem:[#allocation3 + $0x58] sm:$0xff] %vm94, 0.0
    %107 = vst.msk [vmem:[#allocation3 + $0x60] sm:$0xff] %vm94, 0.0
    %108 = vst.msk [vmem:[#allocation3 + $0x68] sm:$0xff] %vm94, 0.0
    %109 = vst.msk [vmem:[#allocation3 + $0x70] sm:$0xff] %vm94, 0.0
    %110 = vst.msk [vmem:[#allocation3 + $0x78] sm:$0xff] %vm94, 0.0
    %111 = vst [vmem:[#allocation4] sm:$0xff] 0.0
    %112 = vst [vmem:[#allocation4 + $0x8] sm:$0xff] 0.0
    %113 = vst [vmem:[#allocation4 + $0x10] sm:$0xff] 0.0
    %114 = vst [vmem:[#allocation4 + $0x18] sm:$0xff] 0.0
    %115 = vst [vmem:[#allocation4 + $0x20] sm:$0xff] 0.0
    %116 = vst [vmem:[#allocation4 + $0x28] sm:$0xff] 0.0
    %117 = vst [vmem:[#allocation4 + $0x30] sm:$0xff] 0.0
    %118 = vst [vmem:[#allocation4 + $0x38] sm:$0xff] 0.0
    %119 = vst [vmem:[#allocation4 + $0x40] sm:$0xff] 0.0
    %120 = vst [vmem:[#allocation4 + $0x48] sm:$0xff] 0.0
    %121 = vst [vmem:[#allocation4 + $0x50] sm:$0xff] 0.0
    %122 = vst [vmem:[#allocation4 + $0x58] sm:$0xff] 0.0
    %123 = vst [vmem:[#allocation4 + $0x60] sm:$0xff] 0.0
    %124 = vst [vmem:[#allocation4 + $0x68] sm:$0xff] 0.0
    %125 = vst [vmem:[#allocation4 + $0x70] sm:$0xff] 0.0
    %126 = vst [vmem:[#allocation4 + $0x78] sm:$0xff] 0.0
    %v127 = vld [vmem:[%s0] sm:$0xff]
    %v128 = vld [vmem:[%s0 + $0x8] sm:$0xff]
    %v129 = vld [vmem:[%s0 + $0x10] sm:$0xff]
    %v130 = vld [vmem:[%s0 + $0x18] sm:$0xff]
    %v131 = vld [vmem:[%s0 + $0x20] sm:$0xff]
    %v132 = vld [vmem:[%s0 + $0x28] sm:$0xff]
    %v133 = vld [vmem:[%s0 + $0x30] sm:$0x3]
    %vm134 = vcmask 15360
    %135 = vst.msk [vmem:[#allocation2 + $0x9] sm:$0xff] %vm134, %v127
    %136 = vst.msk [vmem:[#allocation2 + $0x11] sm:$0xff] %vm134, %v128
    %137 = vst.msk [vmem:[#allocation2 + $0x19] sm:$0xff] %vm134, %v129
    %138 = vst.msk [vmem:[#allocation2 + $0x21] sm:$0xff] %vm134, %v130
    %139 = vst.msk [vmem:[#allocation2 + $0x29] sm:$0xff] %vm134, %v131
    %140 = vst.msk [vmem:[#allocation2 + $0x31] sm:$0xff] %vm134, %v132
    %vm141 = vcmask 9216
    %142 = vst.msk [vmem:[#allocation2 + $0x39] sm:$0x3] %vm141, %v133
    %s143 = scalar_lea.vmem %s0, 56
    %v144 = vld [vmem:[%s143] sm:$0xff]
    %v145 = vld [vmem:[%s143 + $0x8] sm:$0xff]
    %v146 = vld [vmem:[%s143 + $0x10] sm:$0xff]
    %v147 = vld [vmem:[%s143 + $0x18] sm:$0xff]
    %v148 = vld [vmem:[%s143 + $0x20] sm:$0xff]
    %v149 = vld [vmem:[%s143 + $0x28] sm:$0xff]
    %v150 = vld [vmem:[%s143 + $0x30] sm:$0x3]
    %151 = vst.msk [vmem:[#allocation2 + $0x41] sm:$0xff] %vm134, %v144
    %152 = vst.msk [vmem:[#allocation2 + $0x49] sm:$0xff] %vm134, %v145
    %153 = vst.msk [vmem:[#allocation2 + $0x51] sm:$0xff] %vm134, %v146
    %154 = vst.msk [vmem:[#allocation2 + $0x59] sm:$0xff] %vm134, %v147
    %155 = vst.msk [vmem:[#allocation2 + $0x61] sm:$0xff] %vm134, %v148
    %156 = vst.msk [vmem:[#allocation2 + $0x69] sm:$0xff] %vm134, %v149
    %157 = vst.msk [vmem:[#allocation2 + $0x71] sm:$0x3] %vm141, %v150
    %v158 = vld [vmem:[%s7] sm:$0xff]
    %v159 = vld [vmem:[%s7 + $0x8] sm:$0xff]
    %v160 = vld [vmem:[%s7 + $0x10] sm:$0xff]
    %v161 = vld [vmem:[%s7 + $0x18] sm:$0xff]
    %v162 = vld [vmem:[%s7 + $0x20] sm:$0xff]
    %v163 = vld [vmem:[%s7 + $0x28] sm:$0xff]
    %v164 = vld [vmem:[%s7 + $0x30] sm:$0xff]
    %v165 = vld [vmem:[%s7 + $0x38] sm:$0xff]
    %v166 = vld [vmem:[%s7 + $0x40] sm:$0xff]
    %v167 = vld [vmem:[%s7 + $0x48] sm:$0xff]
    %v168 = vld [vmem:[%s7 + $0x50] sm:$0xff]
    %v169 = vld [vmem:[%s7 + $0x58] sm:$0xff]
    %v170 = vld [vmem:[%s7 + $0x60] sm:$0xff]
    %v171 = vld [vmem:[%s7 + $0x68] sm:$0xff]
    %v172 = vld [vmem:[#allocation2 + $0x7] sm:$0xff]
    %v173 = vld [vmem:[#allocation2 + $0xf] sm:$0xff]
    %v174 = vld [vmem:[#allocation2 + $0x17] sm:$0xff]
    %v175 = vld [vmem:[#allocation2 + $0x1f] sm:$0xff]
    %v176 = vld [vmem:[#allocation2 + $0x27] sm:$0xff]
    %v177 = vld [vmem:[#allocation2 + $0x2f] sm:$0xff]
    %v178 = vld [vmem:[#allocation2 + $0x37] sm:$0xff]
    %v179 = vld [vmem:[#allocation2 + $0x3f] sm:$0xff]
    %v180 = vld [vmem:[#allocation2 + $0x47] sm:$0xff]
    %v181 = vld [vmem:[#allocation2 + $0x4f] sm:$0xff]
    %v182 = vld [vmem:[#allocation2 + $0x57] sm:$0xff]
    %v183 = vld [vmem:[#allocation2 + $0x5f] sm:$0xff]
    %v184 = vld [vmem:[#allocation2 + $0x67] sm:$0xff]
    %v185 = vld [vmem:[#allocation2 + $0x6f] sm:$0xff]
    %v186 = vpack.c.bf16 %v173, %v172
    %v187 = vpack.c.bf16 %v175, %v174
    %v188 = vpack.c.bf16 %v177, %v176
    %v189 = vpack.c.bf16 %v179, %v178
    %v190 = vpack.c.bf16 %v181, %v180
    %v191 = vpack.c.bf16 %v183, %v182
    %v192 = vpack.c.bf16 %v185, %v184
    %v193 = vld [vmem:[%s1] sm:$0xf]
    %v194 = vld [vmem:[#allocation2 + $0x8] sm:$0xff]
    %v195 = vld [vmem:[#allocation2 + $0x10] sm:$0xff]
    %v196 = vld [vmem:[#allocation2 + $0x18] sm:$0xff]
    %v197 = vld [vmem:[#allocation2 + $0x20] sm:$0xff]
    %v198 = vld [vmem:[#allocation2 + $0x28] sm:$0xff]
    %v199 = vld [vmem:[#allocation2 + $0x30] sm:$0xff]
    %v200 = vld [vmem:[#allocation2 + $0x38] sm:$0xff]
    %v201 = vld [vmem:[#allocation2 + $0x40] sm:$0xff]
    %v202 = vld [vmem:[#allocation2 + $0x48] sm:$0xff]
    %v203 = vld [vmem:[#allocation2 + $0x50] sm:$0xff]
    %v204 = vld [vmem:[#allocation2 + $0x58] sm:$0xff]
    %v205 = vld [vmem:[#allocation2 + $0x60] sm:$0xff]
    %v206 = vld [vmem:[#allocation2 + $0x68] sm:$0xff]
    %v207 = vld [vmem:[#allocation2 + $0x70] sm:$0xff]
    %v208 = vpack.c.bf16 %v195, %v194
    %v209 = vpack.c.bf16 %v197, %v196
    %v210 = vpack.c.bf16 %v199, %v198
    %v211 = vpack.c.bf16 %v201, %v200
    %v212 = vpack.c.bf16 %v203, %v202
    %v213 = vpack.c.bf16 %v205, %v204
    %v214 = vpack.c.bf16 %v207, %v206
    %s215 = scalar_lea.vmem %s1, 4
    %v216 = vld [vmem:[%s215] sm:$0xf]
    %v218 = vsel %vm77, %v208, 0
    %v221 = vsel %vm77, %v209, 0
    %v224 = vsel %vm77, %v210, 0
    %v227 = vsel %vm77, %v211, 0
    %v230 = vsel %vm77, %v212, 0
    %v233 = vsel %vm77, %v213, 0
    %v236 = vsel %vm77, %v214, 0
    %vm238 = vcmask 1043456
    %v240 = vsel %vm238, %v216, 0
    %242 = vmatprep.subr.bf16.mxu0 0
    %243 = vmatpush1.bf16.msra.mxu0 %v240
    %244 = vmatprep.subr.bf16.mxu0 0
    %245 = vmatpush1.bf16.msra.mxu0 0
    %246 = vmatprep.subr.bf16.mxu0 0
    %247 = vmatpush1.bf16.msra.mxu0 0
    %248 = vmatprep.subr.bf16.mxu0 0
    %249 = vmatpush1.bf16.msra.mxu0 0
    %250 = vmatprep.subr.bf16.mxu0 0
    %251 = vmatpush1.bf16.msra.mxu0 0
    %252 = vmatprep.subr.bf16.mxu0 0
    %253 = vmatpush1.bf16.msra.mxu0 0
    %254 = vmatprep.subr.bf16.mxu0 0
    %255 = vmatpush1.bf16.msra.mxu0 0
    %256 = vmatprep.subr.bf16.mxu0 0
    %257 = vmatpush1.bf16.msra.mxu0 0
    %258 = vmatprep.subr.bf16.mxu0 0
    %259 = vmatpush1.bf16.msra.mxu0 0
    %260 = vmatprep.subr.bf16.mxu0 0
    %261 = vmatpush1.bf16.msra.mxu0 0
    %262 = vmatprep.subr.bf16.mxu0 0
    %263 = vmatpush1.bf16.msra.mxu0 0
    %264 = vmatprep.subr.bf16.mxu0 0
    %265 = vmatpush1.bf16.msra.mxu0 0
    %266 = vmatprep.subr.bf16.mxu0 0
    %267 = vmatpush1.bf16.msra.mxu0 0
    %268 = vmatprep.subr.bf16.mxu0 0
    %269 = vmatpush1.bf16.msra.mxu0 0
    %270 = vmatprep.subr.bf16.mxu0 0
    %271 = vmatpush1.bf16.msra.mxu0 0
    %272 = vmatprep.subr.bf16.mxu0 0
    %273 = vmatpush1.bf16.msra.mxu0 0
    %274 = vmatprep.mubr.bf16.mxu0 0
    %275 = vmatmul.mubr.bf16.gmra.mrb[0].mxu0 %v218
    %v276 = vpop.f32.mrb[0].mxu0
    %v277 = vadd.f32 0.0, %v276
    %v278 = vpop.f32.mrb[0].mxu0
    %v279 = vpop.f32.mrb[0].mxu0
    %v280 = vadd.f32 0.0, %v279
    %v281 = vpop.f32.mrb[0].mxu0
    %282 = vmatprep.mubr.bf16.mxu0 0
    %283 = vmatmul.mubr.bf16.gmra.mrb[0].mxu0 %v221
    %v284 = vpop.f32.mrb[0].mxu0
    %v285 = vadd.f32 0.0, %v284
    %v286 = vpop.f32.mrb[0].mxu0
    %v287 = vpop.f32.mrb[0].mxu0
    %v288 = vadd.f32 0.0, %v287
    %v289 = vpop.f32.mrb[0].mxu0
    %290 = vmatprep.mubr.bf16.mxu0 0
    %291 = vmatmul.mubr.bf16.gmra.mrb[0].mxu0 %v224
    %v292 = vpop.f32.mrb[0].mxu0
    %v293 = vadd.f32 0.0, %v292
    %v294 = vpop.f32.mrb[0].mxu0
    %v295 = vpop.f32.mrb[0].mxu0
    %v296 = vadd.f32 0.0, %v295
    %v297 = vpop.f32.mrb[0].mxu0
    %298 = vmatprep.mubr.bf16.mxu0 0
    %299 = vmatmul.mubr.bf16.gmra.mrb[0].mxu0 %v227
    %v300 = vpop.f32.mrb[0].mxu0
    %v301 = vadd.f32 0.0, %v300
    %v302 = vpop.f32.mrb[0].mxu0
    %v303 = vpop.f32.mrb[0].mxu0
    %v304 = vadd.f32 0.0, %v303
    %v305 = vpop.f32.mrb[0].mxu0
    %306 = vmatprep.mubr.bf16.mxu0 0
    %307 = vmatmul.mubr.bf16.gmra.mrb[0].mxu0 %v230
    %v308 = vpop.f32.mrb[0].mxu0
    %v309 = vadd.f32 0.0, %v308
    %v310 = vpop.f32.mrb[0].mxu0
    %v311 = vpop.f32.mrb[0].mxu0
    %v312 = vadd.f32 0.0, %v311
    %v313 = vpop.f32.mrb[0].mxu0
    %314 = vmatprep.mubr.bf16.mxu0 0
    %315 = vmatmul.mubr.bf16.gmra.mrb[0].mxu0 %v233
    %v316 = vpop.f32.mrb[0].mxu0
    %v317 = vadd.f32 0.0, %v316
    %v318 = vpop.f32.mrb[0].mxu0
    %v319 = vpop.f32.mrb[0].mxu0
    %v320 = vadd.f32 0.0, %v319
    %v321 = vpop.f32.mrb[0].mxu0
    %322 = vmatprep.mubr.bf16.mxu0 0
    %323 = vmatmul.mubr.bf16.gmra.mrb[0].mxu0 %v236
    %v324 = vpop.f32.mrb[0].mxu0
    %v325 = vadd.f32 0.0, %v324
    %v326 = vpop.f32.mrb[0].mxu0
    %v327 = vpop.f32.mrb[0].mxu0
    %v328 = vadd.f32 0.0, %v327
    %v329 = vpop.f32.mrb[0].mxu0
    %330 = vdwg.mxu0
    %v332 = vsel %vm77, %v186, 0
    %v335 = vsel %vm77, %v187, 0
    %v338 = vsel %vm77, %v188, 0
    %v341 = vsel %vm77, %v189, 0
    %v344 = vsel %vm77, %v190, 0
    %v347 = vsel %vm77, %v191, 0
    %v350 = vsel %vm77, %v192, 0
    %v353 = vsel %vm238, %v193, 0
    %355 = vmatprep.subr.bf16.mxu0 0
    %356 = vmatpush1.bf16.msra.mxu0 %v353
    %357 = vmatprep.subr.bf16.mxu0 0
    %358 = vmatpush1.bf16.msra.mxu0 0
    %359 = vmatprep.subr.bf16.mxu0 0
    %360 = vmatpush1.bf16.msra.mxu0 0
    %361 = vmatprep.subr.bf16.mxu0 0
    %362 = vmatpush1.bf16.msra.mxu0 0
    %363 = vmatprep.subr.bf16.mxu0 0
    %364 = vmatpush1.bf16.msra.mxu0 0
    %365 = vmatprep.subr.bf16.mxu0 0
    %366 = vmatpush1.bf16.msra.mxu0 0
    %367 = vmatprep.subr.bf16.mxu0 0
    %368 = vmatpush1.bf16.msra.mxu0 0
    %369 = vmatprep.subr.bf16.mxu0 0
    %370 = vmatpush1.bf16.msra.mxu0 0
    %371 = vmatprep.subr.bf16.mxu0 0
    %372 = vmatpush1.bf16.msra.mxu0 0
    %373 = vmatprep.subr.bf16.mxu0 0
    %374 = vmatpush1.bf16.msra.mxu0 0
    %375 = vmatprep.subr.bf16.mxu0 0
    %376 = vmatpush1.bf16.msra.mxu0 0
    %377 = vmatprep.subr.bf16.mxu0 0
    %378 = vmatpush1.bf16.msra.mxu0 0
    %379 = vmatprep.subr.bf16.mxu0 0
    %380 = vmatpush1.bf16.msra.mxu0 0
    %381 = vmatprep.subr.bf16.mxu0 0
    %382 = vmatpush1.bf16.msra.mxu0 0
    %383 = vmatprep.subr.bf16.mxu0 0
    %384 = vmatpush1.bf16.msra.mxu0 0
    %385 = vmatprep.subr.bf16.mxu0 0
    %386 = vmatpush1.bf16.msra.mxu0 0
    %387 = vmatprep.mubr.bf16.mxu0 0
    %388 = vmatmul.mubr.bf16.gmra.mrb[0].mxu0 %v332
    %v389 = vpop.f32.mrb[0].mxu0
    %v390 = vadd.f32 %v277, %v389
    %v391 = vpop.f32.mrb[0].mxu0
    %v392 = vpop.f32.mrb[0].mxu0
    %v393 = vadd.f32 %v280, %v392
    %v394 = vpop.f32.mrb[0].mxu0
    %395 = vmatprep.mubr.bf16.mxu0 0
    %396 = vmatmul.mubr.bf16.gmra.mrb[0].mxu0 %v335
    %v397 = vpop.f32.mrb[0].mxu0
    %v398 = vadd.f32 %v285, %v397
    %v399 = vpop.f32.mrb[0].mxu0
    %v400 = vpop.f32.mrb[0].mxu0
    %v401 = vadd.f32 %v288, %v400
    %v402 = vpop.f32.mrb[0].mxu0
    %403 = vmatprep.mubr.bf16.mxu0 0
    %404 = vmatmul.mubr.bf16.gmra.mrb[0].mxu0 %v338
    %v405 = vpop.f32.mrb[0].mxu0
    %v406 = vadd.f32 %v293, %v405
    %v407 = vpop.f32.mrb[0].mxu0
    %v408 = vpop.f32.mrb[0].mxu0
    %v409 = vadd.f32 %v296, %v408
    %v410 = vpop.f32.mrb[0].mxu0
    %411 = vmatprep.mubr.bf16.mxu0 0
    %412 = vmatmul.mubr.bf16.gmra.mrb[0].mxu0 %v341
    %v413 = vpop.f32.mrb[0].mxu0
    %v414 = vadd.f32 %v301, %v413
    %v415 = vpop.f32.mrb[0].mxu0
    %v416 = vpop.f32.mrb[0].mxu0
    %v417 = vadd.f32 %v304, %v416
    %v418 = vpop.f32.mrb[0].mxu0
    %419 = vmatprep.mubr.bf16.mxu0 0
    %420 = vmatmul.mubr.bf16.gmra.mrb[0].mxu0 %v344
    %v421 = vpop.f32.mrb[0].mxu0
    %v422 = vadd.f32 %v309, %v421
    %v423 = vpop.f32.mrb[0].mxu0
    %v424 = vpop.f32.mrb[0].mxu0
    %v425 = vadd.f32 %v312, %v424
    %v426 = vpop.f32.mrb[0].mxu0
    %427 = vmatprep.mubr.bf16.mxu0 0
    %428 = vmatmul.mubr.bf16.gmra.mrb[0].mxu0 %v347
    %v429 = vpop.f32.mrb[0].mxu0
    %v430 = vadd.f32 %v317, %v429
    %v431 = vpop.f32.mrb[0].mxu0
    %v432 = vpop.f32.mrb[0].mxu0
    %v433 = vadd.f32 %v320, %v432
    %v434 = vpop.f32.mrb[0].mxu0
    %435 = vmatprep.mubr.bf16.mxu0 0
    %436 = vmatmul.mubr.bf16.gmra.mrb[0].mxu0 %v350
    %v437 = vpop.f32.mrb[0].mxu0
    %v438 = vadd.f32 %v325, %v437
    %v439 = vpop.f32.mrb[0].mxu0
    %v440 = vpop.f32.mrb[0].mxu0
    %v441 = vadd.f32 %v328, %v440
    %v442 = vpop.f32.mrb[0].mxu0
    %443 = vdwg.mxu0
    %v444 = vld [vmem:[#allocation2 + $0x9] sm:$0xff]
    %v445 = vld [vmem:[#allocation2 + $0x11] sm:$0xff]
    %v446 = vld [vmem:[#allocation2 + $0x19] sm:$0xff]
    %v447 = vld [vmem:[#allocation2 + $0x21] sm:$0xff]
    %v448 = vld [vmem:[#allocation2 + $0x29] sm:$0xff]
    %v449 = vld [vmem:[#allocation2 + $0x31] sm:$0xff]
    %v450 = vld [vmem:[#allocation2 + $0x39] sm:$0xff]
    %v451 = vld [vmem:[#allocation2 + $0x41] sm:$0xff]
    %v452 = vld [vmem:[#allocation2 + $0x49] sm:$0xff]
    %v453 = vld [vmem:[#allocation2 + $0x51] sm:$0xff]
    %v454 = vld [vmem:[#allocation2 + $0x59] sm:$0xff]
    %v455 = vld [vmem:[#allocation2 + $0x61] sm:$0xff]
    %v456 = vld [vmem:[#allocation2 + $0x69] sm:$0xff]
    %v457 = vld [vmem:[#allocation2 + $0x71] sm:$0xff]
    %v458 = vpack.c.bf16 %v445, %v444
    %v459 = vpack.c.bf16 %v447, %v446
    %v460 = vpack.c.bf16 %v449, %v448
    %v461 = vpack.c.bf16 %v451, %v450
    %v462 = vpack.c.bf16 %v453, %v452
    %v463 = vpack.c.bf16 %v455, %v454
    %v464 = vpack.c.bf16 %v457, %v456
    %s465 = scalar_lea.vmem %s1, 8
    %v466 = vld [vmem:[%s465] sm:$0xf]
    %v468 = vsel %vm77, %v458, 0
    %v471 = vsel %vm77, %v459, 0
    %v474 = vsel %vm77, %v460, 0
    %v477 = vsel %vm77, %v461, 0
    %v480 = vsel %vm77, %v462, 0
    %v483 = vsel %vm77, %v463, 0
    %v486 = vsel %vm77, %v464, 0
    %v489 = vsel %vm238, %v466, 0
    %491 = vmatprep.subr.bf16.mxu0 0
    %492 = vmatpush1.bf16.msra.mxu0 %v489
    %493 = vmatprep.subr.bf16.mxu0 0
    %494 = vmatpush1.bf16.msra.mxu0 0
    %495 = vmatprep.subr.bf16.mxu0 0
    %496 = vmatpush1.bf16.msra.mxu0 0
    %497 = vmatprep.subr.bf16.mxu0 0
    %498 = vmatpush1.bf16.msra.mxu0 0
    %499 = vmatprep.subr.bf16.mxu0 0
    %500 = vmatpush1.bf16.msra.mxu0 0
    %501 = vmatprep.subr.bf16.mxu0 0
    %502 = vmatpush1.bf16.msra.mxu0 0
    %503 = vmatprep.subr.bf16.mxu0 0
    %504 = vmatpush1.bf16.msra.mxu0 0
    %505 = vmatprep.subr.bf16.mxu0 0
    %506 = vmatpush1.bf16.msra.mxu0 0
    %507 = vmatprep.subr.bf16.mxu0 0
    %508 = vmatpush1.bf16.msra.mxu0 0
    %509 = vmatprep.subr.bf16.mxu0 0
    %510 = vmatpush1.bf16.msra.mxu0 0
    %511 = vmatprep.subr.bf16.mxu0 0
    %512 = vmatpush1.bf16.msra.mxu0 0
    %513 = vmatprep.subr.bf16.mxu0 0
    %514 = vmatpush1.bf16.msra.mxu0 0
    %515 = vmatprep.subr.bf16.mxu0 0
    %516 = vmatpush1.bf16.msra.mxu0 0
    %517 = vmatprep.subr.bf16.mxu0 0
    %518 = vmatpush1.bf16.msra.mxu0 0
    %519 = vmatprep.subr.bf16.mxu0 0
    %520 = vmatpush1.bf16.msra.mxu0 0
    %521 = vmatprep.subr.bf16.mxu0 0
    %522 = vmatpush1.bf16.msra.mxu0 0
    %523 = vmatprep.mubr.bf16.mxu0 0
    %524 = vmatmul.mubr.bf16.gmra.mrb[0].mxu0 %v468
    %v525 = vpop.f32.mrb[0].mxu0
    %v526 = vadd.f32 0.0, %v525
    %v527 = vpop.f32.mrb[0].mxu0
    %v528 = vpop.f32.mrb[0].mxu0
    %v529 = vadd.f32 0.0, %v528
    %v530 = vpop.f32.mrb[0].mxu0
    %531 = vmatprep.mubr.bf16.mxu0 0
    %532 = vmatmul.mubr.bf16.gmra.mrb[0].mxu0 %v471
    %v533 = vpop.f32.mrb[0].mxu0
    %v534 = vadd.f32 0.0, %v533
    %v535 = vpop.f32.mrb[0].mxu0
    %v536 = vpop.f32.mrb[0].mxu0
    %v537 = vadd.f32 0.0, %v536
    %v538 = vpop.f32.mrb[0].mxu0
    %539 = vmatprep.mubr.bf16.mxu0 0
    %540 = vmatmul.mubr.bf16.gmra.mrb[0].mxu0 %v474
    %v541 = vpop.f32.mrb[0].mxu0
    %v542 = vadd.f32 0.0, %v541
    %v543 = vpop.f32.mrb[0].mxu0
    %v544 = vpop.f32.mrb[0].mxu0
    %v545 = vadd.f32 0.0, %v544
    %v546 = vpop.f32.mrb[0].mxu0
    %547 = vmatprep.mubr.bf16.mxu0 0
    %548 = vmatmul.mubr.bf16.gmra.mrb[0].mxu0 %v477
    %v549 = vpop.f32.mrb[0].mxu0
    %v550 = vadd.f32 0.0, %v549
    %v551 = vpop.f32.mrb[0].mxu0
    %v552 = vpop.f32.mrb[0].mxu0
    %v553 = vadd.f32 0.0, %v552
    %v554 = vpop.f32.mrb[0].mxu0
    %555 = vmatprep.mubr.bf16.mxu0 0
    %556 = vmatmul.mubr.bf16.gmra.mrb[0].mxu0 %v480
    %v557 = vpop.f32.mrb[0].mxu0
    %v558 = vadd.f32 0.0, %v557
    %v559 = vpop.f32.mrb[0].mxu0
    %v560 = vpop.f32.mrb[0].mxu0
    %v561 = vadd.f32 0.0, %v560
    %v562 = vpop.f32.mrb[0].mxu0
    %563 = vmatprep.mubr.bf16.mxu0 0
    %564 = vmatmul.mubr.bf16.gmra.mrb[0].mxu0 %v483
    %v565 = vpop.f32.mrb[0].mxu0
    %v566 = vadd.f32 0.0, %v565
    %v567 = vpop.f32.mrb[0].mxu0
    %v568 = vpop.f32.mrb[0].mxu0
    %v569 = vadd.f32 0.0, %v568
    %v570 = vpop.f32.mrb[0].mxu0
    %571 = vmatprep.mubr.bf16.mxu0 0
    %572 = vmatmul.mubr.bf16.gmra.mrb[0].mxu0 %v486
    %v573 = vpop.f32.mrb[0].mxu0
    %v574 = vadd.f32 0.0, %v573
    %v575 = vpop.f32.mrb[0].mxu0
    %v576 = vpop.f32.mrb[0].mxu0
    %v577 = vadd.f32 0.0, %v576
    %v578 = vpop.f32.mrb[0].mxu0
    %579 = vdwg.mxu0
    %v580 = vadd.f32 %v390, %v526
    %v581 = vadd.f32 %v393, %v529
    %v582 = vadd.f32 %v398, %v534
    %v583 = vadd.f32 %v401, %v537
    %v584 = vadd.f32 %v406, %v542
    %v585 = vadd.f32 %v409, %v545
    %v586 = vadd.f32 %v414, %v550
    %v587 = vadd.f32 %v417, %v553
    %v588 = vadd.f32 %v422, %v558
    %v589 = vadd.f32 %v425, %v561
    %v590 = vadd.f32 %v430, %v566
    %v591 = vadd.f32 %v433, %v569
    %v592 = vadd.f32 %v438, %v574
    %v593 = vadd.f32 %v441, %v577
    %v594 = vld [vmem:[%s2] sm:$0x1]
    %v596 = vlaneseq
    %v597 = vshrl.u32 %v596, 7
    %v598 = vsub.s32 0, %v597
    %v599 = vrot.slane %v594, %v598
    %v601 = vadd.f32 %v580, %v599
    %v602 = vadd.f32 %v581, %v599
    %v603 = vadd.f32 %v582, %v599
    %v604 = vadd.f32 %v583, %v599
    %v605 = vadd.f32 %v584, %v599
    %v606 = vadd.f32 %v585, %v599
    %v607 = vadd.f32 %v586, %v599
    %v608 = vadd.f32 %v587, %v599
    %v609 = vadd.f32 %v588, %v599
    %v610 = vadd.f32 %v589, %v599
    %v611 = vadd.f32 %v590, %v599
    %v612 = vadd.f32 %v591, %v599
    %v613 = vadd.f32 %v592, %v599
    %v614 = vadd.f32 %v593, %v599
    %v615 = vmax.f32 %v601, 0.0
    %v616 = vmax.f32 %v602, 0.0
    %v617 = vmax.f32 %v603, 0.0
    %v618 = vmax.f32 %v604, 0.0
    %v619 = vmax.f32 %v605, 0.0
    %v620 = vmax.f32 %v606, 0.0
    %v621 = vmax.f32 %v607, 0.0
    %v622 = vmax.f32 %v608, 0.0
    %v623 = vmax.f32 %v609, 0.0
    %v624 = vmax.f32 %v610, 0.0
    %v625 = vmax.f32 %v611, 0.0
    %v626 = vmax.f32 %v612, 0.0
    %v627 = vmax.f32 %v613, 0.0
    %v628 = vmax.f32 %v614, 0.0
    %630 = vset.pattern.permute.xlu0 0
    %631 = vperm.xlu0 %630, %v158
    %v632 = vpop.permute.xlu0 %631
    %635 = vset.pattern.permute.xlu0 0
    %636 = vperm.xlu0 %635, %v159
    %v637 = vpop.permute.xlu0 %636
    %640 = vset.pattern.permute.xlu0 0
    %641 = vperm.xlu0 %640, %v160
    %v642 = vpop.permute.xlu0 %641
    %645 = vset.pattern.permute.xlu0 0
    %646 = vperm.xlu0 %645, %v161
    %v647 = vpop.permute.xlu0 %646
    %650 = vset.pattern.permute.xlu0 0
    %651 = vperm.xlu0 %650, %v162
    %v652 = vpop.permute.xlu0 %651
    %655 = vset.pattern.permute.xlu0 0
    %656 = vperm.xlu0 %655, %v163
    %v657 = vpop.permute.xlu0 %656
    %660 = vset.pattern.permute.xlu0 0
    %661 = vperm.xlu0 %660, %v164
    %v662 = vpop.permute.xlu0 %661
    %665 = vset.pattern.permute.xlu0 0
    %666 = vperm.xlu0 %665, %v165
    %v667 = vpop.permute.xlu0 %666
    %670 = vset.pattern.permute.xlu0 0
    %671 = vperm.xlu0 %670, %v166
    %v672 = vpop.permute.xlu0 %671
    %675 = vset.pattern.permute.xlu0 0
    %676 = vperm.xlu0 %675, %v167
    %v677 = vpop.permute.xlu0 %676
    %680 = vset.pattern.permute.xlu0 0
    %681 = vperm.xlu0 %680, %v168
    %v682 = vpop.permute.xlu0 %681
    %685 = vset.pattern.permute.xlu0 0
    %686 = vperm.xlu0 %685, %v169
    %v687 = vpop.permute.xlu0 %686
    %690 = vset.pattern.permute.xlu0 0
    %691 = vperm.xlu0 %690, %v170
    %v692 = vpop.permute.xlu0 %691
    %695 = vset.pattern.permute.xlu0 0
    %696 = vperm.xlu0 %695, %v171
    %v697 = vpop.permute.xlu0 %696
    %v699 = vmul.f32 %v615, %v632
    %v700 = vmul.f32 %v616, %v637
    %v701 = vmul.f32 %v617, %v642
    %v702 = vmul.f32 %v618, %v647
    %v703 = vmul.f32 %v619, %v652
    %v704 = vmul.f32 %v620, %v657
    %v705 = vmul.f32 %v621, %v662
    %v706 = vmul.f32 %v622, %v667
    %v707 = vmul.f32 %v623, %v672
    %v708 = vmul.f32 %v624, %v677
    %v709 = vmul.f32 %v625, %v682
    %v710 = vmul.f32 %v626, %v687
    %v711 = vmul.f32 %v627, %v692
    %v712 = vmul.f32 %v628, %v697
    %713 = vst.msk [vmem:[#allocation3 + $0x8] sm:$0xff] %vm94, %v699
    %714 = vst.msk [vmem:[#allocation3 + $0x10] sm:$0xff] %vm94, %v700
    %715 = vst.msk [vmem:[#allocation3 + $0x18] sm:$0xff] %vm94, %v701
    %716 = vst.msk [vmem:[#allocation3 + $0x20] sm:$0xff] %vm94, %v702
    %717 = vst.msk [vmem:[#allocation3 + $0x28] sm:$0xff] %vm94, %v703
    %718 = vst.msk [vmem:[#allocation3 + $0x30] sm:$0xff] %vm94, %v704
    %719 = vst.msk [vmem:[#allocation3 + $0x38] sm:$0xff] %vm94, %v705
    %720 = vst.msk [vmem:[#allocation3 + $0x40] sm:$0xff] %vm94, %v706
    %721 = vst.msk [vmem:[#allocation3 + $0x48] sm:$0xff] %vm94, %v707
    %722 = vst.msk [vmem:[#allocation3 + $0x50] sm:$0xff] %vm94, %v708
    %723 = vst.msk [vmem:[#allocation3 + $0x58] sm:$0xff] %vm94, %v709
    %724 = vst.msk [vmem:[#allocation3 + $0x60] sm:$0xff] %vm94, %v710
    %725 = vst.msk [vmem:[#allocation3 + $0x68] sm:$0xff] %vm94, %v711
    %726 = vst.msk [vmem:[#allocation3 + $0x70] sm:$0xff] %vm94, %v712
    %v727 = vld [vmem:[#allocation3 + $0x7] sm:$0xff]
    %v728 = vld [vmem:[#allocation3 + $0xf] sm:$0xff]
    %v729 = vld [vmem:[#allocation3 + $0x17] sm:$0xff]
    %v730 = vld [vmem:[#allocation3 + $0x1f] sm:$0xff]
    %v731 = vld [vmem:[#allocation3 + $0x27] sm:$0xff]
    %v732 = vld [vmem:[#allocation3 + $0x2f] sm:$0xff]
    %v733 = vld [vmem:[#allocation3 + $0x37] sm:$0xff]
    %v734 = vld [vmem:[#allocation3 + $0x3f] sm:$0xff]
    %v735 = vld [vmem:[#allocation3 + $0x47] sm:$0xff]
    %v736 = vld [vmem:[#allocation3 + $0x4f] sm:$0xff]
    %v737 = vld [vmem:[#allocation3 + $0x57] sm:$0xff]
    %v738 = vld [vmem:[#allocation3 + $0x5f] sm:$0xff]
    %v739 = vld [vmem:[#allocation3 + $0x67] sm:$0xff]
    %v740 = vld [vmem:[#allocation3 + $0x6f] sm:$0xff]
    %v741 = vpack.c.bf16 %v728, %v727
    %v742 = vpack.c.bf16 %v730, %v729
    %v743 = vpack.c.bf16 %v732, %v731
    %v744 = vpack.c.bf16 %v734, %v733
    %v745 = vpack.c.bf16 %v736, %v735
    %v746 = vpack.c.bf16 %v738, %v737
    %v747 = vpack.c.bf16 %v740, %v739
    %v748 = vld [vmem:[#allocation9] sm:$0xf]
    %v749 = vld [vmem:[#allocation9 + $0x4] sm:$0xf]
    %v750 = vld [vmem:[#allocation9 + $0x8] sm:$0xf]
    %v751 = vld [vmem:[#allocation9 + $0xc] sm:$0xf]
    %v752 = vld [vmem:[#allocation9 + $0x10] sm:$0xf]
    %v753 = vld [vmem:[#allocation9 + $0x14] sm:$0xf]
    %v754 = vld [vmem:[#allocation9 + $0x18] sm:$0xf]
    %v755 = vld [vmem:[#allocation9 + $0x1c] sm:$0xf]
    %v756 = vld [vmem:[#allocation3 + $0x8] sm:$0xff]
    %v757 = vld [vmem:[#allocation3 + $0x10] sm:$0xff]
    %v758 = vld [vmem:[#allocation3 + $0x18] sm:$0xff]
    %v759 = vld [vmem:[#allocation3 + $0x20] sm:$0xff]
    %v760 = vld [vmem:[#allocation3 + $0x28] sm:$0xff]
    %v761 = vld [vmem:[#allocation3 + $0x30] sm:$0xff]
    %v762 = vld [vmem:[#allocation3 + $0x38] sm:$0xff]
    %v763 = vld [vmem:[#allocation3 + $0x40] sm:$0xff]
    %v764 = vld [vmem:[#allocation3 + $0x48] sm:$0xff]
    %v765 = vld [vmem:[#allocation3 + $0x50] sm:$0xff]
    %v766 = vld [vmem:[#allocation3 + $0x58] sm:$0xff]
    %v767 = vld [vmem:[#allocation3 + $0x60] sm:$0xff]
    %v768 = vld [vmem:[#allocation3 + $0x68] sm:$0xff]
    %v769 = vld [vmem:[#allocation3 + $0x70] sm:$0xff]
    %v770 = vpack.c.bf16 %v757, %v756
    %v771 = vpack.c.bf16 %v759, %v758
    %v772 = vpack.c.bf16 %v761, %v760
    %v773 = vpack.c.bf16 %v763, %v762
    %v774 = vpack.c.bf16 %v765, %v764
    %v775 = vpack.c.bf16 %v767, %v766
    %v776 = vpack.c.bf16 %v769, %v768
    %s777 = scalar_lea.vmem [#allocation9], 32
    %v778 = vld [vmem:[%s777] sm:$0xf]
    %v779 = vld [vmem:[%s777 + $0x4] sm:$0xf]
    %v780 = vld [vmem:[%s777 + $0x8] sm:$0xf]
    %v781 = vld [vmem:[%s777 + $0xc] sm:$0xf]
    %v782 = vld [vmem:[%s777 + $0x10] sm:$0xf]
    %v783 = vld [vmem:[%s777 + $0x14] sm:$0xf]
    %v784 = vld [vmem:[%s777 + $0x18] sm:$0xf]
    %v785 = vld [vmem:[%s777 + $0x1c] sm:$0xf]
    %v794 = vunpack.c.l.b16 %v778
    %v795 = vunpack.c.l.b16 %v779
    %v796 = vunpack.c.l.b16 %v780
    %v797 = vunpack.c.l.b16 %v781
    %v798 = vunpack.c.l.b16 %v782
    %v799 = vunpack.c.l.b16 %v783
    %v800 = vunpack.c.l.b16 %v784
    %v801 = vunpack.c.l.b16 %v785
    %v802 = vpack.c.b16 %v795, %v794
    %v803 = vpack.c.b16 %v797, %v796
    %v804 = vpack.c.b16 %v799, %v798
    %v805 = vpack.c.b16 %v801, %v800
    %v811 = vsel %vm94, %v770, 0
    %v814 = vsel %vm94, %v771, 0
    %v817 = vsel %vm94, %v772, 0
    %v820 = vsel %vm94, %v773, 0
    %v823 = vsel %vm94, %v774, 0
    %v826 = vsel %vm94, %v775, 0
    %v829 = vsel %vm94, %v776, 0
    %831 = vmatprep.subr.bf16.mxu0 0
    %832 = vmatpush1.bf16.msra.mxu0 %v802
    %833 = vmatprep.subr.bf16.mxu0 0
    %834 = vmatpush1.bf16.msra.mxu0 %v803
    %835 = vmatprep.subr.bf16.mxu0 0
    %836 = vmatpush1.bf16.msra.mxu0 %v804
    %837 = vmatprep.subr.bf16.mxu0 0
    %838 = vmatpush1.bf16.msra.mxu0 %v805
    %839 = vmatprep.subr.bf16.mxu0 0
    %840 = vmatpush1.bf16.msra.mxu0 0
    %841 = vmatprep.subr.bf16.mxu0 0
    %842 = vmatpush1.bf16.msra.mxu0 0
    %843 = vmatprep.subr.bf16.mxu0 0
    %844 = vmatpush1.bf16.msra.mxu0 0
    %845 = vmatprep.subr.bf16.mxu0 0
    %846 = vmatpush1.bf16.msra.mxu0 0
    %847 = vmatprep.subr.bf16.mxu0 0
    %848 = vmatpush1.bf16.msra.mxu0 0
    %849 = vmatprep.subr.bf16.mxu0 0
    %850 = vmatpush1.bf16.msra.mxu0 0
    %851 = vmatprep.subr.bf16.mxu0 0
    %852 = vmatpush1.bf16.msra.mxu0 0
    %853 = vmatprep.subr.bf16.mxu0 0
    %854 = vmatpush1.bf16.msra.mxu0 0
    %855 = vmatprep.subr.bf16.mxu0 0
    %856 = vmatpush1.bf16.msra.mxu0 0
    %857 = vmatprep.subr.bf16.mxu0 0
    %858 = vmatpush1.bf16.msra.mxu0 0
    %859 = vmatprep.subr.bf16.mxu0 0
    %860 = vmatpush1.bf16.msra.mxu0 0
    %861 = vmatprep.subr.bf16.mxu0 0
    %862 = vmatpush1.bf16.msra.mxu0 0
    %863 = vmatprep.mubr.bf16.mxu0 0
    %864 = vmatmul.mubr.bf16.gmra.mrb[0].mxu0 %v811
    %v865 = vpop.f32.mrb[0].mxu0
    %v866 = vadd.f32 0.0, %v865
    %v867 = vpop.f32.mrb[0].mxu0
    %v868 = vpop.f32.mrb[0].mxu0
    %v869 = vadd.f32 0.0, %v868
    %v870 = vpop.f32.mrb[0].mxu0
    %871 = vmatprep.mubr.bf16.mxu0 0
    %872 = vmatmul.mubr.bf16.gmra.mrb[0].mxu0 %v814
    %v873 = vpop.f32.mrb[0].mxu0
    %v874 = vadd.f32 0.0, %v873
    %v875 = vpop.f32.mrb[0].mxu0
    %v876 = vpop.f32.mrb[0].mxu0
    %v877 = vadd.f32 0.0, %v876
    %v878 = vpop.f32.mrb[0].mxu0
    %879 = vmatprep.mubr.bf16.mxu0 0
    %880 = vmatmul.mubr.bf16.gmra.mrb[0].mxu0 %v817
    %v881 = vpop.f32.mrb[0].mxu0
    %v882 = vadd.f32 0.0, %v881
    %v883 = vpop.f32.mrb[0].mxu0
    %v884 = vpop.f32.mrb[0].mxu0
    %v885 = vadd.f32 0.0, %v884
    %v886 = vpop.f32.mrb[0].mxu0
    %887 = vmatprep.mubr.bf16.mxu0 0
    %888 = vmatmul.mubr.bf16.gmra.mrb[0].mxu0 %v820
    %v889 = vpop.f32.mrb[0].mxu0
    %v890 = vadd.f32 0.0, %v889
    %v891 = vpop.f32.mrb[0].mxu0
    %v892 = vpop.f32.mrb[0].mxu0
    %v893 = vadd.f32 0.0, %v892
    %v894 = vpop.f32.mrb[0].mxu0
    %895 = vmatprep.mubr.bf16.mxu0 0
    %896 = vmatmul.mubr.bf16.gmra.mrb[0].mxu0 %v823
    %v897 = vpop.f32.mrb[0].mxu0
    %v898 = vadd.f32 0.0, %v897
    %v899 = vpop.f32.mrb[0].mxu0
    %v900 = vpop.f32.mrb[0].mxu0
    %v901 = vadd.f32 0.0, %v900
    %v902 = vpop.f32.mrb[0].mxu0
    %903 = vmatprep.mubr.bf16.mxu0 0
    %904 = vmatmul.mubr.bf16.gmra.mrb[0].mxu0 %v826
    %v905 = vpop.f32.mrb[0].mxu0
    %v906 = vadd.f32 0.0, %v905
    %v907 = vpop.f32.mrb[0].mxu0
    %v908 = vpop.f32.mrb[0].mxu0
    %v909 = vadd.f32 0.0, %v908
    %v910 = vpop.f32.mrb[0].mxu0
    %911 = vmatprep.mubr.bf16.mxu0 0
    %912 = vmatmul.mubr.bf16.gmra.mrb[0].mxu0 %v829
    %v913 = vpop.f32.mrb[0].mxu0
    %v914 = vadd.f32 0.0, %v913
    %v915 = vpop.f32.mrb[0].mxu0
    %v916 = vpop.f32.mrb[0].mxu0
    %v917 = vadd.f32 0.0, %v916
    %v918 = vpop.f32.mrb[0].mxu0
    %919 = vdwg.mxu0
    %v928 = vunpack.c.l.b16 %v748
    %v929 = vunpack.c.l.b16 %v749
    %v930 = vunpack.c.l.b16 %v750
    %v931 = vunpack.c.l.b16 %v751
    %v932 = vunpack.c.l.b16 %v752
    %v933 = vunpack.c.l.b16 %v753
    %v934 = vunpack.c.l.b16 %v754
    %v935 = vunpack.c.l.b16 %v755
    %v936 = vpack.c.b16 %v929, %v928
    %v937 = vpack.c.b16 %v931, %v930
    %v938 = vpack.c.b16 %v933, %v932
    %v939 = vpack.c.b16 %v935, %v934
    %v945 = vsel %vm94, %v741, 0
    %v948 = vsel %vm94, %v742, 0
    %v951 = vsel %vm94, %v743, 0
    %v954 = vsel %vm94, %v744, 0
    %v957 = vsel %vm94, %v745, 0
    %v960 = vsel %vm94, %v746, 0
    %v963 = vsel %vm94, %v747, 0
    %965 = vmatprep.subr.bf16.mxu0 0
    %966 = vmatpush1.bf16.msra.mxu0 %v936
    %967 = vmatprep.subr.bf16.mxu0 0
    %968 = vmatpush1.bf16.msra.mxu0 %v937
    %969 = vmatprep.subr.bf16.mxu0 0
    %970 = vmatpush1.bf16.msra.mxu0 %v938
    %971 = vmatprep.subr.bf16.mxu0 0
    %972 = vmatpush1.bf16.msra.mxu0 %v939
    %973 = vmatprep.subr.bf16.mxu0 0
    %974 = vmatpush1.bf16.msra.mxu0 0
    %975 = vmatprep.subr.bf16.mxu0 0
    %976 = vmatpush1.bf16.msra.mxu0 0
    %977 = vmatprep.subr.bf16.mxu0 0
    %978 = vmatpush1.bf16.msra.mxu0 0
    %979 = vmatprep.subr.bf16.mxu0 0
    %980 = vmatpush1.bf16.msra.mxu0 0
    %981 = vmatprep.subr.bf16.mxu0 0
    %982 = vmatpush1.bf16.msra.mxu0 0
    %983 = vmatprep.subr.bf16.mxu0 0
    %984 = vmatpush1.bf16.msra.mxu0 0
    %985 = vmatprep.subr.bf16.mxu0 0
    %986 = vmatpush1.bf16.msra.mxu0 0
    %987 = vmatprep.subr.bf16.mxu0 0
    %988 = vmatpush1.bf16.msra.mxu0 0
    %989 = vmatprep.subr.bf16.mxu0 0
    %990 = vmatpush1.bf16.msra.mxu0 0
    %991 = vmatprep.subr.bf16.mxu0 0
    %992 = vmatpush1.bf16.msra.mxu0 0
    %993 = vmatprep.subr.bf16.mxu0 0
    %994 = vmatpush1.bf16.msra.mxu0 0
    %995 = vmatprep.subr.bf16.mxu0 0
    %996 = vmatpush1.bf16.msra.mxu0 0
    %997 = vmatprep.mubr.bf16.mxu0 0
    %998 = vmatmul.mubr.bf16.gmra.mrb[0].mxu0 %v945
    %v999 = vpop.f32.mrb[0].mxu0
    %v1000 = vadd.f32 %v866, %v999
    %v1001 = vpop.f32.mrb[0].mxu0
    %v1002 = vpop.f32.mrb[0].mxu0
    %v1003 = vadd.f32 %v869, %v1002
    %v1004 = vpop.f32.mrb[0].mxu0
    %1005 = vmatprep.mubr.bf16.mxu0 0
    %1006 = vmatmul.mubr.bf16.gmra.mrb[0].mxu0 %v948
    %v1007 = vpop.f32.mrb[0].mxu0
    %v1008 = vadd.f32 %v874, %v1007
    %v1009 = vpop.f32.mrb[0].mxu0
    %v1010 = vpop.f32.mrb[0].mxu0
    %v1011 = vadd.f32 %v877, %v1010
    %v1012 = vpop.f32.mrb[0].mxu0
    %1013 = vmatprep.mubr.bf16.mxu0 0
    %1014 = vmatmul.mubr.bf16.gmra.mrb[0].mxu0 %v951
    %v1015 = vpop.f32.mrb[0].mxu0
    %v1016 = vadd.f32 %v882, %v1015
    %v1017 = vpop.f32.mrb[0].mxu0
    %v1018 = vpop.f32.mrb[0].mxu0
    %v1019 = vadd.f32 %v885, %v1018
    %v1020 = vpop.f32.mrb[0].mxu0
    %1021 = vmatprep.mubr.bf16.mxu0 0
    %1022 = vmatmul.mubr.bf16.gmra.mrb[0].mxu0 %v954
    %v1023 = vpop.f32.mrb[0].mxu0
    %v1024 = vadd.f32 %v890, %v1023
    %v1025 = vpop.f32.mrb[0].mxu0
    %v1026 = vpop.f32.mrb[0].mxu0
    %v1027 = vadd.f32 %v893, %v1026
    %v1028 = vpop.f32.mrb[0].mxu0
    %1029 = vmatprep.mubr.bf16.mxu0 0
    %1030 = vmatmul.mubr.bf16.gmra.mrb[0].mxu0 %v957
    %v1031 = vpop.f32.mrb[0].mxu0
    %v1032 = vadd.f32 %v898, %v1031
    %v1033 = vpop.f32.mrb[0].mxu0
    %v1034 = vpop.f32.mrb[0].mxu0
    %v1035 = vadd.f32 %v901, %v1034
    %v1036 = vpop.f32.mrb[0].mxu0
    %1037 = vmatprep.mubr.bf16.mxu0 0
    %1038 = vmatmul.mubr.bf16.gmra.mrb[0].mxu0 %v960
    %v1039 = vpop.f32.mrb[0].mxu0
    %v1040 = vadd.f32 %v906, %v1039
    %v1041 = vpop.f32.mrb[0].mxu0
    %v1042 = vpop.f32.mrb[0].mxu0
    %v1043 = vadd.f32 %v909, %v1042
    %v1044 = vpop.f32.mrb[0].mxu0
    %1045 = vmatprep.mubr.bf16.mxu0 0
    %1046 = vmatmul.mubr.bf16.gmra.mrb[0].mxu0 %v963
    %v1047 = vpop.f32.mrb[0].mxu0
    %v1048 = vadd.f32 %v914, %v1047
    %v1049 = vpop.f32.mrb[0].mxu0
    %v1050 = vpop.f32.mrb[0].mxu0
    %v1051 = vadd.f32 %v917, %v1050
    %v1052 = vpop.f32.mrb[0].mxu0
    %1053 = vdwg.mxu0
    %v1054 = vld [vmem:[#allocation3 + $0x9] sm:$0xff]
    %v1055 = vld [vmem:[#allocation3 + $0x11] sm:$0xff]
    %v1056 = vld [vmem:[#allocation3 + $0x19] sm:$0xff]
    %v1057 = vld [vmem:[#allocation3 + $0x21] sm:$0xff]
    %v1058 = vld [vmem:[#allocation3 + $0x29] sm:$0xff]
    %v1059 = vld [vmem:[#allocation3 + $0x31] sm:$0xff]
    %v1060 = vld [vmem:[#allocation3 + $0x39] sm:$0xff]
    %v1061 = vld [vmem:[#allocation3 + $0x41] sm:$0xff]
    %v1062 = vld [vmem:[#allocation3 + $0x49] sm:$0xff]
    %v1063 = vld [vmem:[#allocation3 + $0x51] sm:$0xff]
    %v1064 = vld [vmem:[#allocation3 + $0x59] sm:$0xff]
    %v1065 = vld [vmem:[#allocation3 + $0x61] sm:$0xff]
    %v1066 = vld [vmem:[#allocation3 + $0x69] sm:$0xff]
    %v1067 = vld [vmem:[#allocation3 + $0x71] sm:$0xff]
    %v1068 = vpack.c.bf16 %v1055, %v1054
    %v1069 = vpack.c.bf16 %v1057, %v1056
    %v1070 = vpack.c.bf16 %v1059, %v1058
    %v1071 = vpack.c.bf16 %v1061, %v1060
    %v1072 = vpack.c.bf16 %v1063, %v1062
    %v1073 = vpack.c.bf16 %v1065, %v1064
    %v1074 = vpack.c.bf16 %v1067, %v1066
    %s1075 = scalar_lea.vmem [#allocation9], 64
    %v1076 = vld [vmem:[%s1075] sm:$0xf]
    %v1077 = vld [vmem:[%s1075 + $0x4] sm:$0xf]
    %v1078 = vld [vmem:[%s1075 + $0x8] sm:$0xf]
    %v1079 = vld [vmem:[%s1075 + $0xc] sm:$0xf]
    %v1080 = vld [vmem:[%s1075 + $0x10] sm:$0xf]
    %v1081 = vld [vmem:[%s1075 + $0x14] sm:$0xf]
    %v1082 = vld [vmem:[%s1075 + $0x18] sm:$0xf]
    %v1083 = vld [vmem:[%s1075 + $0x1c] sm:$0xf]
    %v1092 = vunpack.c.l.b16 %v1076
    %v1093 = vunpack.c.l.b16 %v1077
    %v1094 = vunpack.c.l.b16 %v1078
    %v1095 = vunpack.c.l.b16 %v1079
    %v1096 = vunpack.c.l.b16 %v1080
    %v1097 = vunpack.c.l.b16 %v1081
    %v1098 = vunpack.c.l.b16 %v1082
    %v1099 = vunpack.c.l.b16 %v1083
    %v1100 = vpack.c.b16 %v1093, %v1092
    %v1101 = vpack.c.b16 %v1095, %v1094
    %v1102 = vpack.c.b16 %v1097, %v1096
    %v1103 = vpack.c.b16 %v1099, %v1098
    %v1109 = vsel %vm94, %v1068, 0
    %v1112 = vsel %vm94, %v1069, 0
    %v1115 = vsel %vm94, %v1070, 0
    %v1118 = vsel %vm94, %v1071, 0
    %v1121 = vsel %vm94, %v1072, 0
    %v1124 = vsel %vm94, %v1073, 0
    %v1127 = vsel %vm94, %v1074, 0
    %1129 = vmatprep.subr.bf16.mxu0 0
    %1130 = vmatpush1.bf16.msra.mxu0 %v1100
    %1131 = vmatprep.subr.bf16.mxu0 0
    %1132 = vmatpush1.bf16.msra.mxu0 %v1101
    %1133 = vmatprep.subr.bf16.mxu0 0
    %1134 = vmatpush1.bf16.msra.mxu0 %v1102
    %1135 = vmatprep.subr.bf16.mxu0 0
    %1136 = vmatpush1.bf16.msra.mxu0 %v1103
    %1137 = vmatprep.subr.bf16.mxu0 0
    %1138 = vmatpush1.bf16.msra.mxu0 0
    %1139 = vmatprep.subr.bf16.mxu0 0
    %1140 = vmatpush1.bf16.msra.mxu0 0
    %1141 = vmatprep.subr.bf16.mxu0 0
    %1142 = vmatpush1.bf16.msra.mxu0 0
    %1143 = vmatprep.subr.bf16.mxu0 0
    %1144 = vmatpush1.bf16.msra.mxu0 0
    %1145 = vmatprep.subr.bf16.mxu0 0
    %1146 = vmatpush1.bf16.msra.mxu0 0
    %1147 = vmatprep.subr.bf16.mxu0 0
    %1148 = vmatpush1.bf16.msra.mxu0 0
    %1149 = vmatprep.subr.bf16.mxu0 0
    %1150 = vmatpush1.bf16.msra.mxu0 0
    %1151 = vmatprep.subr.bf16.mxu0 0
    %1152 = vmatpush1.bf16.msra.mxu0 0
    %1153 = vmatprep.subr.bf16.mxu0 0
    %1154 = vmatpush1.bf16.msra.mxu0 0
    %1155 = vmatprep.subr.bf16.mxu0 0
    %1156 = vmatpush1.bf16.msra.mxu0 0
    %1157 = vmatprep.subr.bf16.mxu0 0
    %1158 = vmatpush1.bf16.msra.mxu0 0
    %1159 = vmatprep.subr.bf16.mxu0 0
    %1160 = vmatpush1.bf16.msra.mxu0 0
    %1161 = vmatprep.mubr.bf16.mxu0 0
    %1162 = vmatmul.mubr.bf16.gmra.mrb[0].mxu0 %v1109
    %v1163 = vpop.f32.mrb[0].mxu0
    %v1164 = vadd.f32 0.0, %v1163
    %v1165 = vpop.f32.mrb[0].mxu0
    %v1166 = vpop.f32.mrb[0].mxu0
    %v1167 = vadd.f32 0.0, %v1166
    %v1168 = vpop.f32.mrb[0].mxu0
    %1169 = vmatprep.mubr.bf16.mxu0 0
    %1170 = vmatmul.mubr.bf16.gmra.mrb[0].mxu0 %v1112
    %v1171 = vpop.f32.mrb[0].mxu0
    %v1172 = vadd.f32 0.0, %v1171
    %v1173 = vpop.f32.mrb[0].mxu0
    %v1174 = vpop.f32.mrb[0].mxu0
    %v1175 = vadd.f32 0.0, %v1174
    %v1176 = vpop.f32.mrb[0].mxu0
    %1177 = vmatprep.mubr.bf16.mxu0 0
    %1178 = vmatmul.mubr.bf16.gmra.mrb[0].mxu0 %v1115
    %v1179 = vpop.f32.mrb[0].mxu0
    %v1180 = vadd.f32 0.0, %v1179
    %v1181 = vpop.f32.mrb[0].mxu0
    %v1182 = vpop.f32.mrb[0].mxu0
    %v1183 = vadd.f32 0.0, %v1182
    %v1184 = vpop.f32.mrb[0].mxu0
    %1185 = vmatprep.mubr.bf16.mxu0 0
    %1186 = vmatmul.mubr.bf16.gmra.mrb[0].mxu0 %v1118
    %v1187 = vpop.f32.mrb[0].mxu0
    %v1188 = vadd.f32 0.0, %v1187
    %v1189 = vpop.f32.mrb[0].mxu0
    %v1190 = vpop.f32.mrb[0].mxu0
    %v1191 = vadd.f32 0.0, %v1190
    %v1192 = vpop.f32.mrb[0].mxu0
    %1193 = vmatprep.mubr.bf16.mxu0 0
    %1194 = vmatmul.mubr.bf16.gmra.mrb[0].mxu0 %v1121
    %v1195 = vpop.f32.mrb[0].mxu0
    %v1196 = vadd.f32 0.0, %v1195
    %v1197 = vpop.f32.mrb[0].mxu0
    %v1198 = vpop.f32.mrb[0].mxu0
    %v1199 = vadd.f32 0.0, %v1198
    %v1200 = vpop.f32.mrb[0].mxu0
    %1201 = vmatprep.mubr.bf16.mxu0 0
    %1202 = vmatmul.mubr.bf16.gmra.mrb[0].mxu0 %v1124
    %v1203 = vpop.f32.mrb[0].mxu0
    %v1204 = vadd.f32 0.0, %v1203
    %v1205 = vpop.f32.mrb[0].mxu0
    %v1206 = vpop.f32.mrb[0].mxu0
    %v1207 = vadd.f32 0.0, %v1206
    %v1208 = vpop.f32.mrb[0].mxu0
    %1209 = vmatprep.mubr.bf16.mxu0 0
    %1210 = vmatmul.mubr.bf16.gmra.mrb[0].mxu0 %v1127
    %v1211 = vpop.f32.mrb[0].mxu0
    %v1212 = vadd.f32 0.0, %v1211
    %v1213 = vpop.f32.mrb[0].mxu0
    %v1214 = vpop.f32.mrb[0].mxu0
    %v1215 = vadd.f32 0.0, %v1214
    %v1216 = vpop.f32.mrb[0].mxu0
    %1217 = vdwg.mxu0
    %v1218 = vadd.f32 %v1000, %v1164
    %v1219 = vadd.f32 %v1003, %v1167
    %v1220 = vadd.f32 %v1008, %v1172
    %v1221 = vadd.f32 %v1011, %v1175
    %v1222 = vadd.f32 %v1016, %v1180
    %v1223 = vadd.f32 %v1019, %v1183
    %v1224 = vadd.f32 %v1024, %v1188
    %v1225 = vadd.f32 %v1027, %v1191
    %v1226 = vadd.f32 %v1032, %v1196
    %v1227 = vadd.f32 %v1035, %v1199
    %v1228 = vadd.f32 %v1040, %v1204
    %v1229 = vadd.f32 %v1043, %v1207
    %v1230 = vadd.f32 %v1048, %v1212
    %v1231 = vadd.f32 %v1051, %v1215
    %v1232 = vld [vmem:[%s4] sm:$0x1]
    %v1234 = vlaneseq
    %v1235 = vshrl.u32 %v1234, 7
    %v1236 = vsub.s32 0, %v1235
    %v1237 = vrot.slane %v1232, %v1236
    %v1239 = vadd.f32 %v1218, %v1237
    %v1240 = vadd.f32 %v1219, %v1237
    %v1241 = vadd.f32 %v1220, %v1237
    %v1242 = vadd.f32 %v1221, %v1237
    %v1243 = vadd.f32 %v1222, %v1237
    %v1244 = vadd.f32 %v1223, %v1237
    %v1245 = vadd.f32 %v1224, %v1237
    %v1246 = vadd.f32 %v1225, %v1237
    %v1247 = vadd.f32 %v1226, %v1237
    %v1248 = vadd.f32 %v1227, %v1237
    %v1249 = vadd.f32 %v1228, %v1237
    %v1250 = vadd.f32 %v1229, %v1237
    %v1251 = vadd.f32 %v1230, %v1237
    %v1252 = vadd.f32 %v1231, %v1237
    %v1253 = vmax.f32 %v1239, 0.0
    %v1254 = vmax.f32 %v1240, 0.0
    %v1255 = vmax.f32 %v1241, 0.0
    %v1256 = vmax.f32 %v1242, 0.0
    %v1257 = vmax.f32 %v1243, 0.0
    %v1258 = vmax.f32 %v1244, 0.0
    %v1259 = vmax.f32 %v1245, 0.0
    %v1260 = vmax.f32 %v1246, 0.0
    %v1261 = vmax.f32 %v1247, 0.0
    %v1262 = vmax.f32 %v1248, 0.0
    %v1263 = vmax.f32 %v1249, 0.0
    %v1264 = vmax.f32 %v1250, 0.0
    %v1265 = vmax.f32 %v1251, 0.0
    %v1266 = vmax.f32 %v1252, 0.0
    %v1267 = vmul.f32 %v1253, %v632
    %v1268 = vmul.f32 %v1254, %v637
    %v1269 = vmul.f32 %v1255, %v642
    %v1270 = vmul.f32 %v1256, %v647
    %v1271 = vmul.f32 %v1257, %v652
    %v1272 = vmul.f32 %v1258, %v657
    %v1273 = vmul.f32 %v1259, %v662
    %v1274 = vmul.f32 %v1260, %v667
    %v1275 = vmul.f32 %v1261, %v672
    %v1276 = vmul.f32 %v1262, %v677
    %v1277 = vmul.f32 %v1263, %v682
    %v1278 = vmul.f32 %v1264, %v687
    %v1279 = vmul.f32 %v1265, %v692
    %v1280 = vmul.f32 %v1266, %v697
    %1281 = vst [vmem:[#allocation4 + $0x8] sm:$0xff] %v1267
    %1282 = vst [vmem:[#allocation4 + $0x10] sm:$0xff] %v1268
    %1283 = vst [vmem:[#allocation4 + $0x18] sm:$0xff] %v1269
    %1284 = vst [vmem:[#allocation4 + $0x20] sm:$0xff] %v1270
    %1285 = vst [vmem:[#allocation4 + $0x28] sm:$0xff] %v1271
    %1286 = vst [vmem:[#allocation4 + $0x30] sm:$0xff] %v1272
    %1287 = vst [vmem:[#allocation4 + $0x38] sm:$0xff] %v1273
    %1288 = vst [vmem:[#allocation4 + $0x40] sm:$0xff] %v1274
    %1289 = vst [vmem:[#allocation4 + $0x48] sm:$0xff] %v1275
    %1290 = vst [vmem:[#allocation4 + $0x50] sm:$0xff] %v1276
    %1291 = vst [vmem:[#allocation4 + $0x58] sm:$0xff] %v1277
    %1292 = vst [vmem:[#allocation4 + $0x60] sm:$0xff] %v1278
    %1293 = vst [vmem:[#allocation4 + $0x68] sm:$0xff] %v1279
    %1294 = vst [vmem:[#allocation4 + $0x70] sm:$0xff] %v1280
    %v1295 = vld [vmem:[#allocation4 + $0x7] sm:$0xff]
    %v1296 = vld [vmem:[#allocation4 + $0xf] sm:$0xff]
    %v1297 = vld [vmem:[#allocation4 + $0x17] sm:$0xff]
    %v1298 = vld [vmem:[#allocation4 + $0x1f] sm:$0xff]
    %v1299 = vld [vmem:[#allocation4 + $0x27] sm:$0xff]
    %v1300 = vld [vmem:[#allocation4 + $0x2f] sm:$0xff]
    %v1301 = vld [vmem:[#allocation4 + $0x37] sm:$0xff]
    %v1302 = vld [vmem:[#allocation4 + $0x3f] sm:$0xff]
    %v1303 = vld [vmem:[#allocation4 + $0x47] sm:$0xff]
    %v1304 = vld [vmem:[#allocation4 + $0x4f] sm:$0xff]
    %v1305 = vld [vmem:[#allocation4 + $0x57] sm:$0xff]
    %v1306 = vld [vmem:[#allocation4 + $0x5f] sm:$0xff]
    %v1307 = vld [vmem:[#allocation4 + $0x67] sm:$0xff]
    %v1308 = vld [vmem:[#allocation4 + $0x6f] sm:$0xff]
    %v1309 = vpack.c.bf16 %v1296, %v1295
    %v1310 = vpack.c.bf16 %v1298, %v1297
    %v1311 = vpack.c.bf16 %v1300, %v1299
    %v1312 = vpack.c.bf16 %v1302, %v1301
    %v1313 = vpack.c.bf16 %v1304, %v1303
    %v1314 = vpack.c.bf16 %v1306, %v1305
    %v1315 = vpack.c.bf16 %v1308, %v1307
    %v1316 = vld [vmem:[#allocation12] sm:$0xff]
    %v1317 = vld [vmem:[#allocation12 + $0x8] sm:$0xff]
    %v1318 = vld [vmem:[#allocation12 + $0x10] sm:$0xff]
    %v1319 = vld [vmem:[#allocation12 + $0x18] sm:$0xff]
    %v1320 = vld [vmem:[#allocation12 + $0x20] sm:$0xff]
    %v1321 = vld [vmem:[#allocation12 + $0x28] sm:$0xff]
    %v1322 = vld [vmem:[#allocation12 + $0x30] sm:$0xff]
    %v1323 = vld [vmem:[#allocation12 + $0x38] sm:$0xff]
    %v1324 = vld [vmem:[#allocation12 + $0x40] sm:$0xff]
    %v1325 = vld [vmem:[#allocation12 + $0x48] sm:$0xff]
    %v1326 = vld [vmem:[#allocation12 + $0x50] sm:$0xff]
    %v1327 = vld [vmem:[#allocation12 + $0x58] sm:$0xff]
    %v1328 = vld [vmem:[#allocation12 + $0x60] sm:$0xff]
    %v1329 = vld [vmem:[#allocation12 + $0x68] sm:$0xff]
    %v1330 = vld [vmem:[#allocation12 + $0x70] sm:$0xff]
    %v1331 = vld [vmem:[#allocation12 + $0x78] sm:$0xff]
    %v1332 = vld [vmem:[#allocation4 + $0x8] sm:$0xff]
    %v1333 = vld [vmem:[#allocation4 + $0x10] sm:$0xff]
    %v1334 = vld [vmem:[#allocation4 + $0x18] sm:$0xff]
    %v1335 = vld [vmem:[#allocation4 + $0x20] sm:$0xff]
    %v1336 = vld [vmem:[#allocation4 + $0x28] sm:$0xff]
    %v1337 = vld [vmem:[#allocation4 + $0x30] sm:$0xff]
    %v1338 = vld [vmem:[#allocation4 + $0x38] sm:$0xff]
    %v1339 = vld [vmem:[#allocation4 + $0x40] sm:$0xff]
    %v1340 = vld [vmem:[#allocation4 + $0x48] sm:$0xff]
    %v1341 = vld [vmem:[#allocation4 + $0x50] sm:$0xff]
    %v1342 = vld [vmem:[#allocation4 + $0x58] sm:$0xff]
    %v1343 = vld [vmem:[#allocation4 + $0x60] sm:$0xff]
    %v1344 = vld [vmem:[#allocation4 + $0x68] sm:$0xff]
    %v1345 = vld [vmem:[#allocation4 + $0x70] sm:$0xff]
    %v1346 = vpack.c.bf16 %v1333, %v1332
    %v1347 = vpack.c.bf16 %v1335, %v1334
    %v1348 = vpack.c.bf16 %v1337, %v1336
    %v1349 = vpack.c.bf16 %v1339, %v1338
    %v1350 = vpack.c.bf16 %v1341, %v1340
    %v1351 = vpack.c.bf16 %v1343, %v1342
    %v1352 = vpack.c.bf16 %v1345, %v1344
    %s1353 = scalar_lea.vmem [#allocation12], 128
    %v1354 = vld [vmem:[%s1353] sm:$0xff]
    %v1355 = vld [vmem:[%s1353 + $0x8] sm:$0xff]
    %v1356 = vld [vmem:[%s1353 + $0x10] sm:$0xff]
    %v1357 = vld [vmem:[%s1353 + $0x18] sm:$0xff]
    %v1358 = vld [vmem:[%s1353 + $0x20] sm:$0xff]
    %v1359 = vld [vmem:[%s1353 + $0x28] sm:$0xff]
    %v1360 = vld [vmem:[%s1353 + $0x30] sm:$0xff]
    %v1361 = vld [vmem:[%s1353 + $0x38] sm:$0xff]
    %v1362 = vld [vmem:[%s1353 + $0x40] sm:$0xff]
    %v1363 = vld [vmem:[%s1353 + $0x48] sm:$0xff]
    %v1364 = vld [vmem:[%s1353 + $0x50] sm:$0xff]
    %v1365 = vld [vmem:[%s1353 + $0x58] sm:$0xff]
    %v1366 = vld [vmem:[%s1353 + $0x60] sm:$0xff]
    %v1367 = vld [vmem:[%s1353 + $0x68] sm:$0xff]
    %v1368 = vld [vmem:[%s1353 + $0x70] sm:$0xff]
    %v1369 = vld [vmem:[%s1353 + $0x78] sm:$0xff]
    %v1386 = vunpack.c.l.b16 %v1354
    %v1387 = vunpack.c.h.b16 %v1354
    %v1388 = vunpack.c.l.b16 %v1355
    %v1389 = vunpack.c.h.b16 %v1355
    %v1390 = vunpack.c.l.b16 %v1356
    %v1391 = vunpack.c.h.b16 %v1356
    %v1392 = vunpack.c.l.b16 %v1357
    %v1393 = vunpack.c.h.b16 %v1357
    %v1394 = vunpack.c.l.b16 %v1358
    %v1395 = vunpack.c.h.b16 %v1358
    %v1396 = vunpack.c.l.b16 %v1359
    %v1397 = vunpack.c.h.b16 %v1359
    %v1398 = vunpack.c.l.b16 %v1360
    %v1399 = vunpack.c.h.b16 %v1360
    %v1400 = vunpack.c.l.b16 %v1361
    %v1401 = vunpack.c.h.b16 %v1361
    %v1402 = vunpack.c.l.b16 %v1362
    %v1403 = vunpack.c.h.b16 %v1362
    %v1404 = vunpack.c.l.b16 %v1363
    %v1405 = vunpack.c.h.b16 %v1363
    %v1406 = vunpack.c.l.b16 %v1364
    %v1407 = vunpack.c.h.b16 %v1364
    %v1408 = vunpack.c.l.b16 %v1365
    %v1409 = vunpack.c.h.b16 %v1365
    %v1410 = vunpack.c.l.b16 %v1366
    %v1411 = vunpack.c.h.b16 %v1366
    %v1412 = vunpack.c.l.b16 %v1367
    %v1413 = vunpack.c.h.b16 %v1367
    %v1414 = vunpack.c.l.b16 %v1368
    %v1415 = vunpack.c.h.b16 %v1368
    %v1416 = vunpack.c.l.b16 %v1369
    %v1417 = vunpack.c.h.b16 %v1369
    %v1418 = vpack.c.b16 %v1388, %v1386
    %v1419 = vpack.c.b16 %v1389, %v1387
    %v1420 = vpack.c.b16 %v1392, %v1390
    %v1421 = vpack.c.b16 %v1393, %v1391
    %v1422 = vpack.c.b16 %v1396, %v1394
    %v1423 = vpack.c.b16 %v1397, %v1395
    %v1424 = vpack.c.b16 %v1400, %v1398
    %v1425 = vpack.c.b16 %v1401, %v1399
    %v1426 = vpack.c.b16 %v1404, %v1402
    %v1427 = vpack.c.b16 %v1405, %v1403
    %v1428 = vpack.c.b16 %v1408, %v1406
    %v1429 = vpack.c.b16 %v1409, %v1407
    %v1430 = vpack.c.b16 %v1412, %v1410
    %v1431 = vpack.c.b16 %v1413, %v1411
    %v1432 = vpack.c.b16 %v1416, %v1414
    %v1433 = vpack.c.b16 %v1417, %v1415
    %1450 = vmatprep.subr.bf16.mxu0 %v1419
    %1451 = vmatpush1.bf16.msra.mxu0 %v1418
    %1452 = vmatprep.subr.bf16.mxu0 %v1421
    %1453 = vmatpush1.bf16.msra.mxu0 %v1420
    %1454 = vmatprep.subr.bf16.mxu0 %v1423
    %1455 = vmatpush1.bf16.msra.mxu0 %v1422
    %1456 = vmatprep.subr.bf16.mxu0 %v1425
    %1457 = vmatpush1.bf16.msra.mxu0 %v1424
    %1458 = vmatprep.subr.bf16.mxu0 %v1427
    %1459 = vmatpush1.bf16.msra.mxu0 %v1426
    %1460 = vmatprep.subr.bf16.mxu0 %v1429
    %1461 = vmatpush1.bf16.msra.mxu0 %v1428
    %1462 = vmatprep.subr.bf16.mxu0 %v1431
    %1463 = vmatpush1.bf16.msra.mxu0 %v1430
    %1464 = vmatprep.subr.bf16.mxu0 %v1433
    %1465 = vmatpush1.bf16.msra.mxu0 %v1432
    %1466 = vmatprep.subr.bf16.mxu0 0
    %1467 = vmatpush1.bf16.msra.mxu0 0
    %1468 = vmatprep.subr.bf16.mxu0 0
    %1469 = vmatpush1.bf16.msra.mxu0 0
    %1470 = vmatprep.subr.bf16.mxu0 0
    %1471 = vmatpush1.bf16.msra.mxu0 0
    %1472 = vmatprep.subr.bf16.mxu0 0
    %1473 = vmatpush1.bf16.msra.mxu0 0
    %1474 = vmatprep.subr.bf16.mxu0 0
    %1475 = vmatpush1.bf16.msra.mxu0 0
    %1476 = vmatprep.subr.bf16.mxu0 0
    %1477 = vmatpush1.bf16.msra.mxu0 0
    %1478 = vmatprep.subr.bf16.mxu0 0
    %1479 = vmatpush1.bf16.msra.mxu0 0
    %1480 = vmatprep.subr.bf16.mxu0 0
    %1481 = vmatpush1.bf16.msra.mxu0 0
    %1482 = vmatprep.mubr.bf16.mxu0 0
    %1483 = vmatmul.mubr.bf16.gmra.mrb[0].mxu0 %v1346
    %v1484 = vpop.f32.mrb[0].mxu0
    %v1485 = vadd.f32 0.0, %v1484
    %v1486 = vpop.f32.mrb[0].mxu0
    %v1487 = vadd.f32 0.0, %v1486
    %v1488 = vpop.f32.mrb[0].mxu0
    %v1489 = vadd.f32 0.0, %v1488
    %v1490 = vpop.f32.mrb[0].mxu0
    %v1491 = vadd.f32 0.0, %v1490
    %1492 = vmatprep.mubr.bf16.mxu0 0
    %1493 = vmatmul.mubr.bf16.gmra.mrb[0].mxu0 %v1347
    %v1494 = vpop.f32.mrb[0].mxu0
    %v1495 = vadd.f32 0.0, %v1494
    %v1496 = vpop.f32.mrb[0].mxu0
    %v1497 = vadd.f32 0.0, %v1496
    %v1498 = vpop.f32.mrb[0].mxu0
    %v1499 = vadd.f32 0.0, %v1498
    %v1500 = vpop.f32.mrb[0].mxu0
    %v1501 = vadd.f32 0.0, %v1500
    %1502 = vmatprep.mubr.bf16.mxu0 0
    %1503 = vmatmul.mubr.bf16.gmra.mrb[0].mxu0 %v1348
    %v1504 = vpop.f32.mrb[0].mxu0
    %v1505 = vadd.f32 0.0, %v1504
    %v1506 = vpop.f32.mrb[0].mxu0
    %v1507 = vadd.f32 0.0, %v1506
    %v1508 = vpop.f32.mrb[0].mxu0
    %v1509 = vadd.f32 0.0, %v1508
    %v1510 = vpop.f32.mrb[0].mxu0
    %v1511 = vadd.f32 0.0, %v1510
    %1512 = vmatprep.mubr.bf16.mxu0 0
    %1513 = vmatmul.mubr.bf16.gmra.mrb[0].mxu0 %v1349
    %v1514 = vpop.f32.mrb[0].mxu0
    %v1515 = vadd.f32 0.0, %v1514
    %v1516 = vpop.f32.mrb[0].mxu0
    %v1517 = vadd.f32 0.0, %v1516
    %v1518 = vpop.f32.mrb[0].mxu0
    %v1519 = vadd.f32 0.0, %v1518
    %v1520 = vpop.f32.mrb[0].mxu0
    %v1521 = vadd.f32 0.0, %v1520
    %1522 = vmatprep.mubr.bf16.mxu0 0
    %1523 = vmatmul.mubr.bf16.gmra.mrb[0].mxu0 %v1350
    %v1524 = vpop.f32.mrb[0].mxu0
    %v1525 = vadd.f32 0.0, %v1524
    %v1526 = vpop.f32.mrb[0].mxu0
    %v1527 = vadd.f32 0.0, %v1526
    %v1528 = vpop.f32.mrb[0].mxu0
    %v1529 = vadd.f32 0.0, %v1528
    %v1530 = vpop.f32.mrb[0].mxu0
    %v1531 = vadd.f32 0.0, %v1530
    %1532 = vmatprep.mubr.bf16.mxu0 0
    %1533 = vmatmul.mubr.bf16.gmra.mrb[0].mxu0 %v1351
    %v1534 = vpop.f32.mrb[0].mxu0
    %v1535 = vadd.f32 0.0, %v1534
    %v1536 = vpop.f32.mrb[0].mxu0
    %v1537 = vadd.f32 0.0, %v1536
    %v1538 = vpop.f32.mrb[0].mxu0
    %v1539 = vadd.f32 0.0, %v1538
    %v1540 = vpop.f32.mrb[0].mxu0
    %v1541 = vadd.f32 0.0, %v1540
    %1542 = vmatprep.mubr.bf16.mxu0 0
    %1543 = vmatmul.mubr.bf16.gmra.mrb[0].mxu0 %v1352
    %v1544 = vpop.f32.mrb[0].mxu0
    %v1545 = vadd.f32 0.0, %v1544
    %v1546 = vpop.f32.mrb[0].mxu0
    %v1547 = vadd.f32 0.0, %v1546
    %v1548 = vpop.f32.mrb[0].mxu0
    %v1549 = vadd.f32 0.0, %v1548
    %v1550 = vpop.f32.mrb[0].mxu0
    %v1551 = vadd.f32 0.0, %v1550
    %1552 = vdwg.mxu0
    %v1569 = vunpack.c.l.b16 %v1316
    %v1570 = vunpack.c.h.b16 %v1316
    %v1571 = vunpack.c.l.b16 %v1317
    %v1572 = vunpack.c.h.b16 %v1317
    %v1573 = vunpack.c.l.b16 %v1318
    %v1574 = vunpack.c.h.b16 %v1318
    %v1575 = vunpack.c.l.b16 %v1319
    %v1576 = vunpack.c.h.b16 %v1319
    %v1577 = vunpack.c.l.b16 %v1320
    %v1578 = vunpack.c.h.b16 %v1320
    %v1579 = vunpack.c.l.b16 %v1321
    %v1580 = vunpack.c.h.b16 %v1321
    %v1581 = vunpack.c.l.b16 %v1322
    %v1582 = vunpack.c.h.b16 %v1322
    %v1583 = vunpack.c.l.b16 %v1323
    %v1584 = vunpack.c.h.b16 %v1323
    %v1585 = vunpack.c.l.b16 %v1324
    %v1586 = vunpack.c.h.b16 %v1324
    %v1587 = vunpack.c.l.b16 %v1325
    %v1588 = vunpack.c.h.b16 %v1325
    %v1589 = vunpack.c.l.b16 %v1326
    %v1590 = vunpack.c.h.b16 %v1326
    %v1591 = vunpack.c.l.b16 %v1327
    %v1592 = vunpack.c.h.b16 %v1327
    %v1593 = vunpack.c.l.b16 %v1328
    %v1594 = vunpack.c.h.b16 %v1328
    %v1595 = vunpack.c.l.b16 %v1329
    %v1596 = vunpack.c.h.b16 %v1329
    %v1597 = vunpack.c.l.b16 %v1330
    %v1598 = vunpack.c.h.b16 %v1330
    %v1599 = vunpack.c.l.b16 %v1331
    %v1600 = vunpack.c.h.b16 %v1331
    %v1601 = vpack.c.b16 %v1571, %v1569
    %v1602 = vpack.c.b16 %v1572, %v1570
    %v1603 = vpack.c.b16 %v1575, %v1573
    %v1604 = vpack.c.b16 %v1576, %v1574
    %v1605 = vpack.c.b16 %v1579, %v1577
    %v1606 = vpack.c.b16 %v1580, %v1578
    %v1607 = vpack.c.b16 %v1583, %v1581
    %v1608 = vpack.c.b16 %v1584, %v1582
    %v1609 = vpack.c.b16 %v1587, %v1585
    %v1610 = vpack.c.b16 %v1588, %v1586
    %v1611 = vpack.c.b16 %v1591, %v1589
    %v1612 = vpack.c.b16 %v1592, %v1590
    %v1613 = vpack.c.b16 %v1595, %v1593
    %v1614 = vpack.c.b16 %v1596, %v1594
    %v1615 = vpack.c.b16 %v1599, %v1597
    %v1616 = vpack.c.b16 %v1600, %v1598
    %1633 = vmatprep.subr.bf16.mxu0 %v1602
    %1634 = vmatpush1.bf16.msra.mxu0 %v1601
    %1635 = vmatprep.subr.bf16.mxu0 %v1604
    %1636 = vmatpush1.bf16.msra.mxu0 %v1603
    %1637 = vmatprep.subr.bf16.mxu0 %v1606
    %1638 = vmatpush1.bf16.msra.mxu0 %v1605
    %1639 = vmatprep.subr.bf16.mxu0 %v1608
    %1640 = vmatpush1.bf16.msra.mxu0 %v1607
    %1641 = vmatprep.subr.bf16.mxu0 %v1610
    %1642 = vmatpush1.bf16.msra.mxu0 %v1609
    %1643 = vmatprep.subr.bf16.mxu0 %v1612
    %1644 = vmatpush1.bf16.msra.mxu0 %v1611
    %1645 = vmatprep.subr.bf16.mxu0 %v1614
    %1646 = vmatpush1.bf16.msra.mxu0 %v1613
    %1647 = vmatprep.subr.bf16.mxu0 %v1616
    %1648 = vmatpush1.bf16.msra.mxu0 %v1615
    %1649 = vmatprep.subr.bf16.mxu0 0
    %1650 = vmatpush1.bf16.msra.mxu0 0
    %1651 = vmatprep.subr.bf16.mxu0 0
    %1652 = vmatpush1.bf16.msra.mxu0 0
    %1653 = vmatprep.subr.bf16.mxu0 0
    %1654 = vmatpush1.bf16.msra.mxu0 0
    %1655 = vmatprep.subr.bf16.mxu0 0
    %1656 = vmatpush1.bf16.msra.mxu0 0
    %1657 = vmatprep.subr.bf16.mxu0 0
    %1658 = vmatpush1.bf16.msra.mxu0 0
    %1659 = vmatprep.subr.bf16.mxu0 0
    %1660 = vmatpush1.bf16.msra.mxu0 0
    %1661 = vmatprep.subr.bf16.mxu0 0
    %1662 = vmatpush1.bf16.msra.mxu0 0
    %1663 = vmatprep.subr.bf16.mxu0 0
    %1664 = vmatpush1.bf16.msra.mxu0 0
    %1665 = vmatprep.mubr.bf16.mxu0 0
    %1666 = vmatmul.mubr.bf16.gmra.mrb[0].mxu0 %v1309
    %v1667 = vpop.f32.mrb[0].mxu0
    %v1668 = vadd.f32 %v1485, %v1667
    %v1669 = vpop.f32.mrb[0].mxu0
    %v1670 = vadd.f32 %v1487, %v1669
    %v1671 = vpop.f32.mrb[0].mxu0
    %v1672 = vadd.f32 %v1489, %v1671
    %v1673 = vpop.f32.mrb[0].mxu0
    %v1674 = vadd.f32 %v1491, %v1673
    %1675 = vmatprep.mubr.bf16.mxu0 0
    %1676 = vmatmul.mubr.bf16.gmra.mrb[0].mxu0 %v1310
    %v1677 = vpop.f32.mrb[0].mxu0
    %v1678 = vadd.f32 %v1495, %v1677
    %v1679 = vpop.f32.mrb[0].mxu0
    %v1680 = vadd.f32 %v1497, %v1679
    %v1681 = vpop.f32.mrb[0].mxu0
    %v1682 = vadd.f32 %v1499, %v1681
    %v1683 = vpop.f32.mrb[0].mxu0
    %v1684 = vadd.f32 %v1501, %v1683
    %1685 = vmatprep.mubr.bf16.mxu0 0
    %1686 = vmatmul.mubr.bf16.gmra.mrb[0].mxu0 %v1311
    %v1687 = vpop.f32.mrb[0].mxu0
    %v1688 = vadd.f32 %v1505, %v1687
    %v1689 = vpop.f32.mrb[0].mxu0
    %v1690 = vadd.f32 %v1507, %v1689
    %v1691 = vpop.f32.mrb[0].mxu0
    %v1692 = vadd.f32 %v1509, %v1691
    %v1693 = vpop.f32.mrb[0].mxu0
    %v1694 = vadd.f32 %v1511, %v1693
    %1695 = vmatprep.mubr.bf16.mxu0 0
    %1696 = vmatmul.mubr.bf16.gmra.mrb[0].mxu0 %v1312
    %v1697 = vpop.f32.mrb[0].mxu0
    %v1698 = vadd.f32 %v1515, %v1697
    %v1699 = vpop.f32.mrb[0].mxu0
    %v1700 = vadd.f32 %v1517, %v1699
    %v1701 = vpop.f32.mrb[0].mxu0
    %v1702 = vadd.f32 %v1519, %v1701
    %v1703 = vpop.f32.mrb[0].mxu0
    %v1704 = vadd.f32 %v1521, %v1703
    %1705 = vmatprep.mubr.bf16.mxu0 0
    %1706 = vmatmul.mubr.bf16.gmra.mrb[0].mxu0 %v1313
    %v1707 = vpop.f32.mrb[0].mxu0
    %v1708 = vadd.f32 %v1525, %v1707
    %v1709 = vpop.f32.mrb[0].mxu0
    %v1710 = vadd.f32 %v1527, %v1709
    %v1711 = vpop.f32.mrb[0].mxu0
    %v1712 = vadd.f32 %v1529, %v1711
    %v1713 = vpop.f32.mrb[0].mxu0
    %v1714 = vadd.f32 %v1531, %v1713
    %1715 = vmatprep.mubr.bf16.mxu0 0
    %1716 = vmatmul.mubr.bf16.gmra.mrb[0].mxu0 %v1314
    %v1717 = vpop.f32.mrb[0].mxu0
    %v1718 = vadd.f32 %v1535, %v1717
    %v1719 = vpop.f32.mrb[0].mxu0
    %v1720 = vadd.f32 %v1537, %v1719
    %v1721 = vpop.f32.mrb[0].mxu0
    %v1722 = vadd.f32 %v1539, %v1721
    %v1723 = vpop.f32.mrb[0].mxu0
    %v1724 = vadd.f32 %v1541, %v1723
    %1725 = vmatprep.mubr.bf16.mxu0 0
    %1726 = vmatmul.mubr.bf16.gmra.mrb[0].mxu0 %v1315
    %v1727 = vpop.f32.mrb[0].mxu0
    %v1728 = vadd.f32 %v1545, %v1727
    %v1729 = vpop.f32.mrb[0].mxu0
    %v1730 = vadd.f32 %v1547, %v1729
    %v1731 = vpop.f32.mrb[0].mxu0
    %v1732 = vadd.f32 %v1549, %v1731
    %v1733 = vpop.f32.mrb[0].mxu0
    %v1734 = vadd.f32 %v1551, %v1733
    %1735 = vdwg.mxu0
    %v1736 = vld [vmem:[#allocation4 + $0x9] sm:$0xff]
    %v1737 = vld [vmem:[#allocation4 + $0x11] sm:$0xff]
    %v1738 = vld [vmem:[#allocation4 + $0x19] sm:$0xff]
    %v1739 = vld [vmem:[#allocation4 + $0x21] sm:$0xff]
    %v1740 = vld [vmem:[#allocation4 + $0x29] sm:$0xff]
    %v1741 = vld [vmem:[#allocation4 + $0x31] sm:$0xff]
    %v1742 = vld [vmem:[#allocation4 + $0x39] sm:$0xff]
    %v1743 = vld [vmem:[#allocation4 + $0x41] sm:$0xff]
    %v1744 = vld [vmem:[#allocation4 + $0x49] sm:$0xff]
    %v1745 = vld [vmem:[#allocation4 + $0x51] sm:$0xff]
    %v1746 = vld [vmem:[#allocation4 + $0x59] sm:$0xff]
    %v1747 = vld [vmem:[#allocation4 + $0x61] sm:$0xff]
    %v1748 = vld [vmem:[#allocation4 + $0x69] sm:$0xff]
    %v1749 = vld [vmem:[#allocation4 + $0x71] sm:$0xff]
    %v1750 = vpack.c.bf16 %v1737, %v1736
    %v1751 = vpack.c.bf16 %v1739, %v1738
    %v1752 = vpack.c.bf16 %v1741, %v1740
    %v1753 = vpack.c.bf16 %v1743, %v1742
    %v1754 = vpack.c.bf16 %v1745, %v1744
    %v1755 = vpack.c.bf16 %v1747, %v1746
    %v1756 = vpack.c.bf16 %v1749, %v1748
    %s1757 = scalar_lea.vmem [#allocation12], 256
    %v1758 = vld [vmem:[%s1757] sm:$0xff]
    %v1759 = vld [vmem:[%s1757 + $0x8] sm:$0xff]
    %v1760 = vld [vmem:[%s1757 + $0x10] sm:$0xff]
    %v1761 = vld [vmem:[%s1757 + $0x18] sm:$0xff]
    %v1762 = vld [vmem:[%s1757 + $0x20] sm:$0xff]
    %v1763 = vld [vmem:[%s1757 + $0x28] sm:$0xff]
    %v1764 = vld [vmem:[%s1757 + $0x30] sm:$0xff]
    %v1765 = vld [vmem:[%s1757 + $0x38] sm:$0xff]
    %v1766 = vld [vmem:[%s1757 + $0x40] sm:$0xff]
    %v1767 = vld [vmem:[%s1757 + $0x48] sm:$0xff]
    %v1768 = vld [vmem:[%s1757 + $0x50] sm:$0xff]
    %v1769 = vld [vmem:[%s1757 + $0x58] sm:$0xff]
    %v1770 = vld [vmem:[%s1757 + $0x60] sm:$0xff]
    %v1771 = vld [vmem:[%s1757 + $0x68] sm:$0xff]
    %v1772 = vld [vmem:[%s1757 + $0x70] sm:$0xff]
    %v1773 = vld [vmem:[%s1757 + $0x78] sm:$0xff]
    %v1790 = vunpack.c.l.b16 %v1758
    %v1791 = vunpack.c.h.b16 %v1758
    %v1792 = vunpack.c.l.b16 %v1759
    %v1793 = vunpack.c.h.b16 %v1759
    %v1794 = vunpack.c.l.b16 %v1760
    %v1795 = vunpack.c.h.b16 %v1760
    %v1796 = vunpack.c.l.b16 %v1761
    %v1797 = vunpack.c.h.b16 %v1761
    %v1798 = vunpack.c.l.b16 %v1762
    %v1799 = vunpack.c.h.b16 %v1762
    %v1800 = vunpack.c.l.b16 %v1763
    %v1801 = vunpack.c.h.b16 %v1763
    %v1802 = vunpack.c.l.b16 %v1764
    %v1803 = vunpack.c.h.b16 %v1764
    %v1804 = vunpack.c.l.b16 %v1765
    %v1805 = vunpack.c.h.b16 %v1765
    %v1806 = vunpack.c.l.b16 %v1766
    %v1807 = vunpack.c.h.b16 %v1766
    %v1808 = vunpack.c.l.b16 %v1767
    %v1809 = vunpack.c.h.b16 %v1767
    %v1810 = vunpack.c.l.b16 %v1768
    %v1811 = vunpack.c.h.b16 %v1768
    %v1812 = vunpack.c.l.b16 %v1769
    %v1813 = vunpack.c.h.b16 %v1769
    %v1814 = vunpack.c.l.b16 %v1770
    %v1815 = vunpack.c.h.b16 %v1770
    %v1816 = vunpack.c.l.b16 %v1771
    %v1817 = vunpack.c.h.b16 %v1771
    %v1818 = vunpack.c.l.b16 %v1772
    %v1819 = vunpack.c.h.b16 %v1772
    %v1820 = vunpack.c.l.b16 %v1773
    %v1821 = vunpack.c.h.b16 %v1773
    %v1822 = vpack.c.b16 %v1792, %v1790
    %v1823 = vpack.c.b16 %v1793, %v1791
    %v1824 = vpack.c.b16 %v1796, %v1794
    %v1825 = vpack.c.b16 %v1797, %v1795
    %v1826 = vpack.c.b16 %v1800, %v1798
    %v1827 = vpack.c.b16 %v1801, %v1799
    %v1828 = vpack.c.b16 %v1804, %v1802
    %v1829 = vpack.c.b16 %v1805, %v1803
    %v1830 = vpack.c.b16 %v1808, %v1806
    %v1831 = vpack.c.b16 %v1809, %v1807
    %v1832 = vpack.c.b16 %v1812, %v1810
    %v1833 = vpack.c.b16 %v1813, %v1811
    %v1834 = vpack.c.b16 %v1816, %v1814
    %v1835 = vpack.c.b16 %v1817, %v1815
    %v1836 = vpack.c.b16 %v1820, %v1818
    %v1837 = vpack.c.b16 %v1821, %v1819
    %1854 = vmatprep.subr.bf16.mxu0 %v1823
    %1855 = vmatpush1.bf16.msra.mxu0 %v1822
    %1856 = vmatprep.subr.bf16.mxu0 %v1825
    %1857 = vmatpush1.bf16.msra.mxu0 %v1824
    %1858 = vmatprep.subr.bf16.mxu0 %v1827
    %1859 = vmatpush1.bf16.msra.mxu0 %v1826
    %1860 = vmatprep.subr.bf16.mxu0 %v1829
    %1861 = vmatpush1.bf16.msra.mxu0 %v1828
    %1862 = vmatprep.subr.bf16.mxu0 %v1831
    %1863 = vmatpush1.bf16.msra.mxu0 %v1830
    %1864 = vmatprep.subr.bf16.mxu0 %v1833
    %1865 = vmatpush1.bf16.msra.mxu0 %v1832
    %1866 = vmatprep.subr.bf16.mxu0 %v1835
    %1867 = vmatpush1.bf16.msra.mxu0 %v1834
    %1868 = vmatprep.subr.bf16.mxu0 %v1837
    %1869 = vmatpush1.bf16.msra.mxu0 %v1836
    %1870 = vmatprep.subr.bf16.mxu0 0
    %1871 = vmatpush1.bf16.msra.mxu0 0
    %1872 = vmatprep.subr.bf16.mxu0 0
    %1873 = vmatpush1.bf16.msra.mxu0 0
    %1874 = vmatprep.subr.bf16.mxu0 0
    %1875 = vmatpush1.bf16.msra.mxu0 0
    %1876 = vmatprep.subr.bf16.mxu0 0
    %1877 = vmatpush1.bf16.msra.mxu0 0
    %1878 = vmatprep.subr.bf16.mxu0 0
    %1879 = vmatpush1.bf16.msra.mxu0 0
    %1880 = vmatprep.subr.bf16.mxu0 0
    %1881 = vmatpush1.bf16.msra.mxu0 0
    %1882 = vmatprep.subr.bf16.mxu0 0
    %1883 = vmatpush1.bf16.msra.mxu0 0
    %1884 = vmatprep.subr.bf16.mxu0 0
    %1885 = vmatpush1.bf16.msra.mxu0 0
    %1886 = vmatprep.mubr.bf16.mxu0 0
    %1887 = vmatmul.mubr.bf16.gmra.mrb[0].mxu0 %v1750
    %v1888 = vpop.f32.mrb[0].mxu0
    %v1889 = vadd.f32 0.0, %v1888
    %v1890 = vpop.f32.mrb[0].mxu0
    %v1891 = vadd.f32 0.0, %v1890
    %v1892 = vpop.f32.mrb[0].mxu0
    %v1893 = vadd.f32 0.0, %v1892
    %v1894 = vpop.f32.mrb[0].mxu0
    %v1895 = vadd.f32 0.0, %v1894
    %1896 = vmatprep.mubr.bf16.mxu0 0
    %1897 = vmatmul.mubr.bf16.gmra.mrb[0].mxu0 %v1751
    %v1898 = vpop.f32.mrb[0].mxu0
    %v1899 = vadd.f32 0.0, %v1898
    %v1900 = vpop.f32.mrb[0].mxu0
    %v1901 = vadd.f32 0.0, %v1900
    %v1902 = vpop.f32.mrb[0].mxu0
    %v1903 = vadd.f32 0.0, %v1902
    %v1904 = vpop.f32.mrb[0].mxu0
    %v1905 = vadd.f32 0.0, %v1904
    %1906 = vmatprep.mubr.bf16.mxu0 0
    %1907 = vmatmul.mubr.bf16.gmra.mrb[0].mxu0 %v1752
    %v1908 = vpop.f32.mrb[0].mxu0
    %v1909 = vadd.f32 0.0, %v1908
    %v1910 = vpop.f32.mrb[0].mxu0
    %v1911 = vadd.f32 0.0, %v1910
    %v1912 = vpop.f32.mrb[0].mxu0
    %v1913 = vadd.f32 0.0, %v1912
    %v1914 = vpop.f32.mrb[0].mxu0
    %v1915 = vadd.f32 0.0, %v1914
    %1916 = vmatprep.mubr.bf16.mxu0 0
    %1917 = vmatmul.mubr.bf16.gmra.mrb[0].mxu0 %v1753
    %v1918 = vpop.f32.mrb[0].mxu0
    %v1919 = vadd.f32 0.0, %v1918
    %v1920 = vpop.f32.mrb[0].mxu0
    %v1921 = vadd.f32 0.0, %v1920
    %v1922 = vpop.f32.mrb[0].mxu0
    %v1923 = vadd.f32 0.0, %v1922
    %v1924 = vpop.f32.mrb[0].mxu0
    %v1925 = vadd.f32 0.0, %v1924
    %1926 = vmatprep.mubr.bf16.mxu0 0
    %1927 = vmatmul.mubr.bf16.gmra.mrb[0].mxu0 %v1754
    %v1928 = vpop.f32.mrb[0].mxu0
    %v1929 = vadd.f32 0.0, %v1928
    %v1930 = vpop.f32.mrb[0].mxu0
    %v1931 = vadd.f32 0.0, %v1930
    %v1932 = vpop.f32.mrb[0].mxu0
    %v1933 = vadd.f32 0.0, %v1932
    %v1934 = vpop.f32.mrb[0].mxu0
    %v1935 = vadd.f32 0.0, %v1934
    %1936 = vmatprep.mubr.bf16.mxu0 0
    %1937 = vmatmul.mubr.bf16.gmra.mrb[0].mxu0 %v1755
    %v1938 = vpop.f32.mrb[0].mxu0
    %v1939 = vadd.f32 0.0, %v1938
    %v1940 = vpop.f32.mrb[0].mxu0
    %v1941 = vadd.f32 0.0, %v1940
    %v1942 = vpop.f32.mrb[0].mxu0
    %v1943 = vadd.f32 0.0, %v1942
    %v1944 = vpop.f32.mrb[0].mxu0
    %v1945 = vadd.f32 0.0, %v1944
    %1946 = vmatprep.mubr.bf16.mxu0 0
    %1947 = vmatmul.mubr.bf16.gmra.mrb[0].mxu0 %v1756
    %v1948 = vpop.f32.mrb[0].mxu0
    %v1949 = vadd.f32 0.0, %v1948
    %v1950 = vpop.f32.mrb[0].mxu0
    %v1951 = vadd.f32 0.0, %v1950
    %v1952 = vpop.f32.mrb[0].mxu0
    %v1953 = vadd.f32 0.0, %v1952
    %v1954 = vpop.f32.mrb[0].mxu0
    %v1955 = vadd.f32 0.0, %v1954
    %1956 = vdwg.mxu0
    %v1957 = vadd.f32 %v1668, %v1889
    %v1958 = vadd.f32 %v1670, %v1891
    %v1959 = vadd.f32 %v1672, %v1893
    %v1960 = vadd.f32 %v1674, %v1895
    %v1961 = vadd.f32 %v1678, %v1899
    %v1962 = vadd.f32 %v1680, %v1901
    %v1963 = vadd.f32 %v1682, %v1903
    %v1964 = vadd.f32 %v1684, %v1905
    %v1965 = vadd.f32 %v1688, %v1909
    %v1966 = vadd.f32 %v1690, %v1911
    %v1967 = vadd.f32 %v1692, %v1913
    %v1968 = vadd.f32 %v1694, %v1915
    %v1969 = vadd.f32 %v1698, %v1919
    %v1970 = vadd.f32 %v1700, %v1921
    %v1971 = vadd.f32 %v1702, %v1923
    %v1972 = vadd.f32 %v1704, %v1925
    %v1973 = vadd.f32 %v1708, %v1929
    %v1974 = vadd.f32 %v1710, %v1931
    %v1975 = vadd.f32 %v1712, %v1933
    %v1976 = vadd.f32 %v1714, %v1935
    %v1977 = vadd.f32 %v1718, %v1939
    %v1978 = vadd.f32 %v1720, %v1941
    %v1979 = vadd.f32 %v1722, %v1943
    %v1980 = vadd.f32 %v1724, %v1945
    %v1981 = vadd.f32 %v1728, %v1949
    %v1982 = vadd.f32 %v1730, %v1951
    %v1983 = vadd.f32 %v1732, %v1953
    %v1984 = vadd.f32 %v1734, %v1955
    %v1985 = vld [vmem:[%s6] sm:$0x3]
    %v1987 = vlaneseq
    %v1988 = vshrl.u32 %v1987, 7
    %v1989 = vsub.s32 0, %v1988
    %v1990 = vrot.slane %v1985, %v1989
    %v1991 = vlaneseq
    %v1992 = vshrl.u32 %v1991, 7
    %v1993 = vsub.s32 1, %v1992
    %v1994 = vrot.slane %v1985, %v1993
    %v1997 = vadd.f32 %v1957, %v1990
    %v1998 = vadd.f32 %v1958, %v1994
    %v1999 = vadd.f32 %v1959, %v1990
    %v2000 = vadd.f32 %v1960, %v1994
    %v2001 = vadd.f32 %v1961, %v1990
    %v2002 = vadd.f32 %v1962, %v1994
    %v2003 = vadd.f32 %v1963, %v1990
    %v2004 = vadd.f32 %v1964, %v1994
    %v2005 = vadd.f32 %v1965, %v1990
    %v2006 = vadd.f32 %v1966, %v1994
    %v2007 = vadd.f32 %v1967, %v1990
    %v2008 = vadd.f32 %v1968, %v1994
    %v2009 = vadd.f32 %v1969, %v1990
    %v2010 = vadd.f32 %v1970, %v1994
    %v2011 = vadd.f32 %v1971, %v1990
    %v2012 = vadd.f32 %v1972, %v1994
    %v2013 = vadd.f32 %v1973, %v1990
    %v2014 = vadd.f32 %v1974, %v1994
    %v2015 = vadd.f32 %v1975, %v1990
    %v2016 = vadd.f32 %v1976, %v1994
    %v2017 = vadd.f32 %v1977, %v1990
    %v2018 = vadd.f32 %v1978, %v1994
    %v2019 = vadd.f32 %v1979, %v1990
    %v2020 = vadd.f32 %v1980, %v1994
    %v2021 = vadd.f32 %v1981, %v1990
    %v2022 = vadd.f32 %v1982, %v1994
    %v2023 = vadd.f32 %v1983, %v1990
    %v2024 = vadd.f32 %v1984, %v1994
    %v2025 = vmax.f32 %v1997, 0.0
    %v2026 = vmax.f32 %v1998, 0.0
    %v2027 = vmax.f32 %v1999, 0.0
    %v2028 = vmax.f32 %v2000, 0.0
    %v2029 = vmax.f32 %v2001, 0.0
    %v2030 = vmax.f32 %v2002, 0.0
    %v2031 = vmax.f32 %v2003, 0.0
    %v2032 = vmax.f32 %v2004, 0.0
    %v2033 = vmax.f32 %v2005, 0.0
    %v2034 = vmax.f32 %v2006, 0.0
    %v2035 = vmax.f32 %v2007, 0.0
    %v2036 = vmax.f32 %v2008, 0.0
    %v2037 = vmax.f32 %v2009, 0.0
    %v2038 = vmax.f32 %v2010, 0.0
    %v2039 = vmax.f32 %v2011, 0.0
    %v2040 = vmax.f32 %v2012, 0.0
    %v2041 = vmax.f32 %v2013, 0.0
    %v2042 = vmax.f32 %v2014, 0.0
    %v2043 = vmax.f32 %v2015, 0.0
    %v2044 = vmax.f32 %v2016, 0.0
    %v2045 = vmax.f32 %v2017, 0.0
    %v2046 = vmax.f32 %v2018, 0.0
    %v2047 = vmax.f32 %v2019, 0.0
    %v2048 = vmax.f32 %v2020, 0.0
    %v2049 = vmax.f32 %v2021, 0.0
    %v2050 = vmax.f32 %v2022, 0.0
    %v2051 = vmax.f32 %v2023, 0.0
    %v2052 = vmax.f32 %v2024, 0.0
    %2053 = vst [vmem:[#allocation5] sm:$0xff] %v2025
    %2054 = vst [vmem:[#allocation5 + $0x8] sm:$0xff] %v2026
    %2055 = vst [vmem:[#allocation5 + $0x10] sm:$0xff] %v2027
    %2056 = vst [vmem:[#allocation5 + $0x18] sm:$0xff] %v2028
    %2057 = vst [vmem:[#allocation5 + $0x20] sm:$0xff] %v2029
    %2058 = vst [vmem:[#allocation5 + $0x28] sm:$0xff] %v2030
    %2059 = vst [vmem:[#allocation5 + $0x30] sm:$0xff] %v2031
    %2060 = vst [vmem:[#allocation5 + $0x38] sm:$0xff] %v2032
    %2061 = vst [vmem:[#allocation5 + $0x40] sm:$0xff] %v2033
    %2062 = vst [vmem:[#allocation5 + $0x48] sm:$0xff] %v2034
    %2063 = vst [vmem:[#allocation5 + $0x50] sm:$0xff] %v2035
    %2064 = vst [vmem:[#allocation5 + $0x58] sm:$0xff] %v2036
    %2065 = vst [vmem:[#allocation5 + $0x60] sm:$0xff] %v2037
    %2066 = vst [vmem:[#allocation5 + $0x68] sm:$0xff] %v2038
    %2067 = vst [vmem:[#allocation5 + $0x70] sm:$0xff] %v2039
    %2068 = vst [vmem:[#allocation5 + $0x78] sm:$0xff] %v2040
    %2069 = vst [vmem:[#allocation5 + $0x80] sm:$0xff] %v2041
    %2070 = vst [vmem:[#allocation5 + $0x88] sm:$0xff] %v2042
    %2071 = vst [vmem:[#allocation5 + $0x90] sm:$0xff] %v2043
    %2072 = vst [vmem:[#allocation5 + $0x98] sm:$0xff] %v2044
    %2073 = vst [vmem:[#allocation5 + $0xa0] sm:$0xff] %v2045
    %2074 = vst [vmem:[#allocation5 + $0xa8] sm:$0xff] %v2046
    %2075 = vst [vmem:[#allocation5 + $0xb0] sm:$0xff] %v2047
    %2076 = vst [vmem:[#allocation5 + $0xb8] sm:$0xff] %v2048
    %2077 = vst [vmem:[#allocation5 + $0xc0] sm:$0xff] %v2049
    %2078 = vst [vmem:[#allocation5 + $0xc8] sm:$0xff] %v2050
    %2079 = vst [vmem:[#allocation5 + $0xd0] sm:$0xff] %v2051
    %2080 = vst [vmem:[#allocation5 + $0xd8] sm:$0xff] %v2052
    %s2081 = scalar_lea.vmem [#allocation5], 1
    %v2082 = vld [vmem:[%s2081] ss:$8 sm:$0x3]
    %v2083 = vlaneseq
    %vm2084 = vcmp.ge.s32.totalorder %v2083, 0
    %vm2085 = vcmp.lt.s32.totalorder %v2083, 256
    %vm2086 = vmand %vm2084, %vm2085
    %2087 = vst.msk [vmem:[#allocation6] ss:$2 sm:$0x3] %vm2086, %v2082
    %s2088 = scalar_lea.vmem [#allocation5], 2
    %v2089 = vld [vmem:[%s2088] ss:$8 sm:$0x3]
    %s2090 = scalar_lea.vmem [#allocation6], 4
    %2091 = vst.msk [vmem:[%s2090] ss:$2 sm:$0x3] %vm2086, %v2089
    %s2092 = scalar_lea.vmem [#allocation5], 3
    %v2093 = vld [vmem:[%s2092] ss:$8 sm:$0x3]
    %s2094 = scalar_lea.vmem [#allocation6], 8
    %2095 = vst.msk [vmem:[%s2094] ss:$2 sm:$0x3] %vm2086, %v2093
    %s2096 = scalar_lea.vmem [#allocation5], 4
    %v2097 = vld [vmem:[%s2096] ss:$8 sm:$0x3]
    %s2098 = scalar_lea.vmem [#allocation6], 12
    %2099 = vst.msk [vmem:[%s2098] ss:$2 sm:$0x3] %vm2086, %v2097
    %s2100 = scalar_lea.vmem [#allocation5], 5
    %v2101 = vld [vmem:[%s2100] ss:$8 sm:$0x3]
    %s2102 = scalar_lea.vmem [#allocation6], 16
    %2103 = vst.msk [vmem:[%s2102] ss:$2 sm:$0x3] %vm2086, %v2101
    %s2104 = scalar_lea.vmem [#allocation5], 6
    %v2105 = vld [vmem:[%s2104] ss:$8 sm:$0x3]
    %s2106 = scalar_lea.vmem [#allocation6], 20
    %2107 = vst.msk [vmem:[%s2106] ss:$2 sm:$0x3] %vm2086, %v2105
    %s2108 = scalar_lea.vmem [#allocation5], 7
    %v2109 = vld [vmem:[%s2108] ss:$8 sm:$0x3]
    %s2110 = scalar_lea.vmem [#allocation6], 24
    %2111 = vst.msk [vmem:[%s2110] ss:$2 sm:$0x3] %vm2086, %v2109
    %s2112 = scalar_lea.vmem [#allocation5], 16
    %v2113 = vld [vmem:[%s2112] ss:$8 sm:$0x3]
    %s2114 = scalar_lea.vmem [#allocation6], 28
    %2115 = vst.msk [vmem:[%s2114] ss:$2 sm:$0x3] %vm2086, %v2113
    %s2116 = scalar_lea.vmem [#allocation5], 17
    %v2117 = vld [vmem:[%s2116] ss:$8 sm:$0x3]
    %s2118 = scalar_lea.vmem [#allocation6], 32
    %2119 = vst.msk [vmem:[%s2118] ss:$2 sm:$0x3] %vm2086, %v2117
    %s2120 = scalar_lea.vmem [#allocation5], 18
    %v2121 = vld [vmem:[%s2120] ss:$8 sm:$0x3]
    %s2122 = scalar_lea.vmem [#allocation6], 36
    %2123 = vst.msk [vmem:[%s2122] ss:$2 sm:$0x3] %vm2086, %v2121
    %s2124 = scalar_lea.vmem [#allocation5], 19
    %v2125 = vld [vmem:[%s2124] ss:$8 sm:$0x3]
    %s2126 = scalar_lea.vmem [#allocation6], 40
    %2127 = vst.msk [vmem:[%s2126] ss:$2 sm:$0x3] %vm2086, %v2125
    %s2128 = scalar_lea.vmem [#allocation5], 20
    %v2129 = vld [vmem:[%s2128] ss:$8 sm:$0x3]
    %s2130 = scalar_lea.vmem [#allocation6], 44
    %2131 = vst.msk [vmem:[%s2130] ss:$2 sm:$0x3] %vm2086, %v2129
    %s2132 = scalar_lea.vmem [#allocation5], 21
    %v2133 = vld [vmem:[%s2132] ss:$8 sm:$0x3]
    %s2134 = scalar_lea.vmem [#allocation6], 48
    %2135 = vst.msk [vmem:[%s2134] ss:$2 sm:$0x3] %vm2086, %v2133
    %s2136 = scalar_lea.vmem [#allocation5], 22
    %v2137 = vld [vmem:[%s2136] ss:$8 sm:$0x3]
    %s2138 = scalar_lea.vmem [#allocation6], 52
    %2139 = vst.msk [vmem:[%s2138] ss:$2 sm:$0x3] %vm2086, %v2137
    %s2140 = scalar_lea.vmem [#allocation5], 23
    %v2141 = vld [vmem:[%s2140] ss:$8 sm:$0x3]
    %s2142 = scalar_lea.vmem [#allocation6], 56
    %2143 = vst.msk [vmem:[%s2142] ss:$2 sm:$0x3] %vm2086, %v2141
    %s2144 = scalar_lea.vmem [#allocation5], 32
    %v2145 = vld [vmem:[%s2144] ss:$8 sm:$0x3]
    %s2146 = scalar_lea.vmem [#allocation6], 60
    %2147 = vst.msk [vmem:[%s2146] ss:$2 sm:$0x3] %vm2086, %v2145
    %s2148 = scalar_lea.vmem [#allocation5], 33
    %v2149 = vld [vmem:[%s2148] ss:$8 sm:$0x3]
    %s2150 = scalar_lea.vmem [#allocation6], 64
    %2151 = vst.msk [vmem:[%s2150] ss:$2 sm:$0x3] %vm2086, %v2149
    %s2152 = scalar_lea.vmem [#allocation5], 34
    %v2153 = vld [vmem:[%s2152] ss:$8 sm:$0x3]
    %s2154 = scalar_lea.vmem [#allocation6], 68
    %2155 = vst.msk [vmem:[%s2154] ss:$2 sm:$0x3] %vm2086, %v2153
    %s2156 = scalar_lea.vmem [#allocation5], 35
    %v2157 = vld [vmem:[%s2156] ss:$8 sm:$0x3]
    %s2158 = scalar_lea.vmem [#allocation6], 72
    %2159 = vst.msk [vmem:[%s2158] ss:$2 sm:$0x3] %vm2086, %v2157
    %s2160 = scalar_lea.vmem [#allocation5], 36
    %v2161 = vld [vmem:[%s2160] ss:$8 sm:$0x3]
    %s2162 = scalar_lea.vmem [#allocation6], 76
    %2163 = vst.msk [vmem:[%s2162] ss:$2 sm:$0x3] %vm2086, %v2161
    %s2164 = scalar_lea.vmem [#allocation5], 37
    %v2165 = vld [vmem:[%s2164] ss:$8 sm:$0x3]
    %s2166 = scalar_lea.vmem [#allocation6], 80
    %2167 = vst.msk [vmem:[%s2166] ss:$2 sm:$0x3] %vm2086, %v2165
    %s2168 = scalar_lea.vmem [#allocation5], 38
    %v2169 = vld [vmem:[%s2168] ss:$8 sm:$0x3]
    %s2170 = scalar_lea.vmem [#allocation6], 84
    %2171 = vst.msk [vmem:[%s2170] ss:$2 sm:$0x3] %vm2086, %v2169
    %s2172 = scalar_lea.vmem [#allocation5], 39
    %v2173 = vld [vmem:[%s2172] ss:$8 sm:$0x3]
    %s2174 = scalar_lea.vmem [#allocation6], 88
    %2175 = vst.msk [vmem:[%s2174] ss:$2 sm:$0x3] %vm2086, %v2173
    %s2176 = scalar_lea.vmem [#allocation5], 48
    %v2177 = vld [vmem:[%s2176] ss:$8 sm:$0x3]
    %s2178 = scalar_lea.vmem [#allocation6], 92
    %2179 = vst.msk [vmem:[%s2178] ss:$2 sm:$0x3] %vm2086, %v2177
    %s2180 = scalar_lea.vmem [#allocation5], 49
    %v2181 = vld [vmem:[%s2180] ss:$8 sm:$0x3]
    %s2182 = scalar_lea.vmem [#allocation6], 96
    %2183 = vst.msk [vmem:[%s2182] ss:$2 sm:$0x3] %vm2086, %v2181
    %s2184 = scalar_lea.vmem [#allocation5], 50
    %v2185 = vld [vmem:[%s2184] ss:$8 sm:$0x3]
    %s2186 = scalar_lea.vmem [#allocation6], 100
    %2187 = vst.msk [vmem:[%s2186] ss:$2 sm:$0x3] %vm2086, %v2185
    %s2188 = scalar_lea.vmem [#allocation5], 51
    %v2189 = vld [vmem:[%s2188] ss:$8 sm:$0x3]
    %s2190 = scalar_lea.vmem [#allocation6], 104
    %2191 = vst.msk [vmem:[%s2190] ss:$2 sm:$0x3] %vm2086, %v2189
    %s2192 = scalar_lea.vmem [#allocation5], 52
    %v2193 = vld [vmem:[%s2192] ss:$8 sm:$0x3]
    %s2194 = scalar_lea.vmem [#allocation6], 108
    %2195 = vst.msk [vmem:[%s2194] ss:$2 sm:$0x3] %vm2086, %v2193
    %s2196 = scalar_lea.vmem [#allocation5], 53
    %v2197 = vld [vmem:[%s2196] ss:$8 sm:$0x3]
    %s2198 = scalar_lea.vmem [#allocation6], 112
    %2199 = vst.msk [vmem:[%s2198] ss:$2 sm:$0x3] %vm2086, %v2197
    %s2200 = scalar_lea.vmem [#allocation5], 54
    %v2201 = vld [vmem:[%s2200] ss:$8 sm:$0x3]
    %s2202 = scalar_lea.vmem [#allocation6], 116
    %2203 = vst.msk [vmem:[%s2202] ss:$2 sm:$0x3] %vm2086, %v2201
    %s2204 = scalar_lea.vmem [#allocation5], 55
    %v2205 = vld [vmem:[%s2204] ss:$8 sm:$0x3]
    %s2206 = scalar_lea.vmem [#allocation6], 120
    %2207 = vst.msk [vmem:[%s2206] ss:$2 sm:$0x3] %vm2086, %v2205
    %s2208 = scalar_lea.vmem [#allocation5], 64
    %v2209 = vld [vmem:[%s2208] ss:$8 sm:$0x3]
    %s2210 = scalar_lea.vmem [#allocation6], 124
    %2211 = vst.msk [vmem:[%s2210] ss:$2 sm:$0x3] %vm2086, %v2209
    %s2212 = scalar_lea.vmem [#allocation5], 65
    %v2213 = vld [vmem:[%s2212] ss:$8 sm:$0x3]
    %s2214 = scalar_lea.vmem [#allocation6], 128
    %2215 = vst.msk [vmem:[%s2214] ss:$2 sm:$0x3] %vm2086, %v2213
    %s2216 = scalar_lea.vmem [#allocation5], 66
    %v2217 = vld [vmem:[%s2216] ss:$8 sm:$0x3]
    %s2218 = scalar_lea.vmem [#allocation6], 132
    %2219 = vst.msk [vmem:[%s2218] ss:$2 sm:$0x3] %vm2086, %v2217
    %s2220 = scalar_lea.vmem [#allocation5], 67
    %v2221 = vld [vmem:[%s2220] ss:$8 sm:$0x3]
    %s2222 = scalar_lea.vmem [#allocation6], 136
    %2223 = vst.msk [vmem:[%s2222] ss:$2 sm:$0x3] %vm2086, %v2221
    %s2224 = scalar_lea.vmem [#allocation5], 68
    %v2225 = vld [vmem:[%s2224] ss:$8 sm:$0x3]
    %s2226 = scalar_lea.vmem [#allocation6], 140
    %2227 = vst.msk [vmem:[%s2226] ss:$2 sm:$0x3] %vm2086, %v2225
    %s2228 = scalar_lea.vmem [#allocation5], 69
    %v2229 = vld [vmem:[%s2228] ss:$8 sm:$0x3]
    %s2230 = scalar_lea.vmem [#allocation6], 144
    %2231 = vst.msk [vmem:[%s2230] ss:$2 sm:$0x3] %vm2086, %v2229
    %s2232 = scalar_lea.vmem [#allocation5], 70
    %v2233 = vld [vmem:[%s2232] ss:$8 sm:$0x3]
    %s2234 = scalar_lea.vmem [#allocation6], 148
    %2235 = vst.msk [vmem:[%s2234] ss:$2 sm:$0x3] %vm2086, %v2233
    %s2236 = scalar_lea.vmem [#allocation5], 71
    %v2237 = vld [vmem:[%s2236] ss:$8 sm:$0x3]
    %s2238 = scalar_lea.vmem [#allocation6], 152
    %2239 = vst.msk [vmem:[%s2238] ss:$2 sm:$0x3] %vm2086, %v2237
    %s2240 = scalar_lea.vmem [#allocation5], 80
    %v2241 = vld [vmem:[%s2240] ss:$8 sm:$0x3]
    %s2242 = scalar_lea.vmem [#allocation6], 156
    %2243 = vst.msk [vmem:[%s2242] ss:$2 sm:$0x3] %vm2086, %v2241
    %s2244 = scalar_lea.vmem [#allocation5], 81
    %v2245 = vld [vmem:[%s2244] ss:$8 sm:$0x3]
    %s2246 = scalar_lea.vmem [#allocation6], 160
    %2247 = vst.msk [vmem:[%s2246] ss:$2 sm:$0x3] %vm2086, %v2245
    %s2248 = scalar_lea.vmem [#allocation5], 82
    %v2249 = vld [vmem:[%s2248] ss:$8 sm:$0x3]
    %s2250 = scalar_lea.vmem [#allocation6], 164
    %2251 = vst.msk [vmem:[%s2250] ss:$2 sm:$0x3] %vm2086, %v2249
    %s2252 = scalar_lea.vmem [#allocation5], 83
    %v2253 = vld [vmem:[%s2252] ss:$8 sm:$0x3]
    %s2254 = scalar_lea.vmem [#allocation6], 168
    %2255 = vst.msk [vmem:[%s2254] ss:$2 sm:$0x3] %vm2086, %v2253
    %s2256 = scalar_lea.vmem [#allocation5], 84
    %v2257 = vld [vmem:[%s2256] ss:$8 sm:$0x3]
    %s2258 = scalar_lea.vmem [#allocation6], 172
    %2259 = vst.msk [vmem:[%s2258] ss:$2 sm:$0x3] %vm2086, %v2257
    %s2260 = scalar_lea.vmem [#allocation5], 85
    %v2261 = vld [vmem:[%s2260] ss:$8 sm:$0x3]
    %s2262 = scalar_lea.vmem [#allocation6], 176
    %2263 = vst.msk [vmem:[%s2262] ss:$2 sm:$0x3] %vm2086, %v2261
    %s2264 = scalar_lea.vmem [#allocation5], 86
    %v2265 = vld [vmem:[%s2264] ss:$8 sm:$0x3]
    %s2266 = scalar_lea.vmem [#allocation6], 180
    %2267 = vst.msk [vmem:[%s2266] ss:$2 sm:$0x3] %vm2086, %v2265
    %s2268 = scalar_lea.vmem [#allocation5], 87
    %v2269 = vld [vmem:[%s2268] ss:$8 sm:$0x3]
    %s2270 = scalar_lea.vmem [#allocation6], 184
    %2271 = vst.msk [vmem:[%s2270] ss:$2 sm:$0x3] %vm2086, %v2269
    %s2272 = scalar_lea.vmem [#allocation5], 96
    %v2273 = vld [vmem:[%s2272] ss:$8 sm:$0x3]
    %s2274 = scalar_lea.vmem [#allocation6], 188
    %2275 = vst.msk [vmem:[%s2274] ss:$2 sm:$0x3] %vm2086, %v2273
    %s2276 = scalar_lea.vmem [#allocation5], 97
    %v2277 = vld [vmem:[%s2276] ss:$8 sm:$0x3]
    %s2278 = scalar_lea.vmem [#allocation6], 192
    %2279 = vst.msk [vmem:[%s2278] ss:$2 sm:$0x3] %vm2086, %v2277
    %s2280 = scalar_lea.vmem [#allocation5], 98
    %v2281 = vld [vmem:[%s2280] ss:$8 sm:$0x3]
    %s2282 = scalar_lea.vmem [#allocation6], 196
    %2283 = vst.msk [vmem:[%s2282] ss:$2 sm:$0x3] %vm2086, %v2281
    %s2284 = scalar_lea.vmem [#allocation5], 113
    %v2285 = vld [vmem:[%s2284] ss:$8 sm:$0x3]
    %s2286 = scalar_lea.vmem [#allocation6], 1
    %2287 = vst.msk [vmem:[%s2286] ss:$2 sm:$0x3] %vm2086, %v2285
    %s2288 = scalar_lea.vmem [#allocation5], 114
    %v2289 = vld [vmem:[%s2288] ss:$8 sm:$0x3]
    %s2290 = scalar_lea.vmem [#allocation6], 5
    %2291 = vst.msk [vmem:[%s2290] ss:$2 sm:$0x3] %vm2086, %v2289
    %s2292 = scalar_lea.vmem [#allocation5], 115
    %v2293 = vld [vmem:[%s2292] ss:$8 sm:$0x3]
    %s2294 = scalar_lea.vmem [#allocation6], 9
    %2295 = vst.msk [vmem:[%s2294] ss:$2 sm:$0x3] %vm2086, %v2293
    %s2296 = scalar_lea.vmem [#allocation5], 116
    %v2297 = vld [vmem:[%s2296] ss:$8 sm:$0x3]
    %s2298 = scalar_lea.vmem [#allocation6], 13
    %2299 = vst.msk [vmem:[%s2298] ss:$2 sm:$0x3] %vm2086, %v2297
    %s2300 = scalar_lea.vmem [#allocation5], 117
    %v2301 = vld [vmem:[%s2300] ss:$8 sm:$0x3]
    %s2302 = scalar_lea.vmem [#allocation6], 17
    %2303 = vst.msk [vmem:[%s2302] ss:$2 sm:$0x3] %vm2086, %v2301
    %s2304 = scalar_lea.vmem [#allocation5], 118
    %v2305 = vld [vmem:[%s2304] ss:$8 sm:$0x3]
    %s2306 = scalar_lea.vmem [#allocation6], 21
    %2307 = vst.msk [vmem:[%s2306] ss:$2 sm:$0x3] %vm2086, %v2305
    %s2308 = scalar_lea.vmem [#allocation5], 119
    %v2309 = vld [vmem:[%s2308] ss:$8 sm:$0x3]
    %s2310 = scalar_lea.vmem [#allocation6], 25
    %2311 = vst.msk [vmem:[%s2310] ss:$2 sm:$0x3] %vm2086, %v2309
    %s2312 = scalar_lea.vmem [#allocation5], 128
    %v2313 = vld [vmem:[%s2312] ss:$8 sm:$0x3]
    %s2314 = scalar_lea.vmem [#allocation6], 29
    %2315 = vst.msk [vmem:[%s2314] ss:$2 sm:$0x3] %vm2086, %v2313
    %s2316 = scalar_lea.vmem [#allocation5], 129
    %v2317 = vld [vmem:[%s2316] ss:$8 sm:$0x3]
    %s2318 = scalar_lea.vmem [#allocation6], 33
    %2319 = vst.msk [vmem:[%s2318] ss:$2 sm:$0x3] %vm2086, %v2317
    %s2320 = scalar_lea.vmem [#allocation5], 130
    %v2321 = vld [vmem:[%s2320] ss:$8 sm:$0x3]
    %s2322 = scalar_lea.vmem [#allocation6], 37
    %2323 = vst.msk [vmem:[%s2322] ss:$2 sm:$0x3] %vm2086, %v2321
    %s2324 = scalar_lea.vmem [#allocation5], 131
    %v2325 = vld [vmem:[%s2324] ss:$8 sm:$0x3]
    %s2326 = scalar_lea.vmem [#allocation6], 41
    %2327 = vst.msk [vmem:[%s2326] ss:$2 sm:$0x3] %vm2086, %v2325
    %s2328 = scalar_lea.vmem [#allocation5], 132
    %v2329 = vld [vmem:[%s2328] ss:$8 sm:$0x3]
    %s2330 = scalar_lea.vmem [#allocation6], 45
    %2331 = vst.msk [vmem:[%s2330] ss:$2 sm:$0x3] %vm2086, %v2329
    %s2332 = scalar_lea.vmem [#allocation5], 133
    %v2333 = vld [vmem:[%s2332] ss:$8 sm:$0x3]
    %s2334 = scalar_lea.vmem [#allocation6], 49
    %2335 = vst.msk [vmem:[%s2334] ss:$2 sm:$0x3] %vm2086, %v2333
    %s2336 = scalar_lea.vmem [#allocation5], 134
    %v2337 = vld [vmem:[%s2336] ss:$8 sm:$0x3]
    %s2338 = scalar_lea.vmem [#allocation6], 53
    %2339 = vst.msk [vmem:[%s2338] ss:$2 sm:$0x3] %vm2086, %v2337
    %s2340 = scalar_lea.vmem [#allocation5], 135
    %v2341 = vld [vmem:[%s2340] ss:$8 sm:$0x3]
    %s2342 = scalar_lea.vmem [#allocation6], 57
    %2343 = vst.msk [vmem:[%s2342] ss:$2 sm:$0x3] %vm2086, %v2341
    %s2344 = scalar_lea.vmem [#allocation5], 144
    %v2345 = vld [vmem:[%s2344] ss:$8 sm:$0x3]
    %s2346 = scalar_lea.vmem [#allocation6], 61
    %2347 = vst.msk [vmem:[%s2346] ss:$2 sm:$0x3] %vm2086, %v2345
    %s2348 = scalar_lea.vmem [#allocation5], 145
    %v2349 = vld [vmem:[%s2348] ss:$8 sm:$0x3]
    %s2350 = scalar_lea.vmem [#allocation6], 65
    %2351 = vst.msk [vmem:[%s2350] ss:$2 sm:$0x3] %vm2086, %v2349
    %s2352 = scalar_lea.vmem [#allocation5], 146
    %v2353 = vld [vmem:[%s2352] ss:$8 sm:$0x3]
    %s2354 = scalar_lea.vmem [#allocation6], 69
    %2355 = vst.msk [vmem:[%s2354] ss:$2 sm:$0x3] %vm2086, %v2353
    %s2356 = scalar_lea.vmem [#allocation5], 147
    %v2357 = vld [vmem:[%s2356] ss:$8 sm:$0x3]
    %s2358 = scalar_lea.vmem [#allocation6], 73
    %2359 = vst.msk [vmem:[%s2358] ss:$2 sm:$0x3] %vm2086, %v2357
    %s2360 = scalar_lea.vmem [#allocation5], 148
    %v2361 = vld [vmem:[%s2360] ss:$8 sm:$0x3]
    %s2362 = scalar_lea.vmem [#allocation6], 77
    %2363 = vst.msk [vmem:[%s2362] ss:$2 sm:$0x3] %vm2086, %v2361
    %s2364 = scalar_lea.vmem [#allocation5], 149
    %v2365 = vld [vmem:[%s2364] ss:$8 sm:$0x3]
    %s2366 = scalar_lea.vmem [#allocation6], 81
    %2367 = vst.msk [vmem:[%s2366] ss:$2 sm:$0x3] %vm2086, %v2365
    %s2368 = scalar_lea.vmem [#allocation5], 150
    %v2369 = vld [vmem:[%s2368] ss:$8 sm:$0x3]
    %s2370 = scalar_lea.vmem [#allocation6], 85
    %2371 = vst.msk [vmem:[%s2370] ss:$2 sm:$0x3] %vm2086, %v2369
    %s2372 = scalar_lea.vmem [#allocation5], 151
    %v2373 = vld [vmem:[%s2372] ss:$8 sm:$0x3]
    %s2374 = scalar_lea.vmem [#allocation6], 89
    %2375 = vst.msk [vmem:[%s2374] ss:$2 sm:$0x3] %vm2086, %v2373
    %s2376 = scalar_lea.vmem [#allocation5], 160
    %v2377 = vld [vmem:[%s2376] ss:$8 sm:$0x3]
    %s2378 = scalar_lea.vmem [#allocation6], 93
    %2379 = vst.msk [vmem:[%s2378] ss:$2 sm:$0x3] %vm2086, %v2377
    %s2380 = scalar_lea.vmem [#allocation5], 161
    %v2381 = vld [vmem:[%s2380] ss:$8 sm:$0x3]
    %s2382 = scalar_lea.vmem [#allocation6], 97
    %2383 = vst.msk [vmem:[%s2382] ss:$2 sm:$0x3] %vm2086, %v2381
    %s2384 = scalar_lea.vmem [#allocation5], 162
    %v2385 = vld [vmem:[%s2384] ss:$8 sm:$0x3]
    %s2386 = scalar_lea.vmem [#allocation6], 101
    %2387 = vst.msk [vmem:[%s2386] ss:$2 sm:$0x3] %vm2086, %v2385
    %s2388 = scalar_lea.vmem [#allocation5], 163
    %v2389 = vld [vmem:[%s2388] ss:$8 sm:$0x3]
    %s2390 = scalar_lea.vmem [#allocation6], 105
    %2391 = vst.msk [vmem:[%s2390] ss:$2 sm:$0x3] %vm2086, %v2389
    %s2392 = scalar_lea.vmem [#allocation5], 164
    %v2393 = vld [vmem:[%s2392] ss:$8 sm:$0x3]
    %s2394 = scalar_lea.vmem [#allocation6], 109
    %2395 = vst.msk [vmem:[%s2394] ss:$2 sm:$0x3] %vm2086, %v2393
    %s2396 = scalar_lea.vmem [#allocation5], 165
    %v2397 = vld [vmem:[%s2396] ss:$8 sm:$0x3]
    %s2398 = scalar_lea.vmem [#allocation6], 113
    %2399 = vst.msk [vmem:[%s2398] ss:$2 sm:$0x3] %vm2086, %v2397
    %s2400 = scalar_lea.vmem [#allocation5], 166
    %v2401 = vld [vmem:[%s2400] ss:$8 sm:$0x3]
    %s2402 = scalar_lea.vmem [#allocation6], 117
    %2403 = vst.msk [vmem:[%s2402] ss:$2 sm:$0x3] %vm2086, %v2401
    %s2404 = scalar_lea.vmem [#allocation5], 167
    %v2405 = vld [vmem:[%s2404] ss:$8 sm:$0x3]
    %s2406 = scalar_lea.vmem [#allocation6], 121
    %2407 = vst.msk [vmem:[%s2406] ss:$2 sm:$0x3] %vm2086, %v2405
    %s2408 = scalar_lea.vmem [#allocation5], 176
    %v2409 = vld [vmem:[%s2408] ss:$8 sm:$0x3]
    %s2410 = scalar_lea.vmem [#allocation6], 125
    %2411 = vst.msk [vmem:[%s2410] ss:$2 sm:$0x3] %vm2086, %v2409
    %s2412 = scalar_lea.vmem [#allocation5], 177
    %v2413 = vld [vmem:[%s2412] ss:$8 sm:$0x3]
    %s2414 = scalar_lea.vmem [#allocation6], 129
    %2415 = vst.msk [vmem:[%s2414] ss:$2 sm:$0x3] %vm2086, %v2413
    %s2416 = scalar_lea.vmem [#allocation5], 178
    %v2417 = vld [vmem:[%s2416] ss:$8 sm:$0x3]
    %s2418 = scalar_lea.vmem [#allocation6], 133
    %2419 = vst.msk [vmem:[%s2418] ss:$2 sm:$0x3] %vm2086, %v2417
    %s2420 = scalar_lea.vmem [#allocation5], 179
    %v2421 = vld [vmem:[%s2420] ss:$8 sm:$0x3]
    %s2422 = scalar_lea.vmem [#allocation6], 137
    %2423 = vst.msk [vmem:[%s2422] ss:$2 sm:$0x3] %vm2086, %v2421
    %s2424 = scalar_lea.vmem [#allocation5], 180
    %v2425 = vld [vmem:[%s2424] ss:$8 sm:$0x3]
    %s2426 = scalar_lea.vmem [#allocation6], 141
    %2427 = vst.msk [vmem:[%s2426] ss:$2 sm:$0x3] %vm2086, %v2425
    %s2428 = scalar_lea.vmem [#allocation5], 181
    %v2429 = vld [vmem:[%s2428] ss:$8 sm:$0x3]
    %s2430 = scalar_lea.vmem [#allocation6], 145
    %2431 = vst.msk [vmem:[%s2430] ss:$2 sm:$0x3] %vm2086, %v2429
    %s2432 = scalar_lea.vmem [#allocation5], 182
    %v2433 = vld [vmem:[%s2432] ss:$8 sm:$0x3]
    %s2434 = scalar_lea.vmem [#allocation6], 149
    %2435 = vst.msk [vmem:[%s2434] ss:$2 sm:$0x3] %vm2086, %v2433
    %s2436 = scalar_lea.vmem [#allocation5], 183
    %v2437 = vld [vmem:[%s2436] ss:$8 sm:$0x3]
    %s2438 = scalar_lea.vmem [#allocation6], 153
    %2439 = vst.msk [vmem:[%s2438] ss:$2 sm:$0x3] %vm2086, %v2437
    %s2440 = scalar_lea.vmem [#allocation5], 192
    %v2441 = vld [vmem:[%s2440] ss:$8 sm:$0x3]
    %s2442 = scalar_lea.vmem [#allocation6], 157
    %2443 = vst.msk [vmem:[%s2442] ss:$2 sm:$0x3] %vm2086, %v2441
    %s2444 = scalar_lea.vmem [#allocation5], 193
    %v2445 = vld [vmem:[%s2444] ss:$8 sm:$0x3]
    %s2446 = scalar_lea.vmem [#allocation6], 161
    %2447 = vst.msk [vmem:[%s2446] ss:$2 sm:$0x3] %vm2086, %v2445
    %s2448 = scalar_lea.vmem [#allocation5], 194
    %v2449 = vld [vmem:[%s2448] ss:$8 sm:$0x3]
    %s2450 = scalar_lea.vmem [#allocation6], 165
    %2451 = vst.msk [vmem:[%s2450] ss:$2 sm:$0x3] %vm2086, %v2449
    %s2452 = scalar_lea.vmem [#allocation5], 195
    %v2453 = vld [vmem:[%s2452] ss:$8 sm:$0x3]
    %s2454 = scalar_lea.vmem [#allocation6], 169
    %2455 = vst.msk [vmem:[%s2454] ss:$2 sm:$0x3] %vm2086, %v2453
    %s2456 = scalar_lea.vmem [#allocation5], 196
    %v2457 = vld [vmem:[%s2456] ss:$8 sm:$0x3]
    %s2458 = scalar_lea.vmem [#allocation6], 173
    %2459 = vst.msk [vmem:[%s2458] ss:$2 sm:$0x3] %vm2086, %v2457
    %s2460 = scalar_lea.vmem [#allocation5], 197
    %v2461 = vld [vmem:[%s2460] ss:$8 sm:$0x3]
    %s2462 = scalar_lea.vmem [#allocation6], 177
    %2463 = vst.msk [vmem:[%s2462] ss:$2 sm:$0x3] %vm2086, %v2461
    %s2464 = scalar_lea.vmem [#allocation5], 198
    %v2465 = vld [vmem:[%s2464] ss:$8 sm:$0x3]
    %s2466 = scalar_lea.vmem [#allocation6], 181
    %2467 = vst.msk [vmem:[%s2466] ss:$2 sm:$0x3] %vm2086, %v2465
    %s2468 = scalar_lea.vmem [#allocation5], 199
    %v2469 = vld [vmem:[%s2468] ss:$8 sm:$0x3]
    %s2470 = scalar_lea.vmem [#allocation6], 185
    %2471 = vst.msk [vmem:[%s2470] ss:$2 sm:$0x3] %vm2086, %v2469
    %s2472 = scalar_lea.vmem [#allocation5], 208
    %v2473 = vld [vmem:[%s2472] ss:$8 sm:$0x3]
    %s2474 = scalar_lea.vmem [#allocation6], 189
    %2475 = vst.msk [vmem:[%s2474] ss:$2 sm:$0x3] %vm2086, %v2473
    %s2476 = scalar_lea.vmem [#allocation5], 209
    %v2477 = vld [vmem:[%s2476] ss:$8 sm:$0x3]
    %s2478 = scalar_lea.vmem [#allocation6], 193
    %2479 = vst.msk [vmem:[%s2478] ss:$2 sm:$0x3] %vm2086, %v2477
    %s2480 = scalar_lea.vmem [#allocation5], 210
    %v2481 = vld [vmem:[%s2480] ss:$8 sm:$0x3]
    %s2482 = scalar_lea.vmem [#allocation6], 197
    %2483 = vst.msk [vmem:[%s2482] ss:$2 sm:$0x3] %vm2086, %v2481
    %s2484 = smul.u32 4, 400
    %s2485 = smul.u32 %s2484, 1
    %s2486 = sshll.u32 %s2485, 4
    %2487 = dma.done [#allocation8], %s2486
    %v2488 = vld [vmem:[#allocation7] sm:$0xff]
    %v2489 = vld [vmem:[#allocation7 + $0x8] sm:$0xff]
    %v2490 = vld [vmem:[#allocation7 + $0x10] sm:$0xff]
    %v2491 = vld [vmem:[#allocation7 + $0x18] sm:$0xff]
    %v2492 = vld [vmem:[#allocation7 + $0x20] sm:$0xff]
    %v2493 = vld [vmem:[#allocation7 + $0x28] sm:$0xff]
    %v2494 = vld [vmem:[#allocation7 + $0x30] sm:$0xff]
    %v2495 = vld [vmem:[#allocation7 + $0x38] sm:$0xff]
    %v2496 = vld [vmem:[#allocation7 + $0x40] sm:$0xff]
    %v2497 = vld [vmem:[#allocation7 + $0x48] sm:$0xff]
    %v2498 = vld [vmem:[#allocation7 + $0x50] sm:$0xff]
    %v2499 = vld [vmem:[#allocation7 + $0x58] sm:$0xff]
    %v2500 = vld [vmem:[#allocation7 + $0x60] sm:$0xff]
    %v2501 = vld [vmem:[#allocation7 + $0x68] sm:$0xff]
    %v2502 = vld [vmem:[#allocation7 + $0x70] sm:$0xff]
    %v2503 = vld [vmem:[#allocation7 + $0x78] sm:$0xff]
    %v2504 = vld [vmem:[#allocation7 + $0x80] sm:$0xff]
    %v2505 = vld [vmem:[#allocation7 + $0x88] sm:$0xff]
    %v2506 = vld [vmem:[#allocation7 + $0x90] sm:$0xff]
    %v2507 = vld [vmem:[#allocation7 + $0x98] sm:$0xff]
    %v2508 = vld [vmem:[#allocation7 + $0xa0] sm:$0xff]
    %v2509 = vld [vmem:[#allocation7 + $0xa8] sm:$0xff]
    %v2510 = vld [vmem:[#allocation7 + $0xb0] sm:$0xff]
    %v2511 = vld [vmem:[#allocation7 + $0xb8] sm:$0xff]
    %v2512 = vld [vmem:[#allocation7 + $0xc0] sm:$0xff]
    %v2513 = vld [vmem:[#allocation7 + $0xc8] sm:$0xff]
    %v2514 = vld [vmem:[#allocation7 + $0xd0] sm:$0xff]
    %v2515 = vld [vmem:[#allocation7 + $0xd8] sm:$0xff]
    %v2516 = vld [vmem:[#allocation7 + $0xe0] sm:$0xff]
    %v2517 = vld [vmem:[#allocation7 + $0xe8] sm:$0xff]
    %v2518 = vld [vmem:[#allocation7 + $0xf0] sm:$0xff]
    %v2519 = vld [vmem:[#allocation7 + $0xf8] sm:$0xff]
    %v2520 = vld [vmem:[#allocation7 + $0x100] sm:$0xff]
    %v2521 = vld [vmem:[#allocation7 + $0x108] sm:$0xff]
    %v2522 = vld [vmem:[#allocation7 + $0x110] sm:$0xff]
    %v2523 = vld [vmem:[#allocation7 + $0x118] sm:$0xff]
    %v2524 = vld [vmem:[#allocation7 + $0x120] sm:$0xff]
    %v2525 = vld [vmem:[#allocation7 + $0x128] sm:$0xff]
    %v2526 = vld [vmem:[#allocation7 + $0x130] sm:$0xff]
    %v2527 = vld [vmem:[#allocation7 + $0x138] sm:$0xff]
    %v2528 = vld [vmem:[#allocation7 + $0x140] sm:$0xff]
    %v2529 = vld [vmem:[#allocation7 + $0x148] sm:$0xff]
    %v2530 = vld [vmem:[#allocation7 + $0x150] sm:$0xff]
    %v2531 = vld [vmem:[#allocation7 + $0x158] sm:$0xff]
    %v2532 = vld [vmem:[#allocation7 + $0x160] sm:$0xff]
    %v2533 = vld [vmem:[#allocation7 + $0x168] sm:$0xff]
    %v2534 = vld [vmem:[#allocation7 + $0x170] sm:$0xff]
    %v2535 = vld [vmem:[#allocation7 + $0x178] sm:$0xff]
    %v2536 = vld [vmem:[#allocation7 + $0x180] sm:$0xff]
    %v2537 = vld [vmem:[#allocation7 + $0x188] sm:$0xff]
    %v2538 = vld [vmem:[#allocation7 + $0x190] sm:$0xff]
    %v2539 = vld [vmem:[#allocation7 + $0x198] sm:$0xff]
    %v2540 = vld [vmem:[#allocation7 + $0x1a0] sm:$0xff]
    %v2541 = vld [vmem:[#allocation7 + $0x1a8] sm:$0xff]
    %v2542 = vld [vmem:[#allocation7 + $0x1b0] sm:$0xff]
    %v2543 = vld [vmem:[#allocation7 + $0x1b8] sm:$0xff]
    %v2544 = vld [vmem:[#allocation7 + $0x1c0] sm:$0xff]
    %v2545 = vld [vmem:[#allocation7 + $0x1c8] sm:$0xff]
    %v2546 = vld [vmem:[#allocation7 + $0x1d0] sm:$0xff]
    %v2547 = vld [vmem:[#allocation7 + $0x1d8] sm:$0xff]
    %v2548 = vld [vmem:[#allocation7 + $0x1e0] sm:$0xff]
    %v2549 = vld [vmem:[#allocation7 + $0x1e8] sm:$0xff]
    %v2550 = vld [vmem:[#allocation7 + $0x1f0] sm:$0xff]
    %v2551 = vld [vmem:[#allocation7 + $0x1f8] sm:$0xff]
    %v2552 = vld [vmem:[#allocation7 + $0x200] sm:$0xff]
    %v2553 = vld [vmem:[#allocation7 + $0x208] sm:$0xff]
    %v2554 = vld [vmem:[#allocation7 + $0x210] sm:$0xff]
    %v2555 = vld [vmem:[#allocation7 + $0x218] sm:$0xff]
    %v2556 = vld [vmem:[#allocation7 + $0x220] sm:$0xff]
    %v2557 = vld [vmem:[#allocation7 + $0x228] sm:$0xff]
    %v2558 = vld [vmem:[#allocation7 + $0x230] sm:$0xff]
    %v2559 = vld [vmem:[#allocation7 + $0x238] sm:$0xff]
    %v2560 = vld [vmem:[#allocation7 + $0x240] sm:$0xff]
    %v2561 = vld [vmem:[#allocation7 + $0x248] sm:$0xff]
    %v2562 = vld [vmem:[#allocation7 + $0x250] sm:$0xff]
    %v2563 = vld [vmem:[#allocation7 + $0x258] sm:$0xff]
    %v2564 = vld [vmem:[#allocation7 + $0x260] sm:$0xff]
    %v2565 = vld [vmem:[#allocation7 + $0x268] sm:$0xff]
    %v2566 = vld [vmem:[#allocation7 + $0x270] sm:$0xff]
    %v2567 = vld [vmem:[#allocation7 + $0x278] sm:$0xff]
    %v2568 = vld [vmem:[#allocation7 + $0x280] sm:$0xff]
    %v2569 = vld [vmem:[#allocation7 + $0x288] sm:$0xff]
    %v2570 = vld [vmem:[#allocation7 + $0x290] sm:$0xff]
    %v2571 = vld [vmem:[#allocation7 + $0x298] sm:$0xff]
    %v2572 = vld [vmem:[#allocation7 + $0x2a0] sm:$0xff]
    %v2573 = vld [vmem:[#allocation7 + $0x2a8] sm:$0xff]
    %v2574 = vld [vmem:[#allocation7 + $0x2b0] sm:$0xff]
    %v2575 = vld [vmem:[#allocation7 + $0x2b8] sm:$0xff]
    %v2576 = vld [vmem:[#allocation7 + $0x2c0] sm:$0xff]
    %v2577 = vld [vmem:[#allocation7 + $0x2c8] sm:$0xff]
    %v2578 = vld [vmem:[#allocation7 + $0x2d0] sm:$0xff]
    %v2579 = vld [vmem:[#allocation7 + $0x2d8] sm:$0xff]
    %v2580 = vld [vmem:[#allocation7 + $0x2e0] sm:$0xff]
    %v2581 = vld [vmem:[#allocation7 + $0x2e8] sm:$0xff]
    %v2582 = vld [vmem:[#allocation7 + $0x2f0] sm:$0xff]
    %v2583 = vld [vmem:[#allocation7 + $0x2f8] sm:$0xff]
    %v2584 = vld [vmem:[#allocation7 + $0x300] sm:$0xff]
    %v2585 = vld [vmem:[#allocation7 + $0x308] sm:$0xff]
    %v2586 = vld [vmem:[#allocation7 + $0x310] sm:$0xff]
    %v2587 = vld [vmem:[#allocation7 + $0x318] sm:$0xff]
    %v2588 = vld [vmem:[#allocation7 + $0x320] sm:$0xff]
    %v2589 = vld [vmem:[#allocation7 + $0x328] sm:$0xff]
    %v2590 = vld [vmem:[#allocation7 + $0x330] sm:$0xff]
    %v2591 = vld [vmem:[#allocation7 + $0x338] sm:$0xff]
    %v2592 = vld [vmem:[#allocation7 + $0x340] sm:$0xff]
    %v2593 = vld [vmem:[#allocation7 + $0x348] sm:$0xff]
    %v2594 = vld [vmem:[#allocation7 + $0x350] sm:$0xff]
    %v2595 = vld [vmem:[#allocation7 + $0x358] sm:$0xff]
    %v2596 = vld [vmem:[#allocation7 + $0x360] sm:$0xff]
    %v2597 = vld [vmem:[#allocation7 + $0x368] sm:$0xff]
    %v2598 = vld [vmem:[#allocation7 + $0x370] sm:$0xff]
    %v2599 = vld [vmem:[#allocation7 + $0x378] sm:$0xff]
    %v2600 = vld [vmem:[#allocation7 + $0x380] sm:$0xff]
    %v2601 = vld [vmem:[#allocation7 + $0x388] sm:$0xff]
    %v2602 = vld [vmem:[#allocation7 + $0x390] sm:$0xff]
    %v2603 = vld [vmem:[#allocation7 + $0x398] sm:$0xff]
    %v2604 = vld [vmem:[#allocation7 + $0x3a0] sm:$0xff]
    %v2605 = vld [vmem:[#allocation7 + $0x3a8] sm:$0xff]
    %v2606 = vld [vmem:[#allocation7 + $0x3b0] sm:$0xff]
    %v2607 = vld [vmem:[#allocation7 + $0x3b8] sm:$0xff]
    %v2608 = vld [vmem:[#allocation7 + $0x3c0] sm:$0xff]
    %v2609 = vld [vmem:[#allocation7 + $0x3c8] sm:$0xff]
    %v2610 = vld [vmem:[#allocation7 + $0x3d0] sm:$0xff]
    %v2611 = vld [vmem:[#allocation7 + $0x3d8] sm:$0xff]
    %v2612 = vld [vmem:[#allocation7 + $0x3e0] sm:$0xff]
    %v2613 = vld [vmem:[#allocation7 + $0x3e8] sm:$0xff]
    %v2614 = vld [vmem:[#allocation7 + $0x3f0] sm:$0xff]
    %v2615 = vld [vmem:[#allocation7 + $0x3f8] sm:$0xff]
    %v2616 = vld [vmem:[#allocation7 + $0x400] sm:$0xff]
    %v2617 = vld [vmem:[#allocation7 + $0x408] sm:$0xff]
    %v2618 = vld [vmem:[#allocation7 + $0x410] sm:$0xff]
    %v2619 = vld [vmem:[#allocation7 + $0x418] sm:$0xff]
    %v2620 = vld [vmem:[#allocation7 + $0x420] sm:$0xff]
    %v2621 = vld [vmem:[#allocation7 + $0x428] sm:$0xff]
    %v2622 = vld [vmem:[#allocation7 + $0x430] sm:$0xff]
    %v2623 = vld [vmem:[#allocation7 + $0x438] sm:$0xff]
    %v2624 = vld [vmem:[#allocation7 + $0x440] sm:$0xff]
    %v2625 = vld [vmem:[#allocation7 + $0x448] sm:$0xff]
    %v2626 = vld [vmem:[#allocation7 + $0x450] sm:$0xff]
    %v2627 = vld [vmem:[#allocation7 + $0x458] sm:$0xff]
    %v2628 = vld [vmem:[#allocation7 + $0x460] sm:$0xff]
    %v2629 = vld [vmem:[#allocation7 + $0x468] sm:$0xff]
    %v2630 = vld [vmem:[#allocation7 + $0x470] sm:$0xff]
    %v2631 = vld [vmem:[#allocation7 + $0x478] sm:$0xff]
    %v2632 = vld [vmem:[#allocation7 + $0x480] sm:$0xff]
    %v2633 = vld [vmem:[#allocation7 + $0x488] sm:$0xff]
    %v2634 = vld [vmem:[#allocation7 + $0x490] sm:$0xff]
    %v2635 = vld [vmem:[#allocation7 + $0x498] sm:$0xff]
    %v2636 = vld [vmem:[#allocation7 + $0x4a0] sm:$0xff]
    %v2637 = vld [vmem:[#allocation7 + $0x4a8] sm:$0xff]
    %v2638 = vld [vmem:[#allocation7 + $0x4b0] sm:$0xff]
    %v2639 = vld [vmem:[#allocation7 + $0x4b8] sm:$0xff]
    %v2640 = vld [vmem:[#allocation7 + $0x4c0] sm:$0xff]
    %v2641 = vld [vmem:[#allocation7 + $0x4c8] sm:$0xff]
    %v2642 = vld [vmem:[#allocation7 + $0x4d0] sm:$0xff]
    %v2643 = vld [vmem:[#allocation7 + $0x4d8] sm:$0xff]
    %v2644 = vld [vmem:[#allocation7 + $0x4e0] sm:$0xff]
    %v2645 = vld [vmem:[#allocation7 + $0x4e8] sm:$0xff]
    %v2646 = vld [vmem:[#allocation7 + $0x4f0] sm:$0xff]
    %v2647 = vld [vmem:[#allocation7 + $0x4f8] sm:$0xff]
    %v2648 = vld [vmem:[#allocation7 + $0x500] sm:$0xff]
    %v2649 = vld [vmem:[#allocation7 + $0x508] sm:$0xff]
    %v2650 = vld [vmem:[#allocation7 + $0x510] sm:$0xff]
    %v2651 = vld [vmem:[#allocation7 + $0x518] sm:$0xff]
    %v2652 = vld [vmem:[#allocation7 + $0x520] sm:$0xff]
    %v2653 = vld [vmem:[#allocation7 + $0x528] sm:$0xff]
    %v2654 = vld [vmem:[#allocation7 + $0x530] sm:$0xff]
    %v2655 = vld [vmem:[#allocation7 + $0x538] sm:$0xff]
    %v2656 = vld [vmem:[#allocation7 + $0x540] sm:$0xff]
    %v2657 = vld [vmem:[#allocation7 + $0x548] sm:$0xff]
    %v2658 = vld [vmem:[#allocation7 + $0x550] sm:$0xff]
    %v2659 = vld [vmem:[#allocation7 + $0x558] sm:$0xff]
    %v2660 = vld [vmem:[#allocation7 + $0x560] sm:$0xff]
    %v2661 = vld [vmem:[#allocation7 + $0x568] sm:$0xff]
    %v2662 = vld [vmem:[#allocation7 + $0x570] sm:$0xff]
    %v2663 = vld [vmem:[#allocation7 + $0x578] sm:$0xff]
    %v2664 = vld [vmem:[#allocation7 + $0x580] sm:$0xff]
    %v2665 = vld [vmem:[#allocation7 + $0x588] sm:$0xff]
    %v2666 = vld [vmem:[#allocation7 + $0x590] sm:$0xff]
    %v2667 = vld [vmem:[#allocation7 + $0x598] sm:$0xff]
    %v2668 = vld [vmem:[#allocation7 + $0x5a0] sm:$0xff]
    %v2669 = vld [vmem:[#allocation7 + $0x5a8] sm:$0xff]
    %v2670 = vld [vmem:[#allocation7 + $0x5b0] sm:$0xff]
    %v2671 = vld [vmem:[#allocation7 + $0x5b8] sm:$0xff]
    %v2672 = vld [vmem:[#allocation7 + $0x5c0] sm:$0xff]
    %v2673 = vld [vmem:[#allocation7 + $0x5c8] sm:$0xff]
    %v2674 = vld [vmem:[#allocation7 + $0x5d0] sm:$0xff]
    %v2675 = vld [vmem:[#allocation7 + $0x5d8] sm:$0xff]
    %v2676 = vld [vmem:[#allocation7 + $0x5e0] sm:$0xff]
    %v2677 = vld [vmem:[#allocation7 + $0x5e8] sm:$0xff]
    %v2678 = vld [vmem:[#allocation7 + $0x5f0] sm:$0xff]
    %v2679 = vld [vmem:[#allocation7 + $0x5f8] sm:$0xff]
    %v2680 = vld [vmem:[#allocation7 + $0x600] sm:$0xff]
    %v2681 = vld [vmem:[#allocation7 + $0x608] sm:$0xff]
    %v2682 = vld [vmem:[#allocation7 + $0x610] sm:$0xff]
    %v2683 = vld [vmem:[#allocation7 + $0x618] sm:$0xff]
    %v2684 = vld [vmem:[#allocation7 + $0x620] sm:$0xff]
    %v2685 = vld [vmem:[#allocation7 + $0x628] sm:$0xff]
    %v2686 = vld [vmem:[#allocation7 + $0x630] sm:$0xff]
    %v2687 = vld [vmem:[#allocation7 + $0x638] sm:$0xff]
    %v2688 = vld [vmem:[#allocation6] sm:$0xff]
    %v2689 = vld [vmem:[#allocation6 + $0x8] sm:$0xff]
    %v2690 = vld [vmem:[#allocation6 + $0x10] sm:$0xff]
    %v2691 = vld [vmem:[#allocation6 + $0x18] sm:$0xff]
    %v2692 = vld [vmem:[#allocation6 + $0x20] sm:$0xff]
    %v2693 = vld [vmem:[#allocation6 + $0x28] sm:$0xff]
    %v2694 = vld [vmem:[#allocation6 + $0x30] sm:$0x3]
    %v2702 = vcombine.high %v2688, %v2688
    %v2704 = vunpack.c.l.s4 1983009808
    %v2705 = vunpack.c.0.s8 %v2704
    %v2706 = vlaneseq
    %v2707 = vshrl.u32 %v2706, 7
    %v2708 = vsub.s32 %v2705, %v2707
    %v2709 = vrot.slane %v2688, %v2708
    %v2711 = vunpack.c.l.s4 1983009808
    %v2712 = vunpack.c.0.s8 %v2711
    %v2713 = vlaneseq
    %v2714 = vshrl.u32 %v2713, 7
    %v2715 = vsub.s32 %v2712, %v2714
    %v2716 = vrot.slane %v2702, %v2715
    %v2717 = vcombine.high %v2709, %v2709
    %v2718 = vcombine.high %v2716, %v2716
    %v2719 = vcombine.high %v2689, %v2689
    %v2721 = vunpack.c.l.s4 1983009808
    %v2722 = vunpack.c.0.s8 %v2721
    %v2723 = vlaneseq
    %v2724 = vshrl.u32 %v2723, 7
    %v2725 = vsub.s32 %v2722, %v2724
    %v2726 = vrot.slane %v2689, %v2725
    %v2728 = vunpack.c.l.s4 1983009808
    %v2729 = vunpack.c.0.s8 %v2728
    %v2730 = vlaneseq
    %v2731 = vshrl.u32 %v2730, 7
    %v2732 = vsub.s32 %v2729, %v2731
    %v2733 = vrot.slane %v2719, %v2732
    %v2734 = vcombine.high %v2726, %v2726
    %v2735 = vcombine.high %v2733, %v2733
    %v2736 = vcombine.high %v2690, %v2690
    %v2738 = vunpack.c.l.s4 1983009808
    %v2739 = vunpack.c.0.s8 %v2738
    %v2740 = vlaneseq
    %v2741 = vshrl.u32 %v2740, 7
    %v2742 = vsub.s32 %v2739, %v2741
    %v2743 = vrot.slane %v2690, %v2742
    %v2745 = vunpack.c.l.s4 1983009808
    %v2746 = vunpack.c.0.s8 %v2745
    %v2747 = vlaneseq
    %v2748 = vshrl.u32 %v2747, 7
    %v2749 = vsub.s32 %v2746, %v2748
    %v2750 = vrot.slane %v2736, %v2749
    %v2751 = vcombine.high %v2743, %v2743
    %v2752 = vcombine.high %v2750, %v2750
    %v2753 = vcombine.high %v2691, %v2691
    %v2755 = vunpack.c.l.s4 1983009808
    %v2756 = vunpack.c.0.s8 %v2755
    %v2757 = vlaneseq
    %v2758 = vshrl.u32 %v2757, 7
    %v2759 = vsub.s32 %v2756, %v2758
    %v2760 = vrot.slane %v2691, %v2759
    %v2762 = vunpack.c.l.s4 1983009808
    %v2763 = vunpack.c.0.s8 %v2762
    %v2764 = vlaneseq
    %v2765 = vshrl.u32 %v2764, 7
    %v2766 = vsub.s32 %v2763, %v2765
    %v2767 = vrot.slane %v2753, %v2766
    %v2768 = vcombine.high %v2760, %v2760
    %v2769 = vcombine.high %v2767, %v2767
    %v2770 = vcombine.high %v2692, %v2692
    %v2772 = vunpack.c.l.s4 1983009808
    %v2773 = vunpack.c.0.s8 %v2772
    %v2774 = vlaneseq
    %v2775 = vshrl.u32 %v2774, 7
    %v2776 = vsub.s32 %v2773, %v2775
    %v2777 = vrot.slane %v2692, %v2776
    %v2779 = vunpack.c.l.s4 1983009808
    %v2780 = vunpack.c.0.s8 %v2779
    %v2781 = vlaneseq
    %v2782 = vshrl.u32 %v2781, 7
    %v2783 = vsub.s32 %v2780, %v2782
    %v2784 = vrot.slane %v2770, %v2783
    %v2785 = vcombine.high %v2777, %v2777
    %v2786 = vcombine.high %v2784, %v2784
    %v2787 = vcombine.high %v2693, %v2693
    %v2789 = vunpack.c.l.s4 1983009808
    %v2790 = vunpack.c.0.s8 %v2789
    %v2791 = vlaneseq
    %v2792 = vshrl.u32 %v2791, 7
    %v2793 = vsub.s32 %v2790, %v2792
    %v2794 = vrot.slane %v2693, %v2793
    %v2796 = vunpack.c.l.s4 1983009808
    %v2797 = vunpack.c.0.s8 %v2796
    %v2798 = vlaneseq
    %v2799 = vshrl.u32 %v2798, 7
    %v2800 = vsub.s32 %v2797, %v2799
    %v2801 = vrot.slane %v2787, %v2800
    %v2802 = vcombine.high %v2794, %v2794
    %v2803 = vcombine.high %v2801, %v2801
    %v2805 = vunpack.c.l.s4 1983009808
    %v2806 = vunpack.c.0.s8 %v2805
    %v2807 = vlaneseq
    %v2808 = vshrl.u32 %v2807, 7
    %v2809 = vsub.s32 %v2806, %v2808
    %v2810 = vrot.slane %v2694, %v2809
    %v2836 = vpack.c.bf16 %v2709, %v2709
    %v2837 = vpack.c.bf16 %v2717, %v2717
    %v2838 = vpack.c.bf16 %v2716, %v2716
    %v2839 = vpack.c.bf16 %v2718, %v2718
    %v2840 = vpack.c.bf16 %v2726, %v2726
    %v2841 = vpack.c.bf16 %v2734, %v2734
    %v2842 = vpack.c.bf16 %v2733, %v2733
    %v2843 = vpack.c.bf16 %v2735, %v2735
    %v2844 = vpack.c.bf16 %v2743, %v2743
    %v2845 = vpack.c.bf16 %v2751, %v2751
    %v2846 = vpack.c.bf16 %v2750, %v2750
    %v2847 = vpack.c.bf16 %v2752, %v2752
    %v2848 = vpack.c.bf16 %v2760, %v2760
    %v2849 = vpack.c.bf16 %v2768, %v2768
    %v2850 = vpack.c.bf16 %v2767, %v2767
    %v2851 = vpack.c.bf16 %v2769, %v2769
    %v2852 = vpack.c.bf16 %v2777, %v2777
    %v2853 = vpack.c.bf16 %v2785, %v2785
    %v2854 = vpack.c.bf16 %v2784, %v2784
    %v2855 = vpack.c.bf16 %v2786, %v2786
    %v2856 = vpack.c.bf16 %v2794, %v2794
    %v2857 = vpack.c.bf16 %v2802, %v2802
    %v2858 = vpack.c.bf16 %v2801, %v2801
    %v2859 = vpack.c.bf16 %v2803, %v2803
    %v2860 = vpack.c.bf16 %v2810, %v2810
    %2861 = vmatprep.subr.bf16.mxu0 0
    %2862 = vmatpush1.bf16.msra.mxu0 %v2488
    %2863 = vmatprep.subr.bf16.mxu0 0
    %2864 = vmatpush1.bf16.msra.mxu0 %v2489
    %2865 = vmatprep.subr.bf16.mxu0 0
    %2866 = vmatpush1.bf16.msra.mxu0 %v2490
    %2867 = vmatprep.subr.bf16.mxu0 0
    %2868 = vmatpush1.bf16.msra.mxu0 %v2491
    %2869 = vmatprep.subr.bf16.mxu0 0
    %2870 = vmatpush1.bf16.msra.mxu0 %v2492
    %2871 = vmatprep.subr.bf16.mxu0 0
    %2872 = vmatpush1.bf16.msra.mxu0 %v2493
    %2873 = vmatprep.subr.bf16.mxu0 0
    %2874 = vmatpush1.bf16.msra.mxu0 %v2494
    %2875 = vmatprep.subr.bf16.mxu0 0
    %2876 = vmatpush1.bf16.msra.mxu0 %v2495
    %2877 = vmatprep.subr.bf16.mxu0 0
    %2878 = vmatpush1.bf16.msra.mxu0 %v2496
    %2879 = vmatprep.subr.bf16.mxu0 0
    %2880 = vmatpush1.bf16.msra.mxu0 %v2497
    %2881 = vmatprep.subr.bf16.mxu0 0
    %2882 = vmatpush1.bf16.msra.mxu0 %v2498
    %2883 = vmatprep.subr.bf16.mxu0 0
    %2884 = vmatpush1.bf16.msra.mxu0 %v2499
    %2885 = vmatprep.subr.bf16.mxu0 0
    %2886 = vmatpush1.bf16.msra.mxu0 %v2500
    %2887 = vmatprep.subr.bf16.mxu0 0
    %2888 = vmatpush1.bf16.msra.mxu0 %v2501
    %2889 = vmatprep.subr.bf16.mxu0 0
    %2890 = vmatpush1.bf16.msra.mxu0 %v2502
    %2891 = vmatprep.subr.bf16.mxu0 0
    %2892 = vmatpush1.bf16.msra.mxu0 %v2503
    %2893 = vmatprep.mubr.bf16.mxu0 %v2837
    %2894 = vmatmul.mubr.bf16.gmra.mrb[0].mxu0 %v2836
    %v2895 = vpop.f32.mrb[0].mxu0
    %v2896 = vadd.f32 0.0, %v2895
    %v2897 = vpop.f32.mrb[0].mxu0
    %v2898 = vpop.f32.mrb[0].mxu0
    %v2899 = vpop.f32.mrb[0].mxu0
    %2900 = vdwg.mxu0
    %2901 = vmatprep.subr.bf16.mxu0 0
    %2902 = vmatpush1.bf16.msra.mxu0 %v2504
    %2903 = vmatprep.subr.bf16.mxu0 0
    %2904 = vmatpush1.bf16.msra.mxu0 %v2505
    %2905 = vmatprep.subr.bf16.mxu0 0
    %2906 = vmatpush1.bf16.msra.mxu0 %v2506
    %2907 = vmatprep.subr.bf16.mxu0 0
    %2908 = vmatpush1.bf16.msra.mxu0 %v2507
    %2909 = vmatprep.subr.bf16.mxu0 0
    %2910 = vmatpush1.bf16.msra.mxu0 %v2508
    %2911 = vmatprep.subr.bf16.mxu0 0
    %2912 = vmatpush1.bf16.msra.mxu0 %v2509
    %2913 = vmatprep.subr.bf16.mxu0 0
    %2914 = vmatpush1.bf16.msra.mxu0 %v2510
    %2915 = vmatprep.subr.bf16.mxu0 0
    %2916 = vmatpush1.bf16.msra.mxu0 %v2511
    %2917 = vmatprep.subr.bf16.mxu0 0
    %2918 = vmatpush1.bf16.msra.mxu0 %v2512
    %2919 = vmatprep.subr.bf16.mxu0 0
    %2920 = vmatpush1.bf16.msra.mxu0 %v2513
    %2921 = vmatprep.subr.bf16.mxu0 0
    %2922 = vmatpush1.bf16.msra.mxu0 %v2514
    %2923 = vmatprep.subr.bf16.mxu0 0
    %2924 = vmatpush1.bf16.msra.mxu0 %v2515
    %2925 = vmatprep.subr.bf16.mxu0 0
    %2926 = vmatpush1.bf16.msra.mxu0 %v2516
    %2927 = vmatprep.subr.bf16.mxu0 0
    %2928 = vmatpush1.bf16.msra.mxu0 %v2517
    %2929 = vmatprep.subr.bf16.mxu0 0
    %2930 = vmatpush1.bf16.msra.mxu0 %v2518
    %2931 = vmatprep.subr.bf16.mxu0 0
    %2932 = vmatpush1.bf16.msra.mxu0 %v2519
    %2933 = vmatprep.mubr.bf16.mxu0 %v2839
    %2934 = vmatmul.mubr.bf16.gmra.mrb[0].mxu0 %v2838
    %v2935 = vpop.f32.mrb[0].mxu0
    %v2936 = vadd.f32 %v2896, %v2935
    %v2937 = vpop.f32.mrb[0].mxu0
    %v2938 = vpop.f32.mrb[0].mxu0
    %v2939 = vpop.f32.mrb[0].mxu0
    %2940 = vdwg.mxu0
    %2941 = vmatprep.subr.bf16.mxu0 0
    %2942 = vmatpush1.bf16.msra.mxu0 %v2520
    %2943 = vmatprep.subr.bf16.mxu0 0
    %2944 = vmatpush1.bf16.msra.mxu0 %v2521
    %2945 = vmatprep.subr.bf16.mxu0 0
    %2946 = vmatpush1.bf16.msra.mxu0 %v2522
    %2947 = vmatprep.subr.bf16.mxu0 0
    %2948 = vmatpush1.bf16.msra.mxu0 %v2523
    %2949 = vmatprep.subr.bf16.mxu0 0
    %2950 = vmatpush1.bf16.msra.mxu0 %v2524
    %2951 = vmatprep.subr.bf16.mxu0 0
    %2952 = vmatpush1.bf16.msra.mxu0 %v2525
    %2953 = vmatprep.subr.bf16.mxu0 0
    %2954 = vmatpush1.bf16.msra.mxu0 %v2526
    %2955 = vmatprep.subr.bf16.mxu0 0
    %2956 = vmatpush1.bf16.msra.mxu0 %v2527
    %2957 = vmatprep.subr.bf16.mxu0 0
    %2958 = vmatpush1.bf16.msra.mxu0 %v2528
    %2959 = vmatprep.subr.bf16.mxu0 0
    %2960 = vmatpush1.bf16.msra.mxu0 %v2529
    %2961 = vmatprep.subr.bf16.mxu0 0
    %2962 = vmatpush1.bf16.msra.mxu0 %v2530
    %2963 = vmatprep.subr.bf16.mxu0 0
    %2964 = vmatpush1.bf16.msra.mxu0 %v2531
    %2965 = vmatprep.subr.bf16.mxu0 0
    %2966 = vmatpush1.bf16.msra.mxu0 %v2532
    %2967 = vmatprep.subr.bf16.mxu0 0
    %2968 = vmatpush1.bf16.msra.mxu0 %v2533
    %2969 = vmatprep.subr.bf16.mxu0 0
    %2970 = vmatpush1.bf16.msra.mxu0 %v2534
    %2971 = vmatprep.subr.bf16.mxu0 0
    %2972 = vmatpush1.bf16.msra.mxu0 %v2535
    %2973 = vmatprep.mubr.bf16.mxu0 %v2841
    %2974 = vmatmul.mubr.bf16.gmra.mrb[0].mxu0 %v2840
    %v2975 = vpop.f32.mrb[0].mxu0
    %v2976 = vadd.f32 %v2936, %v2975
    %v2977 = vpop.f32.mrb[0].mxu0
    %v2978 = vpop.f32.mrb[0].mxu0
    %v2979 = vpop.f32.mrb[0].mxu0
    %2980 = vdwg.mxu0
    %2981 = vmatprep.subr.bf16.mxu0 0
    %2982 = vmatpush1.bf16.msra.mxu0 %v2536
    %2983 = vmatprep.subr.bf16.mxu0 0
    %2984 = vmatpush1.bf16.msra.mxu0 %v2537
    %2985 = vmatprep.subr.bf16.mxu0 0
    %2986 = vmatpush1.bf16.msra.mxu0 %v2538
    %2987 = vmatprep.subr.bf16.mxu0 0
    %2988 = vmatpush1.bf16.msra.mxu0 %v2539
    %2989 = vmatprep.subr.bf16.mxu0 0
    %2990 = vmatpush1.bf16.msra.mxu0 %v2540
    %2991 = vmatprep.subr.bf16.mxu0 0
    %2992 = vmatpush1.bf16.msra.mxu0 %v2541
    %2993 = vmatprep.subr.bf16.mxu0 0
    %2994 = vmatpush1.bf16.msra.mxu0 %v2542
    %2995 = vmatprep.subr.bf16.mxu0 0
    %2996 = vmatpush1.bf16.msra.mxu0 %v2543
    %2997 = vmatprep.subr.bf16.mxu0 0
    %2998 = vmatpush1.bf16.msra.mxu0 %v2544
    %2999 = vmatprep.subr.bf16.mxu0 0
    %3000 = vmatpush1.bf16.msra.mxu0 %v2545
    %3001 = vmatprep.subr.bf16.mxu0 0
    %3002 = vmatpush1.bf16.msra.mxu0 %v2546
    %3003 = vmatprep.subr.bf16.mxu0 0
    %3004 = vmatpush1.bf16.msra.mxu0 %v2547
    %3005 = vmatprep.subr.bf16.mxu0 0
    %3006 = vmatpush1.bf16.msra.mxu0 %v2548
    %3007 = vmatprep.subr.bf16.mxu0 0
    %3008 = vmatpush1.bf16.msra.mxu0 %v2549
    %3009 = vmatprep.subr.bf16.mxu0 0
    %3010 = vmatpush1.bf16.msra.mxu0 %v2550
    %3011 = vmatprep.subr.bf16.mxu0 0
    %3012 = vmatpush1.bf16.msra.mxu0 %v2551
    %3013 = vmatprep.mubr.bf16.mxu0 %v2843
    %3014 = vmatmul.mubr.bf16.gmra.mrb[0].mxu0 %v2842
    %v3015 = vpop.f32.mrb[0].mxu0
    %v3016 = vadd.f32 %v2976, %v3015
    %v3017 = vpop.f32.mrb[0].mxu0
    %v3018 = vpop.f32.mrb[0].mxu0
    %v3019 = vpop.f32.mrb[0].mxu0
    %3020 = vdwg.mxu0
    %3021 = vmatprep.subr.bf16.mxu0 0
    %3022 = vmatpush1.bf16.msra.mxu0 %v2552
    %3023 = vmatprep.subr.bf16.mxu0 0
    %3024 = vmatpush1.bf16.msra.mxu0 %v2553
    %3025 = vmatprep.subr.bf16.mxu0 0
    %3026 = vmatpush1.bf16.msra.mxu0 %v2554
    %3027 = vmatprep.subr.bf16.mxu0 0
    %3028 = vmatpush1.bf16.msra.mxu0 %v2555
    %3029 = vmatprep.subr.bf16.mxu0 0
    %3030 = vmatpush1.bf16.msra.mxu0 %v2556
    %3031 = vmatprep.subr.bf16.mxu0 0
    %3032 = vmatpush1.bf16.msra.mxu0 %v2557
    %3033 = vmatprep.subr.bf16.mxu0 0
    %3034 = vmatpush1.bf16.msra.mxu0 %v2558
    %3035 = vmatprep.subr.bf16.mxu0 0
    %3036 = vmatpush1.bf16.msra.mxu0 %v2559
    %3037 = vmatprep.subr.bf16.mxu0 0
    %3038 = vmatpush1.bf16.msra.mxu0 %v2560
    %3039 = vmatprep.subr.bf16.mxu0 0
    %3040 = vmatpush1.bf16.msra.mxu0 %v2561
    %3041 = vmatprep.subr.bf16.mxu0 0
    %3042 = vmatpush1.bf16.msra.mxu0 %v2562
    %3043 = vmatprep.subr.bf16.mxu0 0
    %3044 = vmatpush1.bf16.msra.mxu0 %v2563
    %3045 = vmatprep.subr.bf16.mxu0 0
    %3046 = vmatpush1.bf16.msra.mxu0 %v2564
    %3047 = vmatprep.subr.bf16.mxu0 0
    %3048 = vmatpush1.bf16.msra.mxu0 %v2565
    %3049 = vmatprep.subr.bf16.mxu0 0
    %3050 = vmatpush1.bf16.msra.mxu0 %v2566
    %3051 = vmatprep.subr.bf16.mxu0 0
    %3052 = vmatpush1.bf16.msra.mxu0 %v2567
    %3053 = vmatprep.mubr.bf16.mxu0 %v2845
    %3054 = vmatmul.mubr.bf16.gmra.mrb[0].mxu0 %v2844
    %v3055 = vpop.f32.mrb[0].mxu0
    %v3056 = vadd.f32 %v3016, %v3055
    %v3057 = vpop.f32.mrb[0].mxu0
    %v3058 = vpop.f32.mrb[0].mxu0
    %v3059 = vpop.f32.mrb[0].mxu0
    %3060 = vdwg.mxu0
    %3061 = vmatprep.subr.bf16.mxu0 0
    %3062 = vmatpush1.bf16.msra.mxu0 %v2568
    %3063 = vmatprep.subr.bf16.mxu0 0
    %3064 = vmatpush1.bf16.msra.mxu0 %v2569
    %3065 = vmatprep.subr.bf16.mxu0 0
    %3066 = vmatpush1.bf16.msra.mxu0 %v2570
    %3067 = vmatprep.subr.bf16.mxu0 0
    %3068 = vmatpush1.bf16.msra.mxu0 %v2571
    %3069 = vmatprep.subr.bf16.mxu0 0
    %3070 = vmatpush1.bf16.msra.mxu0 %v2572
    %3071 = vmatprep.subr.bf16.mxu0 0
    %3072 = vmatpush1.bf16.msra.mxu0 %v2573
    %3073 = vmatprep.subr.bf16.mxu0 0
    %3074 = vmatpush1.bf16.msra.mxu0 %v2574
    %3075 = vmatprep.subr.bf16.mxu0 0
    %3076 = vmatpush1.bf16.msra.mxu0 %v2575
    %3077 = vmatprep.subr.bf16.mxu0 0
    %3078 = vmatpush1.bf16.msra.mxu0 %v2576
    %3079 = vmatprep.subr.bf16.mxu0 0
    %3080 = vmatpush1.bf16.msra.mxu0 %v2577
    %3081 = vmatprep.subr.bf16.mxu0 0
    %3082 = vmatpush1.bf16.msra.mxu0 %v2578
    %3083 = vmatprep.subr.bf16.mxu0 0
    %3084 = vmatpush1.bf16.msra.mxu0 %v2579
    %3085 = vmatprep.subr.bf16.mxu0 0
    %3086 = vmatpush1.bf16.msra.mxu0 %v2580
    %3087 = vmatprep.subr.bf16.mxu0 0
    %3088 = vmatpush1.bf16.msra.mxu0 %v2581
    %3089 = vmatprep.subr.bf16.mxu0 0
    %3090 = vmatpush1.bf16.msra.mxu0 %v2582
    %3091 = vmatprep.subr.bf16.mxu0 0
    %3092 = vmatpush1.bf16.msra.mxu0 %v2583
    %3093 = vmatprep.mubr.bf16.mxu0 %v2847
    %3094 = vmatmul.mubr.bf16.gmra.mrb[0].mxu0 %v2846
    %v3095 = vpop.f32.mrb[0].mxu0
    %v3096 = vadd.f32 %v3056, %v3095
    %v3097 = vpop.f32.mrb[0].mxu0
    %v3098 = vpop.f32.mrb[0].mxu0
    %v3099 = vpop.f32.mrb[0].mxu0
    %3100 = vdwg.mxu0
    %3101 = vmatprep.subr.bf16.mxu0 0
    %3102 = vmatpush1.bf16.msra.mxu0 %v2584
    %3103 = vmatprep.subr.bf16.mxu0 0
    %3104 = vmatpush1.bf16.msra.mxu0 %v2585
    %3105 = vmatprep.subr.bf16.mxu0 0
    %3106 = vmatpush1.bf16.msra.mxu0 %v2586
    %3107 = vmatprep.subr.bf16.mxu0 0
    %3108 = vmatpush1.bf16.msra.mxu0 %v2587
    %3109 = vmatprep.subr.bf16.mxu0 0
    %3110 = vmatpush1.bf16.msra.mxu0 %v2588
    %3111 = vmatprep.subr.bf16.mxu0 0
    %3112 = vmatpush1.bf16.msra.mxu0 %v2589
    %3113 = vmatprep.subr.bf16.mxu0 0
    %3114 = vmatpush1.bf16.msra.mxu0 %v2590
    %3115 = vmatprep.subr.bf16.mxu0 0
    %3116 = vmatpush1.bf16.msra.mxu0 %v2591
    %3117 = vmatprep.subr.bf16.mxu0 0
    %3118 = vmatpush1.bf16.msra.mxu0 %v2592
    %3119 = vmatprep.subr.bf16.mxu0 0
    %3120 = vmatpush1.bf16.msra.mxu0 %v2593
    %3121 = vmatprep.subr.bf16.mxu0 0
    %3122 = vmatpush1.bf16.msra.mxu0 %v2594
    %3123 = vmatprep.subr.bf16.mxu0 0
    %3124 = vmatpush1.bf16.msra.mxu0 %v2595
    %3125 = vmatprep.subr.bf16.mxu0 0
    %3126 = vmatpush1.bf16.msra.mxu0 %v2596
    %3127 = vmatprep.subr.bf16.mxu0 0
    %3128 = vmatpush1.bf16.msra.mxu0 %v2597
    %3129 = vmatprep.subr.bf16.mxu0 0
    %3130 = vmatpush1.bf16.msra.mxu0 %v2598
    %3131 = vmatprep.subr.bf16.mxu0 0
    %3132 = vmatpush1.bf16.msra.mxu0 %v2599
    %3133 = vmatprep.mubr.bf16.mxu0 %v2849
    %3134 = vmatmul.mubr.bf16.gmra.mrb[0].mxu0 %v2848
    %v3135 = vpop.f32.mrb[0].mxu0
    %v3136 = vadd.f32 %v3096, %v3135
    %v3137 = vpop.f32.mrb[0].mxu0
    %v3138 = vpop.f32.mrb[0].mxu0
    %v3139 = vpop.f32.mrb[0].mxu0
    %3140 = vdwg.mxu0
    %3141 = vmatprep.subr.bf16.mxu0 0
    %3142 = vmatpush1.bf16.msra.mxu0 %v2600
    %3143 = vmatprep.subr.bf16.mxu0 0
    %3144 = vmatpush1.bf16.msra.mxu0 %v2601
    %3145 = vmatprep.subr.bf16.mxu0 0
    %3146 = vmatpush1.bf16.msra.mxu0 %v2602
    %3147 = vmatprep.subr.bf16.mxu0 0
    %3148 = vmatpush1.bf16.msra.mxu0 %v2603
    %3149 = vmatprep.subr.bf16.mxu0 0
    %3150 = vmatpush1.bf16.msra.mxu0 %v2604
    %3151 = vmatprep.subr.bf16.mxu0 0
    %3152 = vmatpush1.bf16.msra.mxu0 %v2605
    %3153 = vmatprep.subr.bf16.mxu0 0
    %3154 = vmatpush1.bf16.msra.mxu0 %v2606
    %3155 = vmatprep.subr.bf16.mxu0 0
    %3156 = vmatpush1.bf16.msra.mxu0 %v2607
    %3157 = vmatprep.subr.bf16.mxu0 0
    %3158 = vmatpush1.bf16.msra.mxu0 %v2608
    %3159 = vmatprep.subr.bf16.mxu0 0
    %3160 = vmatpush1.bf16.msra.mxu0 %v2609
    %3161 = vmatprep.subr.bf16.mxu0 0
    %3162 = vmatpush1.bf16.msra.mxu0 %v2610
    %3163 = vmatprep.subr.bf16.mxu0 0
    %3164 = vmatpush1.bf16.msra.mxu0 %v2611
    %3165 = vmatprep.subr.bf16.mxu0 0
    %3166 = vmatpush1.bf16.msra.mxu0 %v2612
    %3167 = vmatprep.subr.bf16.mxu0 0
    %3168 = vmatpush1.bf16.msra.mxu0 %v2613
    %3169 = vmatprep.subr.bf16.mxu0 0
    %3170 = vmatpush1.bf16.msra.mxu0 %v2614
    %3171 = vmatprep.subr.bf16.mxu0 0
    %3172 = vmatpush1.bf16.msra.mxu0 %v2615
    %3173 = vmatprep.mubr.bf16.mxu0 %v2851
    %3174 = vmatmul.mubr.bf16.gmra.mrb[0].mxu0 %v2850
    %v3175 = vpop.f32.mrb[0].mxu0
    %v3176 = vadd.f32 %v3136, %v3175
    %v3177 = vpop.f32.mrb[0].mxu0
    %v3178 = vpop.f32.mrb[0].mxu0
    %v3179 = vpop.f32.mrb[0].mxu0
    %3180 = vdwg.mxu0
    %3181 = vmatprep.subr.bf16.mxu0 0
    %3182 = vmatpush1.bf16.msra.mxu0 %v2616
    %3183 = vmatprep.subr.bf16.mxu0 0
    %3184 = vmatpush1.bf16.msra.mxu0 %v2617
    %3185 = vmatprep.subr.bf16.mxu0 0
    %3186 = vmatpush1.bf16.msra.mxu0 %v2618
    %3187 = vmatprep.subr.bf16.mxu0 0
    %3188 = vmatpush1.bf16.msra.mxu0 %v2619
    %3189 = vmatprep.subr.bf16.mxu0 0
    %3190 = vmatpush1.bf16.msra.mxu0 %v2620
    %3191 = vmatprep.subr.bf16.mxu0 0
    %3192 = vmatpush1.bf16.msra.mxu0 %v2621
    %3193 = vmatprep.subr.bf16.mxu0 0
    %3194 = vmatpush1.bf16.msra.mxu0 %v2622
    %3195 = vmatprep.subr.bf16.mxu0 0
    %3196 = vmatpush1.bf16.msra.mxu0 %v2623
    %3197 = vmatprep.subr.bf16.mxu0 0
    %3198 = vmatpush1.bf16.msra.mxu0 %v2624
    %3199 = vmatprep.subr.bf16.mxu0 0
    %3200 = vmatpush1.bf16.msra.mxu0 %v2625
    %3201 = vmatprep.subr.bf16.mxu0 0
    %3202 = vmatpush1.bf16.msra.mxu0 %v2626
    %3203 = vmatprep.subr.bf16.mxu0 0
    %3204 = vmatpush1.bf16.msra.mxu0 %v2627
    %3205 = vmatprep.subr.bf16.mxu0 0
    %3206 = vmatpush1.bf16.msra.mxu0 %v2628
    %3207 = vmatprep.subr.bf16.mxu0 0
    %3208 = vmatpush1.bf16.msra.mxu0 %v2629
    %3209 = vmatprep.subr.bf16.mxu0 0
    %3210 = vmatpush1.bf16.msra.mxu0 %v2630
    %3211 = vmatprep.subr.bf16.mxu0 0
    %3212 = vmatpush1.bf16.msra.mxu0 %v2631
    %3213 = vmatprep.mubr.bf16.mxu0 %v2853
    %3214 = vmatmul.mubr.bf16.gmra.mrb[0].mxu0 %v2852
    %v3215 = vpop.f32.mrb[0].mxu0
    %v3216 = vadd.f32 %v3176, %v3215
    %v3217 = vpop.f32.mrb[0].mxu0
    %v3218 = vpop.f32.mrb[0].mxu0
    %v3219 = vpop.f32.mrb[0].mxu0
    %3220 = vdwg.mxu0
    %3221 = vmatprep.subr.bf16.mxu0 0
    %3222 = vmatpush1.bf16.msra.mxu0 %v2632
    %3223 = vmatprep.subr.bf16.mxu0 0
    %3224 = vmatpush1.bf16.msra.mxu0 %v2633
    %3225 = vmatprep.subr.bf16.mxu0 0
    %3226 = vmatpush1.bf16.msra.mxu0 %v2634
    %3227 = vmatprep.subr.bf16.mxu0 0
    %3228 = vmatpush1.bf16.msra.mxu0 %v2635
    %3229 = vmatprep.subr.bf16.mxu0 0
    %3230 = vmatpush1.bf16.msra.mxu0 %v2636
    %3231 = vmatprep.subr.bf16.mxu0 0
    %3232 = vmatpush1.bf16.msra.mxu0 %v2637
    %3233 = vmatprep.subr.bf16.mxu0 0
    %3234 = vmatpush1.bf16.msra.mxu0 %v2638
    %3235 = vmatprep.subr.bf16.mxu0 0
    %3236 = vmatpush1.bf16.msra.mxu0 %v2639
    %3237 = vmatprep.subr.bf16.mxu0 0
    %3238 = vmatpush1.bf16.msra.mxu0 %v2640
    %3239 = vmatprep.subr.bf16.mxu0 0
    %3240 = vmatpush1.bf16.msra.mxu0 %v2641
    %3241 = vmatprep.subr.bf16.mxu0 0
    %3242 = vmatpush1.bf16.msra.mxu0 %v2642
    %3243 = vmatprep.subr.bf16.mxu0 0
    %3244 = vmatpush1.bf16.msra.mxu0 %v2643
    %3245 = vmatprep.subr.bf16.mxu0 0
    %3246 = vmatpush1.bf16.msra.mxu0 %v2644
    %3247 = vmatprep.subr.bf16.mxu0 0
    %3248 = vmatpush1.bf16.msra.mxu0 %v2645
    %3249 = vmatprep.subr.bf16.mxu0 0
    %3250 = vmatpush1.bf16.msra.mxu0 %v2646
    %3251 = vmatprep.subr.bf16.mxu0 0
    %3252 = vmatpush1.bf16.msra.mxu0 %v2647
    %3253 = vmatprep.mubr.bf16.mxu0 %v2855
    %3254 = vmatmul.mubr.bf16.gmra.mrb[0].mxu0 %v2854
    %v3255 = vpop.f32.mrb[0].mxu0
    %v3256 = vadd.f32 %v3216, %v3255
    %v3257 = vpop.f32.mrb[0].mxu0
    %v3258 = vpop.f32.mrb[0].mxu0
    %v3259 = vpop.f32.mrb[0].mxu0
    %3260 = vdwg.mxu0
    %3261 = vmatprep.subr.bf16.mxu0 0
    %3262 = vmatpush1.bf16.msra.mxu0 %v2648
    %3263 = vmatprep.subr.bf16.mxu0 0
    %3264 = vmatpush1.bf16.msra.mxu0 %v2649
    %3265 = vmatprep.subr.bf16.mxu0 0
    %3266 = vmatpush1.bf16.msra.mxu0 %v2650
    %3267 = vmatprep.subr.bf16.mxu0 0
    %3268 = vmatpush1.bf16.msra.mxu0 %v2651
    %3269 = vmatprep.subr.bf16.mxu0 0
    %3270 = vmatpush1.bf16.msra.mxu0 %v2652
    %3271 = vmatprep.subr.bf16.mxu0 0
    %3272 = vmatpush1.bf16.msra.mxu0 %v2653
    %3273 = vmatprep.subr.bf16.mxu0 0
    %3274 = vmatpush1.bf16.msra.mxu0 %v2654
    %3275 = vmatprep.subr.bf16.mxu0 0
    %3276 = vmatpush1.bf16.msra.mxu0 %v2655
    %3277 = vmatprep.subr.bf16.mxu0 0
    %3278 = vmatpush1.bf16.msra.mxu0 %v2656
    %3279 = vmatprep.subr.bf16.mxu0 0
    %3280 = vmatpush1.bf16.msra.mxu0 %v2657
    %3281 = vmatprep.subr.bf16.mxu0 0
    %3282 = vmatpush1.bf16.msra.mxu0 %v2658
    %3283 = vmatprep.subr.bf16.mxu0 0
    %3284 = vmatpush1.bf16.msra.mxu0 %v2659
    %3285 = vmatprep.subr.bf16.mxu0 0
    %3286 = vmatpush1.bf16.msra.mxu0 %v2660
    %3287 = vmatprep.subr.bf16.mxu0 0
    %3288 = vmatpush1.bf16.msra.mxu0 %v2661
    %3289 = vmatprep.subr.bf16.mxu0 0
    %3290 = vmatpush1.bf16.msra.mxu0 %v2662
    %3291 = vmatprep.subr.bf16.mxu0 0
    %3292 = vmatpush1.bf16.msra.mxu0 %v2663
    %3293 = vmatprep.mubr.bf16.mxu0 %v2857
    %3294 = vmatmul.mubr.bf16.gmra.mrb[0].mxu0 %v2856
    %v3295 = vpop.f32.mrb[0].mxu0
    %v3296 = vadd.f32 %v3256, %v3295
    %v3297 = vpop.f32.mrb[0].mxu0
    %v3298 = vpop.f32.mrb[0].mxu0
    %v3299 = vpop.f32.mrb[0].mxu0
    %3300 = vdwg.mxu0
    %3301 = vmatprep.subr.bf16.mxu0 0
    %3302 = vmatpush1.bf16.msra.mxu0 %v2664
    %3303 = vmatprep.subr.bf16.mxu0 0
    %3304 = vmatpush1.bf16.msra.mxu0 %v2665
    %3305 = vmatprep.subr.bf16.mxu0 0
    %3306 = vmatpush1.bf16.msra.mxu0 %v2666
    %3307 = vmatprep.subr.bf16.mxu0 0
    %3308 = vmatpush1.bf16.msra.mxu0 %v2667
    %3309 = vmatprep.subr.bf16.mxu0 0
    %3310 = vmatpush1.bf16.msra.mxu0 %v2668
    %3311 = vmatprep.subr.bf16.mxu0 0
    %3312 = vmatpush1.bf16.msra.mxu0 %v2669
    %3313 = vmatprep.subr.bf16.mxu0 0
    %3314 = vmatpush1.bf16.msra.mxu0 %v2670
    %3315 = vmatprep.subr.bf16.mxu0 0
    %3316 = vmatpush1.bf16.msra.mxu0 %v2671
    %3317 = vmatprep.subr.bf16.mxu0 0
    %3318 = vmatpush1.bf16.msra.mxu0 %v2672
    %3319 = vmatprep.subr.bf16.mxu0 0
    %3320 = vmatpush1.bf16.msra.mxu0 %v2673
    %3321 = vmatprep.subr.bf16.mxu0 0
    %3322 = vmatpush1.bf16.msra.mxu0 %v2674
    %3323 = vmatprep.subr.bf16.mxu0 0
    %3324 = vmatpush1.bf16.msra.mxu0 %v2675
    %3325 = vmatprep.subr.bf16.mxu0 0
    %3326 = vmatpush1.bf16.msra.mxu0 %v2676
    %3327 = vmatprep.subr.bf16.mxu0 0
    %3328 = vmatpush1.bf16.msra.mxu0 %v2677
    %3329 = vmatprep.subr.bf16.mxu0 0
    %3330 = vmatpush1.bf16.msra.mxu0 %v2678
    %3331 = vmatprep.subr.bf16.mxu0 0
    %3332 = vmatpush1.bf16.msra.mxu0 %v2679
    %3333 = vmatprep.mubr.bf16.mxu0 %v2859
    %3334 = vmatmul.mubr.bf16.gmra.mrb[0].mxu0 %v2858
    %v3335 = vpop.f32.mrb[0].mxu0
    %v3336 = vadd.f32 %v3296, %v3335
    %v3337 = vpop.f32.mrb[0].mxu0
    %v3338 = vpop.f32.mrb[0].mxu0
    %v3339 = vpop.f32.mrb[0].mxu0
    %3340 = vdwg.mxu0
    %3341 = vmatprep.subr.bf16.mxu0 0
    %3342 = vmatpush1.bf16.msra.mxu0 %v2680
    %3343 = vmatprep.subr.bf16.mxu0 0
    %3344 = vmatpush1.bf16.msra.mxu0 %v2681
    %3345 = vmatprep.subr.bf16.mxu0 0
    %3346 = vmatpush1.bf16.msra.mxu0 %v2682
    %3347 = vmatprep.subr.bf16.mxu0 0
    %3348 = vmatpush1.bf16.msra.mxu0 %v2683
    %3349 = vmatprep.subr.bf16.mxu0 0
    %3350 = vmatpush1.bf16.msra.mxu0 %v2684
    %3351 = vmatprep.subr.bf16.mxu0 0
    %3352 = vmatpush1.bf16.msra.mxu0 %v2685
    %3353 = vmatprep.subr.bf16.mxu0 0
    %3354 = vmatpush1.bf16.msra.mxu0 %v2686
    %3355 = vmatprep.subr.bf16.mxu0 0
    %3356 = vmatpush1.bf16.msra.mxu0 %v2687
    %3357 = vmatprep.subr.bf16.mxu0 0
    %3358 = vmatpush1.bf16.msra.mxu0 0
    %3359 = vmatprep.subr.bf16.mxu0 0
    %3360 = vmatpush1.bf16.msra.mxu0 0
    %3361 = vmatprep.subr.bf16.mxu0 0
    %3362 = vmatpush1.bf16.msra.mxu0 0
    %3363 = vmatprep.subr.bf16.mxu0 0
    %3364 = vmatpush1.bf16.msra.mxu0 0
    %3365 = vmatprep.subr.bf16.mxu0 0
    %3366 = vmatpush1.bf16.msra.mxu0 0
    %3367 = vmatprep.subr.bf16.mxu0 0
    %3368 = vmatpush1.bf16.msra.mxu0 0
    %3369 = vmatprep.subr.bf16.mxu0 0
    %3370 = vmatpush1.bf16.msra.mxu0 0
    %3371 = vmatprep.subr.bf16.mxu0 0
    %3372 = vmatpush1.bf16.msra.mxu0 0
    %3373 = vmatprep.mubr.bf16.mxu0 0
    %3374 = vmatmul.mubr.bf16.gmra.mrb[0].mxu0 %v2860
    %v3375 = vpop.f32.mrb[0].mxu0
    %v3376 = vadd.f32 %v3336, %v3375
    %v3377 = vpop.f32.mrb[0].mxu0
    %v3378 = vpop.f32.mrb[0].mxu0
    %v3379 = vpop.f32.mrb[0].mxu0
    %3380 = vdwg.mxu0
    %v3381 = vadd.f32 %v3376, 0.0
    %v3382 = vld [vmem:[#allocation6 + $0x32] sm:$0xff]
    %v3383 = vld [vmem:[#allocation6 + $0x3a] sm:$0xff]
    %v3384 = vld [vmem:[#allocation6 + $0x42] sm:$0xff]
    %v3385 = vld [vmem:[#allocation6 + $0x4a] sm:$0xff]
    %v3386 = vld [vmem:[#allocation6 + $0x52] sm:$0xff]
    %v3387 = vld [vmem:[#allocation6 + $0x5a] sm:$0xff]
    %v3388 = vld [vmem:[#allocation6 + $0x62] sm:$0x3]
    %v3396 = vcombine.high %v3382, %v3382
    %v3398 = vunpack.c.l.s4 1983009808
    %v3399 = vunpack.c.0.s8 %v3398
    %v3400 = vlaneseq
    %v3401 = vshrl.u32 %v3400, 7
    %v3402 = vsub.s32 %v3399, %v3401
    %v3403 = vrot.slane %v3382, %v3402
    %v3405 = vunpack.c.l.s4 1983009808
    %v3406 = vunpack.c.0.s8 %v3405
    %v3407 = vlaneseq
    %v3408 = vshrl.u32 %v3407, 7
    %v3409 = vsub.s32 %v3406, %v3408
    %v3410 = vrot.slane %v3396, %v3409
    %v3411 = vcombine.high %v3403, %v3403
    %v3412 = vcombine.high %v3410, %v3410
    %v3413 = vcombine.high %v3383, %v3383
    %v3415 = vunpack.c.l.s4 1983009808
    %v3416 = vunpack.c.0.s8 %v3415
    %v3417 = vlaneseq
    %v3418 = vshrl.u32 %v3417, 7
    %v3419 = vsub.s32 %v3416, %v3418
    %v3420 = vrot.slane %v3383, %v3419
    %v3422 = vunpack.c.l.s4 1983009808
    %v3423 = vunpack.c.0.s8 %v3422
    %v3424 = vlaneseq
    %v3425 = vshrl.u32 %v3424, 7
    %v3426 = vsub.s32 %v3423, %v3425
    %v3427 = vrot.slane %v3413, %v3426
    %v3428 = vcombine.high %v3420, %v3420
    %v3429 = vcombine.high %v3427, %v3427
    %v3430 = vcombine.high %v3384, %v3384
    %v3432 = vunpack.c.l.s4 1983009808
    %v3433 = vunpack.c.0.s8 %v3432
    %v3434 = vlaneseq
    %v3435 = vshrl.u32 %v3434, 7
    %v3436 = vsub.s32 %v3433, %v3435
    %v3437 = vrot.slane %v3384, %v3436
    %v3439 = vunpack.c.l.s4 1983009808
    %v3440 = vunpack.c.0.s8 %v3439
    %v3441 = vlaneseq
    %v3442 = vshrl.u32 %v3441, 7
    %v3443 = vsub.s32 %v3440, %v3442
    %v3444 = vrot.slane %v3430, %v3443
    %v3445 = vcombine.high %v3437, %v3437
    %v3446 = vcombine.high %v3444, %v3444
    %v3447 = vcombine.high %v3385, %v3385
    %v3449 = vunpack.c.l.s4 1983009808
    %v3450 = vunpack.c.0.s8 %v3449
    %v3451 = vlaneseq
    %v3452 = vshrl.u32 %v3451, 7
    %v3453 = vsub.s32 %v3450, %v3452
    %v3454 = vrot.slane %v3385, %v3453
    %v3456 = vunpack.c.l.s4 1983009808
    %v3457 = vunpack.c.0.s8 %v3456
    %v3458 = vlaneseq
    %v3459 = vshrl.u32 %v3458, 7
    %v3460 = vsub.s32 %v3457, %v3459
    %v3461 = vrot.slane %v3447, %v3460
    %v3462 = vcombine.high %v3454, %v3454
    %v3463 = vcombine.high %v3461, %v3461
    %v3464 = vcombine.high %v3386, %v3386
    %v3466 = vunpack.c.l.s4 1983009808
    %v3467 = vunpack.c.0.s8 %v3466
    %v3468 = vlaneseq
    %v3469 = vshrl.u32 %v3468, 7
    %v3470 = vsub.s32 %v3467, %v3469
    %v3471 = vrot.slane %v3386, %v3470
    %v3473 = vunpack.c.l.s4 1983009808
    %v3474 = vunpack.c.0.s8 %v3473
    %v3475 = vlaneseq
    %v3476 = vshrl.u32 %v3475, 7
    %v3477 = vsub.s32 %v3474, %v3476
    %v3478 = vrot.slane %v3464, %v3477
    %v3479 = vcombine.high %v3471, %v3471
    %v3480 = vcombine.high %v3478, %v3478
    %v3481 = vcombine.high %v3387, %v3387
    %v3483 = vunpack.c.l.s4 1983009808
    %v3484 = vunpack.c.0.s8 %v3483
    %v3485 = vlaneseq
    %v3486 = vshrl.u32 %v3485, 7
    %v3487 = vsub.s32 %v3484, %v3486
    %v3488 = vrot.slane %v3387, %v3487
    %v3490 = vunpack.c.l.s4 1983009808
    %v3491 = vunpack.c.0.s8 %v3490
    %v3492 = vlaneseq
    %v3493 = vshrl.u32 %v3492, 7
    %v3494 = vsub.s32 %v3491, %v3493
    %v3495 = vrot.slane %v3481, %v3494
    %v3496 = vcombine.high %v3488, %v3488
    %v3497 = vcombine.high %v3495, %v3495
    %v3499 = vunpack.c.l.s4 1983009808
    %v3500 = vunpack.c.0.s8 %v3499
    %v3501 = vlaneseq
    %v3502 = vshrl.u32 %v3501, 7
    %v3503 = vsub.s32 %v3500, %v3502
    %v3504 = vrot.slane %v3388, %v3503
    %v3530 = vpack.c.bf16 %v3403, %v3403
    %v3531 = vpack.c.bf16 %v3411, %v3411
    %v3532 = vpack.c.bf16 %v3410, %v3410
    %v3533 = vpack.c.bf16 %v3412, %v3412
    %v3534 = vpack.c.bf16 %v3420, %v3420
    %v3535 = vpack.c.bf16 %v3428, %v3428
    %v3536 = vpack.c.bf16 %v3427, %v3427
    %v3537 = vpack.c.bf16 %v3429, %v3429
    %v3538 = vpack.c.bf16 %v3437, %v3437
    %v3539 = vpack.c.bf16 %v3445, %v3445
    %v3540 = vpack.c.bf16 %v3444, %v3444
    %v3541 = vpack.c.bf16 %v3446, %v3446
    %v3542 = vpack.c.bf16 %v3454, %v3454
    %v3543 = vpack.c.bf16 %v3462, %v3462
    %v3544 = vpack.c.bf16 %v3461, %v3461
    %v3545 = vpack.c.bf16 %v3463, %v3463
    %v3546 = vpack.c.bf16 %v3471, %v3471
    %v3547 = vpack.c.bf16 %v3479, %v3479
    %v3548 = vpack.c.bf16 %v3478, %v3478
    %v3549 = vpack.c.bf16 %v3480, %v3480
    %v3550 = vpack.c.bf16 %v3488, %v3488
    %v3551 = vpack.c.bf16 %v3496, %v3496
    %v3552 = vpack.c.bf16 %v3495, %v3495
    %v3553 = vpack.c.bf16 %v3497, %v3497
    %v3554 = vpack.c.bf16 %v3504, %v3504
    %3555 = vmatprep.subr.bf16.mxu0 0
    %3556 = vmatpush1.bf16.msra.mxu0 %v2488
    %3557 = vmatprep.subr.bf16.mxu0 0
    %3558 = vmatpush1.bf16.msra.mxu0 %v2489
    %3559 = vmatprep.subr.bf16.mxu0 0
    %3560 = vmatpush1.bf16.msra.mxu0 %v2490
    %3561 = vmatprep.subr.bf16.mxu0 0
    %3562 = vmatpush1.bf16.msra.mxu0 %v2491
    %3563 = vmatprep.subr.bf16.mxu0 0
    %3564 = vmatpush1.bf16.msra.mxu0 %v2492
    %3565 = vmatprep.subr.bf16.mxu0 0
    %3566 = vmatpush1.bf16.msra.mxu0 %v2493
    %3567 = vmatprep.subr.bf16.mxu0 0
    %3568 = vmatpush1.bf16.msra.mxu0 %v2494
    %3569 = vmatprep.subr.bf16.mxu0 0
    %3570 = vmatpush1.bf16.msra.mxu0 %v2495
    %3571 = vmatprep.subr.bf16.mxu0 0
    %3572 = vmatpush1.bf16.msra.mxu0 %v2496
    %3573 = vmatprep.subr.bf16.mxu0 0
    %3574 = vmatpush1.bf16.msra.mxu0 %v2497
    %3575 = vmatprep.subr.bf16.mxu0 0
    %3576 = vmatpush1.bf16.msra.mxu0 %v2498
    %3577 = vmatprep.subr.bf16.mxu0 0
    %3578 = vmatpush1.bf16.msra.mxu0 %v2499
    %3579 = vmatprep.subr.bf16.mxu0 0
    %3580 = vmatpush1.bf16.msra.mxu0 %v2500
    %3581 = vmatprep.subr.bf16.mxu0 0
    %3582 = vmatpush1.bf16.msra.mxu0 %v2501
    %3583 = vmatprep.subr.bf16.mxu0 0
    %3584 = vmatpush1.bf16.msra.mxu0 %v2502
    %3585 = vmatprep.subr.bf16.mxu0 0
    %3586 = vmatpush1.bf16.msra.mxu0 %v2503
    %3587 = vmatprep.mubr.bf16.mxu0 %v3531
    %3588 = vmatmul.mubr.bf16.gmra.mrb[0].mxu0 %v3530
    %v3589 = vpop.f32.mrb[0].mxu0
    %v3590 = vadd.f32 0.0, %v3589
    %v3591 = vpop.f32.mrb[0].mxu0
    %v3592 = vpop.f32.mrb[0].mxu0
    %v3593 = vpop.f32.mrb[0].mxu0
    %3594 = vdwg.mxu0
    %3595 = vmatprep.subr.bf16.mxu0 0
    %3596 = vmatpush1.bf16.msra.mxu0 %v2504
    %3597 = vmatprep.subr.bf16.mxu0 0
    %3598 = vmatpush1.bf16.msra.mxu0 %v2505
    %3599 = vmatprep.subr.bf16.mxu0 0
    %3600 = vmatpush1.bf16.msra.mxu0 %v2506
    %3601 = vmatprep.subr.bf16.mxu0 0
    %3602 = vmatpush1.bf16.msra.mxu0 %v2507
    %3603 = vmatprep.subr.bf16.mxu0 0
    %3604 = vmatpush1.bf16.msra.mxu0 %v2508
    %3605 = vmatprep.subr.bf16.mxu0 0
    %3606 = vmatpush1.bf16.msra.mxu0 %v2509
    %3607 = vmatprep.subr.bf16.mxu0 0
    %3608 = vmatpush1.bf16.msra.mxu0 %v2510
    %3609 = vmatprep.subr.bf16.mxu0 0
    %3610 = vmatpush1.bf16.msra.mxu0 %v2511
    %3611 = vmatprep.subr.bf16.mxu0 0
    %3612 = vmatpush1.bf16.msra.mxu0 %v2512
    %3613 = vmatprep.subr.bf16.mxu0 0
    %3614 = vmatpush1.bf16.msra.mxu0 %v2513
    %3615 = vmatprep.subr.bf16.mxu0 0
    %3616 = vmatpush1.bf16.msra.mxu0 %v2514
    %3617 = vmatprep.subr.bf16.mxu0 0
    %3618 = vmatpush1.bf16.msra.mxu0 %v2515
    %3619 = vmatprep.subr.bf16.mxu0 0
    %3620 = vmatpush1.bf16.msra.mxu0 %v2516
    %3621 = vmatprep.subr.bf16.mxu0 0
    %3622 = vmatpush1.bf16.msra.mxu0 %v2517
    %3623 = vmatprep.subr.bf16.mxu0 0
    %3624 = vmatpush1.bf16.msra.mxu0 %v2518
    %3625 = vmatprep.subr.bf16.mxu0 0
    %3626 = vmatpush1.bf16.msra.mxu0 %v2519
    %3627 = vmatprep.mubr.bf16.mxu0 %v3533
    %3628 = vmatmul.mubr.bf16.gmra.mrb[0].mxu0 %v3532
    %v3629 = vpop.f32.mrb[0].mxu0
    %v3630 = vadd.f32 %v3590, %v3629
    %v3631 = vpop.f32.mrb[0].mxu0
    %v3632 = vpop.f32.mrb[0].mxu0
    %v3633 = vpop.f32.mrb[0].mxu0
    %3634 = vdwg.mxu0
    %3635 = vmatprep.subr.bf16.mxu0 0
    %3636 = vmatpush1.bf16.msra.mxu0 %v2520
    %3637 = vmatprep.subr.bf16.mxu0 0
    %3638 = vmatpush1.bf16.msra.mxu0 %v2521
    %3639 = vmatprep.subr.bf16.mxu0 0
    %3640 = vmatpush1.bf16.msra.mxu0 %v2522
    %3641 = vmatprep.subr.bf16.mxu0 0
    %3642 = vmatpush1.bf16.msra.mxu0 %v2523
    %3643 = vmatprep.subr.bf16.mxu0 0
    %3644 = vmatpush1.bf16.msra.mxu0 %v2524
    %3645 = vmatprep.subr.bf16.mxu0 0
    %3646 = vmatpush1.bf16.msra.mxu0 %v2525
    %3647 = vmatprep.subr.bf16.mxu0 0
    %3648 = vmatpush1.bf16.msra.mxu0 %v2526
    %3649 = vmatprep.subr.bf16.mxu0 0
    %3650 = vmatpush1.bf16.msra.mxu0 %v2527
    %3651 = vmatprep.subr.bf16.mxu0 0
    %3652 = vmatpush1.bf16.msra.mxu0 %v2528
    %3653 = vmatprep.subr.bf16.mxu0 0
    %3654 = vmatpush1.bf16.msra.mxu0 %v2529
    %3655 = vmatprep.subr.bf16.mxu0 0
    %3656 = vmatpush1.bf16.msra.mxu0 %v2530
    %3657 = vmatprep.subr.bf16.mxu0 0
    %3658 = vmatpush1.bf16.msra.mxu0 %v2531
    %3659 = vmatprep.subr.bf16.mxu0 0
    %3660 = vmatpush1.bf16.msra.mxu0 %v2532
    %3661 = vmatprep.subr.bf16.mxu0 0
    %3662 = vmatpush1.bf16.msra.mxu0 %v2533
    %3663 = vmatprep.subr.bf16.mxu0 0
    %3664 = vmatpush1.bf16.msra.mxu0 %v2534
    %3665 = vmatprep.subr.bf16.mxu0 0
    %3666 = vmatpush1.bf16.msra.mxu0 %v2535
    %3667 = vmatprep.mubr.bf16.mxu0 %v3535
    %3668 = vmatmul.mubr.bf16.gmra.mrb[0].mxu0 %v3534
    %v3669 = vpop.f32.mrb[0].mxu0
    %v3670 = vadd.f32 %v3630, %v3669
    %v3671 = vpop.f32.mrb[0].mxu0
    %v3672 = vpop.f32.mrb[0].mxu0
    %v3673 = vpop.f32.mrb[0].mxu0
    %3674 = vdwg.mxu0
    %3675 = vmatprep.subr.bf16.mxu0 0
    %3676 = vmatpush1.bf16.msra.mxu0 %v2536
    %3677 = vmatprep.subr.bf16.mxu0 0
    %3678 = vmatpush1.bf16.msra.mxu0 %v2537
    %3679 = vmatprep.subr.bf16.mxu0 0
    %3680 = vmatpush1.bf16.msra.mxu0 %v2538
    %3681 = vmatprep.subr.bf16.mxu0 0
    %3682 = vmatpush1.bf16.msra.mxu0 %v2539
    %3683 = vmatprep.subr.bf16.mxu0 0
    %3684 = vmatpush1.bf16.msra.mxu0 %v2540
    %3685 = vmatprep.subr.bf16.mxu0 0
    %3686 = vmatpush1.bf16.msra.mxu0 %v2541
    %3687 = vmatprep.subr.bf16.mxu0 0
    %3688 = vmatpush1.bf16.msra.mxu0 %v2542
    %3689 = vmatprep.subr.bf16.mxu0 0
    %3690 = vmatpush1.bf16.msra.mxu0 %v2543
    %3691 = vmatprep.subr.bf16.mxu0 0
    %3692 = vmatpush1.bf16.msra.mxu0 %v2544
    %3693 = vmatprep.subr.bf16.mxu0 0
    %3694 = vmatpush1.bf16.msra.mxu0 %v2545
    %3695 = vmatprep.subr.bf16.mxu0 0
    %3696 = vmatpush1.bf16.msra.mxu0 %v2546
    %3697 = vmatprep.subr.bf16.mxu0 0
    %3698 = vmatpush1.bf16.msra.mxu0 %v2547
    %3699 = vmatprep.subr.bf16.mxu0 0
    %3700 = vmatpush1.bf16.msra.mxu0 %v2548
    %3701 = vmatprep.subr.bf16.mxu0 0
    %3702 = vmatpush1.bf16.msra.mxu0 %v2549
    %3703 = vmatprep.subr.bf16.mxu0 0
    %3704 = vmatpush1.bf16.msra.mxu0 %v2550
    %3705 = vmatprep.subr.bf16.mxu0 0
    %3706 = vmatpush1.bf16.msra.mxu0 %v2551
    %3707 = vmatprep.mubr.bf16.mxu0 %v3537
    %3708 = vmatmul.mubr.bf16.gmra.mrb[0].mxu0 %v3536
    %v3709 = vpop.f32.mrb[0].mxu0
    %v3710 = vadd.f32 %v3670, %v3709
    %v3711 = vpop.f32.mrb[0].mxu0
    %v3712 = vpop.f32.mrb[0].mxu0
    %v3713 = vpop.f32.mrb[0].mxu0
    %3714 = vdwg.mxu0
    %3715 = vmatprep.subr.bf16.mxu0 0
    %3716 = vmatpush1.bf16.msra.mxu0 %v2552
    %3717 = vmatprep.subr.bf16.mxu0 0
    %3718 = vmatpush1.bf16.msra.mxu0 %v2553
    %3719 = vmatprep.subr.bf16.mxu0 0
    %3720 = vmatpush1.bf16.msra.mxu0 %v2554
    %3721 = vmatprep.subr.bf16.mxu0 0
    %3722 = vmatpush1.bf16.msra.mxu0 %v2555
    %3723 = vmatprep.subr.bf16.mxu0 0
    %3724 = vmatpush1.bf16.msra.mxu0 %v2556
    %3725 = vmatprep.subr.bf16.mxu0 0
    %3726 = vmatpush1.bf16.msra.mxu0 %v2557
    %3727 = vmatprep.subr.bf16.mxu0 0
    %3728 = vmatpush1.bf16.msra.mxu0 %v2558
    %3729 = vmatprep.subr.bf16.mxu0 0
    %3730 = vmatpush1.bf16.msra.mxu0 %v2559
    %3731 = vmatprep.subr.bf16.mxu0 0
    %3732 = vmatpush1.bf16.msra.mxu0 %v2560
    %3733 = vmatprep.subr.bf16.mxu0 0
    %3734 = vmatpush1.bf16.msra.mxu0 %v2561
    %3735 = vmatprep.subr.bf16.mxu0 0
    %3736 = vmatpush1.bf16.msra.mxu0 %v2562
    %3737 = vmatprep.subr.bf16.mxu0 0
    %3738 = vmatpush1.bf16.msra.mxu0 %v2563
    %3739 = vmatprep.subr.bf16.mxu0 0
    %3740 = vmatpush1.bf16.msra.mxu0 %v2564
    %3741 = vmatprep.subr.bf16.mxu0 0
    %3742 = vmatpush1.bf16.msra.mxu0 %v2565
    %3743 = vmatprep.subr.bf16.mxu0 0
    %3744 = vmatpush1.bf16.msra.mxu0 %v2566
    %3745 = vmatprep.subr.bf16.mxu0 0
    %3746 = vmatpush1.bf16.msra.mxu0 %v2567
    %3747 = vmatprep.mubr.bf16.mxu0 %v3539
    %3748 = vmatmul.mubr.bf16.gmra.mrb[0].mxu0 %v3538
    %v3749 = vpop.f32.mrb[0].mxu0
    %v3750 = vadd.f32 %v3710, %v3749
    %v3751 = vpop.f32.mrb[0].mxu0
    %v3752 = vpop.f32.mrb[0].mxu0
    %v3753 = vpop.f32.mrb[0].mxu0
    %3754 = vdwg.mxu0
    %3755 = vmatprep.subr.bf16.mxu0 0
    %3756 = vmatpush1.bf16.msra.mxu0 %v2568
    %3757 = vmatprep.subr.bf16.mxu0 0
    %3758 = vmatpush1.bf16.msra.mxu0 %v2569
    %3759 = vmatprep.subr.bf16.mxu0 0
    %3760 = vmatpush1.bf16.msra.mxu0 %v2570
    %3761 = vmatprep.subr.bf16.mxu0 0
    %3762 = vmatpush1.bf16.msra.mxu0 %v2571
    %3763 = vmatprep.subr.bf16.mxu0 0
    %3764 = vmatpush1.bf16.msra.mxu0 %v2572
    %3765 = vmatprep.subr.bf16.mxu0 0
    %3766 = vmatpush1.bf16.msra.mxu0 %v2573
    %3767 = vmatprep.subr.bf16.mxu0 0
    %3768 = vmatpush1.bf16.msra.mxu0 %v2574
    %3769 = vmatprep.subr.bf16.mxu0 0
    %3770 = vmatpush1.bf16.msra.mxu0 %v2575
    %3771 = vmatprep.subr.bf16.mxu0 0
    %3772 = vmatpush1.bf16.msra.mxu0 %v2576
    %3773 = vmatprep.subr.bf16.mxu0 0
    %3774 = vmatpush1.bf16.msra.mxu0 %v2577
    %3775 = vmatprep.subr.bf16.mxu0 0
    %3776 = vmatpush1.bf16.msra.mxu0 %v2578
    %3777 = vmatprep.subr.bf16.mxu0 0
    %3778 = vmatpush1.bf16.msra.mxu0 %v2579
    %3779 = vmatprep.subr.bf16.mxu0 0
    %3780 = vmatpush1.bf16.msra.mxu0 %v2580
    %3781 = vmatprep.subr.bf16.mxu0 0
    %3782 = vmatpush1.bf16.msra.mxu0 %v2581
    %3783 = vmatprep.subr.bf16.mxu0 0
    %3784 = vmatpush1.bf16.msra.mxu0 %v2582
    %3785 = vmatprep.subr.bf16.mxu0 0
    %3786 = vmatpush1.bf16.msra.mxu0 %v2583
    %3787 = vmatprep.mubr.bf16.mxu0 %v3541
    %3788 = vmatmul.mubr.bf16.gmra.mrb[0].mxu0 %v3540
    %v3789 = vpop.f32.mrb[0].mxu0
    %v3790 = vadd.f32 %v3750, %v3789
    %v3791 = vpop.f32.mrb[0].mxu0
    %v3792 = vpop.f32.mrb[0].mxu0
    %v3793 = vpop.f32.mrb[0].mxu0
    %3794 = vdwg.mxu0
    %3795 = vmatprep.subr.bf16.mxu0 0
    %3796 = vmatpush1.bf16.msra.mxu0 %v2584
    %3797 = vmatprep.subr.bf16.mxu0 0
    %3798 = vmatpush1.bf16.msra.mxu0 %v2585
    %3799 = vmatprep.subr.bf16.mxu0 0
    %3800 = vmatpush1.bf16.msra.mxu0 %v2586
    %3801 = vmatprep.subr.bf16.mxu0 0
    %3802 = vmatpush1.bf16.msra.mxu0 %v2587
    %3803 = vmatprep.subr.bf16.mxu0 0
    %3804 = vmatpush1.bf16.msra.mxu0 %v2588
    %3805 = vmatprep.subr.bf16.mxu0 0
    %3806 = vmatpush1.bf16.msra.mxu0 %v2589
    %3807 = vmatprep.subr.bf16.mxu0 0
    %3808 = vmatpush1.bf16.msra.mxu0 %v2590
    %3809 = vmatprep.subr.bf16.mxu0 0
    %3810 = vmatpush1.bf16.msra.mxu0 %v2591
    %3811 = vmatprep.subr.bf16.mxu0 0
    %3812 = vmatpush1.bf16.msra.mxu0 %v2592
    %3813 = vmatprep.subr.bf16.mxu0 0
    %3814 = vmatpush1.bf16.msra.mxu0 %v2593
    %3815 = vmatprep.subr.bf16.mxu0 0
    %3816 = vmatpush1.bf16.msra.mxu0 %v2594
    %3817 = vmatprep.subr.bf16.mxu0 0
    %3818 = vmatpush1.bf16.msra.mxu0 %v2595
    %3819 = vmatprep.subr.bf16.mxu0 0
    %3820 = vmatpush1.bf16.msra.mxu0 %v2596
    %3821 = vmatprep.subr.bf16.mxu0 0
    %3822 = vmatpush1.bf16.msra.mxu0 %v2597
    %3823 = vmatprep.subr.bf16.mxu0 0
    %3824 = vmatpush1.bf16.msra.mxu0 %v2598
    %3825 = vmatprep.subr.bf16.mxu0 0
    %3826 = vmatpush1.bf16.msra.mxu0 %v2599
    %3827 = vmatprep.mubr.bf16.mxu0 %v3543
    %3828 = vmatmul.mubr.bf16.gmra.mrb[0].mxu0 %v3542
    %v3829 = vpop.f32.mrb[0].mxu0
    %v3830 = vadd.f32 %v3790, %v3829
    %v3831 = vpop.f32.mrb[0].mxu0
    %v3832 = vpop.f32.mrb[0].mxu0
    %v3833 = vpop.f32.mrb[0].mxu0
    %3834 = vdwg.mxu0
    %3835 = vmatprep.subr.bf16.mxu0 0
    %3836 = vmatpush1.bf16.msra.mxu0 %v2600
    %3837 = vmatprep.subr.bf16.mxu0 0
    %3838 = vmatpush1.bf16.msra.mxu0 %v2601
    %3839 = vmatprep.subr.bf16.mxu0 0
    %3840 = vmatpush1.bf16.msra.mxu0 %v2602
    %3841 = vmatprep.subr.bf16.mxu0 0
    %3842 = vmatpush1.bf16.msra.mxu0 %v2603
    %3843 = vmatprep.subr.bf16.mxu0 0
    %3844 = vmatpush1.bf16.msra.mxu0 %v2604
    %3845 = vmatprep.subr.bf16.mxu0 0
    %3846 = vmatpush1.bf16.msra.mxu0 %v2605
    %3847 = vmatprep.subr.bf16.mxu0 0
    %3848 = vmatpush1.bf16.msra.mxu0 %v2606
    %3849 = vmatprep.subr.bf16.mxu0 0
    %3850 = vmatpush1.bf16.msra.mxu0 %v2607
    %3851 = vmatprep.subr.bf16.mxu0 0
    %3852 = vmatpush1.bf16.msra.mxu0 %v2608
    %3853 = vmatprep.subr.bf16.mxu0 0
    %3854 = vmatpush1.bf16.msra.mxu0 %v2609
    %3855 = vmatprep.subr.bf16.mxu0 0
    %3856 = vmatpush1.bf16.msra.mxu0 %v2610
    %3857 = vmatprep.subr.bf16.mxu0 0
    %3858 = vmatpush1.bf16.msra.mxu0 %v2611
    %3859 = vmatprep.subr.bf16.mxu0 0
    %3860 = vmatpush1.bf16.msra.mxu0 %v2612
    %3861 = vmatprep.subr.bf16.mxu0 0
    %3862 = vmatpush1.bf16.msra.mxu0 %v2613
    %3863 = vmatprep.subr.bf16.mxu0 0
    %3864 = vmatpush1.bf16.msra.mxu0 %v2614
    %3865 = vmatprep.subr.bf16.mxu0 0
    %3866 = vmatpush1.bf16.msra.mxu0 %v2615
    %3867 = vmatprep.mubr.bf16.mxu0 %v3545
    %3868 = vmatmul.mubr.bf16.gmra.mrb[0].mxu0 %v3544
    %v3869 = vpop.f32.mrb[0].mxu0
    %v3870 = vadd.f32 %v3830, %v3869
    %v3871 = vpop.f32.mrb[0].mxu0
    %v3872 = vpop.f32.mrb[0].mxu0
    %v3873 = vpop.f32.mrb[0].mxu0
    %3874 = vdwg.mxu0
    %3875 = vmatprep.subr.bf16.mxu0 0
    %3876 = vmatpush1.bf16.msra.mxu0 %v2616
    %3877 = vmatprep.subr.bf16.mxu0 0
    %3878 = vmatpush1.bf16.msra.mxu0 %v2617
    %3879 = vmatprep.subr.bf16.mxu0 0
    %3880 = vmatpush1.bf16.msra.mxu0 %v2618
    %3881 = vmatprep.subr.bf16.mxu0 0
    %3882 = vmatpush1.bf16.msra.mxu0 %v2619
    %3883 = vmatprep.subr.bf16.mxu0 0
    %3884 = vmatpush1.bf16.msra.mxu0 %v2620
    %3885 = vmatprep.subr.bf16.mxu0 0
    %3886 = vmatpush1.bf16.msra.mxu0 %v2621
    %3887 = vmatprep.subr.bf16.mxu0 0
    %3888 = vmatpush1.bf16.msra.mxu0 %v2622
    %3889 = vmatprep.subr.bf16.mxu0 0
    %3890 = vmatpush1.bf16.msra.mxu0 %v2623
    %3891 = vmatprep.subr.bf16.mxu0 0
    %3892 = vmatpush1.bf16.msra.mxu0 %v2624
    %3893 = vmatprep.subr.bf16.mxu0 0
    %3894 = vmatpush1.bf16.msra.mxu0 %v2625
    %3895 = vmatprep.subr.bf16.mxu0 0
    %3896 = vmatpush1.bf16.msra.mxu0 %v2626
    %3897 = vmatprep.subr.bf16.mxu0 0
    %3898 = vmatpush1.bf16.msra.mxu0 %v2627
    %3899 = vmatprep.subr.bf16.mxu0 0
    %3900 = vmatpush1.bf16.msra.mxu0 %v2628
    %3901 = vmatprep.subr.bf16.mxu0 0
    %3902 = vmatpush1.bf16.msra.mxu0 %v2629
    %3903 = vmatprep.subr.bf16.mxu0 0
    %3904 = vmatpush1.bf16.msra.mxu0 %v2630
    %3905 = vmatprep.subr.bf16.mxu0 0
    %3906 = vmatpush1.bf16.msra.mxu0 %v2631
    %3907 = vmatprep.mubr.bf16.mxu0 %v3547
    %3908 = vmatmul.mubr.bf16.gmra.mrb[0].mxu0 %v3546
    %v3909 = vpop.f32.mrb[0].mxu0
    %v3910 = vadd.f32 %v3870, %v3909
    %v3911 = vpop.f32.mrb[0].mxu0
    %v3912 = vpop.f32.mrb[0].mxu0
    %v3913 = vpop.f32.mrb[0].mxu0
    %3914 = vdwg.mxu0
    %3915 = vmatprep.subr.bf16.mxu0 0
    %3916 = vmatpush1.bf16.msra.mxu0 %v2632
    %3917 = vmatprep.subr.bf16.mxu0 0
    %3918 = vmatpush1.bf16.msra.mxu0 %v2633
    %3919 = vmatprep.subr.bf16.mxu0 0
    %3920 = vmatpush1.bf16.msra.mxu0 %v2634
    %3921 = vmatprep.subr.bf16.mxu0 0
    %3922 = vmatpush1.bf16.msra.mxu0 %v2635
    %3923 = vmatprep.subr.bf16.mxu0 0
    %3924 = vmatpush1.bf16.msra.mxu0 %v2636
    %3925 = vmatprep.subr.bf16.mxu0 0
    %3926 = vmatpush1.bf16.msra.mxu0 %v2637
    %3927 = vmatprep.subr.bf16.mxu0 0
    %3928 = vmatpush1.bf16.msra.mxu0 %v2638
    %3929 = vmatprep.subr.bf16.mxu0 0
    %3930 = vmatpush1.bf16.msra.mxu0 %v2639
    %3931 = vmatprep.subr.bf16.mxu0 0
    %3932 = vmatpush1.bf16.msra.mxu0 %v2640
    %3933 = vmatprep.subr.bf16.mxu0 0
    %3934 = vmatpush1.bf16.msra.mxu0 %v2641
    %3935 = vmatprep.subr.bf16.mxu0 0
    %3936 = vmatpush1.bf16.msra.mxu0 %v2642
    %3937 = vmatprep.subr.bf16.mxu0 0
    %3938 = vmatpush1.bf16.msra.mxu0 %v2643
    %3939 = vmatprep.subr.bf16.mxu0 0
    %3940 = vmatpush1.bf16.msra.mxu0 %v2644
    %3941 = vmatprep.subr.bf16.mxu0 0
    %3942 = vmatpush1.bf16.msra.mxu0 %v2645
    %3943 = vmatprep.subr.bf16.mxu0 0
    %3944 = vmatpush1.bf16.msra.mxu0 %v2646
    %3945 = vmatprep.subr.bf16.mxu0 0
    %3946 = vmatpush1.bf16.msra.mxu0 %v2647
    %3947 = vmatprep.mubr.bf16.mxu0 %v3549
    %3948 = vmatmul.mubr.bf16.gmra.mrb[0].mxu0 %v3548
    %v3949 = vpop.f32.mrb[0].mxu0
    %v3950 = vadd.f32 %v3910, %v3949
    %v3951 = vpop.f32.mrb[0].mxu0
    %v3952 = vpop.f32.mrb[0].mxu0
    %v3953 = vpop.f32.mrb[0].mxu0
    %3954 = vdwg.mxu0
    %3955 = vmatprep.subr.bf16.mxu0 0
    %3956 = vmatpush1.bf16.msra.mxu0 %v2648
    %3957 = vmatprep.subr.bf16.mxu0 0
    %3958 = vmatpush1.bf16.msra.mxu0 %v2649
    %3959 = vmatprep.subr.bf16.mxu0 0
    %3960 = vmatpush1.bf16.msra.mxu0 %v2650
    %3961 = vmatprep.subr.bf16.mxu0 0
    %3962 = vmatpush1.bf16.msra.mxu0 %v2651
    %3963 = vmatprep.subr.bf16.mxu0 0
    %3964 = vmatpush1.bf16.msra.mxu0 %v2652
    %3965 = vmatprep.subr.bf16.mxu0 0
    %3966 = vmatpush1.bf16.msra.mxu0 %v2653
    %3967 = vmatprep.subr.bf16.mxu0 0
    %3968 = vmatpush1.bf16.msra.mxu0 %v2654
    %3969 = vmatprep.subr.bf16.mxu0 0
    %3970 = vmatpush1.bf16.msra.mxu0 %v2655
    %3971 = vmatprep.subr.bf16.mxu0 0
    %3972 = vmatpush1.bf16.msra.mxu0 %v2656
    %3973 = vmatprep.subr.bf16.mxu0 0
    %3974 = vmatpush1.bf16.msra.mxu0 %v2657
    %3975 = vmatprep.subr.bf16.mxu0 0
    %3976 = vmatpush1.bf16.msra.mxu0 %v2658
    %3977 = vmatprep.subr.bf16.mxu0 0
    %3978 = vmatpush1.bf16.msra.mxu0 %v2659
    %3979 = vmatprep.subr.bf16.mxu0 0
    %3980 = vmatpush1.bf16.msra.mxu0 %v2660
    %3981 = vmatprep.subr.bf16.mxu0 0
    %3982 = vmatpush1.bf16.msra.mxu0 %v2661
    %3983 = vmatprep.subr.bf16.mxu0 0
    %3984 = vmatpush1.bf16.msra.mxu0 %v2662
    %3985 = vmatprep.subr.bf16.mxu0 0
    %3986 = vmatpush1.bf16.msra.mxu0 %v2663
    %3987 = vmatprep.mubr.bf16.mxu0 %v3551
    %3988 = vmatmul.mubr.bf16.gmra.mrb[0].mxu0 %v3550
    %v3989 = vpop.f32.mrb[0].mxu0
    %v3990 = vadd.f32 %v3950, %v3989
    %v3991 = vpop.f32.mrb[0].mxu0
    %v3992 = vpop.f32.mrb[0].mxu0
    %v3993 = vpop.f32.mrb[0].mxu0
    %3994 = vdwg.mxu0
    %3995 = vmatprep.subr.bf16.mxu0 0
    %3996 = vmatpush1.bf16.msra.mxu0 %v2664
    %3997 = vmatprep.subr.bf16.mxu0 0
    %3998 = vmatpush1.bf16.msra.mxu0 %v2665
    %3999 = vmatprep.subr.bf16.mxu0 0
    %4000 = vmatpush1.bf16.msra.mxu0 %v2666
    %4001 = vmatprep.subr.bf16.mxu0 0
    %4002 = vmatpush1.bf16.msra.mxu0 %v2667
    %4003 = vmatprep.subr.bf16.mxu0 0
    %4004 = vmatpush1.bf16.msra.mxu0 %v2668
    %4005 = vmatprep.subr.bf16.mxu0 0
    %4006 = vmatpush1.bf16.msra.mxu0 %v2669
    %4007 = vmatprep.subr.bf16.mxu0 0
    %4008 = vmatpush1.bf16.msra.mxu0 %v2670
    %4009 = vmatprep.subr.bf16.mxu0 0
    %4010 = vmatpush1.bf16.msra.mxu0 %v2671
    %4011 = vmatprep.subr.bf16.mxu0 0
    %4012 = vmatpush1.bf16.msra.mxu0 %v2672
    %4013 = vmatprep.subr.bf16.mxu0 0
    %4014 = vmatpush1.bf16.msra.mxu0 %v2673
    %4015 = vmatprep.subr.bf16.mxu0 0
    %4016 = vmatpush1.bf16.msra.mxu0 %v2674
    %4017 = vmatprep.subr.bf16.mxu0 0
    %4018 = vmatpush1.bf16.msra.mxu0 %v2675
    %4019 = vmatprep.subr.bf16.mxu0 0
    %4020 = vmatpush1.bf16.msra.mxu0 %v2676
    %4021 = vmatprep.subr.bf16.mxu0 0
    %4022 = vmatpush1.bf16.msra.mxu0 %v2677
    %4023 = vmatprep.subr.bf16.mxu0 0
    %4024 = vmatpush1.bf16.msra.mxu0 %v2678
    %4025 = vmatprep.subr.bf16.mxu0 0
    %4026 = vmatpush1.bf16.msra.mxu0 %v2679
    %4027 = vmatprep.mubr.bf16.mxu0 %v3553
    %4028 = vmatmul.mubr.bf16.gmra.mrb[0].mxu0 %v3552
    %v4029 = vpop.f32.mrb[0].mxu0
    %v4030 = vadd.f32 %v3990, %v4029
    %v4031 = vpop.f32.mrb[0].mxu0
    %v4032 = vpop.f32.mrb[0].mxu0
    %v4033 = vpop.f32.mrb[0].mxu0
    %4034 = vdwg.mxu0
    %4035 = vmatprep.subr.bf16.mxu0 0
    %4036 = vmatpush1.bf16.msra.mxu0 %v2680
    %4037 = vmatprep.subr.bf16.mxu0 0
    %4038 = vmatpush1.bf16.msra.mxu0 %v2681
    %4039 = vmatprep.subr.bf16.mxu0 0
    %4040 = vmatpush1.bf16.msra.mxu0 %v2682
    %4041 = vmatprep.subr.bf16.mxu0 0
    %4042 = vmatpush1.bf16.msra.mxu0 %v2683
    %4043 = vmatprep.subr.bf16.mxu0 0
    %4044 = vmatpush1.bf16.msra.mxu0 %v2684
    %4045 = vmatprep.subr.bf16.mxu0 0
    %4046 = vmatpush1.bf16.msra.mxu0 %v2685
    %4047 = vmatprep.subr.bf16.mxu0 0
    %4048 = vmatpush1.bf16.msra.mxu0 %v2686
    %4049 = vmatprep.subr.bf16.mxu0 0
    %4050 = vmatpush1.bf16.msra.mxu0 %v2687
    %4051 = vmatprep.subr.bf16.mxu0 0
    %4052 = vmatpush1.bf16.msra.mxu0 0
    %4053 = vmatprep.subr.bf16.mxu0 0
    %4054 = vmatpush1.bf16.msra.mxu0 0
    %4055 = vmatprep.subr.bf16.mxu0 0
    %4056 = vmatpush1.bf16.msra.mxu0 0
    %4057 = vmatprep.subr.bf16.mxu0 0
    %4058 = vmatpush1.bf16.msra.mxu0 0
    %4059 = vmatprep.subr.bf16.mxu0 0
    %4060 = vmatpush1.bf16.msra.mxu0 0
    %4061 = vmatprep.subr.bf16.mxu0 0
    %4062 = vmatpush1.bf16.msra.mxu0 0
    %4063 = vmatprep.subr.bf16.mxu0 0
    %4064 = vmatpush1.bf16.msra.mxu0 0
    %4065 = vmatprep.subr.bf16.mxu0 0
    %4066 = vmatpush1.bf16.msra.mxu0 0
    %4067 = vmatprep.mubr.bf16.mxu0 0
    %4068 = vmatmul.mubr.bf16.gmra.mrb[0].mxu0 %v3554
    %v4069 = vpop.f32.mrb[0].mxu0
    %v4070 = vadd.f32 %v4030, %v4069
    %v4071 = vpop.f32.mrb[0].mxu0
    %v4072 = vpop.f32.mrb[0].mxu0
    %v4073 = vpop.f32.mrb[0].mxu0
    %4074 = vdwg.mxu0
    %4076 = vrot.lane.b32.xlu0 %v4070, 96
    %v4077 = vpop.permute.xlu0 %4076
    %v4079 = vadd.f32 %v3381, %v4077
    %v4080 = vld [vmem:[#allocation6 + $0x64] sm:$0xff]
    %v4081 = vld [vmem:[#allocation6 + $0x6c] sm:$0xff]
    %v4082 = vld [vmem:[#allocation6 + $0x74] sm:$0xff]
    %v4083 = vld [vmem:[#allocation6 + $0x7c] sm:$0xff]
    %v4084 = vld [vmem:[#allocation6 + $0x84] sm:$0xff]
    %v4085 = vld [vmem:[#allocation6 + $0x8c] sm:$0xff]
    %v4086 = vld [vmem:[#allocation6 + $0x94] sm:$0x3]
    %v4094 = vcombine.high %v4080, %v4080
    %v4096 = vunpack.c.l.s4 1983009808
    %v4097 = vunpack.c.0.s8 %v4096
    %v4098 = vlaneseq
    %v4099 = vshrl.u32 %v4098, 7
    %v4100 = vsub.s32 %v4097, %v4099
    %v4101 = vrot.slane %v4080, %v4100
    %v4103 = vunpack.c.l.s4 1983009808
    %v4104 = vunpack.c.0.s8 %v4103
    %v4105 = vlaneseq
    %v4106 = vshrl.u32 %v4105, 7
    %v4107 = vsub.s32 %v4104, %v4106
    %v4108 = vrot.slane %v4094, %v4107
    %v4109 = vcombine.high %v4101, %v4101
    %v4110 = vcombine.high %v4108, %v4108
    %v4111 = vcombine.high %v4081, %v4081
    %v4113 = vunpack.c.l.s4 1983009808
    %v4114 = vunpack.c.0.s8 %v4113
    %v4115 = vlaneseq
    %v4116 = vshrl.u32 %v4115, 7
    %v4117 = vsub.s32 %v4114, %v4116
    %v4118 = vrot.slane %v4081, %v4117
    %v4120 = vunpack.c.l.s4 1983009808
    %v4121 = vunpack.c.0.s8 %v4120
    %v4122 = vlaneseq
    %v4123 = vshrl.u32 %v4122, 7
    %v4124 = vsub.s32 %v4121, %v4123
    %v4125 = vrot.slane %v4111, %v4124
    %v4126 = vcombine.high %v4118, %v4118
    %v4127 = vcombine.high %v4125, %v4125
    %v4128 = vcombine.high %v4082, %v4082
    %v4130 = vunpack.c.l.s4 1983009808
    %v4131 = vunpack.c.0.s8 %v4130
    %v4132 = vlaneseq
    %v4133 = vshrl.u32 %v4132, 7
    %v4134 = vsub.s32 %v4131, %v4133
    %v4135 = vrot.slane %v4082, %v4134
    %v4137 = vunpack.c.l.s4 1983009808
    %v4138 = vunpack.c.0.s8 %v4137
    %v4139 = vlaneseq
    %v4140 = vshrl.u32 %v4139, 7
    %v4141 = vsub.s32 %v4138, %v4140
    %v4142 = vrot.slane %v4128, %v4141
    %v4143 = vcombine.high %v4135, %v4135
    %v4144 = vcombine.high %v4142, %v4142
    %v4145 = vcombine.high %v4083, %v4083
    %v4147 = vunpack.c.l.s4 1983009808
    %v4148 = vunpack.c.0.s8 %v4147
    %v4149 = vlaneseq
    %v4150 = vshrl.u32 %v4149, 7
    %v4151 = vsub.s32 %v4148, %v4150
    %v4152 = vrot.slane %v4083, %v4151
    %v4154 = vunpack.c.l.s4 1983009808
    %v4155 = vunpack.c.0.s8 %v4154
    %v4156 = vlaneseq
    %v4157 = vshrl.u32 %v4156, 7
    %v4158 = vsub.s32 %v4155, %v4157
    %v4159 = vrot.slane %v4145, %v4158
    %v4160 = vcombine.high %v4152, %v4152
    %v4161 = vcombine.high %v4159, %v4159
    %v4162 = vcombine.high %v4084, %v4084
    %v4164 = vunpack.c.l.s4 1983009808
    %v4165 = vunpack.c.0.s8 %v4164
    %v4166 = vlaneseq
    %v4167 = vshrl.u32 %v4166, 7
    %v4168 = vsub.s32 %v4165, %v4167
    %v4169 = vrot.slane %v4084, %v4168
    %v4171 = vunpack.c.l.s4 1983009808
    %v4172 = vunpack.c.0.s8 %v4171
    %v4173 = vlaneseq
    %v4174 = vshrl.u32 %v4173, 7
    %v4175 = vsub.s32 %v4172, %v4174
    %v4176 = vrot.slane %v4162, %v4175
    %v4177 = vcombine.high %v4169, %v4169
    %v4178 = vcombine.high %v4176, %v4176
    %v4179 = vcombine.high %v4085, %v4085
    %v4181 = vunpack.c.l.s4 1983009808
    %v4182 = vunpack.c.0.s8 %v4181
    %v4183 = vlaneseq
    %v4184 = vshrl.u32 %v4183, 7
    %v4185 = vsub.s32 %v4182, %v4184
    %v4186 = vrot.slane %v4085, %v4185
    %v4188 = vunpack.c.l.s4 1983009808
    %v4189 = vunpack.c.0.s8 %v4188
    %v4190 = vlaneseq
    %v4191 = vshrl.u32 %v4190, 7
    %v4192 = vsub.s32 %v4189, %v4191
    %v4193 = vrot.slane %v4179, %v4192
    %v4194 = vcombine.high %v4186, %v4186
    %v4195 = vcombine.high %v4193, %v4193
    %v4197 = vunpack.c.l.s4 1983009808
    %v4198 = vunpack.c.0.s8 %v4197
    %v4199 = vlaneseq
    %v4200 = vshrl.u32 %v4199, 7
    %v4201 = vsub.s32 %v4198, %v4200
    %v4202 = vrot.slane %v4086, %v4201
    %v4228 = vpack.c.bf16 %v4101, %v4101
    %v4229 = vpack.c.bf16 %v4109, %v4109
    %v4230 = vpack.c.bf16 %v4108, %v4108
    %v4231 = vpack.c.bf16 %v4110, %v4110
    %v4232 = vpack.c.bf16 %v4118, %v4118
    %v4233 = vpack.c.bf16 %v4126, %v4126
    %v4234 = vpack.c.bf16 %v4125, %v4125
    %v4235 = vpack.c.bf16 %v4127, %v4127
    %v4236 = vpack.c.bf16 %v4135, %v4135
    %v4237 = vpack.c.bf16 %v4143, %v4143
    %v4238 = vpack.c.bf16 %v4142, %v4142
    %v4239 = vpack.c.bf16 %v4144, %v4144
    %v4240 = vpack.c.bf16 %v4152, %v4152
    %v4241 = vpack.c.bf16 %v4160, %v4160
    %v4242 = vpack.c.bf16 %v4159, %v4159
    %v4243 = vpack.c.bf16 %v4161, %v4161
    %v4244 = vpack.c.bf16 %v4169, %v4169
    %v4245 = vpack.c.bf16 %v4177, %v4177
    %v4246 = vpack.c.bf16 %v4176, %v4176
    %v4247 = vpack.c.bf16 %v4178, %v4178
    %v4248 = vpack.c.bf16 %v4186, %v4186
    %v4249 = vpack.c.bf16 %v4194, %v4194
    %v4250 = vpack.c.bf16 %v4193, %v4193
    %v4251 = vpack.c.bf16 %v4195, %v4195
    %v4252 = vpack.c.bf16 %v4202, %v4202
    %4253 = vmatprep.subr.bf16.mxu0 0
    %4254 = vmatpush1.bf16.msra.mxu0 %v2488
    %4255 = vmatprep.subr.bf16.mxu0 0
    %4256 = vmatpush1.bf16.msra.mxu0 %v2489
    %4257 = vmatprep.subr.bf16.mxu0 0
    %4258 = vmatpush1.bf16.msra.mxu0 %v2490
    %4259 = vmatprep.subr.bf16.mxu0 0
    %4260 = vmatpush1.bf16.msra.mxu0 %v2491
    %4261 = vmatprep.subr.bf16.mxu0 0
    %4262 = vmatpush1.bf16.msra.mxu0 %v2492
    %4263 = vmatprep.subr.bf16.mxu0 0
    %4264 = vmatpush1.bf16.msra.mxu0 %v2493
    %4265 = vmatprep.subr.bf16.mxu0 0
    %4266 = vmatpush1.bf16.msra.mxu0 %v2494
    %4267 = vmatprep.subr.bf16.mxu0 0
    %4268 = vmatpush1.bf16.msra.mxu0 %v2495
    %4269 = vmatprep.subr.bf16.mxu0 0
    %4270 = vmatpush1.bf16.msra.mxu0 %v2496
    %4271 = vmatprep.subr.bf16.mxu0 0
    %4272 = vmatpush1.bf16.msra.mxu0 %v2497
    %4273 = vmatprep.subr.bf16.mxu0 0
    %4274 = vmatpush1.bf16.msra.mxu0 %v2498
    %4275 = vmatprep.subr.bf16.mxu0 0
    %4276 = vmatpush1.bf16.msra.mxu0 %v2499
    %4277 = vmatprep.subr.bf16.mxu0 0
    %4278 = vmatpush1.bf16.msra.mxu0 %v2500
    %4279 = vmatprep.subr.bf16.mxu0 0
    %4280 = vmatpush1.bf16.msra.mxu0 %v2501
    %4281 = vmatprep.subr.bf16.mxu0 0
    %4282 = vmatpush1.bf16.msra.mxu0 %v2502
    %4283 = vmatprep.subr.bf16.mxu0 0
    %4284 = vmatpush1.bf16.msra.mxu0 %v2503
    %4285 = vmatprep.mubr.bf16.mxu0 %v4229
    %4286 = vmatmul.mubr.bf16.gmra.mrb[0].mxu0 %v4228
    %v4287 = vpop.f32.mrb[0].mxu0
    %v4288 = vadd.f32 0.0, %v4287
    %v4289 = vpop.f32.mrb[0].mxu0
    %v4290 = vpop.f32.mrb[0].mxu0
    %v4291 = vpop.f32.mrb[0].mxu0
    %4292 = vdwg.mxu0
    %4293 = vmatprep.subr.bf16.mxu0 0
    %4294 = vmatpush1.bf16.msra.mxu0 %v2504
    %4295 = vmatprep.subr.bf16.mxu0 0
    %4296 = vmatpush1.bf16.msra.mxu0 %v2505
    %4297 = vmatprep.subr.bf16.mxu0 0
    %4298 = vmatpush1.bf16.msra.mxu0 %v2506
    %4299 = vmatprep.subr.bf16.mxu0 0
    %4300 = vmatpush1.bf16.msra.mxu0 %v2507
    %4301 = vmatprep.subr.bf16.mxu0 0
    %4302 = vmatpush1.bf16.msra.mxu0 %v2508
    %4303 = vmatprep.subr.bf16.mxu0 0
    %4304 = vmatpush1.bf16.msra.mxu0 %v2509
    %4305 = vmatprep.subr.bf16.mxu0 0
    %4306 = vmatpush1.bf16.msra.mxu0 %v2510
    %4307 = vmatprep.subr.bf16.mxu0 0
    %4308 = vmatpush1.bf16.msra.mxu0 %v2511
    %4309 = vmatprep.subr.bf16.mxu0 0
    %4310 = vmatpush1.bf16.msra.mxu0 %v2512
    %4311 = vmatprep.subr.bf16.mxu0 0
    %4312 = vmatpush1.bf16.msra.mxu0 %v2513
    %4313 = vmatprep.subr.bf16.mxu0 0
    %4314 = vmatpush1.bf16.msra.mxu0 %v2514
    %4315 = vmatprep.subr.bf16.mxu0 0
    %4316 = vmatpush1.bf16.msra.mxu0 %v2515
    %4317 = vmatprep.subr.bf16.mxu0 0
    %4318 = vmatpush1.bf16.msra.mxu0 %v2516
    %4319 = vmatprep.subr.bf16.mxu0 0
    %4320 = vmatpush1.bf16.msra.mxu0 %v2517
    %4321 = vmatprep.subr.bf16.mxu0 0
    %4322 = vmatpush1.bf16.msra.mxu0 %v2518
    %4323 = vmatprep.subr.bf16.mxu0 0
    %4324 = vmatpush1.bf16.msra.mxu0 %v2519
    %4325 = vmatprep.mubr.bf16.mxu0 %v4231
    %4326 = vmatmul.mubr.bf16.gmra.mrb[0].mxu0 %v4230
    %v4327 = vpop.f32.mrb[0].mxu0
    %v4328 = vadd.f32 %v4288, %v4327
    %v4329 = vpop.f32.mrb[0].mxu0
    %v4330 = vpop.f32.mrb[0].mxu0
    %v4331 = vpop.f32.mrb[0].mxu0
    %4332 = vdwg.mxu0
    %4333 = vmatprep.subr.bf16.mxu0 0
    %4334 = vmatpush1.bf16.msra.mxu0 %v2520
    %4335 = vmatprep.subr.bf16.mxu0 0
    %4336 = vmatpush1.bf16.msra.mxu0 %v2521
    %4337 = vmatprep.subr.bf16.mxu0 0
    %4338 = vmatpush1.bf16.msra.mxu0 %v2522
    %4339 = vmatprep.subr.bf16.mxu0 0
    %4340 = vmatpush1.bf16.msra.mxu0 %v2523
    %4341 = vmatprep.subr.bf16.mxu0 0
    %4342 = vmatpush1.bf16.msra.mxu0 %v2524
    %4343 = vmatprep.subr.bf16.mxu0 0
    %4344 = vmatpush1.bf16.msra.mxu0 %v2525
    %4345 = vmatprep.subr.bf16.mxu0 0
    %4346 = vmatpush1.bf16.msra.mxu0 %v2526
    %4347 = vmatprep.subr.bf16.mxu0 0
    %4348 = vmatpush1.bf16.msra.mxu0 %v2527
    %4349 = vmatprep.subr.bf16.mxu0 0
    %4350 = vmatpush1.bf16.msra.mxu0 %v2528
    %4351 = vmatprep.subr.bf16.mxu0 0
    %4352 = vmatpush1.bf16.msra.mxu0 %v2529
    %4353 = vmatprep.subr.bf16.mxu0 0
    %4354 = vmatpush1.bf16.msra.mxu0 %v2530
    %4355 = vmatprep.subr.bf16.mxu0 0
    %4356 = vmatpush1.bf16.msra.mxu0 %v2531
    %4357 = vmatprep.subr.bf16.mxu0 0
    %4358 = vmatpush1.bf16.msra.mxu0 %v2532
    %4359 = vmatprep.subr.bf16.mxu0 0
    %4360 = vmatpush1.bf16.msra.mxu0 %v2533
    %4361 = vmatprep.subr.bf16.mxu0 0
    %4362 = vmatpush1.bf16.msra.mxu0 %v2534
    %4363 = vmatprep.subr.bf16.mxu0 0
    %4364 = vmatpush1.bf16.msra.mxu0 %v2535
    %4365 = vmatprep.mubr.bf16.mxu0 %v4233
    %4366 = vmatmul.mubr.bf16.gmra.mrb[0].mxu0 %v4232
    %v4367 = vpop.f32.mrb[0].mxu0
    %v4368 = vadd.f32 %v4328, %v4367
    %v4369 = vpop.f32.mrb[0].mxu0
    %v4370 = vpop.f32.mrb[0].mxu0
    %v4371 = vpop.f32.mrb[0].mxu0
    %4372 = vdwg.mxu0
    %4373 = vmatprep.subr.bf16.mxu0 0
    %4374 = vmatpush1.bf16.msra.mxu0 %v2536
    %4375 = vmatprep.subr.bf16.mxu0 0
    %4376 = vmatpush1.bf16.msra.mxu0 %v2537
    %4377 = vmatprep.subr.bf16.mxu0 0
    %4378 = vmatpush1.bf16.msra.mxu0 %v2538
    %4379 = vmatprep.subr.bf16.mxu0 0
    %4380 = vmatpush1.bf16.msra.mxu0 %v2539
    %4381 = vmatprep.subr.bf16.mxu0 0
    %4382 = vmatpush1.bf16.msra.mxu0 %v2540
    %4383 = vmatprep.subr.bf16.mxu0 0
    %4384 = vmatpush1.bf16.msra.mxu0 %v2541
    %4385 = vmatprep.subr.bf16.mxu0 0
    %4386 = vmatpush1.bf16.msra.mxu0 %v2542
    %4387 = vmatprep.subr.bf16.mxu0 0
    %4388 = vmatpush1.bf16.msra.mxu0 %v2543
    %4389 = vmatprep.subr.bf16.mxu0 0
    %4390 = vmatpush1.bf16.msra.mxu0 %v2544
    %4391 = vmatprep.subr.bf16.mxu0 0
    %4392 = vmatpush1.bf16.msra.mxu0 %v2545
    %4393 = vmatprep.subr.bf16.mxu0 0
    %4394 = vmatpush1.bf16.msra.mxu0 %v2546
    %4395 = vmatprep.subr.bf16.mxu0 0
    %4396 = vmatpush1.bf16.msra.mxu0 %v2547
    %4397 = vmatprep.subr.bf16.mxu0 0
    %4398 = vmatpush1.bf16.msra.mxu0 %v2548
    %4399 = vmatprep.subr.bf16.mxu0 0
    %4400 = vmatpush1.bf16.msra.mxu0 %v2549
    %4401 = vmatprep.subr.bf16.mxu0 0
    %4402 = vmatpush1.bf16.msra.mxu0 %v2550
    %4403 = vmatprep.subr.bf16.mxu0 0
    %4404 = vmatpush1.bf16.msra.mxu0 %v2551
    %4405 = vmatprep.mubr.bf16.mxu0 %v4235
    %4406 = vmatmul.mubr.bf16.gmra.mrb[0].mxu0 %v4234
    %v4407 = vpop.f32.mrb[0].mxu0
    %v4408 = vadd.f32 %v4368, %v4407
    %v4409 = vpop.f32.mrb[0].mxu0
    %v4410 = vpop.f32.mrb[0].mxu0
    %v4411 = vpop.f32.mrb[0].mxu0
    %4412 = vdwg.mxu0
    %4413 = vmatprep.subr.bf16.mxu0 0
    %4414 = vmatpush1.bf16.msra.mxu0 %v2552
    %4415 = vmatprep.subr.bf16.mxu0 0
    %4416 = vmatpush1.bf16.msra.mxu0 %v2553
    %4417 = vmatprep.subr.bf16.mxu0 0
    %4418 = vmatpush1.bf16.msra.mxu0 %v2554
    %4419 = vmatprep.subr.bf16.mxu0 0
    %4420 = vmatpush1.bf16.msra.mxu0 %v2555
    %4421 = vmatprep.subr.bf16.mxu0 0
    %4422 = vmatpush1.bf16.msra.mxu0 %v2556
    %4423 = vmatprep.subr.bf16.mxu0 0
    %4424 = vmatpush1.bf16.msra.mxu0 %v2557
    %4425 = vmatprep.subr.bf16.mxu0 0
    %4426 = vmatpush1.bf16.msra.mxu0 %v2558
    %4427 = vmatprep.subr.bf16.mxu0 0
    %4428 = vmatpush1.bf16.msra.mxu0 %v2559
    %4429 = vmatprep.subr.bf16.mxu0 0
    %4430 = vmatpush1.bf16.msra.mxu0 %v2560
    %4431 = vmatprep.subr.bf16.mxu0 0
    %4432 = vmatpush1.bf16.msra.mxu0 %v2561
    %4433 = vmatprep.subr.bf16.mxu0 0
    %4434 = vmatpush1.bf16.msra.mxu0 %v2562
    %4435 = vmatprep.subr.bf16.mxu0 0
    %4436 = vmatpush1.bf16.msra.mxu0 %v2563
    %4437 = vmatprep.subr.bf16.mxu0 0
    %4438 = vmatpush1.bf16.msra.mxu0 %v2564
    %4439 = vmatprep.subr.bf16.mxu0 0
    %4440 = vmatpush1.bf16.msra.mxu0 %v2565
    %4441 = vmatprep.subr.bf16.mxu0 0
    %4442 = vmatpush1.bf16.msra.mxu0 %v2566
    %4443 = vmatprep.subr.bf16.mxu0 0
    %4444 = vmatpush1.bf16.msra.mxu0 %v2567
    %4445 = vmatprep.mubr.bf16.mxu0 %v4237
    %4446 = vmatmul.mubr.bf16.gmra.mrb[0].mxu0 %v4236
    %v4447 = vpop.f32.mrb[0].mxu0
    %v4448 = vadd.f32 %v4408, %v4447
    %v4449 = vpop.f32.mrb[0].mxu0
    %v4450 = vpop.f32.mrb[0].mxu0
    %v4451 = vpop.f32.mrb[0].mxu0
    %4452 = vdwg.mxu0
    %4453 = vmatprep.subr.bf16.mxu0 0
    %4454 = vmatpush1.bf16.msra.mxu0 %v2568
    %4455 = vmatprep.subr.bf16.mxu0 0
    %4456 = vmatpush1.bf16.msra.mxu0 %v2569
    %4457 = vmatprep.subr.bf16.mxu0 0
    %4458 = vmatpush1.bf16.msra.mxu0 %v2570
    %4459 = vmatprep.subr.bf16.mxu0 0
    %4460 = vmatpush1.bf16.msra.mxu0 %v2571
    %4461 = vmatprep.subr.bf16.mxu0 0
    %4462 = vmatpush1.bf16.msra.mxu0 %v2572
    %4463 = vmatprep.subr.bf16.mxu0 0
    %4464 = vmatpush1.bf16.msra.mxu0 %v2573
    %4465 = vmatprep.subr.bf16.mxu0 0
    %4466 = vmatpush1.bf16.msra.mxu0 %v2574
    %4467 = vmatprep.subr.bf16.mxu0 0
    %4468 = vmatpush1.bf16.msra.mxu0 %v2575
    %4469 = vmatprep.subr.bf16.mxu0 0
    %4470 = vmatpush1.bf16.msra.mxu0 %v2576
    %4471 = vmatprep.subr.bf16.mxu0 0
    %4472 = vmatpush1.bf16.msra.mxu0 %v2577
    %4473 = vmatprep.subr.bf16.mxu0 0
    %4474 = vmatpush1.bf16.msra.mxu0 %v2578
    %4475 = vmatprep.subr.bf16.mxu0 0
    %4476 = vmatpush1.bf16.msra.mxu0 %v2579
    %4477 = vmatprep.subr.bf16.mxu0 0
    %4478 = vmatpush1.bf16.msra.mxu0 %v2580
    %4479 = vmatprep.subr.bf16.mxu0 0
    %4480 = vmatpush1.bf16.msra.mxu0 %v2581
    %4481 = vmatprep.subr.bf16.mxu0 0
    %4482 = vmatpush1.bf16.msra.mxu0 %v2582
    %4483 = vmatprep.subr.bf16.mxu0 0
    %4484 = vmatpush1.bf16.msra.mxu0 %v2583
    %4485 = vmatprep.mubr.bf16.mxu0 %v4239
    %4486 = vmatmul.mubr.bf16.gmra.mrb[0].mxu0 %v4238
    %v4487 = vpop.f32.mrb[0].mxu0
    %v4488 = vadd.f32 %v4448, %v4487
    %v4489 = vpop.f32.mrb[0].mxu0
    %v4490 = vpop.f32.mrb[0].mxu0
    %v4491 = vpop.f32.mrb[0].mxu0
    %4492 = vdwg.mxu0
    %4493 = vmatprep.subr.bf16.mxu0 0
    %4494 = vmatpush1.bf16.msra.mxu0 %v2584
    %4495 = vmatprep.subr.bf16.mxu0 0
    %4496 = vmatpush1.bf16.msra.mxu0 %v2585
    %4497 = vmatprep.subr.bf16.mxu0 0
    %4498 = vmatpush1.bf16.msra.mxu0 %v2586
    %4499 = vmatprep.subr.bf16.mxu0 0
    %4500 = vmatpush1.bf16.msra.mxu0 %v2587
    %4501 = vmatprep.subr.bf16.mxu0 0
    %4502 = vmatpush1.bf16.msra.mxu0 %v2588
    %4503 = vmatprep.subr.bf16.mxu0 0
    %4504 = vmatpush1.bf16.msra.mxu0 %v2589
    %4505 = vmatprep.subr.bf16.mxu0 0
    %4506 = vmatpush1.bf16.msra.mxu0 %v2590
    %4507 = vmatprep.subr.bf16.mxu0 0
    %4508 = vmatpush1.bf16.msra.mxu0 %v2591
    %4509 = vmatprep.subr.bf16.mxu0 0
    %4510 = vmatpush1.bf16.msra.mxu0 %v2592
    %4511 = vmatprep.subr.bf16.mxu0 0
    %4512 = vmatpush1.bf16.msra.mxu0 %v2593
    %4513 = vmatprep.subr.bf16.mxu0 0
    %4514 = vmatpush1.bf16.msra.mxu0 %v2594
    %4515 = vmatprep.subr.bf16.mxu0 0
    %4516 = vmatpush1.bf16.msra.mxu0 %v2595
    %4517 = vmatprep.subr.bf16.mxu0 0
    %4518 = vmatpush1.bf16.msra.mxu0 %v2596
    %4519 = vmatprep.subr.bf16.mxu0 0
    %4520 = vmatpush1.bf16.msra.mxu0 %v2597
    %4521 = vmatprep.subr.bf16.mxu0 0
    %4522 = vmatpush1.bf16.msra.mxu0 %v2598
    %4523 = vmatprep.subr.bf16.mxu0 0
    %4524 = vmatpush1.bf16.msra.mxu0 %v2599
    %4525 = vmatprep.mubr.bf16.mxu0 %v4241
    %4526 = vmatmul.mubr.bf16.gmra.mrb[0].mxu0 %v4240
    %v4527 = vpop.f32.mrb[0].mxu0
    %v4528 = vadd.f32 %v4488, %v4527
    %v4529 = vpop.f32.mrb[0].mxu0
    %v4530 = vpop.f32.mrb[0].mxu0
    %v4531 = vpop.f32.mrb[0].mxu0
    %4532 = vdwg.mxu0
    %4533 = vmatprep.subr.bf16.mxu0 0
    %4534 = vmatpush1.bf16.msra.mxu0 %v2600
    %4535 = vmatprep.subr.bf16.mxu0 0
    %4536 = vmatpush1.bf16.msra.mxu0 %v2601
    %4537 = vmatprep.subr.bf16.mxu0 0
    %4538 = vmatpush1.bf16.msra.mxu0 %v2602
    %4539 = vmatprep.subr.bf16.mxu0 0
    %4540 = vmatpush1.bf16.msra.mxu0 %v2603
    %4541 = vmatprep.subr.bf16.mxu0 0
    %4542 = vmatpush1.bf16.msra.mxu0 %v2604
    %4543 = vmatprep.subr.bf16.mxu0 0
    %4544 = vmatpush1.bf16.msra.mxu0 %v2605
    %4545 = vmatprep.subr.bf16.mxu0 0
    %4546 = vmatpush1.bf16.msra.mxu0 %v2606
    %4547 = vmatprep.subr.bf16.mxu0 0
    %4548 = vmatpush1.bf16.msra.mxu0 %v2607
    %4549 = vmatprep.subr.bf16.mxu0 0
    %4550 = vmatpush1.bf16.msra.mxu0 %v2608
    %4551 = vmatprep.subr.bf16.mxu0 0
    %4552 = vmatpush1.bf16.msra.mxu0 %v2609
    %4553 = vmatprep.subr.bf16.mxu0 0
    %4554 = vmatpush1.bf16.msra.mxu0 %v2610
    %4555 = vmatprep.subr.bf16.mxu0 0
    %4556 = vmatpush1.bf16.msra.mxu0 %v2611
    %4557 = vmatprep.subr.bf16.mxu0 0
    %4558 = vmatpush1.bf16.msra.mxu0 %v2612
    %4559 = vmatprep.subr.bf16.mxu0 0
    %4560 = vmatpush1.bf16.msra.mxu0 %v2613
    %4561 = vmatprep.subr.bf16.mxu0 0
    %4562 = vmatpush1.bf16.msra.mxu0 %v2614
    %4563 = vmatprep.subr.bf16.mxu0 0
    %4564 = vmatpush1.bf16.msra.mxu0 %v2615
    %4565 = vmatprep.mubr.bf16.mxu0 %v4243
    %4566 = vmatmul.mubr.bf16.gmra.mrb[0].mxu0 %v4242
    %v4567 = vpop.f32.mrb[0].mxu0
    %v4568 = vadd.f32 %v4528, %v4567
    %v4569 = vpop.f32.mrb[0].mxu0
    %v4570 = vpop.f32.mrb[0].mxu0
    %v4571 = vpop.f32.mrb[0].mxu0
    %4572 = vdwg.mxu0
    %4573 = vmatprep.subr.bf16.mxu0 0
    %4574 = vmatpush1.bf16.msra.mxu0 %v2616
    %4575 = vmatprep.subr.bf16.mxu0 0
    %4576 = vmatpush1.bf16.msra.mxu0 %v2617
    %4577 = vmatprep.subr.bf16.mxu0 0
    %4578 = vmatpush1.bf16.msra.mxu0 %v2618
    %4579 = vmatprep.subr.bf16.mxu0 0
    %4580 = vmatpush1.bf16.msra.mxu0 %v2619
    %4581 = vmatprep.subr.bf16.mxu0 0
    %4582 = vmatpush1.bf16.msra.mxu0 %v2620
    %4583 = vmatprep.subr.bf16.mxu0 0
    %4584 = vmatpush1.bf16.msra.mxu0 %v2621
    %4585 = vmatprep.subr.bf16.mxu0 0
    %4586 = vmatpush1.bf16.msra.mxu0 %v2622
    %4587 = vmatprep.subr.bf16.mxu0 0
    %4588 = vmatpush1.bf16.msra.mxu0 %v2623
    %4589 = vmatprep.subr.bf16.mxu0 0
    %4590 = vmatpush1.bf16.msra.mxu0 %v2624
    %4591 = vmatprep.subr.bf16.mxu0 0
    %4592 = vmatpush1.bf16.msra.mxu0 %v2625
    %4593 = vmatprep.subr.bf16.mxu0 0
    %4594 = vmatpush1.bf16.msra.mxu0 %v2626
    %4595 = vmatprep.subr.bf16.mxu0 0
    %4596 = vmatpush1.bf16.msra.mxu0 %v2627
    %4597 = vmatprep.subr.bf16.mxu0 0
    %4598 = vmatpush1.bf16.msra.mxu0 %v2628
    %4599 = vmatprep.subr.bf16.mxu0 0
    %4600 = vmatpush1.bf16.msra.mxu0 %v2629
    %4601 = vmatprep.subr.bf16.mxu0 0
    %4602 = vmatpush1.bf16.msra.mxu0 %v2630
    %4603 = vmatprep.subr.bf16.mxu0 0
    %4604 = vmatpush1.bf16.msra.mxu0 %v2631
    %4605 = vmatprep.mubr.bf16.mxu0 %v4245
    %4606 = vmatmul.mubr.bf16.gmra.mrb[0].mxu0 %v4244
    %v4607 = vpop.f32.mrb[0].mxu0
    %v4608 = vadd.f32 %v4568, %v4607
    %v4609 = vpop.f32.mrb[0].mxu0
    %v4610 = vpop.f32.mrb[0].mxu0
    %v4611 = vpop.f32.mrb[0].mxu0
    %4612 = vdwg.mxu0
    %4613 = vmatprep.subr.bf16.mxu0 0
    %4614 = vmatpush1.bf16.msra.mxu0 %v2632
    %4615 = vmatprep.subr.bf16.mxu0 0
    %4616 = vmatpush1.bf16.msra.mxu0 %v2633
    %4617 = vmatprep.subr.bf16.mxu0 0
    %4618 = vmatpush1.bf16.msra.mxu0 %v2634
    %4619 = vmatprep.subr.bf16.mxu0 0
    %4620 = vmatpush1.bf16.msra.mxu0 %v2635
    %4621 = vmatprep.subr.bf16.mxu0 0
    %4622 = vmatpush1.bf16.msra.mxu0 %v2636
    %4623 = vmatprep.subr.bf16.mxu0 0
    %4624 = vmatpush1.bf16.msra.mxu0 %v2637
    %4625 = vmatprep.subr.bf16.mxu0 0
    %4626 = vmatpush1.bf16.msra.mxu0 %v2638
    %4627 = vmatprep.subr.bf16.mxu0 0
    %4628 = vmatpush1.bf16.msra.mxu0 %v2639
    %4629 = vmatprep.subr.bf16.mxu0 0
    %4630 = vmatpush1.bf16.msra.mxu0 %v2640
    %4631 = vmatprep.subr.bf16.mxu0 0
    %4632 = vmatpush1.bf16.msra.mxu0 %v2641
    %4633 = vmatprep.subr.bf16.mxu0 0
    %4634 = vmatpush1.bf16.msra.mxu0 %v2642
    %4635 = vmatprep.subr.bf16.mxu0 0
    %4636 = vmatpush1.bf16.msra.mxu0 %v2643
    %4637 = vmatprep.subr.bf16.mxu0 0
    %4638 = vmatpush1.bf16.msra.mxu0 %v2644
    %4639 = vmatprep.subr.bf16.mxu0 0
    %4640 = vmatpush1.bf16.msra.mxu0 %v2645
    %4641 = vmatprep.subr.bf16.mxu0 0
    %4642 = vmatpush1.bf16.msra.mxu0 %v2646
    %4643 = vmatprep.subr.bf16.mxu0 0
    %4644 = vmatpush1.bf16.msra.mxu0 %v2647
    %4645 = vmatprep.mubr.bf16.mxu0 %v4247
    %4646 = vmatmul.mubr.bf16.gmra.mrb[0].mxu0 %v4246
    %v4647 = vpop.f32.mrb[0].mxu0
    %v4648 = vadd.f32 %v4608, %v4647
    %v4649 = vpop.f32.mrb[0].mxu0
    %v4650 = vpop.f32.mrb[0].mxu0
    %v4651 = vpop.f32.mrb[0].mxu0
    %4652 = vdwg.mxu0
    %4653 = vmatprep.subr.bf16.mxu0 0
    %4654 = vmatpush1.bf16.msra.mxu0 %v2648
    %4655 = vmatprep.subr.bf16.mxu0 0
    %4656 = vmatpush1.bf16.msra.mxu0 %v2649
    %4657 = vmatprep.subr.bf16.mxu0 0
    %4658 = vmatpush1.bf16.msra.mxu0 %v2650
    %4659 = vmatprep.subr.bf16.mxu0 0
    %4660 = vmatpush1.bf16.msra.mxu0 %v2651
    %4661 = vmatprep.subr.bf16.mxu0 0
    %4662 = vmatpush1.bf16.msra.mxu0 %v2652
    %4663 = vmatprep.subr.bf16.mxu0 0
    %4664 = vmatpush1.bf16.msra.mxu0 %v2653
    %4665 = vmatprep.subr.bf16.mxu0 0
    %4666 = vmatpush1.bf16.msra.mxu0 %v2654
    %4667 = vmatprep.subr.bf16.mxu0 0
    %4668 = vmatpush1.bf16.msra.mxu0 %v2655
    %4669 = vmatprep.subr.bf16.mxu0 0
    %4670 = vmatpush1.bf16.msra.mxu0 %v2656
    %4671 = vmatprep.subr.bf16.mxu0 0
    %4672 = vmatpush1.bf16.msra.mxu0 %v2657
    %4673 = vmatprep.subr.bf16.mxu0 0
    %4674 = vmatpush1.bf16.msra.mxu0 %v2658
    %4675 = vmatprep.subr.bf16.mxu0 0
    %4676 = vmatpush1.bf16.msra.mxu0 %v2659
    %4677 = vmatprep.subr.bf16.mxu0 0
    %4678 = vmatpush1.bf16.msra.mxu0 %v2660
    %4679 = vmatprep.subr.bf16.mxu0 0
    %4680 = vmatpush1.bf16.msra.mxu0 %v2661
    %4681 = vmatprep.subr.bf16.mxu0 0
    %4682 = vmatpush1.bf16.msra.mxu0 %v2662
    %4683 = vmatprep.subr.bf16.mxu0 0
    %4684 = vmatpush1.bf16.msra.mxu0 %v2663
    %4685 = vmatprep.mubr.bf16.mxu0 %v4249
    %4686 = vmatmul.mubr.bf16.gmra.mrb[0].mxu0 %v4248
    %v4687 = vpop.f32.mrb[0].mxu0
    %v4688 = vadd.f32 %v4648, %v4687
    %v4689 = vpop.f32.mrb[0].mxu0
    %v4690 = vpop.f32.mrb[0].mxu0
    %v4691 = vpop.f32.mrb[0].mxu0
    %4692 = vdwg.mxu0
    %4693 = vmatprep.subr.bf16.mxu0 0
    %4694 = vmatpush1.bf16.msra.mxu0 %v2664
    %4695 = vmatprep.subr.bf16.mxu0 0
    %4696 = vmatpush1.bf16.msra.mxu0 %v2665
    %4697 = vmatprep.subr.bf16.mxu0 0
    %4698 = vmatpush1.bf16.msra.mxu0 %v2666
    %4699 = vmatprep.subr.bf16.mxu0 0
    %4700 = vmatpush1.bf16.msra.mxu0 %v2667
    %4701 = vmatprep.subr.bf16.mxu0 0
    %4702 = vmatpush1.bf16.msra.mxu0 %v2668
    %4703 = vmatprep.subr.bf16.mxu0 0
    %4704 = vmatpush1.bf16.msra.mxu0 %v2669
    %4705 = vmatprep.subr.bf16.mxu0 0
    %4706 = vmatpush1.bf16.msra.mxu0 %v2670
    %4707 = vmatprep.subr.bf16.mxu0 0
    %4708 = vmatpush1.bf16.msra.mxu0 %v2671
    %4709 = vmatprep.subr.bf16.mxu0 0
    %4710 = vmatpush1.bf16.msra.mxu0 %v2672
    %4711 = vmatprep.subr.bf16.mxu0 0
    %4712 = vmatpush1.bf16.msra.mxu0 %v2673
    %4713 = vmatprep.subr.bf16.mxu0 0
    %4714 = vmatpush1.bf16.msra.mxu0 %v2674
    %4715 = vmatprep.subr.bf16.mxu0 0
    %4716 = vmatpush1.bf16.msra.mxu0 %v2675
    %4717 = vmatprep.subr.bf16.mxu0 0
    %4718 = vmatpush1.bf16.msra.mxu0 %v2676
    %4719 = vmatprep.subr.bf16.mxu0 0
    %4720 = vmatpush1.bf16.msra.mxu0 %v2677
    %4721 = vmatprep.subr.bf16.mxu0 0
    %4722 = vmatpush1.bf16.msra.mxu0 %v2678
    %4723 = vmatprep.subr.bf16.mxu0 0
    %4724 = vmatpush1.bf16.msra.mxu0 %v2679
    %4725 = vmatprep.mubr.bf16.mxu0 %v4251
    %4726 = vmatmul.mubr.bf16.gmra.mrb[0].mxu0 %v4250
    %v4727 = vpop.f32.mrb[0].mxu0
    %v4728 = vadd.f32 %v4688, %v4727
    %v4729 = vpop.f32.mrb[0].mxu0
    %v4730 = vpop.f32.mrb[0].mxu0
    %v4731 = vpop.f32.mrb[0].mxu0
    %4732 = vdwg.mxu0
    %4733 = vmatprep.subr.bf16.mxu0 0
    %4734 = vmatpush1.bf16.msra.mxu0 %v2680
    %4735 = vmatprep.subr.bf16.mxu0 0
    %4736 = vmatpush1.bf16.msra.mxu0 %v2681
    %4737 = vmatprep.subr.bf16.mxu0 0
    %4738 = vmatpush1.bf16.msra.mxu0 %v2682
    %4739 = vmatprep.subr.bf16.mxu0 0
    %4740 = vmatpush1.bf16.msra.mxu0 %v2683
    %4741 = vmatprep.subr.bf16.mxu0 0
    %4742 = vmatpush1.bf16.msra.mxu0 %v2684
    %4743 = vmatprep.subr.bf16.mxu0 0
    %4744 = vmatpush1.bf16.msra.mxu0 %v2685
    %4745 = vmatprep.subr.bf16.mxu0 0
    %4746 = vmatpush1.bf16.msra.mxu0 %v2686
    %4747 = vmatprep.subr.bf16.mxu0 0
    %4748 = vmatpush1.bf16.msra.mxu0 %v2687
    %4749 = vmatprep.subr.bf16.mxu0 0
    %4750 = vmatpush1.bf16.msra.mxu0 0
    %4751 = vmatprep.subr.bf16.mxu0 0
    %4752 = vmatpush1.bf16.msra.mxu0 0
    %4753 = vmatprep.subr.bf16.mxu0 0
    %4754 = vmatpush1.bf16.msra.mxu0 0
    %4755 = vmatprep.subr.bf16.mxu0 0
    %4756 = vmatpush1.bf16.msra.mxu0 0
    %4757 = vmatprep.subr.bf16.mxu0 0
    %4758 = vmatpush1.bf16.msra.mxu0 0
    %4759 = vmatprep.subr.bf16.mxu0 0
    %4760 = vmatpush1.bf16.msra.mxu0 0
    %4761 = vmatprep.subr.bf16.mxu0 0
    %4762 = vmatpush1.bf16.msra.mxu0 0
    %4763 = vmatprep.subr.bf16.mxu0 0
    %4764 = vmatpush1.bf16.msra.mxu0 0
    %4765 = vmatprep.mubr.bf16.mxu0 0
    %4766 = vmatmul.mubr.bf16.gmra.mrb[0].mxu0 %v4252
    %v4767 = vpop.f32.mrb[0].mxu0
    %v4768 = vadd.f32 %v4728, %v4767
    %v4769 = vpop.f32.mrb[0].mxu0
    %v4770 = vpop.f32.mrb[0].mxu0
    %v4771 = vpop.f32.mrb[0].mxu0
    %4772 = vdwg.mxu0
    %4774 = vrot.lane.b32.xlu0 %v4768, 64
    %v4775 = vpop.permute.xlu0 %4774
    %v4777 = vadd.f32 %v4079, %v4775
    %v4778 = vld [vmem:[#allocation6 + $0x96] sm:$0xff]
    %v4779 = vld [vmem:[#allocation6 + $0x9e] sm:$0xff]
    %v4780 = vld [vmem:[#allocation6 + $0xa6] sm:$0xff]
    %v4781 = vld [vmem:[#allocation6 + $0xae] sm:$0xff]
    %v4782 = vld [vmem:[#allocation6 + $0xb6] sm:$0xff]
    %v4783 = vld [vmem:[#allocation6 + $0xbe] sm:$0xff]
    %v4784 = vld [vmem:[#allocation6 + $0xc6] sm:$0x3]
    %v4792 = vcombine.high %v4778, %v4778
    %v4794 = vunpack.c.l.s4 1983009808
    %v4795 = vunpack.c.0.s8 %v4794
    %v4796 = vlaneseq
    %v4797 = vshrl.u32 %v4796, 7
    %v4798 = vsub.s32 %v4795, %v4797
    %v4799 = vrot.slane %v4778, %v4798
    %v4801 = vunpack.c.l.s4 1983009808
    %v4802 = vunpack.c.0.s8 %v4801
    %v4803 = vlaneseq
    %v4804 = vshrl.u32 %v4803, 7
    %v4805 = vsub.s32 %v4802, %v4804
    %v4806 = vrot.slane %v4792, %v4805
    %v4807 = vcombine.high %v4799, %v4799
    %v4808 = vcombine.high %v4806, %v4806
    %v4809 = vcombine.high %v4779, %v4779
    %v4811 = vunpack.c.l.s4 1983009808
    %v4812 = vunpack.c.0.s8 %v4811
    %v4813 = vlaneseq
    %v4814 = vshrl.u32 %v4813, 7
    %v4815 = vsub.s32 %v4812, %v4814
    %v4816 = vrot.slane %v4779, %v4815
    %v4818 = vunpack.c.l.s4 1983009808
    %v4819 = vunpack.c.0.s8 %v4818
    %v4820 = vlaneseq
    %v4821 = vshrl.u32 %v4820, 7
    %v4822 = vsub.s32 %v4819, %v4821
    %v4823 = vrot.slane %v4809, %v4822
    %v4824 = vcombine.high %v4816, %v4816
    %v4825 = vcombine.high %v4823, %v4823
    %v4826 = vcombine.high %v4780, %v4780
    %v4828 = vunpack.c.l.s4 1983009808
    %v4829 = vunpack.c.0.s8 %v4828
    %v4830 = vlaneseq
    %v4831 = vshrl.u32 %v4830, 7
    %v4832 = vsub.s32 %v4829, %v4831
    %v4833 = vrot.slane %v4780, %v4832
    %v4835 = vunpack.c.l.s4 1983009808
    %v4836 = vunpack.c.0.s8 %v4835
    %v4837 = vlaneseq
    %v4838 = vshrl.u32 %v4837, 7
    %v4839 = vsub.s32 %v4836, %v4838
    %v4840 = vrot.slane %v4826, %v4839
    %v4841 = vcombine.high %v4833, %v4833
    %v4842 = vcombine.high %v4840, %v4840
    %v4843 = vcombine.high %v4781, %v4781
    %v4845 = vunpack.c.l.s4 1983009808
    %v4846 = vunpack.c.0.s8 %v4845
    %v4847 = vlaneseq
    %v4848 = vshrl.u32 %v4847, 7
    %v4849 = vsub.s32 %v4846, %v4848
    %v4850 = vrot.slane %v4781, %v4849
    %v4852 = vunpack.c.l.s4 1983009808
    %v4853 = vunpack.c.0.s8 %v4852
    %v4854 = vlaneseq
    %v4855 = vshrl.u32 %v4854, 7
    %v4856 = vsub.s32 %v4853, %v4855
    %v4857 = vrot.slane %v4843, %v4856
    %v4858 = vcombine.high %v4850, %v4850
    %v4859 = vcombine.high %v4857, %v4857
    %v4860 = vcombine.high %v4782, %v4782
    %v4862 = vunpack.c.l.s4 1983009808
    %v4863 = vunpack.c.0.s8 %v4862
    %v4864 = vlaneseq
    %v4865 = vshrl.u32 %v4864, 7
    %v4866 = vsub.s32 %v4863, %v4865
    %v4867 = vrot.slane %v4782, %v4866
    %v4869 = vunpack.c.l.s4 1983009808
    %v4870 = vunpack.c.0.s8 %v4869
    %v4871 = vlaneseq
    %v4872 = vshrl.u32 %v4871, 7
    %v4873 = vsub.s32 %v4870, %v4872
    %v4874 = vrot.slane %v4860, %v4873
    %v4875 = vcombine.high %v4867, %v4867
    %v4876 = vcombine.high %v4874, %v4874
    %v4877 = vcombine.high %v4783, %v4783
    %v4879 = vunpack.c.l.s4 1983009808
    %v4880 = vunpack.c.0.s8 %v4879
    %v4881 = vlaneseq
    %v4882 = vshrl.u32 %v4881, 7
    %v4883 = vsub.s32 %v4880, %v4882
    %v4884 = vrot.slane %v4783, %v4883
    %v4886 = vunpack.c.l.s4 1983009808
    %v4887 = vunpack.c.0.s8 %v4886
    %v4888 = vlaneseq
    %v4889 = vshrl.u32 %v4888, 7
    %v4890 = vsub.s32 %v4887, %v4889
    %v4891 = vrot.slane %v4877, %v4890
    %v4892 = vcombine.high %v4884, %v4884
    %v4893 = vcombine.high %v4891, %v4891
    %v4895 = vunpack.c.l.s4 1983009808
    %v4896 = vunpack.c.0.s8 %v4895
    %v4897 = vlaneseq
    %v4898 = vshrl.u32 %v4897, 7
    %v4899 = vsub.s32 %v4896, %v4898
    %v4900 = vrot.slane %v4784, %v4899
    %v4926 = vpack.c.bf16 %v4799, %v4799
    %v4927 = vpack.c.bf16 %v4807, %v4807
    %v4928 = vpack.c.bf16 %v4806, %v4806
    %v4929 = vpack.c.bf16 %v4808, %v4808
    %v4930 = vpack.c.bf16 %v4816, %v4816
    %v4931 = vpack.c.bf16 %v4824, %v4824
    %v4932 = vpack.c.bf16 %v4823, %v4823
    %v4933 = vpack.c.bf16 %v4825, %v4825
    %v4934 = vpack.c.bf16 %v4833, %v4833
    %v4935 = vpack.c.bf16 %v4841, %v4841
    %v4936 = vpack.c.bf16 %v4840, %v4840
    %v4937 = vpack.c.bf16 %v4842, %v4842
    %v4938 = vpack.c.bf16 %v4850, %v4850
    %v4939 = vpack.c.bf16 %v4858, %v4858
    %v4940 = vpack.c.bf16 %v4857, %v4857
    %v4941 = vpack.c.bf16 %v4859, %v4859
    %v4942 = vpack.c.bf16 %v4867, %v4867
    %v4943 = vpack.c.bf16 %v4875, %v4875
    %v4944 = vpack.c.bf16 %v4874, %v4874
    %v4945 = vpack.c.bf16 %v4876, %v4876
    %v4946 = vpack.c.bf16 %v4884, %v4884
    %v4947 = vpack.c.bf16 %v4892, %v4892
    %v4948 = vpack.c.bf16 %v4891, %v4891
    %v4949 = vpack.c.bf16 %v4893, %v4893
    %v4950 = vpack.c.bf16 %v4900, %v4900
    %4951 = vmatprep.subr.bf16.mxu0 0
    %4952 = vmatpush1.bf16.msra.mxu0 %v2488
    %4953 = vmatprep.subr.bf16.mxu0 0
    %4954 = vmatpush1.bf16.msra.mxu0 %v2489
    %4955 = vmatprep.subr.bf16.mxu0 0
    %4956 = vmatpush1.bf16.msra.mxu0 %v2490
    %4957 = vmatprep.subr.bf16.mxu0 0
    %4958 = vmatpush1.bf16.msra.mxu0 %v2491
    %4959 = vmatprep.subr.bf16.mxu0 0
    %4960 = vmatpush1.bf16.msra.mxu0 %v2492
    %4961 = vmatprep.subr.bf16.mxu0 0
    %4962 = vmatpush1.bf16.msra.mxu0 %v2493
    %4963 = vmatprep.subr.bf16.mxu0 0
    %4964 = vmatpush1.bf16.msra.mxu0 %v2494
    %4965 = vmatprep.subr.bf16.mxu0 0
    %4966 = vmatpush1.bf16.msra.mxu0 %v2495
    %4967 = vmatprep.subr.bf16.mxu0 0
    %4968 = vmatpush1.bf16.msra.mxu0 %v2496
    %4969 = vmatprep.subr.bf16.mxu0 0
    %4970 = vmatpush1.bf16.msra.mxu0 %v2497
    %4971 = vmatprep.subr.bf16.mxu0 0
    %4972 = vmatpush1.bf16.msra.mxu0 %v2498
    %4973 = vmatprep.subr.bf16.mxu0 0
    %4974 = vmatpush1.bf16.msra.mxu0 %v2499
    %4975 = vmatprep.subr.bf16.mxu0 0
    %4976 = vmatpush1.bf16.msra.mxu0 %v2500
    %4977 = vmatprep.subr.bf16.mxu0 0
    %4978 = vmatpush1.bf16.msra.mxu0 %v2501
    %4979 = vmatprep.subr.bf16.mxu0 0
    %4980 = vmatpush1.bf16.msra.mxu0 %v2502
    %4981 = vmatprep.subr.bf16.mxu0 0
    %4982 = vmatpush1.bf16.msra.mxu0 %v2503
    %4983 = vmatprep.mubr.bf16.mxu0 %v4927
    %4984 = vmatmul.mubr.bf16.gmra.mrb[0].mxu0 %v4926
    %v4985 = vpop.f32.mrb[0].mxu0
    %v4986 = vadd.f32 0.0, %v4985
    %v4987 = vpop.f32.mrb[0].mxu0
    %v4988 = vpop.f32.mrb[0].mxu0
    %v4989 = vpop.f32.mrb[0].mxu0
    %4990 = vdwg.mxu0
    %4991 = vmatprep.subr.bf16.mxu0 0
    %4992 = vmatpush1.bf16.msra.mxu0 %v2504
    %4993 = vmatprep.subr.bf16.mxu0 0
    %4994 = vmatpush1.bf16.msra.mxu0 %v2505
    %4995 = vmatprep.subr.bf16.mxu0 0
    %4996 = vmatpush1.bf16.msra.mxu0 %v2506
    %4997 = vmatprep.subr.bf16.mxu0 0
    %4998 = vmatpush1.bf16.msra.mxu0 %v2507
    %4999 = vmatprep.subr.bf16.mxu0 0
    %5000 = vmatpush1.bf16.msra.mxu0 %v2508
    %5001 = vmatprep.subr.bf16.mxu0 0
    %5002 = vmatpush1.bf16.msra.mxu0 %v2509
    %5003 = vmatprep.subr.bf16.mxu0 0
    %5004 = vmatpush1.bf16.msra.mxu0 %v2510
    %5005 = vmatprep.subr.bf16.mxu0 0
    %5006 = vmatpush1.bf16.msra.mxu0 %v2511
    %5007 = vmatprep.subr.bf16.mxu0 0
    %5008 = vmatpush1.bf16.msra.mxu0 %v2512
    %5009 = vmatprep.subr.bf16.mxu0 0
    %5010 = vmatpush1.bf16.msra.mxu0 %v2513
    %5011 = vmatprep.subr.bf16.mxu0 0
    %5012 = vmatpush1.bf16.msra.mxu0 %v2514
    %5013 = vmatprep.subr.bf16.mxu0 0
    %5014 = vmatpush1.bf16.msra.mxu0 %v2515
    %5015 = vmatprep.subr.bf16.mxu0 0
    %5016 = vmatpush1.bf16.msra.mxu0 %v2516
    %5017 = vmatprep.subr.bf16.mxu0 0
    %5018 = vmatpush1.bf16.msra.mxu0 %v2517
    %5019 = vmatprep.subr.bf16.mxu0 0
    %5020 = vmatpush1.bf16.msra.mxu0 %v2518
    %5021 = vmatprep.subr.bf16.mxu0 0
    %5022 = vmatpush1.bf16.msra.mxu0 %v2519
    %5023 = vmatprep.mubr.bf16.mxu0 %v4929
    %5024 = vmatmul.mubr.bf16.gmra.mrb[0].mxu0 %v4928
    %v5025 = vpop.f32.mrb[0].mxu0
    %v5026 = vadd.f32 %v4986, %v5025
    %v5027 = vpop.f32.mrb[0].mxu0
    %v5028 = vpop.f32.mrb[0].mxu0
    %v5029 = vpop.f32.mrb[0].mxu0
    %5030 = vdwg.mxu0
    %5031 = vmatprep.subr.bf16.mxu0 0
    %5032 = vmatpush1.bf16.msra.mxu0 %v2520
    %5033 = vmatprep.subr.bf16.mxu0 0
    %5034 = vmatpush1.bf16.msra.mxu0 %v2521
    %5035 = vmatprep.subr.bf16.mxu0 0
    %5036 = vmatpush1.bf16.msra.mxu0 %v2522
    %5037 = vmatprep.subr.bf16.mxu0 0
    %5038 = vmatpush1.bf16.msra.mxu0 %v2523
    %5039 = vmatprep.subr.bf16.mxu0 0
    %5040 = vmatpush1.bf16.msra.mxu0 %v2524
    %5041 = vmatprep.subr.bf16.mxu0 0
    %5042 = vmatpush1.bf16.msra.mxu0 %v2525
    %5043 = vmatprep.subr.bf16.mxu0 0
    %5044 = vmatpush1.bf16.msra.mxu0 %v2526
    %5045 = vmatprep.subr.bf16.mxu0 0
    %5046 = vmatpush1.bf16.msra.mxu0 %v2527
    %5047 = vmatprep.subr.bf16.mxu0 0
    %5048 = vmatpush1.bf16.msra.mxu0 %v2528
    %5049 = vmatprep.subr.bf16.mxu0 0
    %5050 = vmatpush1.bf16.msra.mxu0 %v2529
    %5051 = vmatprep.subr.bf16.mxu0 0
    %5052 = vmatpush1.bf16.msra.mxu0 %v2530
    %5053 = vmatprep.subr.bf16.mxu0 0
    %5054 = vmatpush1.bf16.msra.mxu0 %v2531
    %5055 = vmatprep.subr.bf16.mxu0 0
    %5056 = vmatpush1.bf16.msra.mxu0 %v2532
    %5057 = vmatprep.subr.bf16.mxu0 0
    %5058 = vmatpush1.bf16.msra.mxu0 %v2533
    %5059 = vmatprep.subr.bf16.mxu0 0
    %5060 = vmatpush1.bf16.msra.mxu0 %v2534
    %5061 = vmatprep.subr.bf16.mxu0 0
    %5062 = vmatpush1.bf16.msra.mxu0 %v2535
    %5063 = vmatprep.mubr.bf16.mxu0 %v4931
    %5064 = vmatmul.mubr.bf16.gmra.mrb[0].mxu0 %v4930
    %v5065 = vpop.f32.mrb[0].mxu0
    %v5066 = vadd.f32 %v5026, %v5065
    %v5067 = vpop.f32.mrb[0].mxu0
    %v5068 = vpop.f32.mrb[0].mxu0
    %v5069 = vpop.f32.mrb[0].mxu0
    %5070 = vdwg.mxu0
    %5071 = vmatprep.subr.bf16.mxu0 0
    %5072 = vmatpush1.bf16.msra.mxu0 %v2536
    %5073 = vmatprep.subr.bf16.mxu0 0
    %5074 = vmatpush1.bf16.msra.mxu0 %v2537
    %5075 = vmatprep.subr.bf16.mxu0 0
    %5076 = vmatpush1.bf16.msra.mxu0 %v2538
    %5077 = vmatprep.subr.bf16.mxu0 0
    %5078 = vmatpush1.bf16.msra.mxu0 %v2539
    %5079 = vmatprep.subr.bf16.mxu0 0
    %5080 = vmatpush1.bf16.msra.mxu0 %v2540
    %5081 = vmatprep.subr.bf16.mxu0 0
    %5082 = vmatpush1.bf16.msra.mxu0 %v2541
    %5083 = vmatprep.subr.bf16.mxu0 0
    %5084 = vmatpush1.bf16.msra.mxu0 %v2542
    %5085 = vmatprep.subr.bf16.mxu0 0
    %5086 = vmatpush1.bf16.msra.mxu0 %v2543
    %5087 = vmatprep.subr.bf16.mxu0 0
    %5088 = vmatpush1.bf16.msra.mxu0 %v2544
    %5089 = vmatprep.subr.bf16.mxu0 0
    %5090 = vmatpush1.bf16.msra.mxu0 %v2545
    %5091 = vmatprep.subr.bf16.mxu0 0
    %5092 = vmatpush1.bf16.msra.mxu0 %v2546
    %5093 = vmatprep.subr.bf16.mxu0 0
    %5094 = vmatpush1.bf16.msra.mxu0 %v2547
    %5095 = vmatprep.subr.bf16.mxu0 0
    %5096 = vmatpush1.bf16.msra.mxu0 %v2548
    %5097 = vmatprep.subr.bf16.mxu0 0
    %5098 = vmatpush1.bf16.msra.mxu0 %v2549
    %5099 = vmatprep.subr.bf16.mxu0 0
    %5100 = vmatpush1.bf16.msra.mxu0 %v2550
    %5101 = vmatprep.subr.bf16.mxu0 0
    %5102 = vmatpush1.bf16.msra.mxu0 %v2551
    %5103 = vmatprep.mubr.bf16.mxu0 %v4933
    %5104 = vmatmul.mubr.bf16.gmra.mrb[0].mxu0 %v4932
    %v5105 = vpop.f32.mrb[0].mxu0
    %v5106 = vadd.f32 %v5066, %v5105
    %v5107 = vpop.f32.mrb[0].mxu0
    %v5108 = vpop.f32.mrb[0].mxu0
    %v5109 = vpop.f32.mrb[0].mxu0
    %5110 = vdwg.mxu0
    %5111 = vmatprep.subr.bf16.mxu0 0
    %5112 = vmatpush1.bf16.msra.mxu0 %v2552
    %5113 = vmatprep.subr.bf16.mxu0 0
    %5114 = vmatpush1.bf16.msra.mxu0 %v2553
    %5115 = vmatprep.subr.bf16.mxu0 0
    %5116 = vmatpush1.bf16.msra.mxu0 %v2554
    %5117 = vmatprep.subr.bf16.mxu0 0
    %5118 = vmatpush1.bf16.msra.mxu0 %v2555
    %5119 = vmatprep.subr.bf16.mxu0 0
    %5120 = vmatpush1.bf16.msra.mxu0 %v2556
    %5121 = vmatprep.subr.bf16.mxu0 0
    %5122 = vmatpush1.bf16.msra.mxu0 %v2557
    %5123 = vmatprep.subr.bf16.mxu0 0
    %5124 = vmatpush1.bf16.msra.mxu0 %v2558
    %5125 = vmatprep.subr.bf16.mxu0 0
    %5126 = vmatpush1.bf16.msra.mxu0 %v2559
    %5127 = vmatprep.subr.bf16.mxu0 0
    %5128 = vmatpush1.bf16.msra.mxu0 %v2560
    %5129 = vmatprep.subr.bf16.mxu0 0
    %5130 = vmatpush1.bf16.msra.mxu0 %v2561
    %5131 = vmatprep.subr.bf16.mxu0 0
    %5132 = vmatpush1.bf16.msra.mxu0 %v2562
    %5133 = vmatprep.subr.bf16.mxu0 0
    %5134 = vmatpush1.bf16.msra.mxu0 %v2563
    %5135 = vmatprep.subr.bf16.mxu0 0
    %5136 = vmatpush1.bf16.msra.mxu0 %v2564
    %5137 = vmatprep.subr.bf16.mxu0 0
    %5138 = vmatpush1.bf16.msra.mxu0 %v2565
    %5139 = vmatprep.subr.bf16.mxu0 0
    %5140 = vmatpush1.bf16.msra.mxu0 %v2566
    %5141 = vmatprep.subr.bf16.mxu0 0
    %5142 = vmatpush1.bf16.msra.mxu0 %v2567
    %5143 = vmatprep.mubr.bf16.mxu0 %v4935
    %5144 = vmatmul.mubr.bf16.gmra.mrb[0].mxu0 %v4934
    %v5145 = vpop.f32.mrb[0].mxu0
    %v5146 = vadd.f32 %v5106, %v5145
    %v5147 = vpop.f32.mrb[0].mxu0
    %v5148 = vpop.f32.mrb[0].mxu0
    %v5149 = vpop.f32.mrb[0].mxu0
    %5150 = vdwg.mxu0
    %5151 = vmatprep.subr.bf16.mxu0 0
    %5152 = vmatpush1.bf16.msra.mxu0 %v2568
    %5153 = vmatprep.subr.bf16.mxu0 0
    %5154 = vmatpush1.bf16.msra.mxu0 %v2569
    %5155 = vmatprep.subr.bf16.mxu0 0
    %5156 = vmatpush1.bf16.msra.mxu0 %v2570
    %5157 = vmatprep.subr.bf16.mxu0 0
    %5158 = vmatpush1.bf16.msra.mxu0 %v2571
    %5159 = vmatprep.subr.bf16.mxu0 0
    %5160 = vmatpush1.bf16.msra.mxu0 %v2572
    %5161 = vmatprep.subr.bf16.mxu0 0
    %5162 = vmatpush1.bf16.msra.mxu0 %v2573
    %5163 = vmatprep.subr.bf16.mxu0 0
    %5164 = vmatpush1.bf16.msra.mxu0 %v2574
    %5165 = vmatprep.subr.bf16.mxu0 0
    %5166 = vmatpush1.bf16.msra.mxu0 %v2575
    %5167 = vmatprep.subr.bf16.mxu0 0
    %5168 = vmatpush1.bf16.msra.mxu0 %v2576
    %5169 = vmatprep.subr.bf16.mxu0 0
    %5170 = vmatpush1.bf16.msra.mxu0 %v2577
    %5171 = vmatprep.subr.bf16.mxu0 0
    %5172 = vmatpush1.bf16.msra.mxu0 %v2578
    %5173 = vmatprep.subr.bf16.mxu0 0
    %5174 = vmatpush1.bf16.msra.mxu0 %v2579
    %5175 = vmatprep.subr.bf16.mxu0 0
    %5176 = vmatpush1.bf16.msra.mxu0 %v2580
    %5177 = vmatprep.subr.bf16.mxu0 0
    %5178 = vmatpush1.bf16.msra.mxu0 %v2581
    %5179 = vmatprep.subr.bf16.mxu0 0
    %5180 = vmatpush1.bf16.msra.mxu0 %v2582
    %5181 = vmatprep.subr.bf16.mxu0 0
    %5182 = vmatpush1.bf16.msra.mxu0 %v2583
    %5183 = vmatprep.mubr.bf16.mxu0 %v4937
    %5184 = vmatmul.mubr.bf16.gmra.mrb[0].mxu0 %v4936
    %v5185 = vpop.f32.mrb[0].mxu0
    %v5186 = vadd.f32 %v5146, %v5185
    %v5187 = vpop.f32.mrb[0].mxu0
    %v5188 = vpop.f32.mrb[0].mxu0
    %v5189 = vpop.f32.mrb[0].mxu0
    %5190 = vdwg.mxu0
    %5191 = vmatprep.subr.bf16.mxu0 0
    %5192 = vmatpush1.bf16.msra.mxu0 %v2584
    %5193 = vmatprep.subr.bf16.mxu0 0
    %5194 = vmatpush1.bf16.msra.mxu0 %v2585
    %5195 = vmatprep.subr.bf16.mxu0 0
    %5196 = vmatpush1.bf16.msra.mxu0 %v2586
    %5197 = vmatprep.subr.bf16.mxu0 0
    %5198 = vmatpush1.bf16.msra.mxu0 %v2587
    %5199 = vmatprep.subr.bf16.mxu0 0
    %5200 = vmatpush1.bf16.msra.mxu0 %v2588
    %5201 = vmatprep.subr.bf16.mxu0 0
    %5202 = vmatpush1.bf16.msra.mxu0 %v2589
    %5203 = vmatprep.subr.bf16.mxu0 0
    %5204 = vmatpush1.bf16.msra.mxu0 %v2590
    %5205 = vmatprep.subr.bf16.mxu0 0
    %5206 = vmatpush1.bf16.msra.mxu0 %v2591
    %5207 = vmatprep.subr.bf16.mxu0 0
    %5208 = vmatpush1.bf16.msra.mxu0 %v2592
    %5209 = vmatprep.subr.bf16.mxu0 0
    %5210 = vmatpush1.bf16.msra.mxu0 %v2593
    %5211 = vmatprep.subr.bf16.mxu0 0
    %5212 = vmatpush1.bf16.msra.mxu0 %v2594
    %5213 = vmatprep.subr.bf16.mxu0 0
    %5214 = vmatpush1.bf16.msra.mxu0 %v2595
    %5215 = vmatprep.subr.bf16.mxu0 0
    %5216 = vmatpush1.bf16.msra.mxu0 %v2596
    %5217 = vmatprep.subr.bf16.mxu0 0
    %5218 = vmatpush1.bf16.msra.mxu0 %v2597
    %5219 = vmatprep.subr.bf16.mxu0 0
    %5220 = vmatpush1.bf16.msra.mxu0 %v2598
    %5221 = vmatprep.subr.bf16.mxu0 0
    %5222 = vmatpush1.bf16.msra.mxu0 %v2599
    %5223 = vmatprep.mubr.bf16.mxu0 %v4939
    %5224 = vmatmul.mubr.bf16.gmra.mrb[0].mxu0 %v4938
    %v5225 = vpop.f32.mrb[0].mxu0
    %v5226 = vadd.f32 %v5186, %v5225
    %v5227 = vpop.f32.mrb[0].mxu0
    %v5228 = vpop.f32.mrb[0].mxu0
    %v5229 = vpop.f32.mrb[0].mxu0
    %5230 = vdwg.mxu0
    %5231 = vmatprep.subr.bf16.mxu0 0
    %5232 = vmatpush1.bf16.msra.mxu0 %v2600
    %5233 = vmatprep.subr.bf16.mxu0 0
    %5234 = vmatpush1.bf16.msra.mxu0 %v2601
    %5235 = vmatprep.subr.bf16.mxu0 0
    %5236 = vmatpush1.bf16.msra.mxu0 %v2602
    %5237 = vmatprep.subr.bf16.mxu0 0
    %5238 = vmatpush1.bf16.msra.mxu0 %v2603
    %5239 = vmatprep.subr.bf16.mxu0 0
    %5240 = vmatpush1.bf16.msra.mxu0 %v2604
    %5241 = vmatprep.subr.bf16.mxu0 0
    %5242 = vmatpush1.bf16.msra.mxu0 %v2605
    %5243 = vmatprep.subr.bf16.mxu0 0
    %5244 = vmatpush1.bf16.msra.mxu0 %v2606
    %5245 = vmatprep.subr.bf16.mxu0 0
    %5246 = vmatpush1.bf16.msra.mxu0 %v2607
    %5247 = vmatprep.subr.bf16.mxu0 0
    %5248 = vmatpush1.bf16.msra.mxu0 %v2608
    %5249 = vmatprep.subr.bf16.mxu0 0
    %5250 = vmatpush1.bf16.msra.mxu0 %v2609
    %5251 = vmatprep.subr.bf16.mxu0 0
    %5252 = vmatpush1.bf16.msra.mxu0 %v2610
    %5253 = vmatprep.subr.bf16.mxu0 0
    %5254 = vmatpush1.bf16.msra.mxu0 %v2611
    %5255 = vmatprep.subr.bf16.mxu0 0
    %5256 = vmatpush1.bf16.msra.mxu0 %v2612
    %5257 = vmatprep.subr.bf16.mxu0 0
    %5258 = vmatpush1.bf16.msra.mxu0 %v2613
    %5259 = vmatprep.subr.bf16.mxu0 0
    %5260 = vmatpush1.bf16.msra.mxu0 %v2614
    %5261 = vmatprep.subr.bf16.mxu0 0
    %5262 = vmatpush1.bf16.msra.mxu0 %v2615
    %5263 = vmatprep.mubr.bf16.mxu0 %v4941
    %5264 = vmatmul.mubr.bf16.gmra.mrb[0].mxu0 %v4940
    %v5265 = vpop.f32.mrb[0].mxu0
    %v5266 = vadd.f32 %v5226, %v5265
    %v5267 = vpop.f32.mrb[0].mxu0
    %v5268 = vpop.f32.mrb[0].mxu0
    %v5269 = vpop.f32.mrb[0].mxu0
    %5270 = vdwg.mxu0
    %5271 = vmatprep.subr.bf16.mxu0 0
    %5272 = vmatpush1.bf16.msra.mxu0 %v2616
    %5273 = vmatprep.subr.bf16.mxu0 0
    %5274 = vmatpush1.bf16.msra.mxu0 %v2617
    %5275 = vmatprep.subr.bf16.mxu0 0
    %5276 = vmatpush1.bf16.msra.mxu0 %v2618
    %5277 = vmatprep.subr.bf16.mxu0 0
    %5278 = vmatpush1.bf16.msra.mxu0 %v2619
    %5279 = vmatprep.subr.bf16.mxu0 0
    %5280 = vmatpush1.bf16.msra.mxu0 %v2620
    %5281 = vmatprep.subr.bf16.mxu0 0
    %5282 = vmatpush1.bf16.msra.mxu0 %v2621
    %5283 = vmatprep.subr.bf16.mxu0 0
    %5284 = vmatpush1.bf16.msra.mxu0 %v2622
    %5285 = vmatprep.subr.bf16.mxu0 0
    %5286 = vmatpush1.bf16.msra.mxu0 %v2623
    %5287 = vmatprep.subr.bf16.mxu0 0
    %5288 = vmatpush1.bf16.msra.mxu0 %v2624
    %5289 = vmatprep.subr.bf16.mxu0 0
    %5290 = vmatpush1.bf16.msra.mxu0 %v2625
    %5291 = vmatprep.subr.bf16.mxu0 0
    %5292 = vmatpush1.bf16.msra.mxu0 %v2626
    %5293 = vmatprep.subr.bf16.mxu0 0
    %5294 = vmatpush1.bf16.msra.mxu0 %v2627
    %5295 = vmatprep.subr.bf16.mxu0 0
    %5296 = vmatpush1.bf16.msra.mxu0 %v2628
    %5297 = vmatprep.subr.bf16.mxu0 0
    %5298 = vmatpush1.bf16.msra.mxu0 %v2629
    %5299 = vmatprep.subr.bf16.mxu0 0
    %5300 = vmatpush1.bf16.msra.mxu0 %v2630
    %5301 = vmatprep.subr.bf16.mxu0 0
    %5302 = vmatpush1.bf16.msra.mxu0 %v2631
    %5303 = vmatprep.mubr.bf16.mxu0 %v4943
    %5304 = vmatmul.mubr.bf16.gmra.mrb[0].mxu0 %v4942
    %v5305 = vpop.f32.mrb[0].mxu0
    %v5306 = vadd.f32 %v5266, %v5305
    %v5307 = vpop.f32.mrb[0].mxu0
    %v5308 = vpop.f32.mrb[0].mxu0
    %v5309 = vpop.f32.mrb[0].mxu0
    %5310 = vdwg.mxu0
    %5311 = vmatprep.subr.bf16.mxu0 0
    %5312 = vmatpush1.bf16.msra.mxu0 %v2632
    %5313 = vmatprep.subr.bf16.mxu0 0
    %5314 = vmatpush1.bf16.msra.mxu0 %v2633
    %5315 = vmatprep.subr.bf16.mxu0 0
    %5316 = vmatpush1.bf16.msra.mxu0 %v2634
    %5317 = vmatprep.subr.bf16.mxu0 0
    %5318 = vmatpush1.bf16.msra.mxu0 %v2635
    %5319 = vmatprep.subr.bf16.mxu0 0
    %5320 = vmatpush1.bf16.msra.mxu0 %v2636
    %5321 = vmatprep.subr.bf16.mxu0 0
    %5322 = vmatpush1.bf16.msra.mxu0 %v2637
    %5323 = vmatprep.subr.bf16.mxu0 0
    %5324 = vmatpush1.bf16.msra.mxu0 %v2638
    %5325 = vmatprep.subr.bf16.mxu0 0
    %5326 = vmatpush1.bf16.msra.mxu0 %v2639
    %5327 = vmatprep.subr.bf16.mxu0 0
    %5328 = vmatpush1.bf16.msra.mxu0 %v2640
    %5329 = vmatprep.subr.bf16.mxu0 0
    %5330 = vmatpush1.bf16.msra.mxu0 %v2641
    %5331 = vmatprep.subr.bf16.mxu0 0
    %5332 = vmatpush1.bf16.msra.mxu0 %v2642
    %5333 = vmatprep.subr.bf16.mxu0 0
    %5334 = vmatpush1.bf16.msra.mxu0 %v2643
    %5335 = vmatprep.subr.bf16.mxu0 0
    %5336 = vmatpush1.bf16.msra.mxu0 %v2644
    %5337 = vmatprep.subr.bf16.mxu0 0
    %5338 = vmatpush1.bf16.msra.mxu0 %v2645
    %5339 = vmatprep.subr.bf16.mxu0 0
    %5340 = vmatpush1.bf16.msra.mxu0 %v2646
    %5341 = vmatprep.subr.bf16.mxu0 0
    %5342 = vmatpush1.bf16.msra.mxu0 %v2647
    %5343 = vmatprep.mubr.bf16.mxu0 %v4945
    %5344 = vmatmul.mubr.bf16.gmra.mrb[0].mxu0 %v4944
    %v5345 = vpop.f32.mrb[0].mxu0
    %v5346 = vadd.f32 %v5306, %v5345
    %v5347 = vpop.f32.mrb[0].mxu0
    %v5348 = vpop.f32.mrb[0].mxu0
    %v5349 = vpop.f32.mrb[0].mxu0
    %5350 = vdwg.mxu0
    %5351 = vmatprep.subr.bf16.mxu0 0
    %5352 = vmatpush1.bf16.msra.mxu0 %v2648
    %5353 = vmatprep.subr.bf16.mxu0 0
    %5354 = vmatpush1.bf16.msra.mxu0 %v2649
    %5355 = vmatprep.subr.bf16.mxu0 0
    %5356 = vmatpush1.bf16.msra.mxu0 %v2650
    %5357 = vmatprep.subr.bf16.mxu0 0
    %5358 = vmatpush1.bf16.msra.mxu0 %v2651
    %5359 = vmatprep.subr.bf16.mxu0 0
    %5360 = vmatpush1.bf16.msra.mxu0 %v2652
    %5361 = vmatprep.subr.bf16.mxu0 0
    %5362 = vmatpush1.bf16.msra.mxu0 %v2653
    %5363 = vmatprep.subr.bf16.mxu0 0
    %5364 = vmatpush1.bf16.msra.mxu0 %v2654
    %5365 = vmatprep.subr.bf16.mxu0 0
    %5366 = vmatpush1.bf16.msra.mxu0 %v2655
    %5367 = vmatprep.subr.bf16.mxu0 0
    %5368 = vmatpush1.bf16.msra.mxu0 %v2656
    %5369 = vmatprep.subr.bf16.mxu0 0
    %5370 = vmatpush1.bf16.msra.mxu0 %v2657
    %5371 = vmatprep.subr.bf16.mxu0 0
    %5372 = vmatpush1.bf16.msra.mxu0 %v2658
    %5373 = vmatprep.subr.bf16.mxu0 0
    %5374 = vmatpush1.bf16.msra.mxu0 %v2659
    %5375 = vmatprep.subr.bf16.mxu0 0
    %5376 = vmatpush1.bf16.msra.mxu0 %v2660
    %5377 = vmatprep.subr.bf16.mxu0 0
    %5378 = vmatpush1.bf16.msra.mxu0 %v2661
    %5379 = vmatprep.subr.bf16.mxu0 0
    %5380 = vmatpush1.bf16.msra.mxu0 %v2662
    %5381 = vmatprep.subr.bf16.mxu0 0
    %5382 = vmatpush1.bf16.msra.mxu0 %v2663
    %5383 = vmatprep.mubr.bf16.mxu0 %v4947
    %5384 = vmatmul.mubr.bf16.gmra.mrb[0].mxu0 %v4946
    %v5385 = vpop.f32.mrb[0].mxu0
    %v5386 = vadd.f32 %v5346, %v5385
    %v5387 = vpop.f32.mrb[0].mxu0
    %v5388 = vpop.f32.mrb[0].mxu0
    %v5389 = vpop.f32.mrb[0].mxu0
    %5390 = vdwg.mxu0
    %5391 = vmatprep.subr.bf16.mxu0 0
    %5392 = vmatpush1.bf16.msra.mxu0 %v2664
    %5393 = vmatprep.subr.bf16.mxu0 0
    %5394 = vmatpush1.bf16.msra.mxu0 %v2665
    %5395 = vmatprep.subr.bf16.mxu0 0
    %5396 = vmatpush1.bf16.msra.mxu0 %v2666
    %5397 = vmatprep.subr.bf16.mxu0 0
    %5398 = vmatpush1.bf16.msra.mxu0 %v2667
    %5399 = vmatprep.subr.bf16.mxu0 0
    %5400 = vmatpush1.bf16.msra.mxu0 %v2668
    %5401 = vmatprep.subr.bf16.mxu0 0
    %5402 = vmatpush1.bf16.msra.mxu0 %v2669
    %5403 = vmatprep.subr.bf16.mxu0 0
    %5404 = vmatpush1.bf16.msra.mxu0 %v2670
    %5405 = vmatprep.subr.bf16.mxu0 0
    %5406 = vmatpush1.bf16.msra.mxu0 %v2671
    %5407 = vmatprep.subr.bf16.mxu0 0
    %5408 = vmatpush1.bf16.msra.mxu0 %v2672
    %5409 = vmatprep.subr.bf16.mxu0 0
    %5410 = vmatpush1.bf16.msra.mxu0 %v2673
    %5411 = vmatprep.subr.bf16.mxu0 0
    %5412 = vmatpush1.bf16.msra.mxu0 %v2674
    %5413 = vmatprep.subr.bf16.mxu0 0
    %5414 = vmatpush1.bf16.msra.mxu0 %v2675
    %5415 = vmatprep.subr.bf16.mxu0 0
    %5416 = vmatpush1.bf16.msra.mxu0 %v2676
    %5417 = vmatprep.subr.bf16.mxu0 0
    %5418 = vmatpush1.bf16.msra.mxu0 %v2677
    %5419 = vmatprep.subr.bf16.mxu0 0
    %5420 = vmatpush1.bf16.msra.mxu0 %v2678
    %5421 = vmatprep.subr.bf16.mxu0 0
    %5422 = vmatpush1.bf16.msra.mxu0 %v2679
    %5423 = vmatprep.mubr.bf16.mxu0 %v4949
    %5424 = vmatmul.mubr.bf16.gmra.mrb[0].mxu0 %v4948
    %v5425 = vpop.f32.mrb[0].mxu0
    %v5426 = vadd.f32 %v5386, %v5425
    %v5427 = vpop.f32.mrb[0].mxu0
    %v5428 = vpop.f32.mrb[0].mxu0
    %v5429 = vpop.f32.mrb[0].mxu0
    %5430 = vdwg.mxu0
    %5431 = vmatprep.subr.bf16.mxu0 0
    %5432 = vmatpush1.bf16.msra.mxu0 %v2680
    %5433 = vmatprep.subr.bf16.mxu0 0
    %5434 = vmatpush1.bf16.msra.mxu0 %v2681
    %5435 = vmatprep.subr.bf16.mxu0 0
    %5436 = vmatpush1.bf16.msra.mxu0 %v2682
    %5437 = vmatprep.subr.bf16.mxu0 0
    %5438 = vmatpush1.bf16.msra.mxu0 %v2683
    %5439 = vmatprep.subr.bf16.mxu0 0
    %5440 = vmatpush1.bf16.msra.mxu0 %v2684
    %5441 = vmatprep.subr.bf16.mxu0 0
    %5442 = vmatpush1.bf16.msra.mxu0 %v2685
    %5443 = vmatprep.subr.bf16.mxu0 0
    %5444 = vmatpush1.bf16.msra.mxu0 %v2686
    %5445 = vmatprep.subr.bf16.mxu0 0
    %5446 = vmatpush1.bf16.msra.mxu0 %v2687
    %5447 = vmatprep.subr.bf16.mxu0 0
    %5448 = vmatpush1.bf16.msra.mxu0 0
    %5449 = vmatprep.subr.bf16.mxu0 0
    %5450 = vmatpush1.bf16.msra.mxu0 0
    %5451 = vmatprep.subr.bf16.mxu0 0
    %5452 = vmatpush1.bf16.msra.mxu0 0
    %5453 = vmatprep.subr.bf16.mxu0 0
    %5454 = vmatpush1.bf16.msra.mxu0 0
    %5455 = vmatprep.subr.bf16.mxu0 0
    %5456 = vmatpush1.bf16.msra.mxu0 0
    %5457 = vmatprep.subr.bf16.mxu0 0
    %5458 = vmatpush1.bf16.msra.mxu0 0
    %5459 = vmatprep.subr.bf16.mxu0 0
    %5460 = vmatpush1.bf16.msra.mxu0 0
    %5461 = vmatprep.subr.bf16.mxu0 0
    %5462 = vmatpush1.bf16.msra.mxu0 0
    %5463 = vmatprep.mubr.bf16.mxu0 0
    %5464 = vmatmul.mubr.bf16.gmra.mrb[0].mxu0 %v4950
    %v5465 = vpop.f32.mrb[0].mxu0
    %v5466 = vadd.f32 %v5426, %v5465
    %v5467 = vpop.f32.mrb[0].mxu0
    %v5468 = vpop.f32.mrb[0].mxu0
    %v5469 = vpop.f32.mrb[0].mxu0
    %5470 = vdwg.mxu0
    %5472 = vrot.lane.b32.xlu0 %v5466, 32
    %v5473 = vpop.permute.xlu0 %5472
    %v5475 = vadd.f32 %v4777, %v5473
    %v5476 = vld [vmem:[%s9] sm:$0x1]
    %v5478 = vlaneseq
    %v5479 = vshrl.u32 %v5478, 7
    %v5480 = vsub.s32 0, %v5479
    %v5481 = vrot.slane %v5476, %v5480
    %v5483 = vadd.f32 %v5475, %v5481
    %vm5484 = vcmask 123904
    %5485 = vst.msk [vmem:[#allocation14] sm:$0x3] %vm5484, %v5483
    %5487 = vrot.lane.b32.xlu0 %v5483, 112
    %v5488 = vpop.permute.xlu0 %5487
    %5490 = vst.msk [vmem:[#allocation15] sm:$0x3] %vm5484, %v5488
    // Predicated region
    $region50: #{encoder_forward.1} parent=1 // pred_check
      _
    $region51: #{encoder_forward.1} parent=1 // pred_check_branch
      %5492 = sbr.rel (0) target = $region53
    $region52: #{encoder_forward.1} parent=1 // pred_region
      %s5494 = ssub.s32 32, 32
      %5495 = vsyncadd [#allocation11], %s5494
      %s5497 = sshll.u32 [#allocation14], 4
      %s5498 = int_to_ptr.vmem [resolvable:$true] %s5497
      %5500 = dma.vmem_to_hbm [thread:$0]  %s5498, 32, %s10, [#allocation11]
    $region53: #{encoder_forward.1} parent=1 // pred_fallthru
      _
    // Predicated region
    $region54: #{encoder_forward.1} parent=1 // pred_check
      _
    $region55: #{encoder_forward.1} parent=1 // pred_check_branch
      %5502 = sbr.rel (0) target = $region57
    $region56: #{encoder_forward.1} parent=1 // pred_region
      %s5504 = ssub.s32 32, 32
      %5505 = vsyncadd [#allocation16], %s5504
      %s5507 = sshll.u32 [#allocation15], 4
      %s5508 = int_to_ptr.vmem [resolvable:$true] %s5507
      %5510 = dma.vmem_to_hbm [thread:$0]  %s5508, 32, %s11, [#allocation16]
    $region57: #{encoder_forward.1} parent=1 // pred_fallthru
      _
    // Predicated region
    $region58: #{encoder_forward.1} parent=1 // pred_check
      _
    $region59: #{encoder_forward.1} parent=1 // pred_check_branch
      %5512 = sbr.rel (0) target = $region61
    $region60: #{encoder_forward.1} parent=1 // pred_region
      %5513 = dma.done [#allocation11], 32
    $region61: #{encoder_forward.1} parent=1 // pred_fallthru
      _
    // Predicated region
    $region62: #{encoder_forward.1} parent=1 // pred_check
      _
    $region63: #{encoder_forward.1} parent=1 // pred_check_branch
      %5515 = sbr.rel (0) target = $region65
    $region64: #{encoder_forward.1} parent=1 // pred_region
      %5516 = dma.done [#allocation16], 32
    $region65: #{encoder_forward.1} parent=1 // pred_fallthru
      _
    %5517 = vsyncpa [#allocation10], 1
    %5518 = vsyncpa [#allocation13], 1
    %5519 = vsyncpa [#allocation11], 1
    %5520 = vsyncpa [#allocation16], 1
  %5521 = vsyncmov [#allocation8]
  %s5522 = vpop.sfrf %5521
  %p5523 = scmp.eq.s32.totalorder %s5522, 0
  %p5524 = pneg %p5523
  %5526 = shalt.err (%p5524)

</llo_original>
